<compile_context>
chip_gen: v6e
topology: v6e:2x2x1
jax: 0.10.0
libtpu: 0.0.40
codegen_flags: <defaults>
</compile_context>

<pallas_src>
import functools

import jax
import jax.numpy as jnp
from jax.experimental import pallas as pl
from jax.experimental.pallas import tpu as pltpu

EPS = 1e-4  # matches the module: nn.BatchNorm2d(..., eps=0.0001)


def _round_up(x, m):
    return (x + m - 1) // m * m


# ----------------------------- Pallas kernel -------------------------------- #
def _fused_mdconv_kernel(x_ref, mask_ref, scale_ref, shift_ref, w_ref, b_ref, o_ref,
                         *, seg_pad, kk, wp, marg, l_out, l_tot, o_pad, neg_slope):
    """One batch image per grid step; one MultiDilatedConvBlock layer.

    x_ref:     (1, C_in_pad, L_tot) f32  channel-stacked, spatially padded, flattened
                                         activations (row stride `wp`; the padded plane
                                         starts at lane `marg`; both multiples of 128)
    mask_ref:  (1, L_tot)          f32   1.0 on true (unpadded) image pixels, else 0.0
    scale_ref: (C_in_pad, 1)       f32   folded BN scale  (gamma / sqrt(var + eps))
    shift_ref: (C_in_pad, 1)       f32   folded BN shift  (beta - mean * scale)
    w_ref:     (O_pad, Kt)         bf16  conv weights, cols ordered [segment][kh][kw][cin]
    b_ref:     (O_pad, 1)          f32   summed per-group conv biases
    o_ref:     (1, O_pad, L_tot)   f32   this layer's output segment (aliased back into
                                         the stacked buffer by the output BlockSpec)
    """
    x = x_ref[0]                                        # (C_in_pad, L_tot)
    z = x * scale_ref[...] + shift_ref[...]             # BatchNorm2d (eval, folded)
    z = jnp.maximum(z, neg_slope * z)                   # ReLU / LeakyReLU(0.3) / id
    # Zero everything outside the true image: padded taps contribute exactly 0 and the
    # previous layer's garbage halo (shared padded layout) is erased.
    z = jnp.where(mask_ref[...] > 0.5, z, 0.0)          # (C_in_pad, L_tot) f32

    half = kk // 2
    taps = []
    ch0 = 0
    for s, cgp in enumerate(seg_pad):
        d = 2 ** s                                      # dilation of this segment
        z_s = z[ch0:ch0 + cgp, :]
        # Pre-shift the +-j*d column offsets once per segment so every tap below is a
        # lane-aligned static slice (row shifts are aligned because wp, marg % 128 == 0).
        # np.roll semantics; pltpu.roll would give a native XLU rotate instead of the
        # two-slice concat this lowers to -- negligible at these sizes.
        shifted = {}
        for j in range(-half, half + 1):
            c = j * d
            src = z_s if c == 0 else jnp.roll(z_s, -c, axis=1)
            shifted[j] = src.astype(jnp.bfloat16)
        for kh in range(kk):
            base = marg + (kh - half) * d * wp          # lane-aligned flat row shift
            for kw in range(kk):
                taps.append(shifted[kw - half][:, base:base + l_out])
        ch0 += cgp

    # Single large-contraction MXU matmul: bf16 operands, f32 accumulation.
    rhs = jnp.concatenate(taps, axis=0)                 # (Kt, l_out) bf16
    acc = jnp.dot(w_ref[...], rhs, preferred_element_type=jnp.float32)
    res = (acc + b_ref[...]).astype(o_ref.dtype)        # (o_pad, l_out)

    # Write the full aliased output segment; the margins stay zero (aligned stores).
    zeros_m = jnp.zeros((o_pad, marg), o_ref.dtype)
    o_ref[0, :, 0:marg] = zeros_m
    o_ref[0, :, marg:marg + l_out] = res
    o_ref[0, :, marg + l_out:l_tot] = zeros_m


# --------------------- one MultiDilatedConvBlock layer ----------------------- #
def _multi_dilated_layer(stacked, mask, lp, groups, out_channels, idx, kernel_size,
                         seg_pad_all, seg_off_all, *, wp, marg, l_img, l_tot,
                         norm, nonlinear, eps):
    """Consumes channels [0, C_in_pad) of `stacked`, writes its output segment in place."""
    N, C_tot_pad, _ = stacked.shape
    n_seg = idx + 1                                  # input segment + previous outputs
    C_in_pad = seg_off_all[n_seg]
    O = out_channels
    O_pad = seg_pad_all[n_seg]
    out_off = seg_off_all[n_seg]
    assert out_off % O_pad == 0, \
        "layer output channel offset must be a multiple of its padded width"
    out_blk = out_off // O_pad
    K = kernel_size
    C_real = sum(groups)

    # Folded BatchNorm (eval mode), scattered into the 8-aligned channel layout.
    if norm:
        inv_std = 1.0 / jnp.sqrt(lp["bn_var"].astype(jnp.float32) + eps)
        ch_scale = lp["bn_gamma"].astype(jnp.float32) * inv_std
        ch_shift = (lp["bn_beta"].astype(jnp.float32)
                    - lp["bn_mean"].astype(jnp.float32) * ch_scale)
    else:
        ch_scale = jnp.ones((C_real,), jnp.float32)
        ch_shift = jnp.zeros((C_real,), jnp.float32)
    scale_pad = jnp.zeros((C_in_pad,), jnp.float32)
    shift_pad = jnp.zeros((C_in_pad,), jnp.float32)
    cum = 0
    for s, cg in enumerate(groups):
        off = seg_off_all[s]
        scale_pad = scale_pad.at[off:off + cg].set(ch_scale[cum:cum + cg])
        shift_pad = shift_pad.at[off:off + cg].set(ch_shift[cum:cum + cg])
        cum += cg
    scale_col = scale_pad.reshape(C_in_pad, 1)
    shift_col = shift_pad.reshape(C_in_pad, 1)

    if not nonlinear:
        neg_slope = 1.0                              # identity: max(z, z)
    elif nonlinear == "relu":
        neg_slope = 0.0
    elif nonlinear == "leakyrelu":
        neg_slope = 0.3
    else:
        raise NotImplementedError(f"Not support nonlinearity {nonlinear}")

    # Conv weights -> (O_pad, Kt) bf16, columns ordered [segment][kh][kw][cin_pad].
    w_blocks = []
    bias = jnp.zeros((O,), jnp.float32)
    for s, cg in enumerate(groups):
        cgp = seg_pad_all[s]
        wg = lp[f"w{s}"].astype(jnp.float32)                          # (O, cg, K, K)
        wg = jnp.pad(wg, ((0, 0), (0, cgp - cg), (0, 0), (0, 0)))     # dummy cin -> 0
        w_blocks.append(jnp.transpose(wg, (0, 2, 3, 1)).reshape(O, K * K * cgp))
        bias = bias + lp[f"b{s}"].astype(jnp.float32)
    w_full = jnp.concatenate(w_blocks, axis=1)
    Kt = w_full.shape[1]
    if O_pad != O:
        w_full = jnp.pad(w_full, ((0, O_pad - O), (0, 0)))
        bias = jnp.pad(bias, (0, O_pad - O))
    w_bf16 = w_full.astype(jnp.bfloat16)
    b_col = bias.reshape(O_pad, 1)

    kernel = functools.partial(
        _fused_mdconv_kernel,
        seg_pad=tuple(int(c) for c in seg_pad_all[:n_seg]), kk=K, wp=wp, marg=marg,
        l_out=l_img, l_tot=l_tot, o_pad=O_pad, neg_slope=neg_slope)

    return pl.pallas_call(
        kernel,
        out_shape=jax.ShapeDtypeStruct((N, C_tot_pad, l_tot), jnp.float32),
        grid_spec=pltpu.PrefetchScalarGridSpec(
            num_scalar_prefetch=0,
            grid=(N,),
            in_specs=[
                pl.BlockSpec((1, C_in_pad, l_tot), lambda n: (n, 0, 0)),  # stacked acts
                pl.BlockSpec((1, l_tot), lambda n: (0, 0)),               # interior mask
                pl.BlockSpec((C_in_pad, 1), lambda n: (0, 0)),            # BN scale
                pl.BlockSpec((C_in_pad, 1), lambda n: (0, 0)),            # BN shift
                pl.BlockSpec((O_pad, Kt), lambda n: (0, 0)),              # conv weights
                pl.BlockSpec((O_pad, 1), lambda n: (0, 0)),               # summed bias
            ],
            out_specs=pl.BlockSpec((1, O_pad, l_tot),
                                   lambda n, _b=out_blk: (n, _b, 0)),
        ),
        # Write this layer's output segment directly into the shared stacked buffer:
        # no per-layer crop / pad / concat HBM round trips.
        input_output_aliases={0: 0},
        compiler_params=pltpu.CompilerParams(
            dimension_semantics=("parallel",),
            # A few MiB actually used; stays well under v7x's 64 MiB physical VMEM.
            vmem_limit_bytes=48 * 1024 * 1024),
    )(stacked, mask, scale_col, shift_col, w_bf16, b_col)


# --------------------------- CompressedD2Block ------------------------------- #
def compressed_d2_block(x, params, in_channels, growth_rate, kernel_size,
                        compressed_depth, norm=True, nonlinear="relu", eps=EPS):
    """x: (N, in_channels, H, W) -> (N, sum(growth_rate[-compressed_depth:]), H, W)."""
    N, C0, H, W = x.shape
    assert C0 == in_channels
    depth = len(growth_rate)
    assert compressed_depth <= depth
    K = kernel_size

    # Shared layout for every layer of the block:
    #   * halo = worst-case 'same' padding over all dilations (2**(depth-1)),
    #   * row stride Wp and plane offset `marg` rounded to 128 lanes so all flat row
    #     shifts of the conv taps are lane aligned.
    pmax = (K // 2) * (2 ** (depth - 1))
    Hp = H + 2 * pmax
    Wp = _round_up(W + 2 * pmax, 128)
    L = Hp * Wp                                     # multiple of 128
    marg = _round_up(pmax * Wp + pmax, 128)         # >= largest |flat tap shift|
    L_tot = L + 2 * marg

    # 8-aligned channel segments: [input, layer0 out, layer1 out, ...]
    seg_real = [int(in_channels)] + [int(g) for g in growth_rate]
    seg_pad = [_round_up(c, 8) for c in seg_real]
    seg_off = [0]
    for c in seg_pad:
        seg_off.append(seg_off[-1] + c)
    C_tot_pad = seg_off[-1]

    # One-time embed of the raw input into the shared stacked layout.
    xf = jnp.pad(x.astype(jnp.float32),
                 ((0, 0), (0, 0), (pmax, Hp - H - pmax), (pmax, Wp - W - pmax)))
    xf = xf.reshape(N, in_channels, L)
    stacked = jnp.pad(xf, ((0, 0), (0, C_tot_pad - in_channels),
                           (marg, L_tot - L - marg)))

    # Interior (true-pixel) mask over flat positions, shared by every layer.
    pos = jnp.arange(L_tot, dtype=jnp.int32)
    q = pos - marg
    row = q // Wp
    col = q - row * Wp
    interior = ((row >= pmax) & (row < pmax + H) &
                (col >= pmax) & (col < pmax + W))
    mask = interior.astype(jnp.float32).reshape(1, L_tot)

    for idx in range(depth):
        groups = seg_real[:idx + 1]                  # dilations 1, 2, 4, ...
        stacked = _multi_dilated_layer(
            stacked, mask, params[f"layer{idx}"], groups, growth_rate[idx], idx, K,
            seg_pad, seg_off, wp=Wp, marg=marg, l_img=L, l_tot=L_tot,
            norm=norm, nonlinear=nonlinear, eps=eps)

    # CompressedD2Block output: concat of the last `compressed_depth` layer outputs.
    outs = []
    for idx in range(depth - compressed_depth, depth):
        off = seg_off[idx + 1]
        seg = stacked[:, off:off + growth_rate[idx], marg:marg + L]
        seg = seg.reshape(N, growth_rate[idx], Hp, Wp)
        outs.append(seg[:, :, pmax:pmax + H, pmax:pmax + W])
    return jnp.concatenate(outs, axis=1)


# --------------------------- pure-JAX reference ------------------------------ #
def _reference_block(x, lp, groups, kernel_size, eps=EPS, operand_dtype=jnp.float32):
    mean, var = lp["bn_mean"], lp["bn_var"]
    xh = (x - mean[None, :, None, None]) / jnp.sqrt(var + eps)[None, :, None, None]
    xh = xh * lp["bn_gamma"][None, :, None, None] + lp["bn_beta"][None, :, None, None]
    xh = jnp.maximum(xh, 0.0)
    xq = xh.astype(operand_dtype)
    prec = jax.lax.Precision.HIGHEST if operand_dtype == jnp.float32 else None
    K = kernel_size
    out = 0.0
    c0 = 0
    for g, cg in enumerate(groups):
        d = 2 ** g
        p = (K // 2) * d
        xg = xq[:, c0:c0 + cg]
        wq = lp[f"w{g}"].astype(operand_dtype)
        out = out + jax.lax.conv_general_dilated(
            xg, wq, window_strides=(1, 1),
            padding=[(p, p), (p, p)], rhs_dilation=(d, d),
            dimension_numbers=("NCHW", "OIHW", "NCHW"),
            preferred_element_type=jnp.float32,
            precision=prec,
        ) + lp[f"b{g}"][None, :, None, None]
        c0 += cg
    return out


def reference_compressed_d2(x, params, in_channels, growth_rate, kernel_size,
                            compressed_depth, eps=EPS, operand_dtype=jnp.float32):
    depth = len(growth_rate)
    stacked = [x]
    for idx in range(depth):
        groups = [in_channels] + list(growth_rate[:idx])
        inp = x if idx == 0 else jnp.concatenate(stacked, axis=1)
        y = _reference_block(inp, params[f"layer{idx}"], groups, kernel_size, eps,
                             operand_dtype)
        stacked.append(y)
    return jnp.concatenate(stacked[-compressed_depth:], axis=1)


# ------------------------------- main ---------------------------------------- #
if __name__ == "__main__":
    in_channels = 4
    growth_rate = [8, 8, 8]          # depth = 3
    kernel_size = 3
    compressed_depth = 2
    N, H, W = 2, 16, 16
    depth = len(growth_rate)

    key = jax.random.PRNGKey(0)
    params = {}
    kiter = key
    for idx in range(depth):
        groups = [in_channels] + list(growth_rate[:idx])
        C = sum(groups)
        O = growth_rate[idx]
        kiter, k1, k2, k3, k4 = jax.random.split(kiter, 5)
        lp = {
            "bn_gamma": 1.0 + 0.1 * jax.random.normal(k1, (C,), jnp.float32),
            "bn_beta": 0.1 * jax.random.normal(k2, (C,), jnp.float32),
            "bn_mean": 0.1 * jax.random.normal(k3, (C,), jnp.float32),
            "bn_var": jnp.abs(jax.random.normal(k4, (C,), jnp.float32)) + 0.5,
        }
        for g, cg in enumerate(groups):
            kiter, kw_, kb_ = jax.random.split(kiter, 3)
            fan_in = cg * kernel_size * kernel_size
            lp[f"w{g}"] = (jax.random.normal(
                kw_, (O, cg, kernel_size, kernel_size), jnp.float32)
                / jnp.sqrt(fan_in))
            lp[f"b{g}"] = 0.05 * jax.random.normal(kb_, (O,), jnp.float32)
        params[f"layer{idx}"] = lp

    kiter, kx = jax.random.split(kiter)
    x = jax.random.normal(kx, (N, in_channels, H, W), dtype=jnp.float32)

    run = jax.jit(functools.partial(
        compressed_d2_block, in_channels=in_channels, growth_rate=growth_rate,
        kernel_size=kernel_size, compressed_depth=compressed_depth))
    y = jax.block_until_ready(run(x, params))
    assert y.shape == (N, sum(growth_rate[-compressed_depth:]), H, W)

    # bf16-operand reference mirrors the kernel's MXU dtypes (tight check of the
    # tap / mask / BN wiring); f32 HIGHEST reference bounds the bf16 approximation.
    y_bf16 = reference_compressed_d2(x, params, in_channels, growth_rate,
                                     kernel_size, compressed_depth,
                                     operand_dtype=jnp.bfloat16)
    y_f32 = reference_compressed_d2(x, params, in_channels, growth_rate,
                                    kernel_size, compressed_depth)
    err_bf16 = float(jnp.max(jnp.abs(y - y_bf16)))
    err_f32 = float(jnp.max(jnp.abs(y - y_f32)))
    assert err_bf16 < 1e-2, f"mismatch vs bf16 reference: max abs err {err_bf16}"
    assert err_f32 < 5e-2, f"mismatch vs f32 reference: max abs err {err_f32}"

    print("KERNEL_OK")
</pallas_src>

<mosaic_0001>
module attributes {stable_mosaic.version = 11 : i64} {
  func.func @_fused_mdconv_kernel(%arg0: i32, %arg1: memref<1x8x4352xf32, #tpu.memory_space<vmem>>, %arg2: memref<1x4352xf32, #tpu.memory_space<vmem>>, %arg3: memref<8x1xf32, #tpu.memory_space<vmem>>, %arg4: memref<8x1xf32, #tpu.memory_space<vmem>>, %arg5: memref<8x72xbf16, #tpu.memory_space<vmem>>, %arg6: memref<8x1xf32, #tpu.memory_space<vmem>>, %arg7: memref<1x8x4352xf32, #tpu.memory_space<vmem>>) attributes {dimension_semantics = [#tpu.dimension_semantics<parallel>], iteration_bounds = array<i64: 2>, scalar_prefetch = 0 : i64, scratch_operands = 0 : i64, tpu.core_type = #tpu.core_type<tc>, window_params = [{transform_indices = @transform_0, window_bounds = array<i64: 1, 8, 4352>}, {pipeline_mode = #tpu.pipeline_mode<synchronous>, transform_indices = @transform_1, window_bounds = array<i64: 1, 4352>}, {pipeline_mode = #tpu.pipeline_mode<synchronous>, transform_indices = @transform_2, window_bounds = array<i64: 8, 1>}, {pipeline_mode = #tpu.pipeline_mode<synchronous>, transform_indices = @transform_3, window_bounds = array<i64: 8, 1>}, {pipeline_mode = #tpu.pipeline_mode<synchronous>, transform_indices = @transform_4, window_bounds = array<i64: 8, 72>}, {pipeline_mode = #tpu.pipeline_mode<synchronous>, transform_indices = @transform_5, window_bounds = array<i64: 8, 1>}, {transform_indices = @transform_6, window_bounds = array<i64: 1, 8, 4352>}]} {
    %c0 = arith.constant 0 : index
    %c0_0 = arith.constant 0 : index
    %c0_1 = arith.constant 0 : index
    %0 = vector.load %arg1[%c0, %c0_0, %c0_1] : memref<1x8x4352xf32, #tpu.memory_space<vmem>>, vector<1x8x4352xf32>
    %1 = vector.shape_cast %0 : vector<1x8x4352xf32> to vector<8x4352xf32>
    %c0_2 = arith.constant 0 : index
    %c0_3 = arith.constant 0 : index
    %2 = vector.load %arg3[%c0_2, %c0_3] : memref<8x1xf32, #tpu.memory_space<vmem>>, vector<8x1xf32>
    %3 = vector.broadcast %2 : vector<8x1xf32> to vector<8x4352xf32>
    %4 = arith.mulf %1, %3 : vector<8x4352xf32>
    %c0_4 = arith.constant 0 : index
    %c0_5 = arith.constant 0 : index
    %5 = vector.load %arg4[%c0_4, %c0_5] : memref<8x1xf32, #tpu.memory_space<vmem>>, vector<8x1xf32>
    %6 = vector.broadcast %5 : vector<8x1xf32> to vector<8x4352xf32>
    %7 = arith.addf %4, %6 : vector<8x4352xf32>
    %cst = arith.constant 0.000000e+00 : f32
    %8 = vector.broadcast %cst : f32 to vector<8x4352xf32>
    %9 = arith.mulf %8, %7 : vector<8x4352xf32>
    %10 = arith.maximumf %7, %9 : vector<8x4352xf32>
    %c0_6 = arith.constant 0 : index
    %c0_7 = arith.constant 0 : index
    %11 = vector.load %arg2[%c0_6, %c0_7] : memref<1x4352xf32, #tpu.memory_space<vmem>>, vector<1x4352xf32>
    %cst_8 = arith.constant 5.000000e-01 : f32
    %12 = vector.broadcast %cst_8 : f32 to vector<1x4352xf32>
    %13 = arith.cmpf ogt, %11, %12 : vector<1x4352xf32>
    %cst_9 = arith.constant 0.000000e+00 : f32
    %14 = vector.shape_cast %13 : vector<1x4352xi1> to vector<1x4352xi1>
    %15 = vector.broadcast %14 : vector<1x4352xi1> to vector<8x4352xi1>
    %16 = vector.broadcast %cst_9 : f32 to vector<8x4352xf32>
    %17 = arith.select %15, %10, %16 : vector<8x4352xi1>, vector<8x4352xf32>
    %18 = vector.extract_strided_slice %17 {offsets = [0, 4351], sizes = [8, 1], strides = [1, 1]} : vector<8x4352xf32> to vector<8x1xf32>
    %19 = vector.extract_strided_slice %17 {offsets = [0, 0], sizes = [8, 4351], strides = [1, 1]} : vector<8x4352xf32> to vector<8x4351xf32>
    %20 = tpu.concatenate %18, %19 in 1 : vector<8x1xf32>, vector<8x4351xf32> -> vector<8x4352xf32>
    %21 = arith.truncf %20 : vector<8x4352xf32> to vector<8x4352xbf16>
    %22 = arith.truncf %17 : vector<8x4352xf32> to vector<8x4352xbf16>
    %23 = vector.extract_strided_slice %17 {offsets = [0, 1], sizes = [8, 4351], strides = [1, 1]} : vector<8x4352xf32> to vector<8x4351xf32>
    %24 = vector.extract_strided_slice %17 {offsets = [0, 0], sizes = [8, 1], strides = [1, 1]} : vector<8x4352xf32> to vector<8x1xf32>
    %25 = tpu.concatenate %23, %24 in 1 : vector<8x4351xf32>, vector<8x1xf32> -> vector<8x4352xf32>
    %26 = arith.truncf %25 : vector<8x4352xf32> to vector<8x4352xbf16>
    %27 = vector.extract_strided_slice %21 {offsets = [0, 512], sizes = [8, 3072], strides = [1, 1]} : vector<8x4352xbf16> to vector<8x3072xbf16>
    %28 = vector.extract_strided_slice %22 {offsets = [0, 512], sizes = [8, 3072], strides = [1, 1]} : vector<8x4352xbf16> to vector<8x3072xbf16>
    %29 = vector.extract_strided_slice %26 {offsets = [0, 512], sizes = [8, 3072], strides = [1, 1]} : vector<8x4352xbf16> to vector<8x3072xbf16>
    %30 = vector.extract_strided_slice %21 {offsets = [0, 640], sizes = [8, 3072], strides = [1, 1]} : vector<8x4352xbf16> to vector<8x3072xbf16>
    %31 = vector.extract_strided_slice %22 {offsets = [0, 640], sizes = [8, 3072], strides = [1, 1]} : vector<8x4352xbf16> to vector<8x3072xbf16>
    %32 = vector.extract_strided_slice %26 {offsets = [0, 640], sizes = [8, 3072], strides = [1, 1]} : vector<8x4352xbf16> to vector<8x3072xbf16>
    %33 = vector.extract_strided_slice %21 {offsets = [0, 768], sizes = [8, 3072], strides = [1, 1]} : vector<8x4352xbf16> to vector<8x3072xbf16>
    %34 = vector.extract_strided_slice %22 {offsets = [0, 768], sizes = [8, 3072], strides = [1, 1]} : vector<8x4352xbf16> to vector<8x3072xbf16>
    %35 = vector.extract_strided_slice %26 {offsets = [0, 768], sizes = [8, 3072], strides = [1, 1]} : vector<8x4352xbf16> to vector<8x3072xbf16>
    %36 = tpu.concatenate %27, %28, %29, %30, %31, %32, %33, %34, %35 in 0 : vector<8x3072xbf16>, vector<8x3072xbf16>, vector<8x3072xbf16>, vector<8x3072xbf16>, vector<8x3072xbf16>, vector<8x3072xbf16>, vector<8x3072xbf16>, vector<8x3072xbf16>, vector<8x3072xbf16> -> vector<72x3072xbf16>
    %c0_10 = arith.constant 0 : index
    %c0_11 = arith.constant 0 : index
    %37 = vector.load %arg5[%c0_10, %c0_11] : memref<8x72xbf16, #tpu.memory_space<vmem>>, vector<8x72xbf16>
    %cst_12 = arith.constant dense<0.000000e+00> : vector<8x3072xf32>
    %38 = tpu.matmul %37, %36, %cst_12 {dimension_numbers = #tpu.dot_dimension_numbers<[1], [0], [0], [1], [0, 0, 1, 1], [], []>} : vector<8x72xbf16>, vector<72x3072xbf16>, vector<8x3072xf32> -> vector<8x3072xf32>
    %c0_13 = arith.constant 0 : index
    %c0_14 = arith.constant 0 : index
    %39 = vector.load %arg6[%c0_13, %c0_14] : memref<8x1xf32, #tpu.memory_space<vmem>>, vector<8x1xf32>
    %40 = vector.broadcast %39 : vector<8x1xf32> to vector<8x3072xf32>
    %41 = arith.addf %38, %40 : vector<8x3072xf32>
    %cst_15 = arith.constant 0.000000e+00 : f32
    %42 = vector.broadcast %cst_15 : f32 to vector<8x640xf32>
    %c0_16 = arith.constant 0 : index
    %c0_17 = arith.constant 0 : index
    %c0_18 = arith.constant 0 : index
    %43 = vector.load %arg7[%c0_16, %c0_17, %c0_18] : memref<1x8x4352xf32, #tpu.memory_space<vmem>>, vector<1x8x640xf32>
    %44 = vector.shape_cast %43 : vector<1x8x640xf32> to vector<8x640xf32>
    %45 = vector.shape_cast %42 : vector<8x640xf32> to vector<1x8x640xf32>
    tpu.vector_store %arg7[%c0_16, %c0_17, %c0_18], %45 {strides = array<i32>} : memref<1x8x4352xf32, #tpu.memory_space<vmem>>, vector<1x8x640xf32>,
    %c0_19 = arith.constant 0 : index
    %c0_20 = arith.constant 0 : index
    %c640 = arith.constant 640 : index
    %46 = vector.load %arg7[%c0_19, %c0_20, %c640] : memref<1x8x4352xf32, #tpu.memory_space<vmem>>, vector<1x8x3072xf32>
    %47 = vector.shape_cast %46 : vector<1x8x3072xf32> to vector<8x3072xf32>
    %48 = vector.shape_cast %41 : vector<8x3072xf32> to vector<1x8x3072xf32>
    tpu.vector_store %arg7[%c0_19, %c0_20, %c640], %48 {strides = array<i32>} : memref<1x8x4352xf32, #tpu.memory_space<vmem>>, vector<1x8x3072xf32>,
    %c0_21 = arith.constant 0 : index
    %c0_22 = arith.constant 0 : index
    %c3712 = arith.constant 3712 : index
    %49 = vector.load %arg7[%c0_21, %c0_22, %c3712] : memref<1x8x4352xf32, #tpu.memory_space<vmem>>, vector<1x8x640xf32>
    %50 = vector.shape_cast %49 : vector<1x8x640xf32> to vector<8x640xf32>
    %51 = vector.shape_cast %42 : vector<8x640xf32> to vector<1x8x640xf32>
    tpu.vector_store %arg7[%c0_21, %c0_22, %c3712], %51 {strides = array<i32>} : memref<1x8x4352xf32, #tpu.memory_space<vmem>>, vector<1x8x640xf32>,
    return
  }
  func.func @transform_0(%arg0: i32) -> (i32, i32, i32) {
    %c0_i32 = arith.constant 0 : i32
    %c0_i32_0 = arith.constant 0 : i32
    %c0_i32_1 = arith.constant 0 : i32
    return %arg0, %c0_i32, %c0_i32_0 : i32, i32, i32
  }
  func.func @transform_1(%arg0: i32) -> (i32, i32) {
    %c0_i32 = arith.constant 0 : i32
    %c0_i32_0 = arith.constant 0 : i32
    %c0_i32_1 = arith.constant 0 : i32
    return %c0_i32, %c0_i32_0 : i32, i32
  }
  func.func @transform_2(%arg0: i32) -> (i32, i32) {
    %c0_i32 = arith.constant 0 : i32
    %c0_i32_0 = arith.constant 0 : i32
    %c0_i32_1 = arith.constant 0 : i32
    return %c0_i32, %c0_i32_0 : i32, i32
  }
  func.func @transform_3(%arg0: i32) -> (i32, i32) {
    %c0_i32 = arith.constant 0 : i32
    %c0_i32_0 = arith.constant 0 : i32
    %c0_i32_1 = arith.constant 0 : i32
    return %c0_i32, %c0_i32_0 : i32, i32
  }
  func.func @transform_4(%arg0: i32) -> (i32, i32) {
    %c0_i32 = arith.constant 0 : i32
    %c0_i32_0 = arith.constant 0 : i32
    %c0_i32_1 = arith.constant 0 : i32
    return %c0_i32, %c0_i32_0 : i32, i32
  }
  func.func @transform_5(%arg0: i32) -> (i32, i32) {
    %c0_i32 = arith.constant 0 : i32
    %c0_i32_0 = arith.constant 0 : i32
    %c0_i32_1 = arith.constant 0 : i32
    return %c0_i32, %c0_i32_0 : i32, i32
  }
  func.func @transform_6(%arg0: i32) -> (i32, i32, i32) {
    %c1_i32 = arith.constant 1 : i32
    %c0_i32 = arith.constant 0 : i32
    %c0_i32_0 = arith.constant 0 : i32
    return %arg0, %c1_i32, %c0_i32 : i32, i32, i32
  }
}

module attributes {stable_mosaic.version = 11 : i64} {
  func.func @_fused_mdconv_kernel(%arg0: i32, %arg1: memref<1x16x4352xf32, #tpu.memory_space<vmem>>, %arg2: memref<1x4352xf32, #tpu.memory_space<vmem>>, %arg3: memref<16x1xf32, #tpu.memory_space<vmem>>, %arg4: memref<16x1xf32, #tpu.memory_space<vmem>>, %arg5: memref<8x144xbf16, #tpu.memory_space<vmem>>, %arg6: memref<8x1xf32, #tpu.memory_space<vmem>>, %arg7: memref<1x8x4352xf32, #tpu.memory_space<vmem>>) attributes {dimension_semantics = [#tpu.dimension_semantics<parallel>], iteration_bounds = array<i64: 2>, scalar_prefetch = 0 : i64, scratch_operands = 0 : i64, tpu.core_type = #tpu.core_type<tc>, window_params = [{transform_indices = @transform_0, window_bounds = array<i64: 1, 16, 4352>}, {pipeline_mode = #tpu.pipeline_mode<synchronous>, transform_indices = @transform_1, window_bounds = array<i64: 1, 4352>}, {pipeline_mode = #tpu.pipeline_mode<synchronous>, transform_indices = @transform_2, window_bounds = array<i64: 16, 1>}, {pipeline_mode = #tpu.pipeline_mode<synchronous>, transform_indices = @transform_3, window_bounds = array<i64: 16, 1>}, {pipeline_mode = #tpu.pipeline_mode<synchronous>, transform_indices = @transform_4, window_bounds = array<i64: 8, 144>}, {pipeline_mode = #tpu.pipeline_mode<synchronous>, transform_indices = @transform_5, window_bounds = array<i64: 8, 1>}, {transform_indices = @transform_6, window_bounds = array<i64: 1, 8, 4352>}]} {
    %c0 = arith.constant 0 : index
    %c0_0 = arith.constant 0 : index
    %c0_1 = arith.constant 0 : index
    %0 = vector.load %arg1[%c0, %c0_0, %c0_1] : memref<1x16x4352xf32, #tpu.memory_space<vmem>>, vector<1x16x4352xf32>
    %1 = vector.shape_cast %0 : vector<1x16x4352xf32> to vector<16x4352xf32>
    %c0_2 = arith.constant 0 : index
    %c0_3 = arith.constant 0 : index
    %2 = vector.load %arg3[%c0_2, %c0_3] : memref<16x1xf32, #tpu.memory_space<vmem>>, vector<16x1xf32>
    %3 = vector.broadcast %2 : vector<16x1xf32> to vector<16x4352xf32>
    %4 = arith.mulf %1, %3 : vector<16x4352xf32>
    %c0_4 = arith.constant 0 : index
    %c0_5 = arith.constant 0 : index
    %5 = vector.load %arg4[%c0_4, %c0_5] : memref<16x1xf32, #tpu.memory_space<vmem>>, vector<16x1xf32>
    %6 = vector.broadcast %5 : vector<16x1xf32> to vector<16x4352xf32>
    %7 = arith.addf %4, %6 : vector<16x4352xf32>
    %cst = arith.constant 0.000000e+00 : f32
    %8 = vector.broadcast %cst : f32 to vector<16x4352xf32>
    %9 = arith.mulf %8, %7 : vector<16x4352xf32>
    %10 = arith.maximumf %7, %9 : vector<16x4352xf32>
    %c0_6 = arith.constant 0 : index
    %c0_7 = arith.constant 0 : index
    %11 = vector.load %arg2[%c0_6, %c0_7] : memref<1x4352xf32, #tpu.memory_space<vmem>>, vector<1x4352xf32>
    %cst_8 = arith.constant 5.000000e-01 : f32
    %12 = vector.broadcast %cst_8 : f32 to vector<1x4352xf32>
    %13 = arith.cmpf ogt, %11, %12 : vector<1x4352xf32>
    %cst_9 = arith.constant 0.000000e+00 : f32
    %14 = vector.shape_cast %13 : vector<1x4352xi1> to vector<1x4352xi1>
    %15 = vector.broadcast %14 : vector<1x4352xi1> to vector<16x4352xi1>
    %16 = vector.broadcast %cst_9 : f32 to vector<16x4352xf32>
    %17 = arith.select %15, %10, %16 : vector<16x4352xi1>, vector<16x4352xf32>
    %18 = vector.extract_strided_slice %17 {offsets = [0, 0], sizes = [8, 4352], strides = [1, 1]} : vector<16x4352xf32> to vector<8x4352xf32>
    %19 = vector.extract_strided_slice %18 {offsets = [0, 4351], sizes = [8, 1], strides = [1, 1]} : vector<8x4352xf32> to vector<8x1xf32>
    %20 = vector.extract_strided_slice %18 {offsets = [0, 0], sizes = [8, 4351], strides = [1, 1]} : vector<8x4352xf32> to vector<8x4351xf32>
    %21 = tpu.concatenate %19, %20 in 1 : vector<8x1xf32>, vector<8x4351xf32> -> vector<8x4352xf32>
    %22 = arith.truncf %21 : vector<8x4352xf32> to vector<8x4352xbf16>
    %23 = arith.truncf %18 : vector<8x4352xf32> to vector<8x4352xbf16>
    %24 = vector.extract_strided_slice %18 {offsets = [0, 1], sizes = [8, 4351], strides = [1, 1]} : vector<8x4352xf32> to vector<8x4351xf32>
    %25 = vector.extract_strided_slice %18 {offsets = [0, 0], sizes = [8, 1], strides = [1, 1]} : vector<8x4352xf32> to vector<8x1xf32>
    %26 = tpu.concatenate %24, %25 in 1 : vector<8x4351xf32>, vector<8x1xf32> -> vector<8x4352xf32>
    %27 = arith.truncf %26 : vector<8x4352xf32> to vector<8x4352xbf16>
    %28 = vector.extract_strided_slice %22 {offsets = [0, 512], sizes = [8, 3072], strides = [1, 1]} : vector<8x4352xbf16> to vector<8x3072xbf16>
    %29 = vector.extract_strided_slice %23 {offsets = [0, 512], sizes = [8, 3072], strides = [1, 1]} : vector<8x4352xbf16> to vector<8x3072xbf16>
    %30 = vector.extract_strided_slice %27 {offsets = [0, 512], sizes = [8, 3072], strides = [1, 1]} : vector<8x4352xbf16> to vector<8x3072xbf16>
    %31 = vector.extract_strided_slice %22 {offsets = [0, 640], sizes = [8, 3072], strides = [1, 1]} : vector<8x4352xbf16> to vector<8x3072xbf16>
    %32 = vector.extract_strided_slice %23 {offsets = [0, 640], sizes = [8, 3072], strides = [1, 1]} : vector<8x4352xbf16> to vector<8x3072xbf16>
    %33 = vector.extract_strided_slice %27 {offsets = [0, 640], sizes = [8, 3072], strides = [1, 1]} : vector<8x4352xbf16> to vector<8x3072xbf16>
    %34 = vector.extract_strided_slice %22 {offsets = [0, 768], sizes = [8, 3072], strides = [1, 1]} : vector<8x4352xbf16> to vector<8x3072xbf16>
    %35 = vector.extract_strided_slice %23 {offsets = [0, 768], sizes = [8, 3072], strides = [1, 1]} : vector<8x4352xbf16> to vector<8x3072xbf16>
    %36 = vector.extract_strided_slice %27 {offsets = [0, 768], sizes = [8, 3072], strides = [1, 1]} : vector<8x4352xbf16> to vector<8x3072xbf16>
    %37 = vector.extract_strided_slice %17 {offsets = [8, 0], sizes = [8, 4352], strides = [1, 1]} : vector<16x4352xf32> to vector<8x4352xf32>
    %38 = vector.extract_strided_slice %37 {offsets = [0, 4350], sizes = [8, 2], strides = [1, 1]} : vector<8x4352xf32> to vector<8x2xf32>
    %39 = vector.extract_strided_slice %37 {offsets = [0, 0], sizes = [8, 4350], strides = [1, 1]} : vector<8x4352xf32> to vector<8x4350xf32>
    %40 = tpu.concatenate %38, %39 in 1 : vector<8x2xf32>, vector<8x4350xf32> -> vector<8x4352xf32>
    %41 = arith.truncf %40 : vector<8x4352xf32> to vector<8x4352xbf16>
    %42 = arith.truncf %37 : vector<8x4352xf32> to vector<8x4352xbf16>
    %43 = vector.extract_strided_slice %37 {offsets = [0, 2], sizes = [8, 4350], strides = [1, 1]} : vector<8x4352xf32> to vector<8x4350xf32>
    %44 = vector.extract_strided_slice %37 {offsets = [0, 0], sizes = [8, 2], strides = [1, 1]} : vector<8x4352xf32> to vector<8x2xf32>
    %45 = tpu.concatenate %43, %44 in 1 : vector<8x4350xf32>, vector<8x2xf32> -> vector<8x4352xf32>
    %46 = arith.truncf %45 : vector<8x4352xf32> to vector<8x4352xbf16>
    %47 = vector.extract_strided_slice %41 {offsets = [0, 384], sizes = [8, 3072], strides = [1, 1]} : vector<8x4352xbf16> to vector<8x3072xbf16>
    %48 = vector.extract_strided_slice %42 {offsets = [0, 384], sizes = [8, 3072], strides = [1, 1]} : vector<8x4352xbf16> to vector<8x3072xbf16>
    %49 = vector.extract_strided_slice %46 {offsets = [0, 384], sizes = [8, 3072], strides = [1, 1]} : vector<8x4352xbf16> to vector<8x3072xbf16>
    %50 = vector.extract_strided_slice %41 {offsets = [0, 640], sizes = [8, 3072], strides = [1, 1]} : vector<8x4352xbf16> to vector<8x3072xbf16>
    %51 = vector.extract_strided_slice %42 {offsets = [0, 640], sizes = [8, 3072], strides = [1, 1]} : vector<8x4352xbf16> to vector<8x3072xbf16>
    %52 = vector.extract_strided_slice %46 {offsets = [0, 640], sizes = [8, 3072], strides = [1, 1]} : vector<8x4352xbf16> to vector<8x3072xbf16>
    %53 = vector.extract_strided_slice %41 {offsets = [0, 896], sizes = [8, 3072], strides = [1, 1]} : vector<8x4352xbf16> to vector<8x3072xbf16>
    %54 = vector.extract_strided_slice %42 {offsets = [0, 896], sizes = [8, 3072], strides = [1, 1]} : vector<8x4352xbf16> to vector<8x3072xbf16>
    %55 = vector.extract_strided_slice %46 {offsets = [0, 896], sizes = [8, 3072], strides = [1, 1]} : vector<8x4352xbf16> to vector<8x3072xbf16>
    %56 = tpu.concatenate %28, %29, %30, %31, %32, %33, %34, %35, %36, %47, %48, %49, %50, %51, %52, %53 in 0 : vector<8x3072xbf16>, vector<8x3072xbf16>, vector<8x3072xbf16>, vector<8x3072xbf16>, vector<8x3072xbf16>, vector<8x3072xbf16>, vector<8x3072xbf16>, vector<8x3072xbf16>, vector<8x3072xbf16>, vector<8x3072xbf16>, vector<8x3072xbf16>, vector<8x3072xbf16>, vector<8x3072xbf16>, vector<8x3072xbf16>, vector<8x3072xbf16>, vector<8x3072xbf16> -> vector<128x3072xbf16>
    %57 = tpu.concatenate %54, %55 in 0 : vector<8x3072xbf16>, vector<8x3072xbf16> -> vector<16x3072xbf16>
    %58 = tpu.concatenate %56, %57 in 0 : vector<128x3072xbf16>, vector<16x3072xbf16> -> vector<144x3072xbf16>
    %c0_10 = arith.constant 0 : index
    %c0_11 = arith.constant 0 : index
    %59 = vector.load %arg5[%c0_10, %c0_11] : memref<8x144xbf16, #tpu.memory_space<vmem>>, vector<8x144xbf16>
    %cst_12 = arith.constant dense<0.000000e+00> : vector<8x3072xf32>
    %60 = tpu.matmul %59, %58, %cst_12 {dimension_numbers = #tpu.dot_dimension_numbers<[1], [0], [0], [1], [0, 0, 1, 1], [], []>} : vector<8x144xbf16>, vector<144x3072xbf16>, vector<8x3072xf32> -> vector<8x3072xf32>
    %c0_13 = arith.constant 0 : index
    %c0_14 = arith.constant 0 : index
    %61 = vector.load %arg6[%c0_13, %c0_14] : memref<8x1xf32, #tpu.memory_space<vmem>>, vector<8x1xf32>
    %62 = vector.broadcast %61 : vector<8x1xf32> to vector<8x3072xf32>
    %63 = arith.addf %60, %62 : vector<8x3072xf32>
    %cst_15 = arith.constant 0.000000e+00 : f32
    %64 = vector.broadcast %cst_15 : f32 to vector<8x640xf32>
    %c0_16 = arith.constant 0 : index
    %c0_17 = arith.constant 0 : index
    %c0_18 = arith.constant 0 : index
    %65 = vector.load %arg7[%c0_16, %c0_17, %c0_18] : memref<1x8x4352xf32, #tpu.memory_space<vmem>>, vector<1x8x640xf32>
    %66 = vector.shape_cast %65 : vector<1x8x640xf32> to vector<8x640xf32>
    %67 = vector.shape_cast %64 : vector<8x640xf32> to vector<1x8x640xf32>
    tpu.vector_store %arg7[%c0_16, %c0_17, %c0_18], %67 {strides = array<i32>} : memref<1x8x4352xf32, #tpu.memory_space<vmem>>, vector<1x8x640xf32>,
    %c0_19 = arith.constant 0 : index
    %c0_20 = arith.constant 0 : index
    %c640 = arith.constant 640 : index
    %68 = vector.load %arg7[%c0_19, %c0_20, %c640] : memref<1x8x4352xf32, #tpu.memory_space<vmem>>, vector<1x8x3072xf32>
    %69 = vector.shape_cast %68 : vector<1x8x3072xf32> to vector<8x3072xf32>
    %70 = vector.shape_cast %63 : vector<8x3072xf32> to vector<1x8x3072xf32>
    tpu.vector_store %arg7[%c0_19, %c0_20, %c640], %70 {strides = array<i32>} : memref<1x8x4352xf32, #tpu.memory_space<vmem>>, vector<1x8x3072xf32>,
    %c0_21 = arith.constant 0 : index
    %c0_22 = arith.constant 0 : index
    %c3712 = arith.constant 3712 : index
    %71 = vector.load %arg7[%c0_21, %c0_22, %c3712] : memref<1x8x4352xf32, #tpu.memory_space<vmem>>, vector<1x8x640xf32>
    %72 = vector.shape_cast %71 : vector<1x8x640xf32> to vector<8x640xf32>
    %73 = vector.shape_cast %64 : vector<8x640xf32> to vector<1x8x640xf32>
    tpu.vector_store %arg7[%c0_21, %c0_22, %c3712], %73 {strides = array<i32>} : memref<1x8x4352xf32, #tpu.memory_space<vmem>>, vector<1x8x640xf32>,
    return
  }
  func.func @transform_0(%arg0: i32) -> (i32, i32, i32) {
    %c0_i32 = arith.constant 0 : i32
    %c0_i32_0 = arith.constant 0 : i32
    %c0_i32_1 = arith.constant 0 : i32
    return %arg0, %c0_i32, %c0_i32_0 : i32, i32, i32
  }
  func.func @transform_1(%arg0: i32) -> (i32, i32) {
    %c0_i32 = arith.constant 0 : i32
    %c0_i32_0 = arith.constant 0 : i32
    %c0_i32_1 = arith.constant 0 : i32
    return %c0_i32, %c0_i32_0 : i32, i32
  }
  func.func @transform_2(%arg0: i32) -> (i32, i32) {
    %c0_i32 = arith.constant 0 : i32
    %c0_i32_0 = arith.constant 0 : i32
    %c0_i32_1 = arith.constant 0 : i32
    return %c0_i32, %c0_i32_0 : i32, i32
  }
  func.func @transform_3(%arg0: i32) -> (i32, i32) {
    %c0_i32 = arith.constant 0 : i32
    %c0_i32_0 = arith.constant 0 : i32
    %c0_i32_1 = arith.constant 0 : i32
    return %c0_i32, %c0_i32_0 : i32, i32
  }
  func.func @transform_4(%arg0: i32) -> (i32, i32) {
    %c0_i32 = arith.constant 0 : i32
    %c0_i32_0 = arith.constant 0 : i32
    %c0_i32_1 = arith.constant 0 : i32
    return %c0_i32, %c0_i32_0 : i32, i32
  }
  func.func @transform_5(%arg0: i32) -> (i32, i32) {
    %c0_i32 = arith.constant 0 : i32
    %c0_i32_0 = arith.constant 0 : i32
    %c0_i32_1 = arith.constant 0 : i32
    return %c0_i32, %c0_i32_0 : i32, i32
  }
  func.func @transform_6(%arg0: i32) -> (i32, i32, i32) {
    %c2_i32 = arith.constant 2 : i32
    %c0_i32 = arith.constant 0 : i32
    %c0_i32_0 = arith.constant 0 : i32
    return %arg0, %c2_i32, %c0_i32 : i32, i32, i32
  }
}

module attributes {stable_mosaic.version = 11 : i64} {
  func.func @_fused_mdconv_kernel(%arg0: i32, %arg1: memref<1x24x4352xf32, #tpu.memory_space<vmem>>, %arg2: memref<1x4352xf32, #tpu.memory_space<vmem>>, %arg3: memref<24x1xf32, #tpu.memory_space<vmem>>, %arg4: memref<24x1xf32, #tpu.memory_space<vmem>>, %arg5: memref<8x216xbf16, #tpu.memory_space<vmem>>, %arg6: memref<8x1xf32, #tpu.memory_space<vmem>>, %arg7: memref<1x8x4352xf32, #tpu.memory_space<vmem>>) attributes {dimension_semantics = [#tpu.dimension_semantics<parallel>], iteration_bounds = array<i64: 2>, scalar_prefetch = 0 : i64, scratch_operands = 0 : i64, tpu.core_type = #tpu.core_type<tc>, window_params = [{transform_indices = @transform_0, window_bounds = array<i64: 1, 24, 4352>}, {pipeline_mode = #tpu.pipeline_mode<synchronous>, transform_indices = @transform_1, window_bounds = array<i64: 1, 4352>}, {pipeline_mode = #tpu.pipeline_mode<synchronous>, transform_indices = @transform_2, window_bounds = array<i64: 24, 1>}, {pipeline_mode = #tpu.pipeline_mode<synchronous>, transform_indices = @transform_3, window_bounds = array<i64: 24, 1>}, {pipeline_mode = #tpu.pipeline_mode<synchronous>, transform_indices = @transform_4, window_bounds = array<i64: 8, 216>}, {pipeline_mode = #tpu.pipeline_mode<synchronous>, transform_indices = @transform_5, window_bounds = array<i64: 8, 1>}, {transform_indices = @transform_6, window_bounds = array<i64: 1, 8, 4352>}]} {
    %c0 = arith.constant 0 : index
    %c0_0 = arith.constant 0 : index
    %c0_1 = arith.constant 0 : index
    %0 = vector.load %arg1[%c0, %c0_0, %c0_1] : memref<1x24x4352xf32, #tpu.memory_space<vmem>>, vector<1x24x4352xf32>
    %1 = vector.shape_cast %0 : vector<1x24x4352xf32> to vector<24x4352xf32>
    %c0_2 = arith.constant 0 : index
    %c0_3 = arith.constant 0 : index
    %2 = vector.load %arg3[%c0_2, %c0_3] : memref<24x1xf32, #tpu.memory_space<vmem>>, vector<24x1xf32>
    %3 = vector.broadcast %2 : vector<24x1xf32> to vector<24x4352xf32>
    %4 = arith.mulf %1, %3 : vector<24x4352xf32>
    %c0_4 = arith.constant 0 : index
    %c0_5 = arith.constant 0 : index
    %5 = vector.load %arg4[%c0_4, %c0_5] : memref<24x1xf32, #tpu.memory_space<vmem>>, vector<24x1xf32>
    %6 = vector.broadcast %5 : vector<24x1xf32> to vector<24x4352xf32>
    %7 = arith.addf %4, %6 : vector<24x4352xf32>
    %cst = arith.constant 0.000000e+00 : f32
    %8 = vector.broadcast %cst : f32 to vector<24x4352xf32>
    %9 = arith.mulf %8, %7 : vector<24x4352xf32>
    %10 = arith.maximumf %7, %9 : vector<24x4352xf32>
    %c0_6 = arith.constant 0 : index
    %c0_7 = arith.constant 0 : index
    %11 = vector.load %arg2[%c0_6, %c0_7] : memref<1x4352xf32, #tpu.memory_space<vmem>>, vector<1x4352xf32>
    %cst_8 = arith.constant 5.000000e-01 : f32
    %12 = vector.broadcast %cst_8 : f32 to vector<1x4352xf32>
    %13 = arith.cmpf ogt, %11, %12 : vector<1x4352xf32>
    %cst_9 = arith.constant 0.000000e+00 : f32
    %14 = vector.shape_cast %13 : vector<1x4352xi1> to vector<1x4352xi1>
    %15 = vector.broadcast %14 : vector<1x4352xi1> to vector<24x4352xi1>
    %16 = vector.broadcast %cst_9 : f32 to vector<24x4352xf32>
    %17 = arith.select %15, %10, %16 : vector<24x4352xi1>, vector<24x4352xf32>
    %18 = vector.extract_strided_slice %17 {offsets = [0, 0], sizes = [8, 4352], strides = [1, 1]} : vector<24x4352xf32> to vector<8x4352xf32>
    %19 = vector.extract_strided_slice %18 {offsets = [0, 4351], sizes = [8, 1], strides = [1, 1]} : vector<8x4352xf32> to vector<8x1xf32>
    %20 = vector.extract_strided_slice %18 {offsets = [0, 0], sizes = [8, 4351], strides = [1, 1]} : vector<8x4352xf32> to vector<8x4351xf32>
    %21 = tpu.concatenate %19, %20 in 1 : vector<8x1xf32>, vector<8x4351xf32> -> vector<8x4352xf32>
    %22 = arith.truncf %21 : vector<8x4352xf32> to vector<8x4352xbf16>
    %23 = arith.truncf %18 : vector<8x4352xf32> to vector<8x4352xbf16>
    %24 = vector.extract_strided_slice %18 {offsets = [0, 1], sizes = [8, 4351], strides = [1, 1]} : vector<8x4352xf32> to vector<8x4351xf32>
    %25 = vector.extract_strided_slice %18 {offsets = [0, 0], sizes = [8, 1], strides = [1, 1]} : vector<8x4352xf32> to vector<8x1xf32>
    %26 = tpu.concatenate %24, %25 in 1 : vector<8x4351xf32>, vector<8x1xf32> -> vector<8x4352xf32>
    %27 = arith.truncf %26 : vector<8x4352xf32> to vector<8x4352xbf16>
    %28 = vector.extract_strided_slice %22 {offsets = [0, 512], sizes = [8, 3072], strides = [1, 1]} : vector<8x4352xbf16> to vector<8x3072xbf16>
    %29 = vector.extract_strided_slice %23 {offsets = [0, 512], sizes = [8, 3072], strides = [1, 1]} : vector<8x4352xbf16> to vector<8x3072xbf16>
    %30 = vector.extract_strided_slice %27 {offsets = [0, 512], sizes = [8, 3072], strides = [1, 1]} : vector<8x4352xbf16> to vector<8x3072xbf16>
    %31 = vector.extract_strided_slice %22 {offsets = [0, 640], sizes = [8, 3072], strides = [1, 1]} : vector<8x4352xbf16> to vector<8x3072xbf16>
    %32 = vector.extract_strided_slice %23 {offsets = [0, 640], sizes = [8, 3072], strides = [1, 1]} : vector<8x4352xbf16> to vector<8x3072xbf16>
    %33 = vector.extract_strided_slice %27 {offsets = [0, 640], sizes = [8, 3072], strides = [1, 1]} : vector<8x4352xbf16> to vector<8x3072xbf16>
    %34 = vector.extract_strided_slice %22 {offsets = [0, 768], sizes = [8, 3072], strides = [1, 1]} : vector<8x4352xbf16> to vector<8x3072xbf16>
    %35 = vector.extract_strided_slice %23 {offsets = [0, 768], sizes = [8, 3072], strides = [1, 1]} : vector<8x4352xbf16> to vector<8x3072xbf16>
    %36 = vector.extract_strided_slice %27 {offsets = [0, 768], sizes = [8, 3072], strides = [1, 1]} : vector<8x4352xbf16> to vector<8x3072xbf16>
    %37 = vector.extract_strided_slice %17 {offsets = [8, 0], sizes = [8, 4352], strides = [1, 1]} : vector<24x4352xf32> to vector<8x4352xf32>
    %38 = vector.extract_strided_slice %37 {offsets = [0, 4350], sizes = [8, 2], strides = [1, 1]} : vector<8x4352xf32> to vector<8x2xf32>
    %39 = vector.extract_strided_slice %37 {offsets = [0, 0], sizes = [8, 4350], strides = [1, 1]} : vector<8x4352xf32> to vector<8x4350xf32>
    %40 = tpu.concatenate %38, %39 in 1 : vector<8x2xf32>, vector<8x4350xf32> -> vector<8x4352xf32>
    %41 = arith.truncf %40 : vector<8x4352xf32> to vector<8x4352xbf16>
    %42 = arith.truncf %37 : vector<8x4352xf32> to vector<8x4352xbf16>
    %43 = vector.extract_strided_slice %37 {offsets = [0, 2], sizes = [8, 4350], strides = [1, 1]} : vector<8x4352xf32> to vector<8x4350xf32>
    %44 = vector.extract_strided_slice %37 {offsets = [0, 0], sizes = [8, 2], strides = [1, 1]} : vector<8x4352xf32> to vector<8x2xf32>
    %45 = tpu.concatenate %43, %44 in 1 : vector<8x4350xf32>, vector<8x2xf32> -> vector<8x4352xf32>
    %46 = arith.truncf %45 : vector<8x4352xf32> to vector<8x4352xbf16>
    %47 = vector.extract_strided_slice %41 {offsets = [0, 384], sizes = [8, 3072], strides = [1, 1]} : vector<8x4352xbf16> to vector<8x3072xbf16>
    %48 = vector.extract_strided_slice %42 {offsets = [0, 384], sizes = [8, 3072], strides = [1, 1]} : vector<8x4352xbf16> to vector<8x3072xbf16>
    %49 = vector.extract_strided_slice %46 {offsets = [0, 384], sizes = [8, 3072], strides = [1, 1]} : vector<8x4352xbf16> to vector<8x3072xbf16>
    %50 = vector.extract_strided_slice %41 {offsets = [0, 640], sizes = [8, 3072], strides = [1, 1]} : vector<8x4352xbf16> to vector<8x3072xbf16>
    %51 = vector.extract_strided_slice %42 {offsets = [0, 640], sizes = [8, 3072], strides = [1, 1]} : vector<8x4352xbf16> to vector<8x3072xbf16>
    %52 = vector.extract_strided_slice %46 {offsets = [0, 640], sizes = [8, 3072], strides = [1, 1]} : vector<8x4352xbf16> to vector<8x3072xbf16>
    %53 = vector.extract_strided_slice %41 {offsets = [0, 896], sizes = [8, 3072], strides = [1, 1]} : vector<8x4352xbf16> to vector<8x3072xbf16>
    %54 = vector.extract_strided_slice %42 {offsets = [0, 896], sizes = [8, 3072], strides = [1, 1]} : vector<8x4352xbf16> to vector<8x3072xbf16>
    %55 = vector.extract_strided_slice %46 {offsets = [0, 896], sizes = [8, 3072], strides = [1, 1]} : vector<8x4352xbf16> to vector<8x3072xbf16>
    %56 = vector.extract_strided_slice %17 {offsets = [16, 0], sizes = [8, 4352], strides = [1, 1]} : vector<24x4352xf32> to vector<8x4352xf32>
    %57 = vector.extract_strided_slice %56 {offsets = [0, 4348], sizes = [8, 4], strides = [1, 1]} : vector<8x4352xf32> to vector<8x4xf32>
    %58 = vector.extract_strided_slice %56 {offsets = [0, 0], sizes = [8, 4348], strides = [1, 1]} : vector<8x4352xf32> to vector<8x4348xf32>
    %59 = tpu.concatenate %57, %58 in 1 : vector<8x4xf32>, vector<8x4348xf32> -> vector<8x4352xf32>
    %60 = arith.truncf %59 : vector<8x4352xf32> to vector<8x4352xbf16>
    %61 = arith.truncf %56 : vector<8x4352xf32> to vector<8x4352xbf16>
    %62 = vector.extract_strided_slice %56 {offsets = [0, 4], sizes = [8, 4348], strides = [1, 1]} : vector<8x4352xf32> to vector<8x4348xf32>
    %63 = vector.extract_strided_slice %56 {offsets = [0, 0], sizes = [8, 4], strides = [1, 1]} : vector<8x4352xf32> to vector<8x4xf32>
    %64 = tpu.concatenate %62, %63 in 1 : vector<8x4348xf32>, vector<8x4xf32> -> vector<8x4352xf32>
    %65 = arith.truncf %64 : vector<8x4352xf32> to vector<8x4352xbf16>
    %66 = vector.extract_strided_slice %60 {offsets = [0, 128], sizes = [8, 3072], strides = [1, 1]} : vector<8x4352xbf16> to vector<8x3072xbf16>
    %67 = vector.extract_strided_slice %61 {offsets = [0, 128], sizes = [8, 3072], strides = [1, 1]} : vector<8x4352xbf16> to vector<8x3072xbf16>
    %68 = vector.extract_strided_slice %65 {offsets = [0, 128], sizes = [8, 3072], strides = [1, 1]} : vector<8x4352xbf16> to vector<8x3072xbf16>
    %69 = vector.extract_strided_slice %60 {offsets = [0, 640], sizes = [8, 3072], strides = [1, 1]} : vector<8x4352xbf16> to vector<8x3072xbf16>
    %70 = vector.extract_strided_slice %61 {offsets = [0, 640], sizes = [8, 3072], strides = [1, 1]} : vector<8x4352xbf16> to vector<8x3072xbf16>
    %71 = vector.extract_strided_slice %65 {offsets = [0, 640], sizes = [8, 3072], strides = [1, 1]} : vector<8x4352xbf16> to vector<8x3072xbf16>
    %72 = vector.extract_strided_slice %60 {offsets = [0, 1152], sizes = [8, 3072], strides = [1, 1]} : vector<8x4352xbf16> to vector<8x3072xbf16>
    %73 = vector.extract_strided_slice %61 {offsets = [0, 1152], sizes = [8, 3072], strides = [1, 1]} : vector<8x4352xbf16> to vector<8x3072xbf16>
    %74 = vector.extract_strided_slice %65 {offsets = [0, 1152], sizes = [8, 3072], strides = [1, 1]} : vector<8x4352xbf16> to vector<8x3072xbf16>
    %75 = tpu.concatenate %28, %29, %30, %31, %32, %33, %34, %35, %36, %47, %48, %49, %50, %51, %52, %53 in 0 : vector<8x3072xbf16>, vector<8x3072xbf16>, vector<8x3072xbf16>, vector<8x3072xbf16>, vector<8x3072xbf16>, vector<8x3072xbf16>, vector<8x3072xbf16>, vector<8x3072xbf16>, vector<8x3072xbf16>, vector<8x3072xbf16>, vector<8x3072xbf16>, vector<8x3072xbf16>, vector<8x3072xbf16>, vector<8x3072xbf16>, vector<8x3072xbf16>, vector<8x3072xbf16> -> vector<128x3072xbf16>
    %76 = tpu.concatenate %54, %55, %66, %67, %68, %69, %70, %71, %72, %73, %74 in 0 : vector<8x3072xbf16>, vector<8x3072xbf16>, vector<8x3072xbf16>, vector<8x3072xbf16>, vector<8x3072xbf16>, vector<8x3072xbf16>, vector<8x3072xbf16>, vector<8x3072xbf16>, vector<8x3072xbf16>, vector<8x3072xbf16>, vector<8x3072xbf16> -> vector<88x3072xbf16>
    %77 = tpu.concatenate %75, %76 in 0 : vector<128x3072xbf16>, vector<88x3072xbf16> -> vector<216x3072xbf16>
    %c0_10 = arith.constant 0 : index
    %c0_11 = arith.constant 0 : index
    %78 = vector.load %arg5[%c0_10, %c0_11] : memref<8x216xbf16, #tpu.memory_space<vmem>>, vector<8x216xbf16>
    %cst_12 = arith.constant dense<0.000000e+00> : vector<8x3072xf32>
    %79 = tpu.matmul %78, %77, %cst_12 {dimension_numbers = #tpu.dot_dimension_numbers<[1], [0], [0], [1], [0, 0, 1, 1], [], []>} : vector<8x216xbf16>, vector<216x3072xbf16>, vector<8x3072xf32> -> vector<8x3072xf32>
    %c0_13 = arith.constant 0 : index
    %c0_14 = arith.constant 0 : index
    %80 = vector.load %arg6[%c0_13, %c0_14] : memref<8x1xf32, #tpu.memory_space<vmem>>, vector<8x1xf32>
    %81 = vector.broadcast %80 : vector<8x1xf32> to vector<8x3072xf32>
    %82 = arith.addf %79, %81 : vector<8x3072xf32>
    %cst_15 = arith.constant 0.000000e+00 : f32
    %83 = vector.broadcast %cst_15 : f32 to vector<8x640xf32>
    %c0_16 = arith.constant 0 : index
    %c0_17 = arith.constant 0 : index
    %c0_18 = arith.constant 0 : index
    %84 = vector.load %arg7[%c0_16, %c0_17, %c0_18] : memref<1x8x4352xf32, #tpu.memory_space<vmem>>, vector<1x8x640xf32>
    %85 = vector.shape_cast %84 : vector<1x8x640xf32> to vector<8x640xf32>
    %86 = vector.shape_cast %83 : vector<8x640xf32> to vector<1x8x640xf32>
    tpu.vector_store %arg7[%c0_16, %c0_17, %c0_18], %86 {strides = array<i32>} : memref<1x8x4352xf32, #tpu.memory_space<vmem>>, vector<1x8x640xf32>,
    %c0_19 = arith.constant 0 : index
    %c0_20 = arith.constant 0 : index
    %c640 = arith.constant 640 : index
    %87 = vector.load %arg7[%c0_19, %c0_20, %c640] : memref<1x8x4352xf32, #tpu.memory_space<vmem>>, vector<1x8x3072xf32>
    %88 = vector.shape_cast %87 : vector<1x8x3072xf32> to vector<8x3072xf32>
    %89 = vector.shape_cast %82 : vector<8x3072xf32> to vector<1x8x3072xf32>
    tpu.vector_store %arg7[%c0_19, %c0_20, %c640], %89 {strides = array<i32>} : memref<1x8x4352xf32, #tpu.memory_space<vmem>>, vector<1x8x3072xf32>,
    %c0_21 = arith.constant 0 : index
    %c0_22 = arith.constant 0 : index
    %c3712 = arith.constant 3712 : index
    %90 = vector.load %arg7[%c0_21, %c0_22, %c3712] : memref<1x8x4352xf32, #tpu.memory_space<vmem>>, vector<1x8x640xf32>
    %91 = vector.shape_cast %90 : vector<1x8x640xf32> to vector<8x640xf32>
    %92 = vector.shape_cast %83 : vector<8x640xf32> to vector<1x8x640xf32>
    tpu.vector_store %arg7[%c0_21, %c0_22, %c3712], %92 {strides = array<i32>} : memref<1x8x4352xf32, #tpu.memory_space<vmem>>, vector<1x8x640xf32>,
    return
  }
  func.func @transform_0(%arg0: i32) -> (i32, i32, i32) {
    %c0_i32 = arith.constant 0 : i32
    %c0_i32_0 = arith.constant 0 : i32
    %c0_i32_1 = arith.constant 0 : i32
    return %arg0, %c0_i32, %c0_i32_0 : i32, i32, i32
  }
  func.func @transform_1(%arg0: i32) -> (i32, i32) {
    %c0_i32 = arith.constant 0 : i32
    %c0_i32_0 = arith.constant 0 : i32
    %c0_i32_1 = arith.constant 0 : i32
    return %c0_i32, %c0_i32_0 : i32, i32
  }
  func.func @transform_2(%arg0: i32) -> (i32, i32) {
    %c0_i32 = arith.constant 0 : i32
    %c0_i32_0 = arith.constant 0 : i32
    %c0_i32_1 = arith.constant 0 : i32
    return %c0_i32, %c0_i32_0 : i32, i32
  }
  func.func @transform_3(%arg0: i32) -> (i32, i32) {
    %c0_i32 = arith.constant 0 : i32
    %c0_i32_0 = arith.constant 0 : i32
    %c0_i32_1 = arith.constant 0 : i32
    return %c0_i32, %c0_i32_0 : i32, i32
  }
  func.func @transform_4(%arg0: i32) -> (i32, i32) {
    %c0_i32 = arith.constant 0 : i32
    %c0_i32_0 = arith.constant 0 : i32
    %c0_i32_1 = arith.constant 0 : i32
    return %c0_i32, %c0_i32_0 : i32, i32
  }
  func.func @transform_5(%arg0: i32) -> (i32, i32) {
    %c0_i32 = arith.constant 0 : i32
    %c0_i32_0 = arith.constant 0 : i32
    %c0_i32_1 = arith.constant 0 : i32
    return %c0_i32, %c0_i32_0 : i32, i32
  }
  func.func @transform_6(%arg0: i32) -> (i32, i32, i32) {
    %c3_i32 = arith.constant 3 : i32
    %c0_i32 = arith.constant 0 : i32
    %c0_i32_0 = arith.constant 0 : i32
    return %arg0, %c3_i32, %c0_i32 : i32, i32, i32
  }
}

</mosaic_0001>

<llo_original>
// kernel: compressed_d2_block.3
$region0: #{compressed_d2_block.3}
  #allocation0 [shape = 'u32[]', space=smem, size = 0x4, offset = 0x4, fixed_abs, tag = 'smem constant byte address 0x4 - core index']
  #allocation1 [shape = 'u32[144,128]{1,0:T(1,128)}', space=vmem, size = 0x12000, scoped, tag = 'internal scratch']
  %s0 = inlined_call_operand.vmem [shape: f32[2,32,4352], index: 0, kind: input, shape index: {}, may-alias: {0,6}]
  %s1 = inlined_call_operand.vmem [shape: f32[1,4352], index: 1, kind: input, shape index: {}]
  %s2 = inlined_call_operand.vmem [shape: f32[8,1], index: 2, kind: input, shape index: {}]
  %s3 = inlined_call_operand.vmem [shape: f32[8,1], index: 3, kind: input, shape index: {}]
  %s4 = inlined_call_operand.vmem [shape: bf16[8,72], index: 4, kind: input, shape index: {}]
  %s5 = inlined_call_operand.vmem [shape: f32[8,1], index: 5, kind: input, shape index: {}]
  %s6 = inlined_call_operand.vmem [shape: f32[2,32,4352], index: 6, kind: output, shape index: {}, may-alias: {0,6}]
  %s7 = sld [smem:[#allocation0]]
  $region57: #{compressed_d2_block.3} parent=0
    _
  %s9 = ssub.s32 1, %s7
  %s10 = scalar_select 0, %s9, %s7
  loop: start=0, step=1, limit=4
  $region2: #{compressed_d2_block.3} parent=0 // loop_pre_header
    _
  $region3: #{compressed_d2_block.3} parent=0 // loop_header
    %s12 = sphi 0, %s16
    %p13 = scmp.ge.s32.totalorder %s12, 4
    %s22 = sphi 0, %s24
    %s25 = sphi 0, %s22
    %s26 = sphi 0, %s25
    %s42 = sphi 0, %s26
    %s46 = sphi 0, %s46
    %s48 = sphi 0, %s46
    %s49 = sphi 0, %s48
    %s63 = sphi 0, %s49
    %s67 = sphi 0, %s67
    %s69 = sphi 0, %s67
    %s70 = sphi 0, %s69
    %s84 = sphi 0, %s70
    %s88 = sphi 0, %s88
    %s90 = sphi 0, %s88
    %s91 = sphi 0, %s90
    %s105 = sphi 0, %s91
    %s109 = sphi 0, %s109
    %s111 = sphi 0, %s109
    %s112 = sphi 0, %s111
    %s126 = sphi 0, %s112
    %s130 = sphi 0, %s130
    %s132 = sphi 0, %s130
    %s133 = sphi 0, %s132
    %s147 = sphi 0, %s133
    %s153 = sphi 0, %s155
    %s156 = sphi 0, %s153
    %s157 = sphi 0, %s156
    %s173 = sphi 0, %s157
  $region4: #{compressed_d2_block.3} parent=0 // loop_header_branch
    %15 = sbr.rel (%p13) target = $region8
  $region5: #{compressed_d2_block.3} parent=0 // loop_body
    %s17 = ssub.s32 %s12, 1
    %s18 = ssub.s32 %s12, 2
    %s19 = sadd.s32 %s12, 1
    %s20 = ssub.s32 %s12, %s19
    %p21 = scmp.eq.s32.totalorder %s20, 0
    %s23 = sadd.s32 %s22, 1
    %s24 = scalar_select %p21, %s22, %s23
    %p27 = pneg %p21
    %p28 = scmp.eq.s32.totalorder %s12, 1
    %p29 = por %p27, %p28
    %p30 = scmp.ne.s32.totalorder %s22, %s25
    %p31 = scmp.eq.s32.totalorder %s12, 0
    %p32 = por %p30, %p31
    %p33 = scmp.ne.s32.totalorder %s22, %s25
    %p34 = scmp.eq.s32.totalorder %s17, 1
    %p35 = por %p33, %p34
    %p36 = scmp.ne.s32.totalorder %s25, %s26
    %p37 = scmp.eq.s32.totalorder %s17, 0
    %p38 = por %p36, %p37
    %p39 = scmp.ne.s32.totalorder %s25, %s26
    %p40 = scmp.eq.s32.totalorder %s18, 1
    %p41 = por %p39, %p40
    %p43 = scmp.ne.s32.totalorder %s26, %s42
    %p44 = scmp.eq.s32.totalorder %s18, 0
    %p45 = por %p43, %p44
    %s47 = sadd.s32 %s46, 1
    %p50 = scmp.eq.s32.totalorder %s12, 1
    %p51 = scmp.ne.s32.totalorder %s46, %s48
    %p52 = scmp.eq.s32.totalorder %s12, 0
    %p53 = por %p51, %p52
    %p54 = scmp.ne.s32.totalorder %s46, %s48
    %p55 = scmp.eq.s32.totalorder %s17, 1
    %p56 = por %p54, %p55
    %p57 = scmp.ne.s32.totalorder %s48, %s49
    %p58 = scmp.eq.s32.totalorder %s17, 0
    %p59 = por %p57, %p58
    %p60 = scmp.ne.s32.totalorder %s48, %s49
    %p61 = scmp.eq.s32.totalorder %s18, 1
    %p62 = por %p60, %p61
    %p64 = scmp.ne.s32.totalorder %s49, %s63
    %p65 = scmp.eq.s32.totalorder %s18, 0
    %p66 = por %p64, %p65
    %s68 = sadd.s32 %s67, 1
    %p71 = scmp.eq.s32.totalorder %s12, 1
    %p72 = scmp.ne.s32.totalorder %s67, %s69
    %p73 = scmp.eq.s32.totalorder %s12, 0
    %p74 = por %p72, %p73
    %p75 = scmp.ne.s32.totalorder %s67, %s69
    %p76 = scmp.eq.s32.totalorder %s17, 1
    %p77 = por %p75, %p76
    %p78 = scmp.ne.s32.totalorder %s69, %s70
    %p79 = scmp.eq.s32.totalorder %s17, 0
    %p80 = por %p78, %p79
    %p81 = scmp.ne.s32.totalorder %s69, %s70
    %p82 = scmp.eq.s32.totalorder %s18, 1
    %p83 = por %p81, %p82
    %p85 = scmp.ne.s32.totalorder %s70, %s84
    %p86 = scmp.eq.s32.totalorder %s18, 0
    %p87 = por %p85, %p86
    %s89 = sadd.s32 %s88, 1
    %p92 = scmp.eq.s32.totalorder %s12, 1
    %p93 = scmp.ne.s32.totalorder %s88, %s90
    %p94 = scmp.eq.s32.totalorder %s12, 0
    %p95 = por %p93, %p94
    %p96 = scmp.ne.s32.totalorder %s88, %s90
    %p97 = scmp.eq.s32.totalorder %s17, 1
    %p98 = por %p96, %p97
    %p99 = scmp.ne.s32.totalorder %s90, %s91
    %p100 = scmp.eq.s32.totalorder %s17, 0
    %p101 = por %p99, %p100
    %p102 = scmp.ne.s32.totalorder %s90, %s91
    %p103 = scmp.eq.s32.totalorder %s18, 1
    %p104 = por %p102, %p103
    %p106 = scmp.ne.s32.totalorder %s91, %s105
    %p107 = scmp.eq.s32.totalorder %s18, 0
    %p108 = por %p106, %p107
    %s110 = sadd.s32 %s109, 1
    %p113 = scmp.eq.s32.totalorder %s12, 1
    %p114 = scmp.ne.s32.totalorder %s109, %s111
    %p115 = scmp.eq.s32.totalorder %s12, 0
    %p116 = por %p114, %p115
    %p117 = scmp.ne.s32.totalorder %s109, %s111
    %p118 = scmp.eq.s32.totalorder %s17, 1
    %p119 = por %p117, %p118
    %p120 = scmp.ne.s32.totalorder %s111, %s112
    %p121 = scmp.eq.s32.totalorder %s17, 0
    %p122 = por %p120, %p121
    %p123 = scmp.ne.s32.totalorder %s111, %s112
    %p124 = scmp.eq.s32.totalorder %s18, 1
    %p125 = por %p123, %p124
    %p127 = scmp.ne.s32.totalorder %s112, %s126
    %p128 = scmp.eq.s32.totalorder %s18, 0
    %p129 = por %p127, %p128
    %s131 = sadd.s32 %s130, 1
    %p134 = scmp.eq.s32.totalorder %s12, 1
    %p135 = scmp.ne.s32.totalorder %s130, %s132
    %p136 = scmp.eq.s32.totalorder %s12, 0
    %p137 = por %p135, %p136
    %p138 = scmp.ne.s32.totalorder %s130, %s132
    %p139 = scmp.eq.s32.totalorder %s17, 1
    %p140 = por %p138, %p139
    %p141 = scmp.ne.s32.totalorder %s132, %s133
    %p142 = scmp.eq.s32.totalorder %s17, 0
    %p143 = por %p141, %p142
    %p144 = scmp.ne.s32.totalorder %s132, %s133
    %p145 = scmp.eq.s32.totalorder %s18, 1
    %p146 = por %p144, %p145
    %p148 = scmp.ne.s32.totalorder %s133, %s147
    %p149 = scmp.eq.s32.totalorder %s18, 0
    %p150 = por %p148, %p149
    %s151 = ssub.s32 %s12, %s19
    %p152 = scmp.eq.s32.totalorder %s151, 0
    %s154 = sadd.s32 %s153, 1
    %s155 = scalar_select %p152, %s153, %s154
    %p158 = pneg %p152
    %p159 = scmp.eq.s32.totalorder %s12, 1
    %p160 = por %p158, %p159
    %p161 = scmp.ne.s32.totalorder %s153, %s156
    %p162 = scmp.eq.s32.totalorder %s12, 0
    %p163 = por %p161, %p162
    %p164 = scmp.ne.s32.totalorder %s153, %s156
    %p165 = scmp.eq.s32.totalorder %s17, 1
    %p166 = por %p164, %p165
    %p167 = scmp.ne.s32.totalorder %s156, %s157
    %p168 = scmp.eq.s32.totalorder %s17, 0
    %p169 = por %p167, %p168
    %p170 = scmp.ne.s32.totalorder %s156, %s157
    %p171 = scmp.eq.s32.totalorder %s18, 1
    %p172 = por %p170, %p171
    %p174 = scmp.ne.s32.totalorder %s157, %s173
    %p175 = scmp.eq.s32.totalorder %s18, 0
    %p176 = por %p174, %p175
    %p177 = scmp.le.s32.totalorder 1, %s12
    %p178 = scmp.lt.s32.totalorder %s12, 3
    %p179 = pnand %p177, %p178
    %p180 = pneg %p179
    // Predicated region
    $region9: #{compressed_d2_block.3} parent=5 // pred_check
      _
    $region10: #{compressed_d2_block.3} parent=5 // pred_check_branch
      %182 = sbr.rel (%p179) target = $region12
    $region11: #{compressed_d2_block.3} parent=5 // pred_region
      %s183 = ssub.s32 %s12, 1
      // Predicated region
      $region13: #{compressed_d2_block.3} parent=11 // pred_check
        %p184 = pneg %p59
      $region14: #{compressed_d2_block.3} parent=11 // pred_check_branch
        %186 = sbr.rel (%p184) target = $region16
      $region15: #{compressed_d2_block.3} parent=11 // pred_region
        _
      $region16: #{compressed_d2_block.3} parent=11 // pred_fallthru
        _
      // Predicated region
      $region17: #{compressed_d2_block.3} parent=11 // pred_check
        %p187 = pneg %p80
      $region18: #{compressed_d2_block.3} parent=11 // pred_check_branch
        %189 = sbr.rel (%p187) target = $region20
      $region19: #{compressed_d2_block.3} parent=11 // pred_region
        _
      $region20: #{compressed_d2_block.3} parent=11 // pred_fallthru
        _
      // Predicated region
      $region21: #{compressed_d2_block.3} parent=11 // pred_check
        %p190 = pneg %p101
      $region22: #{compressed_d2_block.3} parent=11 // pred_check_branch
        %192 = sbr.rel (%p190) target = $region24
      $region23: #{compressed_d2_block.3} parent=11 // pred_region
        _
      $region24: #{compressed_d2_block.3} parent=11 // pred_fallthru
        _
      // Predicated region
      $region25: #{compressed_d2_block.3} parent=11 // pred_check
        %p193 = pneg %p122
      $region26: #{compressed_d2_block.3} parent=11 // pred_check_branch
        %195 = sbr.rel (%p193) target = $region28
      $region27: #{compressed_d2_block.3} parent=11 // pred_region
        _
      $region28: #{compressed_d2_block.3} parent=11 // pred_fallthru
        _
      // Predicated region
      $region29: #{compressed_d2_block.3} parent=11 // pred_check
        %p196 = pneg %p143
      $region30: #{compressed_d2_block.3} parent=11 // pred_check_branch
        %198 = sbr.rel (%p196) target = $region32
      $region31: #{compressed_d2_block.3} parent=11 // pred_region
        _
      $region32: #{compressed_d2_block.3} parent=11 // pred_fallthru
        _
    $region12: #{compressed_d2_block.3} parent=5 // pred_fallthru
      _
    %p199 = scmp.lt.s32.totalorder %s12, 2
    // Predicated region
    $region33: #{compressed_d2_block.3} parent=5 // pred_check
      %p200 = pneg %p199
    $region34: #{compressed_d2_block.3} parent=5 // pred_check_branch
      %202 = sbr.rel (%p200) target = $region36
    $region35: #{compressed_d2_block.3} parent=5 // pred_region
      // Predicated region
      $region37: #{compressed_d2_block.3} parent=35 // pred_check
        %p203 = pneg %p32
      $region38: #{compressed_d2_block.3} parent=35 // pred_check_branch
        %205 = sbr.rel (%p203) target = $region40
      $region39: #{compressed_d2_block.3} parent=35 // pred_region
        %p206 = scmp.lt.s32.totalorder %s12, 1
        %s207 = scalar_select %p206, %s12, 1
        %s208 = smul.addr %s207, 136
        %s209 = smul.addr %s208, 8
        %s210 = scalar_lea.vmem %s0, %s209
      $region40: #{compressed_d2_block.3} parent=35 // pred_fallthru
        _
    $region36: #{compressed_d2_block.3} parent=5 // pred_fallthru
      _
    %p211 = scmp.le.s32.totalorder 1, %s12
    %p212 = scmp.lt.s32.totalorder %s12, 3
    %p213 = pnand %p211, %p212
    %p214 = pneg %p213
    // Predicated region
    $region41: #{compressed_d2_block.3} parent=5 // pred_check
      _
    $region42: #{compressed_d2_block.3} parent=5 // pred_check_branch
      %216 = sbr.rel (%p213) target = $region44
    $region43: #{compressed_d2_block.3} parent=5 // pred_region
      %s217 = ssub.s32 %s12, 1
      %p218 = scmp.lt.s32.totalorder %s17, 1
      %s219 = scalar_select %p218, %s17, 1
      %s220 = smul.addr %s219, 136
      %s221 = smul.addr %s220, 8
      %s222 = scalar_lea.vmem %s0, %s221
      %p223 = pneg %p38
      %p224 = pneg %p35
      %p225 = pneg %p59
      %p226 = pneg %p56
      %p227 = pneg %p80
      %p228 = pneg %p77
      %p229 = pneg %p101
      %p230 = pneg %p98
      %p231 = pneg %p122
      %p232 = pneg %p119
      %p233 = pneg %p143
      %p234 = pneg %p140
      %p235 = pneg %p169
      %p236 = pneg %p166
      %p237 = scmp.lt.s32.totalorder %s17, 1
      %s238 = scalar_select %p237, %s17, 1
      %s239 = smul.addr %s238, 136
      %s240 = sadd.s32 34, %s239
      %s241 = smul.addr %s240, 8
      %s242 = scalar_lea.vmem %s6, %s241
      %p243 = scmp.lt.s32.totalorder %s17, 1
      %s244 = scalar_select %p243, %s17, 1
      %s245 = smul.addr %s244, 136
      %s246 = smul.addr %s245, 8
      %s247 = scalar_lea.vmem %s0, %s246
      %p248 = scmp.lt.s32.totalorder %s17, 1
      %s249 = scalar_select %p248, %s17, 1
      %s250 = smul.addr %s249, 136
      %s251 = sadd.s32 34, %s250
      %s252 = smul.addr %s251, 8
      %s253 = scalar_lea.vmem %s6, %s252
      %v255 = vld [vmem:[%s247 + $0x18] sm:$0xff]
      %v256 = vld [vmem:[%s247 + $0x20] sm:$0xff]
      %v257 = vld [vmem:[%s247 + $0x28] sm:$0xff]
      %v258 = vld [vmem:[%s247 + $0x30] sm:$0xff]
      %v259 = vld [vmem:[%s247 + $0x38] sm:$0xff]
      %v260 = vld [vmem:[%s247 + $0x40] sm:$0xff]
      %v261 = vld [vmem:[%s247 + $0x48] sm:$0xff]
      %v262 = vld [vmem:[%s247 + $0x50] sm:$0xff]
      %v263 = vld [vmem:[%s247 + $0x58] sm:$0xff]
      %v264 = vld [vmem:[%s247 + $0x60] sm:$0xff]
      %v265 = vld [vmem:[%s247 + $0x68] sm:$0xff]
      %v266 = vld [vmem:[%s247 + $0x70] sm:$0xff]
      %v267 = vld [vmem:[%s247 + $0x78] sm:$0xff]
      %v268 = vld [vmem:[%s247 + $0x80] sm:$0xff]
      %v269 = vld [vmem:[%s247 + $0x88] sm:$0xff]
      %v270 = vld [vmem:[%s247 + $0x90] sm:$0xff]
      %v271 = vld [vmem:[%s247 + $0x98] sm:$0xff]
      %v272 = vld [vmem:[%s247 + $0xa0] sm:$0xff]
      %v273 = vld [vmem:[%s247 + $0xa8] sm:$0xff]
      %v274 = vld [vmem:[%s247 + $0xb0] sm:$0xff]
      %v275 = vld [vmem:[%s247 + $0xb8] sm:$0xff]
      %v276 = vld [vmem:[%s247 + $0xc0] sm:$0xff]
      %v277 = vld [vmem:[%s247 + $0xc8] sm:$0xff]
      %v278 = vld [vmem:[%s247 + $0xd0] sm:$0xff]
      %v279 = vld [vmem:[%s247 + $0xd8] sm:$0xff]
      %v280 = vld [vmem:[%s247 + $0xe0] sm:$0xff]
      %v281 = vld [vmem:[%s247 + $0xe8] sm:$0xff]
      %v282 = vld [vmem:[%s247 + $0xf0] sm:$0xff]
      %v283 = vld [vmem:[%s2] sm:$0xff]
      %285 = vset.pattern.permute.xlu0 0
      %286 = vperm.xlu0 %285, %v283
      %v287 = vpop.permute.xlu0 %286
      %v289 = vmul.f32 %v255, %v287
      %v290 = vmul.f32 %v256, %v287
      %v291 = vmul.f32 %v257, %v287
      %v292 = vmul.f32 %v258, %v287
      %v293 = vmul.f32 %v259, %v287
      %v294 = vmul.f32 %v260, %v287
      %v295 = vmul.f32 %v261, %v287
      %v296 = vmul.f32 %v262, %v287
      %v297 = vmul.f32 %v263, %v287
      %v298 = vmul.f32 %v264, %v287
      %v299 = vmul.f32 %v265, %v287
      %v300 = vmul.f32 %v266, %v287
      %v301 = vmul.f32 %v267, %v287
      %v302 = vmul.f32 %v268, %v287
      %v303 = vmul.f32 %v269, %v287
      %v304 = vmul.f32 %v270, %v287
      %v305 = vmul.f32 %v271, %v287
      %v306 = vmul.f32 %v272, %v287
      %v307 = vmul.f32 %v273, %v287
      %v308 = vmul.f32 %v274, %v287
      %v309 = vmul.f32 %v275, %v287
      %v310 = vmul.f32 %v276, %v287
      %v311 = vmul.f32 %v277, %v287
      %v312 = vmul.f32 %v278, %v287
      %v313 = vmul.f32 %v279, %v287
      %v314 = vmul.f32 %v280, %v287
      %v315 = vmul.f32 %v281, %v287
      %v316 = vmul.f32 %v282, %v287
      %v317 = vld [vmem:[%s3] sm:$0xff]
      %319 = vset.pattern.permute.xlu0 0
      %320 = vperm.xlu0 %319, %v317
      %v321 = vpop.permute.xlu0 %320
      %v323 = vadd.f32 %v289, %v321
      %v324 = vadd.f32 %v290, %v321
      %v325 = vadd.f32 %v291, %v321
      %v326 = vadd.f32 %v292, %v321
      %v327 = vadd.f32 %v293, %v321
      %v328 = vadd.f32 %v294, %v321
      %v329 = vadd.f32 %v295, %v321
      %v330 = vadd.f32 %v296, %v321
      %v331 = vadd.f32 %v297, %v321
      %v332 = vadd.f32 %v298, %v321
      %v333 = vadd.f32 %v299, %v321
      %v334 = vadd.f32 %v300, %v321
      %v335 = vadd.f32 %v301, %v321
      %v336 = vadd.f32 %v302, %v321
      %v337 = vadd.f32 %v303, %v321
      %v338 = vadd.f32 %v304, %v321
      %v339 = vadd.f32 %v305, %v321
      %v340 = vadd.f32 %v306, %v321
      %v341 = vadd.f32 %v307, %v321
      %v342 = vadd.f32 %v308, %v321
      %v343 = vadd.f32 %v309, %v321
      %v344 = vadd.f32 %v310, %v321
      %v345 = vadd.f32 %v311, %v321
      %v346 = vadd.f32 %v312, %v321
      %v347 = vadd.f32 %v313, %v321
      %v348 = vadd.f32 %v314, %v321
      %v349 = vadd.f32 %v315, %v321
      %v350 = vadd.f32 %v316, %v321
      %v351 = vmul.f32 %v323, 0.0
      %v352 = vmul.f32 %v324, 0.0
      %v353 = vmul.f32 %v325, 0.0
      %v354 = vmul.f32 %v326, 0.0
      %v355 = vmul.f32 %v327, 0.0
      %v356 = vmul.f32 %v328, 0.0
      %v357 = vmul.f32 %v329, 0.0
      %v358 = vmul.f32 %v330, 0.0
      %v359 = vmul.f32 %v331, 0.0
      %v360 = vmul.f32 %v332, 0.0
      %v361 = vmul.f32 %v333, 0.0
      %v362 = vmul.f32 %v334, 0.0
      %v363 = vmul.f32 %v335, 0.0
      %v364 = vmul.f32 %v336, 0.0
      %v365 = vmul.f32 %v337, 0.0
      %v366 = vmul.f32 %v338, 0.0
      %v367 = vmul.f32 %v339, 0.0
      %v368 = vmul.f32 %v340, 0.0
      %v369 = vmul.f32 %v341, 0.0
      %v370 = vmul.f32 %v342, 0.0
      %v371 = vmul.f32 %v343, 0.0
      %v372 = vmul.f32 %v344, 0.0
      %v373 = vmul.f32 %v345, 0.0
      %v374 = vmul.f32 %v346, 0.0
      %v375 = vmul.f32 %v347, 0.0
      %v376 = vmul.f32 %v348, 0.0
      %v377 = vmul.f32 %v349, 0.0
      %v378 = vmul.f32 %v350, 0.0
      %v379 = vmax.f32 %v323, %v351
      %v380 = vmax.f32 %v324, %v352
      %v381 = vmax.f32 %v325, %v353
      %v382 = vmax.f32 %v326, %v354
      %v383 = vmax.f32 %v327, %v355
      %v384 = vmax.f32 %v328, %v356
      %v385 = vmax.f32 %v329, %v357
      %v386 = vmax.f32 %v330, %v358
      %v387 = vmax.f32 %v331, %v359
      %v388 = vmax.f32 %v332, %v360
      %v389 = vmax.f32 %v333, %v361
      %v390 = vmax.f32 %v334, %v362
      %v391 = vmax.f32 %v335, %v363
      %v392 = vmax.f32 %v336, %v364
      %v393 = vmax.f32 %v337, %v365
      %v394 = vmax.f32 %v338, %v366
      %v395 = vmax.f32 %v339, %v367
      %v396 = vmax.f32 %v340, %v368
      %v397 = vmax.f32 %v341, %v369
      %v398 = vmax.f32 %v342, %v370
      %v399 = vmax.f32 %v343, %v371
      %v400 = vmax.f32 %v344, %v372
      %v401 = vmax.f32 %v345, %v373
      %v402 = vmax.f32 %v346, %v374
      %v403 = vmax.f32 %v347, %v375
      %v404 = vmax.f32 %v348, %v376
      %v405 = vmax.f32 %v349, %v377
      %v406 = vmax.f32 %v350, %v378
      %v407 = vld [vmem:[%s1] sm:$0xff]
      %v408 = vld [vmem:[%s1 + $0x8] sm:$0xff]
      %v409 = vld [vmem:[%s1 + $0x10] sm:$0xff]
      %v410 = vld [vmem:[%s1 + $0x18] sm:$0xff]
      %vm411 = vcmp.gt.f32.partialorder %v407, 0.5
      %vm412 = vcmp.gt.f32.partialorder %v408, 0.5
      %vm413 = vcmp.gt.f32.partialorder %v409, 0.5
      %vm414 = vcmp.gt.f32.partialorder %v410, 0.5
      %v415 = vsel %vm411, 1, 0
      %v416 = vsel %vm412, 1, 0
      %v417 = vsel %vm413, 1, 0
      %v418 = vsel %vm414, 1, 0
      %v419 = vlaneseq
      %v420 = vshrl.u32 %v419, 7
      %v421 = vsub.s32 3, %v420
      %v422 = vrot.slane %v415, %v421
      %v423 = vlaneseq
      %v424 = vshrl.u32 %v423, 7
      %v425 = vsub.s32 4, %v424
      %v426 = vrot.slane %v415, %v425
      %v427 = vlaneseq
      %v428 = vshrl.u32 %v427, 7
      %v429 = vsub.s32 5, %v428
      %v430 = vrot.slane %v415, %v429
      %v431 = vlaneseq
      %v432 = vshrl.u32 %v431, 7
      %v433 = vsub.s32 6, %v432
      %v434 = vrot.slane %v415, %v433
      %v435 = vlaneseq
      %v436 = vshrl.u32 %v435, 7
      %v437 = vsub.s32 7, %v436
      %v438 = vrot.slane %v415, %v437
      %v439 = vlaneseq
      %v440 = vshrl.u32 %v439, 7
      %v441 = vsub.s32 0, %v440
      %v442 = vrot.slane %v416, %v441
      %v443 = vlaneseq
      %v444 = vshrl.u32 %v443, 7
      %v445 = vsub.s32 1, %v444
      %v446 = vrot.slane %v416, %v445
      %v447 = vlaneseq
      %v448 = vshrl.u32 %v447, 7
      %v449 = vsub.s32 2, %v448
      %v450 = vrot.slane %v416, %v449
      %v451 = vlaneseq
      %v452 = vshrl.u32 %v451, 7
      %v453 = vsub.s32 3, %v452
      %v454 = vrot.slane %v416, %v453
      %v455 = vlaneseq
      %v456 = vshrl.u32 %v455, 7
      %v457 = vsub.s32 4, %v456
      %v458 = vrot.slane %v416, %v457
      %v459 = vlaneseq
      %v460 = vshrl.u32 %v459, 7
      %v461 = vsub.s32 5, %v460
      %v462 = vrot.slane %v416, %v461
      %v463 = vlaneseq
      %v464 = vshrl.u32 %v463, 7
      %v465 = vsub.s32 6, %v464
      %v466 = vrot.slane %v416, %v465
      %v467 = vlaneseq
      %v468 = vshrl.u32 %v467, 7
      %v469 = vsub.s32 7, %v468
      %v470 = vrot.slane %v416, %v469
      %v471 = vlaneseq
      %v472 = vshrl.u32 %v471, 7
      %v473 = vsub.s32 0, %v472
      %v474 = vrot.slane %v417, %v473
      %v475 = vlaneseq
      %v476 = vshrl.u32 %v475, 7
      %v477 = vsub.s32 1, %v476
      %v478 = vrot.slane %v417, %v477
      %v479 = vlaneseq
      %v480 = vshrl.u32 %v479, 7
      %v481 = vsub.s32 2, %v480
      %v482 = vrot.slane %v417, %v481
      %v483 = vlaneseq
      %v484 = vshrl.u32 %v483, 7
      %v485 = vsub.s32 3, %v484
      %v486 = vrot.slane %v417, %v485
      %v487 = vlaneseq
      %v488 = vshrl.u32 %v487, 7
      %v489 = vsub.s32 4, %v488
      %v490 = vrot.slane %v417, %v489
      %v491 = vlaneseq
      %v492 = vshrl.u32 %v491, 7
      %v493 = vsub.s32 5, %v492
      %v494 = vrot.slane %v417, %v493
      %v495 = vlaneseq
      %v496 = vshrl.u32 %v495, 7
      %v497 = vsub.s32 6, %v496
      %v498 = vrot.slane %v417, %v497
      %v499 = vlaneseq
      %v500 = vshrl.u32 %v499, 7
      %v501 = vsub.s32 7, %v500
      %v502 = vrot.slane %v417, %v501
      %v503 = vlaneseq
      %v504 = vshrl.u32 %v503, 7
      %v505 = vsub.s32 0, %v504
      %v506 = vrot.slane %v418, %v505
      %v507 = vlaneseq
      %v508 = vshrl.u32 %v507, 7
      %v509 = vsub.s32 1, %v508
      %v510 = vrot.slane %v418, %v509
      %v511 = vlaneseq
      %v512 = vshrl.u32 %v511, 7
      %v513 = vsub.s32 2, %v512
      %v514 = vrot.slane %v418, %v513
      %v515 = vlaneseq
      %v516 = vshrl.u32 %v515, 7
      %v517 = vsub.s32 3, %v516
      %v518 = vrot.slane %v418, %v517
      %v519 = vlaneseq
      %v520 = vshrl.u32 %v519, 7
      %v521 = vsub.s32 4, %v520
      %v522 = vrot.slane %v418, %v521
      %v523 = vlaneseq
      %v524 = vshrl.u32 %v523, 7
      %v525 = vsub.s32 5, %v524
      %v526 = vrot.slane %v418, %v525
      %v527 = vlaneseq
      %v528 = vshrl.u32 %v527, 7
      %v529 = vsub.s32 6, %v528
      %v530 = vrot.slane %v418, %v529
      %vm531 = vcmp.eq.s32.totalorder %v422, 1
      %vm532 = vcmp.eq.s32.totalorder %v426, 1
      %vm533 = vcmp.eq.s32.totalorder %v430, 1
      %vm534 = vcmp.eq.s32.totalorder %v434, 1
      %vm535 = vcmp.eq.s32.totalorder %v438, 1
      %vm536 = vcmp.eq.s32.totalorder %v442, 1
      %vm537 = vcmp.eq.s32.totalorder %v446, 1
      %vm538 = vcmp.eq.s32.totalorder %v450, 1
      %vm539 = vcmp.eq.s32.totalorder %v454, 1
      %vm540 = vcmp.eq.s32.totalorder %v458, 1
      %vm541 = vcmp.eq.s32.totalorder %v462, 1
      %vm542 = vcmp.eq.s32.totalorder %v466, 1
      %vm543 = vcmp.eq.s32.totalorder %v470, 1
      %vm544 = vcmp.eq.s32.totalorder %v474, 1
      %vm545 = vcmp.eq.s32.totalorder %v478, 1
      %vm546 = vcmp.eq.s32.totalorder %v482, 1
      %vm547 = vcmp.eq.s32.totalorder %v486, 1
      %vm548 = vcmp.eq.s32.totalorder %v490, 1
      %vm549 = vcmp.eq.s32.totalorder %v494, 1
      %vm550 = vcmp.eq.s32.totalorder %v498, 1
      %vm551 = vcmp.eq.s32.totalorder %v502, 1
      %vm552 = vcmp.eq.s32.totalorder %v506, 1
      %vm553 = vcmp.eq.s32.totalorder %v510, 1
      %vm554 = vcmp.eq.s32.totalorder %v514, 1
      %vm555 = vcmp.eq.s32.totalorder %v518, 1
      %vm556 = vcmp.eq.s32.totalorder %v522, 1
      %vm557 = vcmp.eq.s32.totalorder %v526, 1
      %vm558 = vcmp.eq.s32.totalorder %v530, 1
      %v559 = vsel %vm531, %v379, 0.0
      %v560 = vsel %vm532, %v380, 0.0
      %v561 = vsel %vm533, %v381, 0.0
      %v562 = vsel %vm534, %v382, 0.0
      %v563 = vsel %vm535, %v383, 0.0
      %v564 = vsel %vm536, %v384, 0.0
      %v565 = vsel %vm537, %v385, 0.0
      %v566 = vsel %vm538, %v386, 0.0
      %v567 = vsel %vm539, %v387, 0.0
      %v568 = vsel %vm540, %v388, 0.0
      %v569 = vsel %vm541, %v389, 0.0
      %v570 = vsel %vm542, %v390, 0.0
      %v571 = vsel %vm543, %v391, 0.0
      %v572 = vsel %vm544, %v392, 0.0
      %v573 = vsel %vm545, %v393, 0.0
      %v574 = vsel %vm546, %v394, 0.0
      %v575 = vsel %vm547, %v395, 0.0
      %v576 = vsel %vm548, %v396, 0.0
      %v577 = vsel %vm549, %v397, 0.0
      %v578 = vsel %vm550, %v398, 0.0
      %v579 = vsel %vm551, %v399, 0.0
      %v580 = vsel %vm552, %v400, 0.0
      %v581 = vsel %vm553, %v401, 0.0
      %v582 = vsel %vm554, %v402, 0.0
      %v583 = vsel %vm555, %v403, 0.0
      %v584 = vsel %vm556, %v404, 0.0
      %v585 = vsel %vm557, %v405, 0.0
      %v586 = vsel %vm558, %v406, 0.0
      %614 = vrot.lane.b32.xlu0 %v559, 1
      %v615 = vpop.permute.xlu0 %614
      %616 = vrot.lane.b32.xlu0 %v560, 1
      %v617 = vpop.permute.xlu0 %616
      %618 = vrot.lane.b32.xlu0 %v561, 1
      %v619 = vpop.permute.xlu0 %618
      %620 = vrot.lane.b32.xlu0 %v562, 1
      %v621 = vpop.permute.xlu0 %620
      %622 = vrot.lane.b32.xlu0 %v563, 1
      %v623 = vpop.permute.xlu0 %622
      %624 = vrot.lane.b32.xlu0 %v564, 1
      %v625 = vpop.permute.xlu0 %624
      %626 = vrot.lane.b32.xlu0 %v565, 1
      %v627 = vpop.permute.xlu0 %626
      %628 = vrot.lane.b32.xlu0 %v566, 1
      %v629 = vpop.permute.xlu0 %628
      %630 = vrot.lane.b32.xlu0 %v567, 1
      %v631 = vpop.permute.xlu0 %630
      %632 = vrot.lane.b32.xlu0 %v568, 1
      %v633 = vpop.permute.xlu0 %632
      %634 = vrot.lane.b32.xlu0 %v569, 1
      %v635 = vpop.permute.xlu0 %634
      %636 = vrot.lane.b32.xlu0 %v570, 1
      %v637 = vpop.permute.xlu0 %636
      %638 = vrot.lane.b32.xlu0 %v571, 1
      %v639 = vpop.permute.xlu0 %638
      %640 = vrot.lane.b32.xlu0 %v572, 1
      %v641 = vpop.permute.xlu0 %640
      %642 = vrot.lane.b32.xlu0 %v573, 1
      %v643 = vpop.permute.xlu0 %642
      %644 = vrot.lane.b32.xlu0 %v574, 1
      %v645 = vpop.permute.xlu0 %644
      %646 = vrot.lane.b32.xlu0 %v575, 1
      %v647 = vpop.permute.xlu0 %646
      %648 = vrot.lane.b32.xlu0 %v576, 1
      %v649 = vpop.permute.xlu0 %648
      %650 = vrot.lane.b32.xlu0 %v577, 1
      %v651 = vpop.permute.xlu0 %650
      %652 = vrot.lane.b32.xlu0 %v578, 1
      %v653 = vpop.permute.xlu0 %652
      %654 = vrot.lane.b32.xlu0 %v579, 1
      %v655 = vpop.permute.xlu0 %654
      %656 = vrot.lane.b32.xlu0 %v580, 1
      %v657 = vpop.permute.xlu0 %656
      %658 = vrot.lane.b32.xlu0 %v581, 1
      %v659 = vpop.permute.xlu0 %658
      %660 = vrot.lane.b32.xlu0 %v582, 1
      %v661 = vpop.permute.xlu0 %660
      %662 = vrot.lane.b32.xlu0 %v583, 1
      %v663 = vpop.permute.xlu0 %662
      %664 = vrot.lane.b32.xlu0 %v584, 1
      %v665 = vpop.permute.xlu0 %664
      %666 = vrot.lane.b32.xlu0 %v585, 1
      %v667 = vpop.permute.xlu0 %666
      %vm668 = vcmask 7168
      %v669 = vsel %vm668, %v615, %v617
      %v670 = vsel %vm668, %v617, %v619
      %v671 = vsel %vm668, %v619, %v621
      %v672 = vsel %vm668, %v621, %v623
      %v673 = vsel %vm668, %v623, %v625
      %v674 = vsel %vm668, %v625, %v627
      %v675 = vsel %vm668, %v627, %v629
      %v676 = vsel %vm668, %v629, %v631
      %v677 = vsel %vm668, %v631, %v633
      %v678 = vsel %vm668, %v633, %v635
      %v679 = vsel %vm668, %v635, %v637
      %v680 = vsel %vm668, %v637, %v639
      %v681 = vsel %vm668, %v639, %v641
      %v682 = vsel %vm668, %v641, %v643
      %v683 = vsel %vm668, %v643, %v645
      %v684 = vsel %vm668, %v645, %v647
      %v685 = vsel %vm668, %v647, %v649
      %v686 = vsel %vm668, %v649, %v651
      %v687 = vsel %vm668, %v651, %v653
      %v688 = vsel %vm668, %v653, %v655
      %v689 = vsel %vm668, %v655, %v657
      %v690 = vsel %vm668, %v657, %v659
      %v691 = vsel %vm668, %v659, %v661
      %v692 = vsel %vm668, %v661, %v663
      %v693 = vsel %vm668, %v663, %v665
      %v694 = vsel %vm668, %v665, %v667
      %v721 = vpack.c.bf16 %v669, %v669
      %v722 = vpack.c.bf16 %v670, %v670
      %v723 = vpack.c.bf16 %v671, %v671
      %v724 = vpack.c.bf16 %v672, %v672
      %v725 = vpack.c.bf16 %v673, %v673
      %v726 = vpack.c.bf16 %v674, %v674
      %v727 = vpack.c.bf16 %v675, %v675
      %v728 = vpack.c.bf16 %v676, %v676
      %v729 = vpack.c.bf16 %v677, %v677
      %v730 = vpack.c.bf16 %v678, %v678
      %v731 = vpack.c.bf16 %v679, %v679
      %v732 = vpack.c.bf16 %v680, %v680
      %v733 = vpack.c.bf16 %v681, %v681
      %v734 = vpack.c.bf16 %v682, %v682
      %v735 = vpack.c.bf16 %v683, %v683
      %v736 = vpack.c.bf16 %v684, %v684
      %v737 = vpack.c.bf16 %v685, %v685
      %v738 = vpack.c.bf16 %v686, %v686
      %v739 = vpack.c.bf16 %v687, %v687
      %v740 = vpack.c.bf16 %v688, %v688
      %v741 = vpack.c.bf16 %v689, %v689
      %v742 = vpack.c.bf16 %v690, %v690
      %v743 = vpack.c.bf16 %v691, %v691
      %v744 = vpack.c.bf16 %v692, %v692
      %v745 = vpack.c.bf16 %v693, %v693
      %v746 = vpack.c.bf16 %v694, %v694
      %v747 = vpack.c.bf16 %v560, %v560
      %v748 = vpack.c.bf16 %v561, %v561
      %v749 = vpack.c.bf16 %v562, %v562
      %v750 = vpack.c.bf16 %v563, %v563
      %v751 = vpack.c.bf16 %v564, %v564
      %v752 = vpack.c.bf16 %v565, %v565
      %v753 = vpack.c.bf16 %v566, %v566
      %v754 = vpack.c.bf16 %v567, %v567
      %v755 = vpack.c.bf16 %v568, %v568
      %v756 = vpack.c.bf16 %v569, %v569
      %v757 = vpack.c.bf16 %v570, %v570
      %v758 = vpack.c.bf16 %v571, %v571
      %v759 = vpack.c.bf16 %v572, %v572
      %v760 = vpack.c.bf16 %v573, %v573
      %v761 = vpack.c.bf16 %v574, %v574
      %v762 = vpack.c.bf16 %v575, %v575
      %v763 = vpack.c.bf16 %v576, %v576
      %v764 = vpack.c.bf16 %v577, %v577
      %v765 = vpack.c.bf16 %v578, %v578
      %v766 = vpack.c.bf16 %v579, %v579
      %v767 = vpack.c.bf16 %v580, %v580
      %v768 = vpack.c.bf16 %v581, %v581
      %v769 = vpack.c.bf16 %v582, %v582
      %v770 = vpack.c.bf16 %v583, %v583
      %v771 = vpack.c.bf16 %v584, %v584
      %v772 = vpack.c.bf16 %v585, %v585
      %774 = vrot.lane.b32.xlu0 %v560, 127
      %v775 = vpop.permute.xlu0 %774
      %776 = vrot.lane.b32.xlu0 %v561, 127
      %v777 = vpop.permute.xlu0 %776
      %778 = vrot.lane.b32.xlu0 %v562, 127
      %v779 = vpop.permute.xlu0 %778
      %780 = vrot.lane.b32.xlu0 %v563, 127
      %v781 = vpop.permute.xlu0 %780
      %782 = vrot.lane.b32.xlu0 %v564, 127
      %v783 = vpop.permute.xlu0 %782
      %784 = vrot.lane.b32.xlu0 %v565, 127
      %v785 = vpop.permute.xlu0 %784
      %786 = vrot.lane.b32.xlu0 %v566, 127
      %v787 = vpop.permute.xlu0 %786
      %788 = vrot.lane.b32.xlu0 %v567, 127
      %v789 = vpop.permute.xlu0 %788
      %790 = vrot.lane.b32.xlu0 %v568, 127
      %v791 = vpop.permute.xlu0 %790
      %792 = vrot.lane.b32.xlu0 %v569, 127
      %v793 = vpop.permute.xlu0 %792
      %794 = vrot.lane.b32.xlu0 %v570, 127
      %v795 = vpop.permute.xlu0 %794
      %796 = vrot.lane.b32.xlu0 %v571, 127
      %v797 = vpop.permute.xlu0 %796
      %798 = vrot.lane.b32.xlu0 %v572, 127
      %v799 = vpop.permute.xlu0 %798
      %800 = vrot.lane.b32.xlu0 %v573, 127
      %v801 = vpop.permute.xlu0 %800
      %802 = vrot.lane.b32.xlu0 %v574, 127
      %v803 = vpop.permute.xlu0 %802
      %804 = vrot.lane.b32.xlu0 %v575, 127
      %v805 = vpop.permute.xlu0 %804
      %806 = vrot.lane.b32.xlu0 %v576, 127
      %v807 = vpop.permute.xlu0 %806
      %808 = vrot.lane.b32.xlu0 %v577, 127
      %v809 = vpop.permute.xlu0 %808
      %810 = vrot.lane.b32.xlu0 %v578, 127
      %v811 = vpop.permute.xlu0 %810
      %812 = vrot.lane.b32.xlu0 %v579, 127
      %v813 = vpop.permute.xlu0 %812
      %814 = vrot.lane.b32.xlu0 %v580, 127
      %v815 = vpop.permute.xlu0 %814
      %816 = vrot.lane.b32.xlu0 %v581, 127
      %v817 = vpop.permute.xlu0 %816
      %818 = vrot.lane.b32.xlu0 %v582, 127
      %v819 = vpop.permute.xlu0 %818
      %820 = vrot.lane.b32.xlu0 %v583, 127
      %v821 = vpop.permute.xlu0 %820
      %822 = vrot.lane.b32.xlu0 %v584, 127
      %v823 = vpop.permute.xlu0 %822
      %824 = vrot.lane.b32.xlu0 %v585, 127
      %v825 = vpop.permute.xlu0 %824
      %826 = vrot.lane.b32.xlu0 %v586, 127
      %v827 = vpop.permute.xlu0 %826
      %vm828 = vcmask 1039360
      %v829 = vsel %vm828, %v775, %v777
      %v830 = vsel %vm828, %v777, %v779
      %v831 = vsel %vm828, %v779, %v781
      %v832 = vsel %vm828, %v781, %v783
      %v833 = vsel %vm828, %v783, %v785
      %v834 = vsel %vm828, %v785, %v787
      %v835 = vsel %vm828, %v787, %v789
      %v836 = vsel %vm828, %v789, %v791
      %v837 = vsel %vm828, %v791, %v793
      %v838 = vsel %vm828, %v793, %v795
      %v839 = vsel %vm828, %v795, %v797
      %v840 = vsel %vm828, %v797, %v799
      %v841 = vsel %vm828, %v799, %v801
      %v842 = vsel %vm828, %v801, %v803
      %v843 = vsel %vm828, %v803, %v805
      %v844 = vsel %vm828, %v805, %v807
      %v845 = vsel %vm828, %v807, %v809
      %v846 = vsel %vm828, %v809, %v811
      %v847 = vsel %vm828, %v811, %v813
      %v848 = vsel %vm828, %v813, %v815
      %v849 = vsel %vm828, %v815, %v817
      %v850 = vsel %vm828, %v817, %v819
      %v851 = vsel %vm828, %v819, %v821
      %v852 = vsel %vm828, %v821, %v823
      %v853 = vsel %vm828, %v823, %v825
      %v854 = vsel %vm828, %v825, %v827
      %v881 = vpack.c.bf16 %v829, %v829
      %v882 = vpack.c.bf16 %v830, %v830
      %v883 = vpack.c.bf16 %v831, %v831
      %v884 = vpack.c.bf16 %v832, %v832
      %v885 = vpack.c.bf16 %v833, %v833
      %v886 = vpack.c.bf16 %v834, %v834
      %v887 = vpack.c.bf16 %v835, %v835
      %v888 = vpack.c.bf16 %v836, %v836
      %v889 = vpack.c.bf16 %v837, %v837
      %v890 = vpack.c.bf16 %v838, %v838
      %v891 = vpack.c.bf16 %v839, %v839
      %v892 = vpack.c.bf16 %v840, %v840
      %v893 = vpack.c.bf16 %v841, %v841
      %v894 = vpack.c.bf16 %v842, %v842
      %v895 = vpack.c.bf16 %v843, %v843
      %v896 = vpack.c.bf16 %v844, %v844
      %v897 = vpack.c.bf16 %v845, %v845
      %v898 = vpack.c.bf16 %v846, %v846
      %v899 = vpack.c.bf16 %v847, %v847
      %v900 = vpack.c.bf16 %v848, %v848
      %v901 = vpack.c.bf16 %v849, %v849
      %v902 = vpack.c.bf16 %v850, %v850
      %v903 = vpack.c.bf16 %v851, %v851
      %v904 = vpack.c.bf16 %v852, %v852
      %v905 = vpack.c.bf16 %v853, %v853
      %v906 = vpack.c.bf16 %v854, %v854
      %v931 = vrot.slane %v747, 4
      %v932 = vrot.slane %v748, 4
      %v933 = vrot.slane %v749, 4
      %v934 = vrot.slane %v750, 4
      %v935 = vrot.slane %v751, 4
      %v936 = vrot.slane %v752, 4
      %v937 = vrot.slane %v753, 4
      %v938 = vrot.slane %v754, 4
      %v939 = vrot.slane %v755, 4
      %v940 = vrot.slane %v756, 4
      %v941 = vrot.slane %v757, 4
      %v942 = vrot.slane %v758, 4
      %v943 = vrot.slane %v759, 4
      %v944 = vrot.slane %v760, 4
      %v945 = vrot.slane %v761, 4
      %v946 = vrot.slane %v762, 4
      %v947 = vrot.slane %v763, 4
      %v948 = vrot.slane %v764, 4
      %v949 = vrot.slane %v765, 4
      %v950 = vrot.slane %v766, 4
      %v951 = vrot.slane %v767, 4
      %v952 = vrot.slane %v768, 4
      %v953 = vrot.slane %v769, 4
      %v954 = vrot.slane %v770, 4
      %v979 = vrot.slane %v722, 4
      %v980 = vrot.slane %v723, 4
      %v981 = vrot.slane %v724, 4
      %v982 = vrot.slane %v725, 4
      %v983 = vrot.slane %v726, 4
      %v984 = vrot.slane %v727, 4
      %v985 = vrot.slane %v728, 4
      %v986 = vrot.slane %v729, 4
      %v987 = vrot.slane %v730, 4
      %v988 = vrot.slane %v731, 4
      %v989 = vrot.slane %v732, 4
      %v990 = vrot.slane %v733, 4
      %v991 = vrot.slane %v734, 4
      %v992 = vrot.slane %v735, 4
      %v993 = vrot.slane %v736, 4
      %v994 = vrot.slane %v737, 4
      %v995 = vrot.slane %v738, 4
      %v996 = vrot.slane %v739, 4
      %v997 = vrot.slane %v740, 4
      %v998 = vrot.slane %v741, 4
      %v999 = vrot.slane %v742, 4
      %v1000 = vrot.slane %v743, 4
      %v1001 = vrot.slane %v744, 4
      %v1002 = vrot.slane %v745, 4
      %v1027 = vrot.slane %v882, 4
      %v1028 = vrot.slane %v883, 4
      %v1029 = vrot.slane %v884, 4
      %v1030 = vrot.slane %v885, 4
      %v1031 = vrot.slane %v886, 4
      %v1032 = vrot.slane %v887, 4
      %v1033 = vrot.slane %v888, 4
      %v1034 = vrot.slane %v889, 4
      %v1035 = vrot.slane %v890, 4
      %v1036 = vrot.slane %v891, 4
      %v1037 = vrot.slane %v892, 4
      %v1038 = vrot.slane %v893, 4
      %v1039 = vrot.slane %v894, 4
      %v1040 = vrot.slane %v895, 4
      %v1041 = vrot.slane %v896, 4
      %v1042 = vrot.slane %v897, 4
      %v1043 = vrot.slane %v898, 4
      %v1044 = vrot.slane %v899, 4
      %v1045 = vrot.slane %v900, 4
      %v1046 = vrot.slane %v901, 4
      %v1047 = vrot.slane %v902, 4
      %v1048 = vrot.slane %v903, 4
      %v1049 = vrot.slane %v904, 4
      %v1050 = vrot.slane %v905, 4
      %v1053 = vrot.slane %v771, 4
      %v1054 = vrot.slane %v772, 4
      %vm1055 = vcmask 1043456
      %v1058 = vsel %vm1055, %v721, %v931
      %v1062 = vsel %vm1055, %v722, %v932
      %v1066 = vsel %vm1055, %v723, %v933
      %v1070 = vsel %vm1055, %v724, %v934
      %v1074 = vsel %vm1055, %v725, %v935
      %v1078 = vsel %vm1055, %v726, %v936
      %v1082 = vsel %vm1055, %v727, %v937
      %v1086 = vsel %vm1055, %v728, %v938
      %v1090 = vsel %vm1055, %v729, %v939
      %v1094 = vsel %vm1055, %v730, %v940
      %v1098 = vsel %vm1055, %v731, %v941
      %v1102 = vsel %vm1055, %v732, %v942
      %v1106 = vsel %vm1055, %v733, %v943
      %v1110 = vsel %vm1055, %v734, %v944
      %v1114 = vsel %vm1055, %v735, %v945
      %v1118 = vsel %vm1055, %v736, %v946
      %v1122 = vsel %vm1055, %v737, %v947
      %v1126 = vsel %vm1055, %v738, %v948
      %v1130 = vsel %vm1055, %v739, %v949
      %v1134 = vsel %vm1055, %v740, %v950
      %v1138 = vsel %vm1055, %v741, %v951
      %v1142 = vsel %vm1055, %v742, %v952
      %v1146 = vsel %vm1055, %v743, %v953
      %v1150 = vsel %vm1055, %v744, %v954
      %v1154 = vsel %vm1055, %v881, %v979
      %v1158 = vsel %vm1055, %v882, %v980
      %v1162 = vsel %vm1055, %v883, %v981
      %v1166 = vsel %vm1055, %v884, %v982
      %v1170 = vsel %vm1055, %v885, %v983
      %v1174 = vsel %vm1055, %v886, %v984
      %v1178 = vsel %vm1055, %v887, %v985
      %v1182 = vsel %vm1055, %v888, %v986
      %v1186 = vsel %vm1055, %v889, %v987
      %v1190 = vsel %vm1055, %v890, %v988
      %v1194 = vsel %vm1055, %v891, %v989
      %v1198 = vsel %vm1055, %v892, %v990
      %v1202 = vsel %vm1055, %v893, %v991
      %v1206 = vsel %vm1055, %v894, %v992
      %v1210 = vsel %vm1055, %v895, %v993
      %v1214 = vsel %vm1055, %v896, %v994
      %v1218 = vsel %vm1055, %v897, %v995
      %v1222 = vsel %vm1055, %v898, %v996
      %v1226 = vsel %vm1055, %v899, %v997
      %v1230 = vsel %vm1055, %v900, %v998
      %v1234 = vsel %vm1055, %v901, %v999
      %v1238 = vsel %vm1055, %v902, %v1000
      %v1242 = vsel %vm1055, %v903, %v1001
      %v1246 = vsel %vm1055, %v904, %v1002
      %v1250 = vsel %vm1055, %v748, %v1027
      %v1254 = vsel %vm1055, %v749, %v1028
      %v1258 = vsel %vm1055, %v750, %v1029
      %v1262 = vsel %vm1055, %v751, %v1030
      %v1266 = vsel %vm1055, %v752, %v1031
      %v1270 = vsel %vm1055, %v753, %v1032
      %v1274 = vsel %vm1055, %v754, %v1033
      %v1278 = vsel %vm1055, %v755, %v1034
      %v1282 = vsel %vm1055, %v756, %v1035
      %v1286 = vsel %vm1055, %v757, %v1036
      %v1290 = vsel %vm1055, %v758, %v1037
      %v1294 = vsel %vm1055, %v759, %v1038
      %v1298 = vsel %vm1055, %v760, %v1039
      %v1302 = vsel %vm1055, %v761, %v1040
      %v1306 = vsel %vm1055, %v762, %v1041
      %v1310 = vsel %vm1055, %v763, %v1042
      %v1314 = vsel %vm1055, %v764, %v1043
      %v1318 = vsel %vm1055, %v765, %v1044
      %v1322 = vsel %vm1055, %v766, %v1045
      %v1326 = vsel %vm1055, %v767, %v1046
      %v1330 = vsel %vm1055, %v768, %v1047
      %v1334 = vsel %vm1055, %v769, %v1048
      %v1338 = vsel %vm1055, %v770, %v1049
      %v1342 = vsel %vm1055, %v771, %v1050
      %v1346 = vsel %vm1055, %v745, %v1053
      %v1350 = vsel %vm1055, %v746, %v1054
      %v1352 = vld [vmem:[%s4] sm:$0xf]
      %v1353 = vld [vmem:[%s5] sm:$0xff]
      %1355 = vset.pattern.permute.xlu0 0
      %1356 = vperm.xlu0 %1355, %v1353
      %v1357 = vpop.permute.xlu0 %1356
      %vm1359 = vcmask 588800
      %v1361 = vsel %vm1359, %v1352, 0
      %v1363 = vsel %vm1055, %v883, 0
      %v1365 = vsel %vm1055, %v884, 0
      %v1367 = vsel %vm1055, %v885, 0
      %v1369 = vsel %vm1055, %v886, 0
      %v1371 = vsel %vm1055, %v887, 0
      %v1373 = vsel %vm1055, %v888, 0
      %v1375 = vsel %vm1055, %v889, 0
      %v1377 = vsel %vm1055, %v890, 0
      %v1379 = vsel %vm1055, %v891, 0
      %v1381 = vsel %vm1055, %v892, 0
      %v1383 = vsel %vm1055, %v893, 0
      %v1385 = vsel %vm1055, %v894, 0
      %v1387 = vsel %vm1055, %v895, 0
      %v1389 = vsel %vm1055, %v896, 0
      %v1391 = vsel %vm1055, %v897, 0
      %v1393 = vsel %vm1055, %v898, 0
      %v1395 = vsel %vm1055, %v899, 0
      %v1397 = vsel %vm1055, %v900, 0
      %v1399 = vsel %vm1055, %v901, 0
      %v1401 = vsel %vm1055, %v902, 0
      %v1403 = vsel %vm1055, %v903, 0
      %v1405 = vsel %vm1055, %v904, 0
      %v1408 = vsel %vm1055, %v905, 0
      %v1411 = vsel %vm1055, %v906, 0
      %1413 = vmatprep.subr.bf16.mxu0 0
      %1414 = vmatpush1.bf16.msra.mxu0 0
      %1415 = vmatprep.subr.bf16.mxu0 0
      %1416 = vmatpush1.bf16.msra.mxu0 0
      %1417 = vmatprep.subr.bf16.mxu0 0
      %1418 = vmatpush1.bf16.msra.mxu0 0
      %1419 = vmatprep.subr.bf16.mxu0 %v1365
      %1420 = vmatpush1.bf16.msra.mxu0 %v1363
      %1421 = vmatprep.subr.bf16.mxu0 %v1070
      %1422 = vmatpush1.bf16.msra.mxu0 %v1066
      %1423 = vmatprep.subr.bf16.mxu0 %v1254
      %1424 = vmatpush1.bf16.msra.mxu0 %v1250
      %1425 = vmatprep.subr.bf16.mxu0 %v1158
      %1426 = vmatpush1.bf16.msra.mxu0 %v1154
      %1427 = vmatprep.subr.bf16.mxu0 %v1062
      %1428 = vmatpush1.bf16.msra.mxu0 %v1058
      %1429 = vmatprep.subr.bf16.mxu0 0
      %1430 = vmatpush2.bf16.msra.mxu0 0
      %1431 = vmatprep.subr.bf16.mxu0 0
      %1432 = vmatpush2.bf16.msra.mxu0 0
      %1433 = vmatprep.subr.bf16.mxu0 0
      %1434 = vmatpush2.bf16.msra.mxu0 0
      %1435 = vmatprep.subr.bf16.mxu0 0
      %1436 = vmatpush2.bf16.msra.mxu0 0
      %1437 = vmatprep.subr.bf16.mxu0 0
      %1438 = vmatpush2.bf16.msra.mxu0 0
      %1439 = vmatprep.subr.bf16.mxu0 0
      %1440 = vmatpush2.bf16.msra.mxu0 0
      %1441 = vmatprep.subr.bf16.mxu0 0
      %1442 = vmatpush2.bf16.msra.mxu0 0
      %1443 = vmatprep.subr.bf16.mxu0 0
      %1444 = vmatpush2.bf16.msra.mxu0 0
      %1445 = vmatprep.mubr.bf16.mxu0 0
      %1446 = vmatmul.mubr.bf16.gmra.mxu0 %v1361
      %v1447 = vpop.f32.mrf.mxu0
      %v1448 = vadd.f32 %v1357, %v1447
      %v1449 = vpop.f32.mrf.mxu0
      %v1450 = vadd.f32 %v1357, %v1449
      %v1451 = vpop.f32.mrf.mxu0
      %v1452 = vpop.f32.mrf.mxu0
      %1453 = vdwg.mxu0
      %1454 = vmatprep.subr.bf16.mxu0 0
      %1455 = vmatpush1.bf16.msra.mxu0 0
      %1456 = vmatprep.subr.bf16.mxu0 0
      %1457 = vmatpush1.bf16.msra.mxu0 0
      %1458 = vmatprep.subr.bf16.mxu0 0
      %1459 = vmatpush1.bf16.msra.mxu0 0
      %1460 = vmatprep.subr.bf16.mxu0 %v1369
      %1461 = vmatpush1.bf16.msra.mxu0 %v1367
      %1462 = vmatprep.subr.bf16.mxu0 %v1078
      %1463 = vmatpush1.bf16.msra.mxu0 %v1074
      %1464 = vmatprep.subr.bf16.mxu0 %v1262
      %1465 = vmatpush1.bf16.msra.mxu0 %v1258
      %1466 = vmatprep.subr.bf16.mxu0 %v1166
      %1467 = vmatpush1.bf16.msra.mxu0 %v1162
      %1468 = vmatprep.subr.bf16.mxu0 %v1070
      %1469 = vmatpush1.bf16.msra.mxu0 %v1066
      %1470 = vmatprep.subr.bf16.mxu0 0
      %1471 = vmatpush2.bf16.msra.mxu0 0
      %1472 = vmatprep.subr.bf16.mxu0 0
      %1473 = vmatpush2.bf16.msra.mxu0 0
      %1474 = vmatprep.subr.bf16.mxu0 0
      %1475 = vmatpush2.bf16.msra.mxu0 0
      %1476 = vmatprep.subr.bf16.mxu0 0
      %1477 = vmatpush2.bf16.msra.mxu0 0
      %1478 = vmatprep.subr.bf16.mxu0 0
      %1479 = vmatpush2.bf16.msra.mxu0 0
      %1480 = vmatprep.subr.bf16.mxu0 0
      %1481 = vmatpush2.bf16.msra.mxu0 0
      %1482 = vmatprep.subr.bf16.mxu0 0
      %1483 = vmatpush2.bf16.msra.mxu0 0
      %1484 = vmatprep.subr.bf16.mxu0 0
      %1485 = vmatpush2.bf16.msra.mxu0 0
      %1486 = vmatprep.mubr.bf16.mxu0 0
      %1487 = vmatmul.mubr.bf16.gmra.mxu0 %v1361
      %v1488 = vpop.f32.mrf.mxu0
      %v1489 = vadd.f32 %v1357, %v1488
      %v1490 = vpop.f32.mrf.mxu0
      %v1491 = vadd.f32 %v1357, %v1490
      %v1492 = vpop.f32.mrf.mxu0
      %v1493 = vpop.f32.mrf.mxu0
      %1494 = vdwg.mxu0
      %1495 = vmatprep.subr.bf16.mxu0 0
      %1496 = vmatpush1.bf16.msra.mxu0 0
      %1497 = vmatprep.subr.bf16.mxu0 0
      %1498 = vmatpush1.bf16.msra.mxu0 0
      %1499 = vmatprep.subr.bf16.mxu0 0
      %1500 = vmatpush1.bf16.msra.mxu0 0
      %1501 = vmatprep.subr.bf16.mxu0 %v1373
      %1502 = vmatpush1.bf16.msra.mxu0 %v1371
      %1503 = vmatprep.subr.bf16.mxu0 %v1086
      %1504 = vmatpush1.bf16.msra.mxu0 %v1082
      %1505 = vmatprep.subr.bf16.mxu0 %v1270
      %1506 = vmatpush1.bf16.msra.mxu0 %v1266
      %1507 = vmatprep.subr.bf16.mxu0 %v1174
      %1508 = vmatpush1.bf16.msra.mxu0 %v1170
      %1509 = vmatprep.subr.bf16.mxu0 %v1078
      %1510 = vmatpush1.bf16.msra.mxu0 %v1074
      %1511 = vmatprep.subr.bf16.mxu0 0
      %1512 = vmatpush2.bf16.msra.mxu0 0
      %1513 = vmatprep.subr.bf16.mxu0 0
      %1514 = vmatpush2.bf16.msra.mxu0 0
      %1515 = vmatprep.subr.bf16.mxu0 0
      %1516 = vmatpush2.bf16.msra.mxu0 0
      %1517 = vmatprep.subr.bf16.mxu0 0
      %1518 = vmatpush2.bf16.msra.mxu0 0
      %1519 = vmatprep.subr.bf16.mxu0 0
      %1520 = vmatpush2.bf16.msra.mxu0 0
      %1521 = vmatprep.subr.bf16.mxu0 0
      %1522 = vmatpush2.bf16.msra.mxu0 0
      %1523 = vmatprep.subr.bf16.mxu0 0
      %1524 = vmatpush2.bf16.msra.mxu0 0
      %1525 = vmatprep.subr.bf16.mxu0 0
      %1526 = vmatpush2.bf16.msra.mxu0 0
      %1527 = vmatprep.mubr.bf16.mxu0 0
      %1528 = vmatmul.mubr.bf16.gmra.mxu0 %v1361
      %v1529 = vpop.f32.mrf.mxu0
      %v1530 = vadd.f32 %v1357, %v1529
      %v1531 = vpop.f32.mrf.mxu0
      %v1532 = vadd.f32 %v1357, %v1531
      %v1533 = vpop.f32.mrf.mxu0
      %v1534 = vpop.f32.mrf.mxu0
      %1535 = vdwg.mxu0
      %1536 = vmatprep.subr.bf16.mxu0 0
      %1537 = vmatpush1.bf16.msra.mxu0 0
      %1538 = vmatprep.subr.bf16.mxu0 0
      %1539 = vmatpush1.bf16.msra.mxu0 0
      %1540 = vmatprep.subr.bf16.mxu0 0
      %1541 = vmatpush1.bf16.msra.mxu0 0
      %1542 = vmatprep.subr.bf16.mxu0 %v1377
      %1543 = vmatpush1.bf16.msra.mxu0 %v1375
      %1544 = vmatprep.subr.bf16.mxu0 %v1094
      %1545 = vmatpush1.bf16.msra.mxu0 %v1090
      %1546 = vmatprep.subr.bf16.mxu0 %v1278
      %1547 = vmatpush1.bf16.msra.mxu0 %v1274
      %1548 = vmatprep.subr.bf16.mxu0 %v1182
      %1549 = vmatpush1.bf16.msra.mxu0 %v1178
      %1550 = vmatprep.subr.bf16.mxu0 %v1086
      %1551 = vmatpush1.bf16.msra.mxu0 %v1082
      %1552 = vmatprep.subr.bf16.mxu0 0
      %1553 = vmatpush2.bf16.msra.mxu0 0
      %1554 = vmatprep.subr.bf16.mxu0 0
      %1555 = vmatpush2.bf16.msra.mxu0 0
      %1556 = vmatprep.subr.bf16.mxu0 0
      %1557 = vmatpush2.bf16.msra.mxu0 0
      %1558 = vmatprep.subr.bf16.mxu0 0
      %1559 = vmatpush2.bf16.msra.mxu0 0
      %1560 = vmatprep.subr.bf16.mxu0 0
      %1561 = vmatpush2.bf16.msra.mxu0 0
      %1562 = vmatprep.subr.bf16.mxu0 0
      %1563 = vmatpush2.bf16.msra.mxu0 0
      %1564 = vmatprep.subr.bf16.mxu0 0
      %1565 = vmatpush2.bf16.msra.mxu0 0
      %1566 = vmatprep.subr.bf16.mxu0 0
      %1567 = vmatpush2.bf16.msra.mxu0 0
      %1568 = vmatprep.mubr.bf16.mxu0 0
      %1569 = vmatmul.mubr.bf16.gmra.mxu0 %v1361
      %v1570 = vpop.f32.mrf.mxu0
      %v1571 = vadd.f32 %v1357, %v1570
      %v1572 = vpop.f32.mrf.mxu0
      %v1573 = vadd.f32 %v1357, %v1572
      %v1574 = vpop.f32.mrf.mxu0
      %v1575 = vpop.f32.mrf.mxu0
      %1576 = vdwg.mxu0
      %1577 = vmatprep.subr.bf16.mxu0 0
      %1578 = vmatpush1.bf16.msra.mxu0 0
      %1579 = vmatprep.subr.bf16.mxu0 0
      %1580 = vmatpush1.bf16.msra.mxu0 0
      %1581 = vmatprep.subr.bf16.mxu0 0
      %1582 = vmatpush1.bf16.msra.mxu0 0
      %1583 = vmatprep.subr.bf16.mxu0 %v1381
      %1584 = vmatpush1.bf16.msra.mxu0 %v1379
      %1585 = vmatprep.subr.bf16.mxu0 %v1102
      %1586 = vmatpush1.bf16.msra.mxu0 %v1098
      %1587 = vmatprep.subr.bf16.mxu0 %v1286
      %1588 = vmatpush1.bf16.msra.mxu0 %v1282
      %1589 = vmatprep.subr.bf16.mxu0 %v1190
      %1590 = vmatpush1.bf16.msra.mxu0 %v1186
      %1591 = vmatprep.subr.bf16.mxu0 %v1094
      %1592 = vmatpush1.bf16.msra.mxu0 %v1090
      %1593 = vmatprep.subr.bf16.mxu0 0
      %1594 = vmatpush2.bf16.msra.mxu0 0
      %1595 = vmatprep.subr.bf16.mxu0 0
      %1596 = vmatpush2.bf16.msra.mxu0 0
      %1597 = vmatprep.subr.bf16.mxu0 0
      %1598 = vmatpush2.bf16.msra.mxu0 0
      %1599 = vmatprep.subr.bf16.mxu0 0
      %1600 = vmatpush2.bf16.msra.mxu0 0
      %1601 = vmatprep.subr.bf16.mxu0 0
      %1602 = vmatpush2.bf16.msra.mxu0 0
      %1603 = vmatprep.subr.bf16.mxu0 0
      %1604 = vmatpush2.bf16.msra.mxu0 0
      %1605 = vmatprep.subr.bf16.mxu0 0
      %1606 = vmatpush2.bf16.msra.mxu0 0
      %1607 = vmatprep.subr.bf16.mxu0 0
      %1608 = vmatpush2.bf16.msra.mxu0 0
      %1609 = vmatprep.mubr.bf16.mxu0 0
      %1610 = vmatmul.mubr.bf16.gmra.mxu0 %v1361
      %v1611 = vpop.f32.mrf.mxu0
      %v1612 = vadd.f32 %v1357, %v1611
      %v1613 = vpop.f32.mrf.mxu0
      %v1614 = vadd.f32 %v1357, %v1613
      %v1615 = vpop.f32.mrf.mxu0
      %v1616 = vpop.f32.mrf.mxu0
      %1617 = vdwg.mxu0
      %1618 = vmatprep.subr.bf16.mxu0 0
      %1619 = vmatpush1.bf16.msra.mxu0 0
      %1620 = vmatprep.subr.bf16.mxu0 0
      %1621 = vmatpush1.bf16.msra.mxu0 0
      %1622 = vmatprep.subr.bf16.mxu0 0
      %1623 = vmatpush1.bf16.msra.mxu0 0
      %1624 = vmatprep.subr.bf16.mxu0 %v1385
      %1625 = vmatpush1.bf16.msra.mxu0 %v1383
      %1626 = vmatprep.subr.bf16.mxu0 %v1110
      %1627 = vmatpush1.bf16.msra.mxu0 %v1106
      %1628 = vmatprep.subr.bf16.mxu0 %v1294
      %1629 = vmatpush1.bf16.msra.mxu0 %v1290
      %1630 = vmatprep.subr.bf16.mxu0 %v1198
      %1631 = vmatpush1.bf16.msra.mxu0 %v1194
      %1632 = vmatprep.subr.bf16.mxu0 %v1102
      %1633 = vmatpush1.bf16.msra.mxu0 %v1098
      %1634 = vmatprep.subr.bf16.mxu0 0
      %1635 = vmatpush2.bf16.msra.mxu0 0
      %1636 = vmatprep.subr.bf16.mxu0 0
      %1637 = vmatpush2.bf16.msra.mxu0 0
      %1638 = vmatprep.subr.bf16.mxu0 0
      %1639 = vmatpush2.bf16.msra.mxu0 0
      %1640 = vmatprep.subr.bf16.mxu0 0
      %1641 = vmatpush2.bf16.msra.mxu0 0
      %1642 = vmatprep.subr.bf16.mxu0 0
      %1643 = vmatpush2.bf16.msra.mxu0 0
      %1644 = vmatprep.subr.bf16.mxu0 0
      %1645 = vmatpush2.bf16.msra.mxu0 0
      %1646 = vmatprep.subr.bf16.mxu0 0
      %1647 = vmatpush2.bf16.msra.mxu0 0
      %1648 = vmatprep.subr.bf16.mxu0 0
      %1649 = vmatpush2.bf16.msra.mxu0 0
      %1650 = vmatprep.mubr.bf16.mxu0 0
      %1651 = vmatmul.mubr.bf16.gmra.mxu0 %v1361
      %v1652 = vpop.f32.mrf.mxu0
      %v1653 = vadd.f32 %v1357, %v1652
      %v1654 = vpop.f32.mrf.mxu0
      %v1655 = vadd.f32 %v1357, %v1654
      %v1656 = vpop.f32.mrf.mxu0
      %v1657 = vpop.f32.mrf.mxu0
      %1658 = vdwg.mxu0
      %1659 = vmatprep.subr.bf16.mxu0 0
      %1660 = vmatpush1.bf16.msra.mxu0 0
      %1661 = vmatprep.subr.bf16.mxu0 0
      %1662 = vmatpush1.bf16.msra.mxu0 0
      %1663 = vmatprep.subr.bf16.mxu0 0
      %1664 = vmatpush1.bf16.msra.mxu0 0
      %1665 = vmatprep.subr.bf16.mxu0 %v1389
      %1666 = vmatpush1.bf16.msra.mxu0 %v1387
      %1667 = vmatprep.subr.bf16.mxu0 %v1118
      %1668 = vmatpush1.bf16.msra.mxu0 %v1114
      %1669 = vmatprep.subr.bf16.mxu0 %v1302
      %1670 = vmatpush1.bf16.msra.mxu0 %v1298
      %1671 = vmatprep.subr.bf16.mxu0 %v1206
      %1672 = vmatpush1.bf16.msra.mxu0 %v1202
      %1673 = vmatprep.subr.bf16.mxu0 %v1110
      %1674 = vmatpush1.bf16.msra.mxu0 %v1106
      %1675 = vmatprep.subr.bf16.mxu0 0
      %1676 = vmatpush2.bf16.msra.mxu0 0
      %1677 = vmatprep.subr.bf16.mxu0 0
      %1678 = vmatpush2.bf16.msra.mxu0 0
      %1679 = vmatprep.subr.bf16.mxu0 0
      %1680 = vmatpush2.bf16.msra.mxu0 0
      %1681 = vmatprep.subr.bf16.mxu0 0
      %1682 = vmatpush2.bf16.msra.mxu0 0
      %1683 = vmatprep.subr.bf16.mxu0 0
      %1684 = vmatpush2.bf16.msra.mxu0 0
      %1685 = vmatprep.subr.bf16.mxu0 0
      %1686 = vmatpush2.bf16.msra.mxu0 0
      %1687 = vmatprep.subr.bf16.mxu0 0
      %1688 = vmatpush2.bf16.msra.mxu0 0
      %1689 = vmatprep.subr.bf16.mxu0 0
      %1690 = vmatpush2.bf16.msra.mxu0 0
      %1691 = vmatprep.mubr.bf16.mxu0 0
      %1692 = vmatmul.mubr.bf16.gmra.mxu0 %v1361
      %v1693 = vpop.f32.mrf.mxu0
      %v1694 = vadd.f32 %v1357, %v1693
      %v1695 = vpop.f32.mrf.mxu0
      %v1696 = vadd.f32 %v1357, %v1695
      %v1697 = vpop.f32.mrf.mxu0
      %v1698 = vpop.f32.mrf.mxu0
      %1699 = vdwg.mxu0
      %1700 = vmatprep.subr.bf16.mxu0 0
      %1701 = vmatpush1.bf16.msra.mxu0 0
      %1702 = vmatprep.subr.bf16.mxu0 0
      %1703 = vmatpush1.bf16.msra.mxu0 0
      %1704 = vmatprep.subr.bf16.mxu0 0
      %1705 = vmatpush1.bf16.msra.mxu0 0
      %1706 = vmatprep.subr.bf16.mxu0 %v1393
      %1707 = vmatpush1.bf16.msra.mxu0 %v1391
      %1708 = vmatprep.subr.bf16.mxu0 %v1126
      %1709 = vmatpush1.bf16.msra.mxu0 %v1122
      %1710 = vmatprep.subr.bf16.mxu0 %v1310
      %1711 = vmatpush1.bf16.msra.mxu0 %v1306
      %1712 = vmatprep.subr.bf16.mxu0 %v1214
      %1713 = vmatpush1.bf16.msra.mxu0 %v1210
      %1714 = vmatprep.subr.bf16.mxu0 %v1118
      %1715 = vmatpush1.bf16.msra.mxu0 %v1114
      %1716 = vmatprep.subr.bf16.mxu0 0
      %1717 = vmatpush2.bf16.msra.mxu0 0
      %1718 = vmatprep.subr.bf16.mxu0 0
      %1719 = vmatpush2.bf16.msra.mxu0 0
      %1720 = vmatprep.subr.bf16.mxu0 0
      %1721 = vmatpush2.bf16.msra.mxu0 0
      %1722 = vmatprep.subr.bf16.mxu0 0
      %1723 = vmatpush2.bf16.msra.mxu0 0
      %1724 = vmatprep.subr.bf16.mxu0 0
      %1725 = vmatpush2.bf16.msra.mxu0 0
      %1726 = vmatprep.subr.bf16.mxu0 0
      %1727 = vmatpush2.bf16.msra.mxu0 0
      %1728 = vmatprep.subr.bf16.mxu0 0
      %1729 = vmatpush2.bf16.msra.mxu0 0
      %1730 = vmatprep.subr.bf16.mxu0 0
      %1731 = vmatpush2.bf16.msra.mxu0 0
      %1732 = vmatprep.mubr.bf16.mxu0 0
      %1733 = vmatmul.mubr.bf16.gmra.mxu0 %v1361
      %v1734 = vpop.f32.mrf.mxu0
      %v1735 = vadd.f32 %v1357, %v1734
      %v1736 = vpop.f32.mrf.mxu0
      %v1737 = vadd.f32 %v1357, %v1736
      %v1738 = vpop.f32.mrf.mxu0
      %v1739 = vpop.f32.mrf.mxu0
      %1740 = vdwg.mxu0
      %1741 = vmatprep.subr.bf16.mxu0 0
      %1742 = vmatpush1.bf16.msra.mxu0 0
      %1743 = vmatprep.subr.bf16.mxu0 0
      %1744 = vmatpush1.bf16.msra.mxu0 0
      %1745 = vmatprep.subr.bf16.mxu0 0
      %1746 = vmatpush1.bf16.msra.mxu0 0
      %1747 = vmatprep.subr.bf16.mxu0 %v1397
      %1748 = vmatpush1.bf16.msra.mxu0 %v1395
      %1749 = vmatprep.subr.bf16.mxu0 %v1134
      %1750 = vmatpush1.bf16.msra.mxu0 %v1130
      %1751 = vmatprep.subr.bf16.mxu0 %v1318
      %1752 = vmatpush1.bf16.msra.mxu0 %v1314
      %1753 = vmatprep.subr.bf16.mxu0 %v1222
      %1754 = vmatpush1.bf16.msra.mxu0 %v1218
      %1755 = vmatprep.subr.bf16.mxu0 %v1126
      %1756 = vmatpush1.bf16.msra.mxu0 %v1122
      %1757 = vmatprep.subr.bf16.mxu0 0
      %1758 = vmatpush2.bf16.msra.mxu0 0
      %1759 = vmatprep.subr.bf16.mxu0 0
      %1760 = vmatpush2.bf16.msra.mxu0 0
      %1761 = vmatprep.subr.bf16.mxu0 0
      %1762 = vmatpush2.bf16.msra.mxu0 0
      %1763 = vmatprep.subr.bf16.mxu0 0
      %1764 = vmatpush2.bf16.msra.mxu0 0
      %1765 = vmatprep.subr.bf16.mxu0 0
      %1766 = vmatpush2.bf16.msra.mxu0 0
      %1767 = vmatprep.subr.bf16.mxu0 0
      %1768 = vmatpush2.bf16.msra.mxu0 0
      %1769 = vmatprep.subr.bf16.mxu0 0
      %1770 = vmatpush2.bf16.msra.mxu0 0
      %1771 = vmatprep.subr.bf16.mxu0 0
      %1772 = vmatpush2.bf16.msra.mxu0 0
      %1773 = vmatprep.mubr.bf16.mxu0 0
      %1774 = vmatmul.mubr.bf16.gmra.mxu0 %v1361
      %v1775 = vpop.f32.mrf.mxu0
      %v1776 = vadd.f32 %v1357, %v1775
      %v1777 = vpop.f32.mrf.mxu0
      %v1778 = vadd.f32 %v1357, %v1777
      %v1779 = vpop.f32.mrf.mxu0
      %v1780 = vpop.f32.mrf.mxu0
      %1781 = vdwg.mxu0
      %1782 = vmatprep.subr.bf16.mxu0 0
      %1783 = vmatpush1.bf16.msra.mxu0 0
      %1784 = vmatprep.subr.bf16.mxu0 0
      %1785 = vmatpush1.bf16.msra.mxu0 0
      %1786 = vmatprep.subr.bf16.mxu0 0
      %1787 = vmatpush1.bf16.msra.mxu0 0
      %1788 = vmatprep.subr.bf16.mxu0 %v1401
      %1789 = vmatpush1.bf16.msra.mxu0 %v1399
      %1790 = vmatprep.subr.bf16.mxu0 %v1142
      %1791 = vmatpush1.bf16.msra.mxu0 %v1138
      %1792 = vmatprep.subr.bf16.mxu0 %v1326
      %1793 = vmatpush1.bf16.msra.mxu0 %v1322
      %1794 = vmatprep.subr.bf16.mxu0 %v1230
      %1795 = vmatpush1.bf16.msra.mxu0 %v1226
      %1796 = vmatprep.subr.bf16.mxu0 %v1134
      %1797 = vmatpush1.bf16.msra.mxu0 %v1130
      %1798 = vmatprep.subr.bf16.mxu0 0
      %1799 = vmatpush2.bf16.msra.mxu0 0
      %1800 = vmatprep.subr.bf16.mxu0 0
      %1801 = vmatpush2.bf16.msra.mxu0 0
      %1802 = vmatprep.subr.bf16.mxu0 0
      %1803 = vmatpush2.bf16.msra.mxu0 0
      %1804 = vmatprep.subr.bf16.mxu0 0
      %1805 = vmatpush2.bf16.msra.mxu0 0
      %1806 = vmatprep.subr.bf16.mxu0 0
      %1807 = vmatpush2.bf16.msra.mxu0 0
      %1808 = vmatprep.subr.bf16.mxu0 0
      %1809 = vmatpush2.bf16.msra.mxu0 0
      %1810 = vmatprep.subr.bf16.mxu0 0
      %1811 = vmatpush2.bf16.msra.mxu0 0
      %1812 = vmatprep.subr.bf16.mxu0 0
      %1813 = vmatpush2.bf16.msra.mxu0 0
      %1814 = vmatprep.mubr.bf16.mxu0 0
      %1815 = vmatmul.mubr.bf16.gmra.mxu0 %v1361
      %v1816 = vpop.f32.mrf.mxu0
      %v1817 = vadd.f32 %v1357, %v1816
      %v1818 = vpop.f32.mrf.mxu0
      %v1819 = vadd.f32 %v1357, %v1818
      %v1820 = vpop.f32.mrf.mxu0
      %v1821 = vpop.f32.mrf.mxu0
      %1822 = vdwg.mxu0
      %1823 = vmatprep.subr.bf16.mxu0 0
      %1824 = vmatpush1.bf16.msra.mxu0 0
      %1825 = vmatprep.subr.bf16.mxu0 0
      %1826 = vmatpush1.bf16.msra.mxu0 0
      %1827 = vmatprep.subr.bf16.mxu0 0
      %1828 = vmatpush1.bf16.msra.mxu0 0
      %1829 = vmatprep.subr.bf16.mxu0 %v1405
      %1830 = vmatpush1.bf16.msra.mxu0 %v1403
      %1831 = vmatprep.subr.bf16.mxu0 %v1150
      %1832 = vmatpush1.bf16.msra.mxu0 %v1146
      %1833 = vmatprep.subr.bf16.mxu0 %v1334
      %1834 = vmatpush1.bf16.msra.mxu0 %v1330
      %1835 = vmatprep.subr.bf16.mxu0 %v1238
      %1836 = vmatpush1.bf16.msra.mxu0 %v1234
      %1837 = vmatprep.subr.bf16.mxu0 %v1142
      %1838 = vmatpush1.bf16.msra.mxu0 %v1138
      %1839 = vmatprep.subr.bf16.mxu0 0
      %1840 = vmatpush2.bf16.msra.mxu0 0
      %1841 = vmatprep.subr.bf16.mxu0 0
      %1842 = vmatpush2.bf16.msra.mxu0 0
      %1843 = vmatprep.subr.bf16.mxu0 0
      %1844 = vmatpush2.bf16.msra.mxu0 0
      %1845 = vmatprep.subr.bf16.mxu0 0
      %1846 = vmatpush2.bf16.msra.mxu0 0
      %1847 = vmatprep.subr.bf16.mxu0 0
      %1848 = vmatpush2.bf16.msra.mxu0 0
      %1849 = vmatprep.subr.bf16.mxu0 0
      %1850 = vmatpush2.bf16.msra.mxu0 0
      %1851 = vmatprep.subr.bf16.mxu0 0
      %1852 = vmatpush2.bf16.msra.mxu0 0
      %1853 = vmatprep.subr.bf16.mxu0 0
      %1854 = vmatpush2.bf16.msra.mxu0 0
      %1855 = vmatprep.mubr.bf16.mxu0 0
      %1856 = vmatmul.mubr.bf16.gmra.mxu0 %v1361
      %v1857 = vpop.f32.mrf.mxu0
      %v1858 = vadd.f32 %v1357, %v1857
      %v1859 = vpop.f32.mrf.mxu0
      %v1860 = vadd.f32 %v1357, %v1859
      %v1861 = vpop.f32.mrf.mxu0
      %v1862 = vpop.f32.mrf.mxu0
      %1863 = vdwg.mxu0
      %1864 = vmatprep.subr.bf16.mxu0 0
      %1865 = vmatpush1.bf16.msra.mxu0 0
      %1866 = vmatprep.subr.bf16.mxu0 0
      %1867 = vmatpush1.bf16.msra.mxu0 0
      %1868 = vmatprep.subr.bf16.mxu0 0
      %1869 = vmatpush1.bf16.msra.mxu0 0
      %1870 = vmatprep.subr.bf16.mxu0 %v1411
      %1871 = vmatpush1.bf16.msra.mxu0 %v1408
      %1872 = vmatprep.subr.bf16.mxu0 %v1350
      %1873 = vmatpush1.bf16.msra.mxu0 %v1346
      %1874 = vmatprep.subr.bf16.mxu0 %v1342
      %1875 = vmatpush1.bf16.msra.mxu0 %v1338
      %1876 = vmatprep.subr.bf16.mxu0 %v1246
      %1877 = vmatpush1.bf16.msra.mxu0 %v1242
      %1878 = vmatprep.subr.bf16.mxu0 %v1150
      %1879 = vmatpush1.bf16.msra.mxu0 %v1146
      %1880 = vmatprep.subr.bf16.mxu0 0
      %1881 = vmatpush2.bf16.msra.mxu0 0
      %1882 = vmatprep.subr.bf16.mxu0 0
      %1883 = vmatpush2.bf16.msra.mxu0 0
      %1884 = vmatprep.subr.bf16.mxu0 0
      %1885 = vmatpush2.bf16.msra.mxu0 0
      %1886 = vmatprep.subr.bf16.mxu0 0
      %1887 = vmatpush2.bf16.msra.mxu0 0
      %1888 = vmatprep.subr.bf16.mxu0 0
      %1889 = vmatpush2.bf16.msra.mxu0 0
      %1890 = vmatprep.subr.bf16.mxu0 0
      %1891 = vmatpush2.bf16.msra.mxu0 0
      %1892 = vmatprep.subr.bf16.mxu0 0
      %1893 = vmatpush2.bf16.msra.mxu0 0
      %1894 = vmatprep.subr.bf16.mxu0 0
      %1895 = vmatpush2.bf16.msra.mxu0 0
      %1896 = vmatprep.mubr.bf16.mxu0 0
      %1897 = vmatmul.mubr.bf16.gmra.mxu0 %v1361
      %v1898 = vpop.f32.mrf.mxu0
      %v1899 = vadd.f32 %v1357, %v1898
      %v1900 = vpop.f32.mrf.mxu0
      %v1901 = vadd.f32 %v1357, %v1900
      %v1902 = vpop.f32.mrf.mxu0
      %v1903 = vpop.f32.mrf.mxu0
      %1904 = vdwg.mxu0
      %1905 = vst [vmem:[%s253] sm:$0xff] 0.0
      %1906 = vst [vmem:[%s253 + $0x8] sm:$0xff] 0.0
      %1907 = vst [vmem:[%s253 + $0x10] sm:$0xff] 0.0
      %1908 = vst [vmem:[%s253 + $0x18] sm:$0xff] 0.0
      %1909 = vst [vmem:[%s253 + $0x20] sm:$0xff] 0.0
      %1910 = vst [vmem:[%s253 + $0x28] sm:$0xff] %v1448
      %1911 = vst [vmem:[%s253 + $0x30] sm:$0xff] %v1450
      %1912 = vst [vmem:[%s253 + $0x38] sm:$0xff] %v1489
      %1913 = vst [vmem:[%s253 + $0x40] sm:$0xff] %v1491
      %1914 = vst [vmem:[%s253 + $0x48] sm:$0xff] %v1530
      %1915 = vst [vmem:[%s253 + $0x50] sm:$0xff] %v1532
      %1916 = vst [vmem:[%s253 + $0x58] sm:$0xff] %v1571
      %1917 = vst [vmem:[%s253 + $0x60] sm:$0xff] %v1573
      %1918 = vst [vmem:[%s253 + $0x68] sm:$0xff] %v1612
      %1919 = vst [vmem:[%s253 + $0x70] sm:$0xff] %v1614
      %1920 = vst [vmem:[%s253 + $0x78] sm:$0xff] %v1653
      %1921 = vst [vmem:[%s253 + $0x80] sm:$0xff] %v1655
      %1922 = vst [vmem:[%s253 + $0x88] sm:$0xff] %v1694
      %1923 = vst [vmem:[%s253 + $0x90] sm:$0xff] %v1696
      %1924 = vst [vmem:[%s253 + $0x98] sm:$0xff] %v1735
      %1925 = vst [vmem:[%s253 + $0xa0] sm:$0xff] %v1737
      %1926 = vst [vmem:[%s253 + $0xa8] sm:$0xff] %v1776
      %1927 = vst [vmem:[%s253 + $0xb0] sm:$0xff] %v1778
      %1928 = vst [vmem:[%s253 + $0xb8] sm:$0xff] %v1817
      %1929 = vst [vmem:[%s253 + $0xc0] sm:$0xff] %v1819
      %1930 = vst [vmem:[%s253 + $0xc8] sm:$0xff] %v1858
      %1931 = vst [vmem:[%s253 + $0xd0] sm:$0xff] %v1860
      %1932 = vst [vmem:[%s253 + $0xd8] sm:$0xff] %v1899
      %1933 = vst [vmem:[%s253 + $0xe0] sm:$0xff] %v1901
      %1934 = vst [vmem:[%s253 + $0xe8] sm:$0xff] 0.0
      %1935 = vst [vmem:[%s253 + $0xf0] sm:$0xff] 0.0
      %1936 = vst [vmem:[%s253 + $0xf8] sm:$0xff] 0.0
      %1937 = vst [vmem:[%s253 + $0x100] sm:$0xff] 0.0
      %1938 = vst [vmem:[%s253 + $0x108] sm:$0xff] 0.0
      %p1939 = scmp.lt.s32.totalorder %s17, 1
      %s1940 = scalar_select %p1939, %s17, 1
      %s1941 = smul.addr %s1940, 136
      %s1942 = sadd.s32 34, %s1941
      %s1943 = smul.addr %s1942, 8
      %s1944 = scalar_lea.vmem %s6, %s1943
      // Predicated region
      $region45: #{compressed_d2_block.3} parent=43 // pred_check
        %p1945 = pneg %p166
      $region46: #{compressed_d2_block.3} parent=43 // pred_check_branch
        %1947 = sbr.rel (%p1945) target = $region48
      $region47: #{compressed_d2_block.3} parent=43 // pred_region
        _
      $region48: #{compressed_d2_block.3} parent=43 // pred_fallthru
        _
    $region44: #{compressed_d2_block.3} parent=5 // pred_fallthru
      _
    %p1948 = scmp.le.s32.totalorder 2, %s12
    // Predicated region
    $region49: #{compressed_d2_block.3} parent=5 // pred_check
      %p1949 = pneg %p1948
    $region50: #{compressed_d2_block.3} parent=5 // pred_check_branch
      %1951 = sbr.rel (%p1949) target = $region52
    $region51: #{compressed_d2_block.3} parent=5 // pred_region
      %s1952 = ssub.s32 %s12, 2
      // Predicated region
      $region53: #{compressed_d2_block.3} parent=51 // pred_check
        %p1953 = pneg %p172
      $region54: #{compressed_d2_block.3} parent=51 // pred_check_branch
        %1955 = sbr.rel (%p1953) target = $region56
      $region55: #{compressed_d2_block.3} parent=51 // pred_region
        %p1956 = scmp.lt.s32.totalorder %s18, 1
        %s1957 = scalar_select %p1956, %s18, 1
        %s1958 = smul.addr %s1957, 136
        %s1959 = sadd.s32 34, %s1958
        %s1960 = smul.addr %s1959, 8
        %s1961 = scalar_lea.vmem %s6, %s1960
      $region56: #{compressed_d2_block.3} parent=51 // pred_fallthru
        _
    $region52: #{compressed_d2_block.3} parent=5 // pred_fallthru
      _
  $region6: #{compressed_d2_block.3} parent=0 // loop_footer
    %s16 = sadd.s32 1, %s12
  $region7: #{compressed_d2_block.3} parent=0 // loop_footer_branch
    %11 = sbr.rel target = $region3
  $region8: #{compressed_d2_block.3} parent=0 // loop_exit
    _

// kernel: compressed_d2_block.4
$region0: #{compressed_d2_block.4}
  #allocation0 [shape = 'u32[]', space=smem, size = 0x4, offset = 0x4, fixed_abs, tag = 'smem constant byte address 0x4 - core index']
  #allocation1 [shape = 'u32[144,128]{1,0:T(1,128)}', space=vmem, size = 0x12000, scoped, tag = 'internal scratch']
  %s0 = inlined_call_operand.vmem [shape: f32[2,32,4352], index: 0, kind: input, shape index: {}, may-alias: {0,6}]
  %s1 = inlined_call_operand.vmem [shape: f32[1,4352], index: 1, kind: input, shape index: {}]
  %s2 = inlined_call_operand.vmem [shape: f32[16,1], index: 2, kind: input, shape index: {}]
  %s3 = inlined_call_operand.vmem [shape: f32[16,1], index: 3, kind: input, shape index: {}]
  %s4 = inlined_call_operand.vmem [shape: bf16[8,144], index: 4, kind: input, shape index: {}]
  %s5 = inlined_call_operand.vmem [shape: f32[8,1], index: 5, kind: input, shape index: {}]
  %s6 = inlined_call_operand.vmem [shape: f32[2,32,4352], index: 6, kind: output, shape index: {}, may-alias: {0,6}]
  %s7 = sld [smem:[#allocation0]]
  $region57: #{compressed_d2_block.4} parent=0
    _
  %s9 = ssub.s32 1, %s7
  %s10 = scalar_select 0, %s9, %s7
  loop: start=0, step=1, limit=4
  $region2: #{compressed_d2_block.4} parent=0 // loop_pre_header
    _
  $region3: #{compressed_d2_block.4} parent=0 // loop_header
    %s12 = sphi 0, %s16
    %p13 = scmp.ge.s32.totalorder %s12, 4
    %s22 = sphi 0, %s24
    %s25 = sphi 0, %s22
    %s26 = sphi 0, %s25
    %s42 = sphi 0, %s26
    %s46 = sphi 0, %s46
    %s48 = sphi 0, %s46
    %s49 = sphi 0, %s48
    %s63 = sphi 0, %s49
    %s67 = sphi 0, %s67
    %s69 = sphi 0, %s67
    %s70 = sphi 0, %s69
    %s84 = sphi 0, %s70
    %s88 = sphi 0, %s88
    %s90 = sphi 0, %s88
    %s91 = sphi 0, %s90
    %s105 = sphi 0, %s91
    %s109 = sphi 0, %s109
    %s111 = sphi 0, %s109
    %s112 = sphi 0, %s111
    %s126 = sphi 0, %s112
    %s130 = sphi 0, %s130
    %s132 = sphi 0, %s130
    %s133 = sphi 0, %s132
    %s147 = sphi 0, %s133
    %s153 = sphi 0, %s155
    %s156 = sphi 0, %s153
    %s157 = sphi 0, %s156
    %s173 = sphi 0, %s157
  $region4: #{compressed_d2_block.4} parent=0 // loop_header_branch
    %15 = sbr.rel (%p13) target = $region8
  $region5: #{compressed_d2_block.4} parent=0 // loop_body
    %s17 = ssub.s32 %s12, 1
    %s18 = ssub.s32 %s12, 2
    %s19 = sadd.s32 %s12, 1
    %s20 = ssub.s32 %s12, %s19
    %p21 = scmp.eq.s32.totalorder %s20, 0
    %s23 = sadd.s32 %s22, 1
    %s24 = scalar_select %p21, %s22, %s23
    %p27 = pneg %p21
    %p28 = scmp.eq.s32.totalorder %s12, 1
    %p29 = por %p27, %p28
    %p30 = scmp.ne.s32.totalorder %s22, %s25
    %p31 = scmp.eq.s32.totalorder %s12, 0
    %p32 = por %p30, %p31
    %p33 = scmp.ne.s32.totalorder %s22, %s25
    %p34 = scmp.eq.s32.totalorder %s17, 1
    %p35 = por %p33, %p34
    %p36 = scmp.ne.s32.totalorder %s25, %s26
    %p37 = scmp.eq.s32.totalorder %s17, 0
    %p38 = por %p36, %p37
    %p39 = scmp.ne.s32.totalorder %s25, %s26
    %p40 = scmp.eq.s32.totalorder %s18, 1
    %p41 = por %p39, %p40
    %p43 = scmp.ne.s32.totalorder %s26, %s42
    %p44 = scmp.eq.s32.totalorder %s18, 0
    %p45 = por %p43, %p44
    %s47 = sadd.s32 %s46, 1
    %p50 = scmp.eq.s32.totalorder %s12, 1
    %p51 = scmp.ne.s32.totalorder %s46, %s48
    %p52 = scmp.eq.s32.totalorder %s12, 0
    %p53 = por %p51, %p52
    %p54 = scmp.ne.s32.totalorder %s46, %s48
    %p55 = scmp.eq.s32.totalorder %s17, 1
    %p56 = por %p54, %p55
    %p57 = scmp.ne.s32.totalorder %s48, %s49
    %p58 = scmp.eq.s32.totalorder %s17, 0
    %p59 = por %p57, %p58
    %p60 = scmp.ne.s32.totalorder %s48, %s49
    %p61 = scmp.eq.s32.totalorder %s18, 1
    %p62 = por %p60, %p61
    %p64 = scmp.ne.s32.totalorder %s49, %s63
    %p65 = scmp.eq.s32.totalorder %s18, 0
    %p66 = por %p64, %p65
    %s68 = sadd.s32 %s67, 1
    %p71 = scmp.eq.s32.totalorder %s12, 1
    %p72 = scmp.ne.s32.totalorder %s67, %s69
    %p73 = scmp.eq.s32.totalorder %s12, 0
    %p74 = por %p72, %p73
    %p75 = scmp.ne.s32.totalorder %s67, %s69
    %p76 = scmp.eq.s32.totalorder %s17, 1
    %p77 = por %p75, %p76
    %p78 = scmp.ne.s32.totalorder %s69, %s70
    %p79 = scmp.eq.s32.totalorder %s17, 0
    %p80 = por %p78, %p79
    %p81 = scmp.ne.s32.totalorder %s69, %s70
    %p82 = scmp.eq.s32.totalorder %s18, 1
    %p83 = por %p81, %p82
    %p85 = scmp.ne.s32.totalorder %s70, %s84
    %p86 = scmp.eq.s32.totalorder %s18, 0
    %p87 = por %p85, %p86
    %s89 = sadd.s32 %s88, 1
    %p92 = scmp.eq.s32.totalorder %s12, 1
    %p93 = scmp.ne.s32.totalorder %s88, %s90
    %p94 = scmp.eq.s32.totalorder %s12, 0
    %p95 = por %p93, %p94
    %p96 = scmp.ne.s32.totalorder %s88, %s90
    %p97 = scmp.eq.s32.totalorder %s17, 1
    %p98 = por %p96, %p97
    %p99 = scmp.ne.s32.totalorder %s90, %s91
    %p100 = scmp.eq.s32.totalorder %s17, 0
    %p101 = por %p99, %p100
    %p102 = scmp.ne.s32.totalorder %s90, %s91
    %p103 = scmp.eq.s32.totalorder %s18, 1
    %p104 = por %p102, %p103
    %p106 = scmp.ne.s32.totalorder %s91, %s105
    %p107 = scmp.eq.s32.totalorder %s18, 0
    %p108 = por %p106, %p107
    %s110 = sadd.s32 %s109, 1
    %p113 = scmp.eq.s32.totalorder %s12, 1
    %p114 = scmp.ne.s32.totalorder %s109, %s111
    %p115 = scmp.eq.s32.totalorder %s12, 0
    %p116 = por %p114, %p115
    %p117 = scmp.ne.s32.totalorder %s109, %s111
    %p118 = scmp.eq.s32.totalorder %s17, 1
    %p119 = por %p117, %p118
    %p120 = scmp.ne.s32.totalorder %s111, %s112
    %p121 = scmp.eq.s32.totalorder %s17, 0
    %p122 = por %p120, %p121
    %p123 = scmp.ne.s32.totalorder %s111, %s112
    %p124 = scmp.eq.s32.totalorder %s18, 1
    %p125 = por %p123, %p124
    %p127 = scmp.ne.s32.totalorder %s112, %s126
    %p128 = scmp.eq.s32.totalorder %s18, 0
    %p129 = por %p127, %p128
    %s131 = sadd.s32 %s130, 1
    %p134 = scmp.eq.s32.totalorder %s12, 1
    %p135 = scmp.ne.s32.totalorder %s130, %s132
    %p136 = scmp.eq.s32.totalorder %s12, 0
    %p137 = por %p135, %p136
    %p138 = scmp.ne.s32.totalorder %s130, %s132
    %p139 = scmp.eq.s32.totalorder %s17, 1
    %p140 = por %p138, %p139
    %p141 = scmp.ne.s32.totalorder %s132, %s133
    %p142 = scmp.eq.s32.totalorder %s17, 0
    %p143 = por %p141, %p142
    %p144 = scmp.ne.s32.totalorder %s132, %s133
    %p145 = scmp.eq.s32.totalorder %s18, 1
    %p146 = por %p144, %p145
    %p148 = scmp.ne.s32.totalorder %s133, %s147
    %p149 = scmp.eq.s32.totalorder %s18, 0
    %p150 = por %p148, %p149
    %s151 = ssub.s32 %s12, %s19
    %p152 = scmp.eq.s32.totalorder %s151, 0
    %s154 = sadd.s32 %s153, 1
    %s155 = scalar_select %p152, %s153, %s154
    %p158 = pneg %p152
    %p159 = scmp.eq.s32.totalorder %s12, 1
    %p160 = por %p158, %p159
    %p161 = scmp.ne.s32.totalorder %s153, %s156
    %p162 = scmp.eq.s32.totalorder %s12, 0
    %p163 = por %p161, %p162
    %p164 = scmp.ne.s32.totalorder %s153, %s156
    %p165 = scmp.eq.s32.totalorder %s17, 1
    %p166 = por %p164, %p165
    %p167 = scmp.ne.s32.totalorder %s156, %s157
    %p168 = scmp.eq.s32.totalorder %s17, 0
    %p169 = por %p167, %p168
    %p170 = scmp.ne.s32.totalorder %s156, %s157
    %p171 = scmp.eq.s32.totalorder %s18, 1
    %p172 = por %p170, %p171
    %p174 = scmp.ne.s32.totalorder %s157, %s173
    %p175 = scmp.eq.s32.totalorder %s18, 0
    %p176 = por %p174, %p175
    %p177 = scmp.le.s32.totalorder 1, %s12
    %p178 = scmp.lt.s32.totalorder %s12, 3
    %p179 = pnand %p177, %p178
    %p180 = pneg %p179
    // Predicated region
    $region9: #{compressed_d2_block.4} parent=5 // pred_check
      _
    $region10: #{compressed_d2_block.4} parent=5 // pred_check_branch
      %182 = sbr.rel (%p179) target = $region12
    $region11: #{compressed_d2_block.4} parent=5 // pred_region
      %s183 = ssub.s32 %s12, 1
      // Predicated region
      $region13: #{compressed_d2_block.4} parent=11 // pred_check
        %p184 = pneg %p59
      $region14: #{compressed_d2_block.4} parent=11 // pred_check_branch
        %186 = sbr.rel (%p184) target = $region16
      $region15: #{compressed_d2_block.4} parent=11 // pred_region
        _
      $region16: #{compressed_d2_block.4} parent=11 // pred_fallthru
        _
      // Predicated region
      $region17: #{compressed_d2_block.4} parent=11 // pred_check
        %p187 = pneg %p80
      $region18: #{compressed_d2_block.4} parent=11 // pred_check_branch
        %189 = sbr.rel (%p187) target = $region20
      $region19: #{compressed_d2_block.4} parent=11 // pred_region
        _
      $region20: #{compressed_d2_block.4} parent=11 // pred_fallthru
        _
      // Predicated region
      $region21: #{compressed_d2_block.4} parent=11 // pred_check
        %p190 = pneg %p101
      $region22: #{compressed_d2_block.4} parent=11 // pred_check_branch
        %192 = sbr.rel (%p190) target = $region24
      $region23: #{compressed_d2_block.4} parent=11 // pred_region
        _
      $region24: #{compressed_d2_block.4} parent=11 // pred_fallthru
        _
      // Predicated region
      $region25: #{compressed_d2_block.4} parent=11 // pred_check
        %p193 = pneg %p122
      $region26: #{compressed_d2_block.4} parent=11 // pred_check_branch
        %195 = sbr.rel (%p193) target = $region28
      $region27: #{compressed_d2_block.4} parent=11 // pred_region
        _
      $region28: #{compressed_d2_block.4} parent=11 // pred_fallthru
        _
      // Predicated region
      $region29: #{compressed_d2_block.4} parent=11 // pred_check
        %p196 = pneg %p143
      $region30: #{compressed_d2_block.4} parent=11 // pred_check_branch
        %198 = sbr.rel (%p196) target = $region32
      $region31: #{compressed_d2_block.4} parent=11 // pred_region
        _
      $region32: #{compressed_d2_block.4} parent=11 // pred_fallthru
        _
    $region12: #{compressed_d2_block.4} parent=5 // pred_fallthru
      _
    %p199 = scmp.lt.s32.totalorder %s12, 2
    // Predicated region
    $region33: #{compressed_d2_block.4} parent=5 // pred_check
      %p200 = pneg %p199
    $region34: #{compressed_d2_block.4} parent=5 // pred_check_branch
      %202 = sbr.rel (%p200) target = $region36
    $region35: #{compressed_d2_block.4} parent=5 // pred_region
      // Predicated region
      $region37: #{compressed_d2_block.4} parent=35 // pred_check
        %p203 = pneg %p32
      $region38: #{compressed_d2_block.4} parent=35 // pred_check_branch
        %205 = sbr.rel (%p203) target = $region40
      $region39: #{compressed_d2_block.4} parent=35 // pred_region
        %p206 = scmp.lt.s32.totalorder %s12, 1
        %s207 = scalar_select %p206, %s12, 1
        %s208 = smul.addr %s207, 136
        %s209 = smul.addr %s208, 8
        %s210 = scalar_lea.vmem %s0, %s209
      $region40: #{compressed_d2_block.4} parent=35 // pred_fallthru
        _
    $region36: #{compressed_d2_block.4} parent=5 // pred_fallthru
      _
    %p211 = scmp.le.s32.totalorder 1, %s12
    %p212 = scmp.lt.s32.totalorder %s12, 3
    %p213 = pnand %p211, %p212
    %p214 = pneg %p213
    // Predicated region
    $region41: #{compressed_d2_block.4} parent=5 // pred_check
      _
    $region42: #{compressed_d2_block.4} parent=5 // pred_check_branch
      %216 = sbr.rel (%p213) target = $region44
    $region43: #{compressed_d2_block.4} parent=5 // pred_region
      %s217 = ssub.s32 %s12, 1
      %p218 = scmp.lt.s32.totalorder %s17, 1
      %s219 = scalar_select %p218, %s17, 1
      %s220 = smul.addr %s219, 136
      %s221 = smul.addr %s220, 8
      %s222 = scalar_lea.vmem %s0, %s221
      %p223 = pneg %p38
      %p224 = pneg %p35
      %p225 = pneg %p59
      %p226 = pneg %p56
      %p227 = pneg %p80
      %p228 = pneg %p77
      %p229 = pneg %p101
      %p230 = pneg %p98
      %p231 = pneg %p122
      %p232 = pneg %p119
      %p233 = pneg %p143
      %p234 = pneg %p140
      %p235 = pneg %p169
      %p236 = pneg %p166
      %p237 = scmp.lt.s32.totalorder %s17, 1
      %s238 = scalar_select %p237, %s17, 1
      %s239 = smul.addr %s238, 136
      %s240 = sadd.s32 68, %s239
      %s241 = smul.addr %s240, 8
      %s242 = scalar_lea.vmem %s6, %s241
      %p243 = scmp.lt.s32.totalorder %s17, 1
      %s244 = scalar_select %p243, %s17, 1
      %s245 = smul.addr %s244, 136
      %s246 = smul.addr %s245, 8
      %s247 = scalar_lea.vmem %s0, %s246
      %p248 = scmp.lt.s32.totalorder %s17, 1
      %s249 = scalar_select %p248, %s17, 1
      %s250 = smul.addr %s249, 136
      %s251 = sadd.s32 68, %s250
      %s252 = smul.addr %s251, 8
      %s253 = scalar_lea.vmem %s6, %s252
      %v255 = vld [vmem:[%s247 + $0x18] sm:$0xff]
      %v256 = vld [vmem:[%s247 + $0x20] sm:$0xff]
      %v257 = vld [vmem:[%s247 + $0x28] sm:$0xff]
      %v258 = vld [vmem:[%s247 + $0x30] sm:$0xff]
      %v259 = vld [vmem:[%s247 + $0x38] sm:$0xff]
      %v260 = vld [vmem:[%s247 + $0x40] sm:$0xff]
      %v261 = vld [vmem:[%s247 + $0x48] sm:$0xff]
      %v262 = vld [vmem:[%s247 + $0x50] sm:$0xff]
      %v263 = vld [vmem:[%s247 + $0x58] sm:$0xff]
      %v264 = vld [vmem:[%s247 + $0x60] sm:$0xff]
      %v265 = vld [vmem:[%s247 + $0x68] sm:$0xff]
      %v266 = vld [vmem:[%s247 + $0x70] sm:$0xff]
      %v267 = vld [vmem:[%s247 + $0x78] sm:$0xff]
      %v268 = vld [vmem:[%s247 + $0x80] sm:$0xff]
      %v269 = vld [vmem:[%s247 + $0x88] sm:$0xff]
      %v270 = vld [vmem:[%s247 + $0x90] sm:$0xff]
      %v271 = vld [vmem:[%s247 + $0x98] sm:$0xff]
      %v272 = vld [vmem:[%s247 + $0xa0] sm:$0xff]
      %v273 = vld [vmem:[%s247 + $0xa8] sm:$0xff]
      %v274 = vld [vmem:[%s247 + $0xb0] sm:$0xff]
      %v275 = vld [vmem:[%s247 + $0xb8] sm:$0xff]
      %v276 = vld [vmem:[%s247 + $0xc0] sm:$0xff]
      %v277 = vld [vmem:[%s247 + $0xc8] sm:$0xff]
      %v278 = vld [vmem:[%s247 + $0xd0] sm:$0xff]
      %v279 = vld [vmem:[%s247 + $0xd8] sm:$0xff]
      %v280 = vld [vmem:[%s247 + $0xe0] sm:$0xff]
      %v281 = vld [vmem:[%s247 + $0xe8] sm:$0xff]
      %v282 = vld [vmem:[%s247 + $0xf0] sm:$0xff]
      %v283 = vld [vmem:[%s247 + $0x120] sm:$0xff]
      %v284 = vld [vmem:[%s247 + $0x128] sm:$0xff]
      %v285 = vld [vmem:[%s247 + $0x130] sm:$0xff]
      %v286 = vld [vmem:[%s247 + $0x138] sm:$0xff]
      %v287 = vld [vmem:[%s247 + $0x140] sm:$0xff]
      %v288 = vld [vmem:[%s247 + $0x148] sm:$0xff]
      %v289 = vld [vmem:[%s247 + $0x150] sm:$0xff]
      %v290 = vld [vmem:[%s247 + $0x158] sm:$0xff]
      %v291 = vld [vmem:[%s247 + $0x160] sm:$0xff]
      %v292 = vld [vmem:[%s247 + $0x168] sm:$0xff]
      %v293 = vld [vmem:[%s247 + $0x170] sm:$0xff]
      %v294 = vld [vmem:[%s247 + $0x178] sm:$0xff]
      %v295 = vld [vmem:[%s247 + $0x180] sm:$0xff]
      %v296 = vld [vmem:[%s247 + $0x188] sm:$0xff]
      %v297 = vld [vmem:[%s247 + $0x190] sm:$0xff]
      %v298 = vld [vmem:[%s247 + $0x198] sm:$0xff]
      %v299 = vld [vmem:[%s247 + $0x1a0] sm:$0xff]
      %v300 = vld [vmem:[%s247 + $0x1a8] sm:$0xff]
      %v301 = vld [vmem:[%s247 + $0x1b0] sm:$0xff]
      %v302 = vld [vmem:[%s247 + $0x1b8] sm:$0xff]
      %v303 = vld [vmem:[%s247 + $0x1c0] sm:$0xff]
      %v304 = vld [vmem:[%s247 + $0x1c8] sm:$0xff]
      %v305 = vld [vmem:[%s247 + $0x1d0] sm:$0xff]
      %v306 = vld [vmem:[%s247 + $0x1d8] sm:$0xff]
      %v307 = vld [vmem:[%s247 + $0x1e0] sm:$0xff]
      %v308 = vld [vmem:[%s247 + $0x1e8] sm:$0xff]
      %v309 = vld [vmem:[%s247 + $0x1f0] sm:$0xff]
      %v310 = vld [vmem:[%s247 + $0x1f8] sm:$0xff]
      %v311 = vld [vmem:[%s247 + $0x200] sm:$0xff]
      %v312 = vld [vmem:[%s247 + $0x208] sm:$0xff]
      %v313 = vld [vmem:[%s2] sm:$0xff]
      %v314 = vld [vmem:[%s2 + $0x8] sm:$0xff]
      %316 = vset.pattern.permute.xlu0 0
      %317 = vperm.xlu0 %316, %v313
      %v318 = vpop.permute.xlu0 %317
      %321 = vset.pattern.permute.xlu0 0
      %322 = vperm.xlu0 %321, %v314
      %v323 = vpop.permute.xlu0 %322
      %v325 = vmul.f32 %v255, %v318
      %v326 = vmul.f32 %v256, %v318
      %v327 = vmul.f32 %v257, %v318
      %v328 = vmul.f32 %v258, %v318
      %v329 = vmul.f32 %v259, %v318
      %v330 = vmul.f32 %v260, %v318
      %v331 = vmul.f32 %v261, %v318
      %v332 = vmul.f32 %v262, %v318
      %v333 = vmul.f32 %v263, %v318
      %v334 = vmul.f32 %v264, %v318
      %v335 = vmul.f32 %v265, %v318
      %v336 = vmul.f32 %v266, %v318
      %v337 = vmul.f32 %v267, %v318
      %v338 = vmul.f32 %v268, %v318
      %v339 = vmul.f32 %v269, %v318
      %v340 = vmul.f32 %v270, %v318
      %v341 = vmul.f32 %v271, %v318
      %v342 = vmul.f32 %v272, %v318
      %v343 = vmul.f32 %v273, %v318
      %v344 = vmul.f32 %v274, %v318
      %v345 = vmul.f32 %v275, %v318
      %v346 = vmul.f32 %v276, %v318
      %v347 = vmul.f32 %v277, %v318
      %v348 = vmul.f32 %v278, %v318
      %v349 = vmul.f32 %v279, %v318
      %v350 = vmul.f32 %v280, %v318
      %v351 = vmul.f32 %v281, %v318
      %v352 = vmul.f32 %v282, %v318
      %v353 = vmul.f32 %v283, %v323
      %v354 = vmul.f32 %v284, %v323
      %v355 = vmul.f32 %v285, %v323
      %v356 = vmul.f32 %v286, %v323
      %v357 = vmul.f32 %v287, %v323
      %v358 = vmul.f32 %v288, %v323
      %v359 = vmul.f32 %v289, %v323
      %v360 = vmul.f32 %v290, %v323
      %v361 = vmul.f32 %v291, %v323
      %v362 = vmul.f32 %v292, %v323
      %v363 = vmul.f32 %v293, %v323
      %v364 = vmul.f32 %v294, %v323
      %v365 = vmul.f32 %v295, %v323
      %v366 = vmul.f32 %v296, %v323
      %v367 = vmul.f32 %v297, %v323
      %v368 = vmul.f32 %v298, %v323
      %v369 = vmul.f32 %v299, %v323
      %v370 = vmul.f32 %v300, %v323
      %v371 = vmul.f32 %v301, %v323
      %v372 = vmul.f32 %v302, %v323
      %v373 = vmul.f32 %v303, %v323
      %v374 = vmul.f32 %v304, %v323
      %v375 = vmul.f32 %v305, %v323
      %v376 = vmul.f32 %v306, %v323
      %v377 = vmul.f32 %v307, %v323
      %v378 = vmul.f32 %v308, %v323
      %v379 = vmul.f32 %v309, %v323
      %v380 = vmul.f32 %v310, %v323
      %v381 = vmul.f32 %v311, %v323
      %v382 = vmul.f32 %v312, %v323
      %v383 = vld [vmem:[%s3] sm:$0xff]
      %v384 = vld [vmem:[%s3 + $0x8] sm:$0xff]
      %386 = vset.pattern.permute.xlu0 0
      %387 = vperm.xlu0 %386, %v383
      %v388 = vpop.permute.xlu0 %387
      %391 = vset.pattern.permute.xlu0 0
      %392 = vperm.xlu0 %391, %v384
      %v393 = vpop.permute.xlu0 %392
      %v395 = vadd.f32 %v325, %v388
      %v396 = vadd.f32 %v326, %v388
      %v397 = vadd.f32 %v327, %v388
      %v398 = vadd.f32 %v328, %v388
      %v399 = vadd.f32 %v329, %v388
      %v400 = vadd.f32 %v330, %v388
      %v401 = vadd.f32 %v331, %v388
      %v402 = vadd.f32 %v332, %v388
      %v403 = vadd.f32 %v333, %v388
      %v404 = vadd.f32 %v334, %v388
      %v405 = vadd.f32 %v335, %v388
      %v406 = vadd.f32 %v336, %v388
      %v407 = vadd.f32 %v337, %v388
      %v408 = vadd.f32 %v338, %v388
      %v409 = vadd.f32 %v339, %v388
      %v410 = vadd.f32 %v340, %v388
      %v411 = vadd.f32 %v341, %v388
      %v412 = vadd.f32 %v342, %v388
      %v413 = vadd.f32 %v343, %v388
      %v414 = vadd.f32 %v344, %v388
      %v415 = vadd.f32 %v345, %v388
      %v416 = vadd.f32 %v346, %v388
      %v417 = vadd.f32 %v347, %v388
      %v418 = vadd.f32 %v348, %v388
      %v419 = vadd.f32 %v349, %v388
      %v420 = vadd.f32 %v350, %v388
      %v421 = vadd.f32 %v351, %v388
      %v422 = vadd.f32 %v352, %v388
      %v423 = vadd.f32 %v353, %v393
      %v424 = vadd.f32 %v354, %v393
      %v425 = vadd.f32 %v355, %v393
      %v426 = vadd.f32 %v356, %v393
      %v427 = vadd.f32 %v357, %v393
      %v428 = vadd.f32 %v358, %v393
      %v429 = vadd.f32 %v359, %v393
      %v430 = vadd.f32 %v360, %v393
      %v431 = vadd.f32 %v361, %v393
      %v432 = vadd.f32 %v362, %v393
      %v433 = vadd.f32 %v363, %v393
      %v434 = vadd.f32 %v364, %v393
      %v435 = vadd.f32 %v365, %v393
      %v436 = vadd.f32 %v366, %v393
      %v437 = vadd.f32 %v367, %v393
      %v438 = vadd.f32 %v368, %v393
      %v439 = vadd.f32 %v369, %v393
      %v440 = vadd.f32 %v370, %v393
      %v441 = vadd.f32 %v371, %v393
      %v442 = vadd.f32 %v372, %v393
      %v443 = vadd.f32 %v373, %v393
      %v444 = vadd.f32 %v374, %v393
      %v445 = vadd.f32 %v375, %v393
      %v446 = vadd.f32 %v376, %v393
      %v447 = vadd.f32 %v377, %v393
      %v448 = vadd.f32 %v378, %v393
      %v449 = vadd.f32 %v379, %v393
      %v450 = vadd.f32 %v380, %v393
      %v451 = vadd.f32 %v381, %v393
      %v452 = vadd.f32 %v382, %v393
      %v453 = vmul.f32 %v395, 0.0
      %v454 = vmul.f32 %v396, 0.0
      %v455 = vmul.f32 %v397, 0.0
      %v456 = vmul.f32 %v398, 0.0
      %v457 = vmul.f32 %v399, 0.0
      %v458 = vmul.f32 %v400, 0.0
      %v459 = vmul.f32 %v401, 0.0
      %v460 = vmul.f32 %v402, 0.0
      %v461 = vmul.f32 %v403, 0.0
      %v462 = vmul.f32 %v404, 0.0
      %v463 = vmul.f32 %v405, 0.0
      %v464 = vmul.f32 %v406, 0.0
      %v465 = vmul.f32 %v407, 0.0
      %v466 = vmul.f32 %v408, 0.0
      %v467 = vmul.f32 %v409, 0.0
      %v468 = vmul.f32 %v410, 0.0
      %v469 = vmul.f32 %v411, 0.0
      %v470 = vmul.f32 %v412, 0.0
      %v471 = vmul.f32 %v413, 0.0
      %v472 = vmul.f32 %v414, 0.0
      %v473 = vmul.f32 %v415, 0.0
      %v474 = vmul.f32 %v416, 0.0
      %v475 = vmul.f32 %v417, 0.0
      %v476 = vmul.f32 %v418, 0.0
      %v477 = vmul.f32 %v419, 0.0
      %v478 = vmul.f32 %v420, 0.0
      %v479 = vmul.f32 %v421, 0.0
      %v480 = vmul.f32 %v422, 0.0
      %v481 = vmul.f32 %v423, 0.0
      %v482 = vmul.f32 %v424, 0.0
      %v483 = vmul.f32 %v425, 0.0
      %v484 = vmul.f32 %v426, 0.0
      %v485 = vmul.f32 %v427, 0.0
      %v486 = vmul.f32 %v428, 0.0
      %v487 = vmul.f32 %v429, 0.0
      %v488 = vmul.f32 %v430, 0.0
      %v489 = vmul.f32 %v431, 0.0
      %v490 = vmul.f32 %v432, 0.0
      %v491 = vmul.f32 %v433, 0.0
      %v492 = vmul.f32 %v434, 0.0
      %v493 = vmul.f32 %v435, 0.0
      %v494 = vmul.f32 %v436, 0.0
      %v495 = vmul.f32 %v437, 0.0
      %v496 = vmul.f32 %v438, 0.0
      %v497 = vmul.f32 %v439, 0.0
      %v498 = vmul.f32 %v440, 0.0
      %v499 = vmul.f32 %v441, 0.0
      %v500 = vmul.f32 %v442, 0.0
      %v501 = vmul.f32 %v443, 0.0
      %v502 = vmul.f32 %v444, 0.0
      %v503 = vmul.f32 %v445, 0.0
      %v504 = vmul.f32 %v446, 0.0
      %v505 = vmul.f32 %v447, 0.0
      %v506 = vmul.f32 %v448, 0.0
      %v507 = vmul.f32 %v449, 0.0
      %v508 = vmul.f32 %v450, 0.0
      %v509 = vmul.f32 %v451, 0.0
      %v510 = vmul.f32 %v452, 0.0
      %v511 = vmax.f32 %v395, %v453
      %v512 = vmax.f32 %v396, %v454
      %v513 = vmax.f32 %v397, %v455
      %v514 = vmax.f32 %v398, %v456
      %v515 = vmax.f32 %v399, %v457
      %v516 = vmax.f32 %v400, %v458
      %v517 = vmax.f32 %v401, %v459
      %v518 = vmax.f32 %v402, %v460
      %v519 = vmax.f32 %v403, %v461
      %v520 = vmax.f32 %v404, %v462
      %v521 = vmax.f32 %v405, %v463
      %v522 = vmax.f32 %v406, %v464
      %v523 = vmax.f32 %v407, %v465
      %v524 = vmax.f32 %v408, %v466
      %v525 = vmax.f32 %v409, %v467
      %v526 = vmax.f32 %v410, %v468
      %v527 = vmax.f32 %v411, %v469
      %v528 = vmax.f32 %v412, %v470
      %v529 = vmax.f32 %v413, %v471
      %v530 = vmax.f32 %v414, %v472
      %v531 = vmax.f32 %v415, %v473
      %v532 = vmax.f32 %v416, %v474
      %v533 = vmax.f32 %v417, %v475
      %v534 = vmax.f32 %v418, %v476
      %v535 = vmax.f32 %v419, %v477
      %v536 = vmax.f32 %v420, %v478
      %v537 = vmax.f32 %v421, %v479
      %v538 = vmax.f32 %v422, %v480
      %v539 = vmax.f32 %v423, %v481
      %v540 = vmax.f32 %v424, %v482
      %v541 = vmax.f32 %v425, %v483
      %v542 = vmax.f32 %v426, %v484
      %v543 = vmax.f32 %v427, %v485
      %v544 = vmax.f32 %v428, %v486
      %v545 = vmax.f32 %v429, %v487
      %v546 = vmax.f32 %v430, %v488
      %v547 = vmax.f32 %v431, %v489
      %v548 = vmax.f32 %v432, %v490
      %v549 = vmax.f32 %v433, %v491
      %v550 = vmax.f32 %v434, %v492
      %v551 = vmax.f32 %v435, %v493
      %v552 = vmax.f32 %v436, %v494
      %v553 = vmax.f32 %v437, %v495
      %v554 = vmax.f32 %v438, %v496
      %v555 = vmax.f32 %v439, %v497
      %v556 = vmax.f32 %v440, %v498
      %v557 = vmax.f32 %v441, %v499
      %v558 = vmax.f32 %v442, %v500
      %v559 = vmax.f32 %v443, %v501
      %v560 = vmax.f32 %v444, %v502
      %v561 = vmax.f32 %v445, %v503
      %v562 = vmax.f32 %v446, %v504
      %v563 = vmax.f32 %v447, %v505
      %v564 = vmax.f32 %v448, %v506
      %v565 = vmax.f32 %v449, %v507
      %v566 = vmax.f32 %v450, %v508
      %v567 = vmax.f32 %v451, %v509
      %v568 = vmax.f32 %v452, %v510
      %v569 = vld [vmem:[%s1] sm:$0xff]
      %v570 = vld [vmem:[%s1 + $0x8] sm:$0xff]
      %v571 = vld [vmem:[%s1 + $0x10] sm:$0xff]
      %v572 = vld [vmem:[%s1 + $0x18] sm:$0xff]
      %vm573 = vcmp.gt.f32.partialorder %v569, 0.5
      %vm574 = vcmp.gt.f32.partialorder %v570, 0.5
      %vm575 = vcmp.gt.f32.partialorder %v571, 0.5
      %vm576 = vcmp.gt.f32.partialorder %v572, 0.5
      %v577 = vsel %vm573, 1, 0
      %v578 = vsel %vm574, 1, 0
      %v579 = vsel %vm575, 1, 0
      %v580 = vsel %vm576, 1, 0
      %v581 = vlaneseq
      %v582 = vshrl.u32 %v581, 7
      %v583 = vsub.s32 2, %v582
      %v584 = vrot.slane %v577, %v583
      %v585 = vlaneseq
      %v586 = vshrl.u32 %v585, 7
      %v587 = vsub.s32 3, %v586
      %v588 = vrot.slane %v577, %v587
      %v589 = vlaneseq
      %v590 = vshrl.u32 %v589, 7
      %v591 = vsub.s32 4, %v590
      %v592 = vrot.slane %v577, %v591
      %v593 = vlaneseq
      %v594 = vshrl.u32 %v593, 7
      %v595 = vsub.s32 5, %v594
      %v596 = vrot.slane %v577, %v595
      %v597 = vlaneseq
      %v598 = vshrl.u32 %v597, 7
      %v599 = vsub.s32 6, %v598
      %v600 = vrot.slane %v577, %v599
      %v601 = vlaneseq
      %v602 = vshrl.u32 %v601, 7
      %v603 = vsub.s32 7, %v602
      %v604 = vrot.slane %v577, %v603
      %v605 = vlaneseq
      %v606 = vshrl.u32 %v605, 7
      %v607 = vsub.s32 0, %v606
      %v608 = vrot.slane %v578, %v607
      %v609 = vlaneseq
      %v610 = vshrl.u32 %v609, 7
      %v611 = vsub.s32 1, %v610
      %v612 = vrot.slane %v578, %v611
      %v613 = vlaneseq
      %v614 = vshrl.u32 %v613, 7
      %v615 = vsub.s32 2, %v614
      %v616 = vrot.slane %v578, %v615
      %v617 = vlaneseq
      %v618 = vshrl.u32 %v617, 7
      %v619 = vsub.s32 3, %v618
      %v620 = vrot.slane %v578, %v619
      %v621 = vlaneseq
      %v622 = vshrl.u32 %v621, 7
      %v623 = vsub.s32 4, %v622
      %v624 = vrot.slane %v578, %v623
      %v625 = vlaneseq
      %v626 = vshrl.u32 %v625, 7
      %v627 = vsub.s32 5, %v626
      %v628 = vrot.slane %v578, %v627
      %v629 = vlaneseq
      %v630 = vshrl.u32 %v629, 7
      %v631 = vsub.s32 6, %v630
      %v632 = vrot.slane %v578, %v631
      %v633 = vlaneseq
      %v634 = vshrl.u32 %v633, 7
      %v635 = vsub.s32 7, %v634
      %v636 = vrot.slane %v578, %v635
      %v637 = vlaneseq
      %v638 = vshrl.u32 %v637, 7
      %v639 = vsub.s32 0, %v638
      %v640 = vrot.slane %v579, %v639
      %v641 = vlaneseq
      %v642 = vshrl.u32 %v641, 7
      %v643 = vsub.s32 1, %v642
      %v644 = vrot.slane %v579, %v643
      %v645 = vlaneseq
      %v646 = vshrl.u32 %v645, 7
      %v647 = vsub.s32 2, %v646
      %v648 = vrot.slane %v579, %v647
      %v649 = vlaneseq
      %v650 = vshrl.u32 %v649, 7
      %v651 = vsub.s32 3, %v650
      %v652 = vrot.slane %v579, %v651
      %v653 = vlaneseq
      %v654 = vshrl.u32 %v653, 7
      %v655 = vsub.s32 4, %v654
      %v656 = vrot.slane %v579, %v655
      %v657 = vlaneseq
      %v658 = vshrl.u32 %v657, 7
      %v659 = vsub.s32 5, %v658
      %v660 = vrot.slane %v579, %v659
      %v661 = vlaneseq
      %v662 = vshrl.u32 %v661, 7
      %v663 = vsub.s32 6, %v662
      %v664 = vrot.slane %v579, %v663
      %v665 = vlaneseq
      %v666 = vshrl.u32 %v665, 7
      %v667 = vsub.s32 7, %v666
      %v668 = vrot.slane %v579, %v667
      %v669 = vlaneseq
      %v670 = vshrl.u32 %v669, 7
      %v671 = vsub.s32 0, %v670
      %v672 = vrot.slane %v580, %v671
      %v673 = vlaneseq
      %v674 = vshrl.u32 %v673, 7
      %v675 = vsub.s32 1, %v674
      %v676 = vrot.slane %v580, %v675
      %v677 = vlaneseq
      %v678 = vshrl.u32 %v677, 7
      %v679 = vsub.s32 2, %v678
      %v680 = vrot.slane %v580, %v679
      %v681 = vlaneseq
      %v682 = vshrl.u32 %v681, 7
      %v683 = vsub.s32 3, %v682
      %v684 = vrot.slane %v580, %v683
      %v685 = vlaneseq
      %v686 = vshrl.u32 %v685, 7
      %v687 = vsub.s32 4, %v686
      %v688 = vrot.slane %v580, %v687
      %v689 = vlaneseq
      %v690 = vshrl.u32 %v689, 7
      %v691 = vsub.s32 5, %v690
      %v692 = vrot.slane %v580, %v691
      %v693 = vlaneseq
      %v694 = vshrl.u32 %v693, 7
      %v695 = vsub.s32 6, %v694
      %v696 = vrot.slane %v580, %v695
      %v697 = vlaneseq
      %v698 = vshrl.u32 %v697, 7
      %v699 = vsub.s32 7, %v698
      %v700 = vrot.slane %v580, %v699
      %vm701 = vcmp.eq.s32.totalorder %v584, 1
      %vm702 = vcmp.eq.s32.totalorder %v588, 1
      %vm703 = vcmp.eq.s32.totalorder %v592, 1
      %vm704 = vcmp.eq.s32.totalorder %v596, 1
      %vm705 = vcmp.eq.s32.totalorder %v600, 1
      %vm706 = vcmp.eq.s32.totalorder %v604, 1
      %vm707 = vcmp.eq.s32.totalorder %v608, 1
      %vm708 = vcmp.eq.s32.totalorder %v612, 1
      %vm709 = vcmp.eq.s32.totalorder %v616, 1
      %vm710 = vcmp.eq.s32.totalorder %v620, 1
      %vm711 = vcmp.eq.s32.totalorder %v624, 1
      %vm712 = vcmp.eq.s32.totalorder %v628, 1
      %vm713 = vcmp.eq.s32.totalorder %v632, 1
      %vm714 = vcmp.eq.s32.totalorder %v636, 1
      %vm715 = vcmp.eq.s32.totalorder %v640, 1
      %vm716 = vcmp.eq.s32.totalorder %v644, 1
      %vm717 = vcmp.eq.s32.totalorder %v648, 1
      %vm718 = vcmp.eq.s32.totalorder %v652, 1
      %vm719 = vcmp.eq.s32.totalorder %v656, 1
      %vm720 = vcmp.eq.s32.totalorder %v660, 1
      %vm721 = vcmp.eq.s32.totalorder %v664, 1
      %vm722 = vcmp.eq.s32.totalorder %v668, 1
      %vm723 = vcmp.eq.s32.totalorder %v672, 1
      %vm724 = vcmp.eq.s32.totalorder %v676, 1
      %vm725 = vcmp.eq.s32.totalorder %v680, 1
      %vm726 = vcmp.eq.s32.totalorder %v684, 1
      %vm727 = vcmp.eq.s32.totalorder %v688, 1
      %vm728 = vcmp.eq.s32.totalorder %v692, 1
      %vm729 = vcmp.eq.s32.totalorder %v696, 1
      %vm730 = vcmp.eq.s32.totalorder %v700, 1
      %v731 = vsel %vm702, %v511, 0.0
      %v732 = vsel %vm703, %v512, 0.0
      %v733 = vsel %vm704, %v513, 0.0
      %v734 = vsel %vm705, %v514, 0.0
      %v735 = vsel %vm706, %v515, 0.0
      %v736 = vsel %vm707, %v516, 0.0
      %v737 = vsel %vm708, %v517, 0.0
      %v738 = vsel %vm709, %v518, 0.0
      %v739 = vsel %vm710, %v519, 0.0
      %v740 = vsel %vm711, %v520, 0.0
      %v741 = vsel %vm712, %v521, 0.0
      %v742 = vsel %vm713, %v522, 0.0
      %v743 = vsel %vm714, %v523, 0.0
      %v744 = vsel %vm715, %v524, 0.0
      %v745 = vsel %vm716, %v525, 0.0
      %v746 = vsel %vm717, %v526, 0.0
      %v747 = vsel %vm718, %v527, 0.0
      %v748 = vsel %vm719, %v528, 0.0
      %v749 = vsel %vm720, %v529, 0.0
      %v750 = vsel %vm721, %v530, 0.0
      %v751 = vsel %vm722, %v531, 0.0
      %v752 = vsel %vm723, %v532, 0.0
      %v753 = vsel %vm724, %v533, 0.0
      %v754 = vsel %vm725, %v534, 0.0
      %v755 = vsel %vm726, %v535, 0.0
      %v756 = vsel %vm727, %v536, 0.0
      %v757 = vsel %vm728, %v537, 0.0
      %v758 = vsel %vm729, %v538, 0.0
      %v759 = vsel %vm701, %v539, 0.0
      %v760 = vsel %vm702, %v540, 0.0
      %v761 = vsel %vm703, %v541, 0.0
      %v762 = vsel %vm704, %v542, 0.0
      %v763 = vsel %vm705, %v543, 0.0
      %v764 = vsel %vm706, %v544, 0.0
      %v765 = vsel %vm707, %v545, 0.0
      %v766 = vsel %vm708, %v546, 0.0
      %v767 = vsel %vm709, %v547, 0.0
      %v768 = vsel %vm710, %v548, 0.0
      %v769 = vsel %vm711, %v549, 0.0
      %v770 = vsel %vm712, %v550, 0.0
      %v771 = vsel %vm713, %v551, 0.0
      %v772 = vsel %vm714, %v552, 0.0
      %v773 = vsel %vm715, %v553, 0.0
      %v774 = vsel %vm716, %v554, 0.0
      %v775 = vsel %vm717, %v555, 0.0
      %v776 = vsel %vm718, %v556, 0.0
      %v777 = vsel %vm719, %v557, 0.0
      %v778 = vsel %vm720, %v558, 0.0
      %v779 = vsel %vm721, %v559, 0.0
      %v780 = vsel %vm722, %v560, 0.0
      %v781 = vsel %vm723, %v561, 0.0
      %v782 = vsel %vm724, %v562, 0.0
      %v783 = vsel %vm725, %v563, 0.0
      %v784 = vsel %vm726, %v564, 0.0
      %v785 = vsel %vm727, %v565, 0.0
      %v786 = vsel %vm728, %v566, 0.0
      %v787 = vsel %vm729, %v567, 0.0
      %v788 = vsel %vm730, %v568, 0.0
      %816 = vrot.lane.b32.xlu0 %v731, 1
      %v817 = vpop.permute.xlu0 %816
      %818 = vrot.lane.b32.xlu0 %v732, 1
      %v819 = vpop.permute.xlu0 %818
      %820 = vrot.lane.b32.xlu0 %v733, 1
      %v821 = vpop.permute.xlu0 %820
      %822 = vrot.lane.b32.xlu0 %v734, 1
      %v823 = vpop.permute.xlu0 %822
      %824 = vrot.lane.b32.xlu0 %v735, 1
      %v825 = vpop.permute.xlu0 %824
      %826 = vrot.lane.b32.xlu0 %v736, 1
      %v827 = vpop.permute.xlu0 %826
      %828 = vrot.lane.b32.xlu0 %v737, 1
      %v829 = vpop.permute.xlu0 %828
      %830 = vrot.lane.b32.xlu0 %v738, 1
      %v831 = vpop.permute.xlu0 %830
      %832 = vrot.lane.b32.xlu0 %v739, 1
      %v833 = vpop.permute.xlu0 %832
      %834 = vrot.lane.b32.xlu0 %v740, 1
      %v835 = vpop.permute.xlu0 %834
      %836 = vrot.lane.b32.xlu0 %v741, 1
      %v837 = vpop.permute.xlu0 %836
      %838 = vrot.lane.b32.xlu0 %v742, 1
      %v839 = vpop.permute.xlu0 %838
      %840 = vrot.lane.b32.xlu0 %v743, 1
      %v841 = vpop.permute.xlu0 %840
      %842 = vrot.lane.b32.xlu0 %v744, 1
      %v843 = vpop.permute.xlu0 %842
      %844 = vrot.lane.b32.xlu0 %v745, 1
      %v845 = vpop.permute.xlu0 %844
      %846 = vrot.lane.b32.xlu0 %v746, 1
      %v847 = vpop.permute.xlu0 %846
      %848 = vrot.lane.b32.xlu0 %v747, 1
      %v849 = vpop.permute.xlu0 %848
      %850 = vrot.lane.b32.xlu0 %v748, 1
      %v851 = vpop.permute.xlu0 %850
      %852 = vrot.lane.b32.xlu0 %v749, 1
      %v853 = vpop.permute.xlu0 %852
      %854 = vrot.lane.b32.xlu0 %v750, 1
      %v855 = vpop.permute.xlu0 %854
      %856 = vrot.lane.b32.xlu0 %v751, 1
      %v857 = vpop.permute.xlu0 %856
      %858 = vrot.lane.b32.xlu0 %v752, 1
      %v859 = vpop.permute.xlu0 %858
      %860 = vrot.lane.b32.xlu0 %v753, 1
      %v861 = vpop.permute.xlu0 %860
      %862 = vrot.lane.b32.xlu0 %v754, 1
      %v863 = vpop.permute.xlu0 %862
      %864 = vrot.lane.b32.xlu0 %v755, 1
      %v865 = vpop.permute.xlu0 %864
      %866 = vrot.lane.b32.xlu0 %v756, 1
      %v867 = vpop.permute.xlu0 %866
      %868 = vrot.lane.b32.xlu0 %v757, 1
      %v869 = vpop.permute.xlu0 %868
      %vm870 = vcmask 7168
      %v871 = vsel %vm870, %v817, %v819
      %v872 = vsel %vm870, %v819, %v821
      %v873 = vsel %vm870, %v821, %v823
      %v874 = vsel %vm870, %v823, %v825
      %v875 = vsel %vm870, %v825, %v827
      %v876 = vsel %vm870, %v827, %v829
      %v877 = vsel %vm870, %v829, %v831
      %v878 = vsel %vm870, %v831, %v833
      %v879 = vsel %vm870, %v833, %v835
      %v880 = vsel %vm870, %v835, %v837
      %v881 = vsel %vm870, %v837, %v839
      %v882 = vsel %vm870, %v839, %v841
      %v883 = vsel %vm870, %v841, %v843
      %v884 = vsel %vm870, %v843, %v845
      %v885 = vsel %vm870, %v845, %v847
      %v886 = vsel %vm870, %v847, %v849
      %v887 = vsel %vm870, %v849, %v851
      %v888 = vsel %vm870, %v851, %v853
      %v889 = vsel %vm870, %v853, %v855
      %v890 = vsel %vm870, %v855, %v857
      %v891 = vsel %vm870, %v857, %v859
      %v892 = vsel %vm870, %v859, %v861
      %v893 = vsel %vm870, %v861, %v863
      %v894 = vsel %vm870, %v863, %v865
      %v895 = vsel %vm870, %v865, %v867
      %v896 = vsel %vm870, %v867, %v869
      %v923 = vpack.c.bf16 %v871, %v871
      %v924 = vpack.c.bf16 %v872, %v872
      %v925 = vpack.c.bf16 %v873, %v873
      %v926 = vpack.c.bf16 %v874, %v874
      %v927 = vpack.c.bf16 %v875, %v875
      %v928 = vpack.c.bf16 %v876, %v876
      %v929 = vpack.c.bf16 %v877, %v877
      %v930 = vpack.c.bf16 %v878, %v878
      %v931 = vpack.c.bf16 %v879, %v879
      %v932 = vpack.c.bf16 %v880, %v880
      %v933 = vpack.c.bf16 %v881, %v881
      %v934 = vpack.c.bf16 %v882, %v882
      %v935 = vpack.c.bf16 %v883, %v883
      %v936 = vpack.c.bf16 %v884, %v884
      %v937 = vpack.c.bf16 %v885, %v885
      %v938 = vpack.c.bf16 %v886, %v886
      %v939 = vpack.c.bf16 %v887, %v887
      %v940 = vpack.c.bf16 %v888, %v888
      %v941 = vpack.c.bf16 %v889, %v889
      %v942 = vpack.c.bf16 %v890, %v890
      %v943 = vpack.c.bf16 %v891, %v891
      %v944 = vpack.c.bf16 %v892, %v892
      %v945 = vpack.c.bf16 %v893, %v893
      %v946 = vpack.c.bf16 %v894, %v894
      %v947 = vpack.c.bf16 %v895, %v895
      %v948 = vpack.c.bf16 %v896, %v896
      %v949 = vpack.c.bf16 %v732, %v732
      %v950 = vpack.c.bf16 %v733, %v733
      %v951 = vpack.c.bf16 %v734, %v734
      %v952 = vpack.c.bf16 %v735, %v735
      %v953 = vpack.c.bf16 %v736, %v736
      %v954 = vpack.c.bf16 %v737, %v737
      %v955 = vpack.c.bf16 %v738, %v738
      %v956 = vpack.c.bf16 %v739, %v739
      %v957 = vpack.c.bf16 %v740, %v740
      %v958 = vpack.c.bf16 %v741, %v741
      %v959 = vpack.c.bf16 %v742, %v742
      %v960 = vpack.c.bf16 %v743, %v743
      %v961 = vpack.c.bf16 %v744, %v744
      %v962 = vpack.c.bf16 %v745, %v745
      %v963 = vpack.c.bf16 %v746, %v746
      %v964 = vpack.c.bf16 %v747, %v747
      %v965 = vpack.c.bf16 %v748, %v748
      %v966 = vpack.c.bf16 %v749, %v749
      %v967 = vpack.c.bf16 %v750, %v750
      %v968 = vpack.c.bf16 %v751, %v751
      %v969 = vpack.c.bf16 %v752, %v752
      %v970 = vpack.c.bf16 %v753, %v753
      %v971 = vpack.c.bf16 %v754, %v754
      %v972 = vpack.c.bf16 %v755, %v755
      %v973 = vpack.c.bf16 %v756, %v756
      %v974 = vpack.c.bf16 %v757, %v757
      %976 = vrot.lane.b32.xlu0 %v732, 127
      %v977 = vpop.permute.xlu0 %976
      %978 = vrot.lane.b32.xlu0 %v733, 127
      %v979 = vpop.permute.xlu0 %978
      %980 = vrot.lane.b32.xlu0 %v734, 127
      %v981 = vpop.permute.xlu0 %980
      %982 = vrot.lane.b32.xlu0 %v735, 127
      %v983 = vpop.permute.xlu0 %982
      %984 = vrot.lane.b32.xlu0 %v736, 127
      %v985 = vpop.permute.xlu0 %984
      %986 = vrot.lane.b32.xlu0 %v737, 127
      %v987 = vpop.permute.xlu0 %986
      %988 = vrot.lane.b32.xlu0 %v738, 127
      %v989 = vpop.permute.xlu0 %988
      %990 = vrot.lane.b32.xlu0 %v739, 127
      %v991 = vpop.permute.xlu0 %990
      %992 = vrot.lane.b32.xlu0 %v740, 127
      %v993 = vpop.permute.xlu0 %992
      %994 = vrot.lane.b32.xlu0 %v741, 127
      %v995 = vpop.permute.xlu0 %994
      %996 = vrot.lane.b32.xlu0 %v742, 127
      %v997 = vpop.permute.xlu0 %996
      %998 = vrot.lane.b32.xlu0 %v743, 127
      %v999 = vpop.permute.xlu0 %998
      %1000 = vrot.lane.b32.xlu0 %v744, 127
      %v1001 = vpop.permute.xlu0 %1000
      %1002 = vrot.lane.b32.xlu0 %v745, 127
      %v1003 = vpop.permute.xlu0 %1002
      %1004 = vrot.lane.b32.xlu0 %v746, 127
      %v1005 = vpop.permute.xlu0 %1004
      %1006 = vrot.lane.b32.xlu0 %v747, 127
      %v1007 = vpop.permute.xlu0 %1006
      %1008 = vrot.lane.b32.xlu0 %v748, 127
      %v1009 = vpop.permute.xlu0 %1008
      %1010 = vrot.lane.b32.xlu0 %v749, 127
      %v1011 = vpop.permute.xlu0 %1010
      %1012 = vrot.lane.b32.xlu0 %v750, 127
      %v1013 = vpop.permute.xlu0 %1012
      %1014 = vrot.lane.b32.xlu0 %v751, 127
      %v1015 = vpop.permute.xlu0 %1014
      %1016 = vrot.lane.b32.xlu0 %v752, 127
      %v1017 = vpop.permute.xlu0 %1016
      %1018 = vrot.lane.b32.xlu0 %v753, 127
      %v1019 = vpop.permute.xlu0 %1018
      %1020 = vrot.lane.b32.xlu0 %v754, 127
      %v1021 = vpop.permute.xlu0 %1020
      %1022 = vrot.lane.b32.xlu0 %v755, 127
      %v1023 = vpop.permute.xlu0 %1022
      %1024 = vrot.lane.b32.xlu0 %v756, 127
      %v1025 = vpop.permute.xlu0 %1024
      %1026 = vrot.lane.b32.xlu0 %v757, 127
      %v1027 = vpop.permute.xlu0 %1026
      %1028 = vrot.lane.b32.xlu0 %v758, 127
      %v1029 = vpop.permute.xlu0 %1028
      %vm1030 = vcmask 1039360
      %v1031 = vsel %vm1030, %v977, %v979
      %v1032 = vsel %vm1030, %v979, %v981
      %v1033 = vsel %vm1030, %v981, %v983
      %v1034 = vsel %vm1030, %v983, %v985
      %v1035 = vsel %vm1030, %v985, %v987
      %v1036 = vsel %vm1030, %v987, %v989
      %v1037 = vsel %vm1030, %v989, %v991
      %v1038 = vsel %vm1030, %v991, %v993
      %v1039 = vsel %vm1030, %v993, %v995
      %v1040 = vsel %vm1030, %v995, %v997
      %v1041 = vsel %vm1030, %v997, %v999
      %v1042 = vsel %vm1030, %v999, %v1001
      %v1043 = vsel %vm1030, %v1001, %v1003
      %v1044 = vsel %vm1030, %v1003, %v1005
      %v1045 = vsel %vm1030, %v1005, %v1007
      %v1046 = vsel %vm1030, %v1007, %v1009
      %v1047 = vsel %vm1030, %v1009, %v1011
      %v1048 = vsel %vm1030, %v1011, %v1013
      %v1049 = vsel %vm1030, %v1013, %v1015
      %v1050 = vsel %vm1030, %v1015, %v1017
      %v1051 = vsel %vm1030, %v1017, %v1019
      %v1052 = vsel %vm1030, %v1019, %v1021
      %v1053 = vsel %vm1030, %v1021, %v1023
      %v1054 = vsel %vm1030, %v1023, %v1025
      %v1055 = vsel %vm1030, %v1025, %v1027
      %v1056 = vsel %vm1030, %v1027, %v1029
      %v1083 = vpack.c.bf16 %v1031, %v1031
      %v1084 = vpack.c.bf16 %v1032, %v1032
      %v1085 = vpack.c.bf16 %v1033, %v1033
      %v1086 = vpack.c.bf16 %v1034, %v1034
      %v1087 = vpack.c.bf16 %v1035, %v1035
      %v1088 = vpack.c.bf16 %v1036, %v1036
      %v1089 = vpack.c.bf16 %v1037, %v1037
      %v1090 = vpack.c.bf16 %v1038, %v1038
      %v1091 = vpack.c.bf16 %v1039, %v1039
      %v1092 = vpack.c.bf16 %v1040, %v1040
      %v1093 = vpack.c.bf16 %v1041, %v1041
      %v1094 = vpack.c.bf16 %v1042, %v1042
      %v1095 = vpack.c.bf16 %v1043, %v1043
      %v1096 = vpack.c.bf16 %v1044, %v1044
      %v1097 = vpack.c.bf16 %v1045, %v1045
      %v1098 = vpack.c.bf16 %v1046, %v1046
      %v1099 = vpack.c.bf16 %v1047, %v1047
      %v1100 = vpack.c.bf16 %v1048, %v1048
      %v1101 = vpack.c.bf16 %v1049, %v1049
      %v1102 = vpack.c.bf16 %v1050, %v1050
      %v1103 = vpack.c.bf16 %v1051, %v1051
      %v1104 = vpack.c.bf16 %v1052, %v1052
      %v1105 = vpack.c.bf16 %v1053, %v1053
      %v1106 = vpack.c.bf16 %v1054, %v1054
      %v1107 = vpack.c.bf16 %v1055, %v1055
      %v1108 = vpack.c.bf16 %v1056, %v1056
      %1138 = vrot.lane.b32.xlu0 %v759, 2
      %v1139 = vpop.permute.xlu0 %1138
      %1140 = vrot.lane.b32.xlu0 %v760, 2
      %v1141 = vpop.permute.xlu0 %1140
      %1142 = vrot.lane.b32.xlu0 %v761, 2
      %v1143 = vpop.permute.xlu0 %1142
      %1144 = vrot.lane.b32.xlu0 %v762, 2
      %v1145 = vpop.permute.xlu0 %1144
      %1146 = vrot.lane.b32.xlu0 %v763, 2
      %v1147 = vpop.permute.xlu0 %1146
      %1148 = vrot.lane.b32.xlu0 %v764, 2
      %v1149 = vpop.permute.xlu0 %1148
      %1150 = vrot.lane.b32.xlu0 %v765, 2
      %v1151 = vpop.permute.xlu0 %1150
      %1152 = vrot.lane.b32.xlu0 %v766, 2
      %v1153 = vpop.permute.xlu0 %1152
      %1154 = vrot.lane.b32.xlu0 %v767, 2
      %v1155 = vpop.permute.xlu0 %1154
      %1156 = vrot.lane.b32.xlu0 %v768, 2
      %v1157 = vpop.permute.xlu0 %1156
      %1158 = vrot.lane.b32.xlu0 %v769, 2
      %v1159 = vpop.permute.xlu0 %1158
      %1160 = vrot.lane.b32.xlu0 %v770, 2
      %v1161 = vpop.permute.xlu0 %1160
      %1162 = vrot.lane.b32.xlu0 %v771, 2
      %v1163 = vpop.permute.xlu0 %1162
      %1164 = vrot.lane.b32.xlu0 %v772, 2
      %v1165 = vpop.permute.xlu0 %1164
      %1166 = vrot.lane.b32.xlu0 %v773, 2
      %v1167 = vpop.permute.xlu0 %1166
      %1168 = vrot.lane.b32.xlu0 %v774, 2
      %v1169 = vpop.permute.xlu0 %1168
      %1170 = vrot.lane.b32.xlu0 %v775, 2
      %v1171 = vpop.permute.xlu0 %1170
      %1172 = vrot.lane.b32.xlu0 %v776, 2
      %v1173 = vpop.permute.xlu0 %1172
      %1174 = vrot.lane.b32.xlu0 %v777, 2
      %v1175 = vpop.permute.xlu0 %1174
      %1176 = vrot.lane.b32.xlu0 %v778, 2
      %v1177 = vpop.permute.xlu0 %1176
      %1178 = vrot.lane.b32.xlu0 %v779, 2
      %v1179 = vpop.permute.xlu0 %1178
      %1180 = vrot.lane.b32.xlu0 %v780, 2
      %v1181 = vpop.permute.xlu0 %1180
      %1182 = vrot.lane.b32.xlu0 %v781, 2
      %v1183 = vpop.permute.xlu0 %1182
      %1184 = vrot.lane.b32.xlu0 %v782, 2
      %v1185 = vpop.permute.xlu0 %1184
      %1186 = vrot.lane.b32.xlu0 %v783, 2
      %v1187 = vpop.permute.xlu0 %1186
      %1188 = vrot.lane.b32.xlu0 %v784, 2
      %v1189 = vpop.permute.xlu0 %1188
      %1190 = vrot.lane.b32.xlu0 %v785, 2
      %v1191 = vpop.permute.xlu0 %1190
      %1192 = vrot.lane.b32.xlu0 %v786, 2
      %v1193 = vpop.permute.xlu0 %1192
      %1194 = vrot.lane.b32.xlu0 %v787, 2
      %v1195 = vpop.permute.xlu0 %1194
      %vm1196 = vcmask 15360
      %v1197 = vsel %vm1196, %v1139, %v1141
      %v1198 = vsel %vm1196, %v1141, %v1143
      %v1199 = vsel %vm1196, %v1143, %v1145
      %v1200 = vsel %vm1196, %v1145, %v1147
      %v1201 = vsel %vm1196, %v1147, %v1149
      %v1202 = vsel %vm1196, %v1149, %v1151
      %v1203 = vsel %vm1196, %v1151, %v1153
      %v1204 = vsel %vm1196, %v1153, %v1155
      %v1205 = vsel %vm1196, %v1155, %v1157
      %v1206 = vsel %vm1196, %v1157, %v1159
      %v1207 = vsel %vm1196, %v1159, %v1161
      %v1208 = vsel %vm1196, %v1161, %v1163
      %v1209 = vsel %vm1196, %v1163, %v1165
      %v1210 = vsel %vm1196, %v1165, %v1167
      %v1211 = vsel %vm1196, %v1167, %v1169
      %v1212 = vsel %vm1196, %v1169, %v1171
      %v1213 = vsel %vm1196, %v1171, %v1173
      %v1214 = vsel %vm1196, %v1173, %v1175
      %v1215 = vsel %vm1196, %v1175, %v1177
      %v1216 = vsel %vm1196, %v1177, %v1179
      %v1217 = vsel %vm1196, %v1179, %v1181
      %v1218 = vsel %vm1196, %v1181, %v1183
      %v1219 = vsel %vm1196, %v1183, %v1185
      %v1220 = vsel %vm1196, %v1185, %v1187
      %v1221 = vsel %vm1196, %v1187, %v1189
      %v1222 = vsel %vm1196, %v1189, %v1191
      %v1223 = vsel %vm1196, %v1191, %v1193
      %v1224 = vsel %vm1196, %v1193, %v1195
      %v1253 = vpack.c.bf16 %v1197, %v1197
      %v1254 = vpack.c.bf16 %v1198, %v1198
      %v1255 = vpack.c.bf16 %v1199, %v1199
      %v1256 = vpack.c.bf16 %v1200, %v1200
      %v1257 = vpack.c.bf16 %v1201, %v1201
      %v1258 = vpack.c.bf16 %v1202, %v1202
      %v1259 = vpack.c.bf16 %v1203, %v1203
      %v1260 = vpack.c.bf16 %v1204, %v1204
      %v1261 = vpack.c.bf16 %v1205, %v1205
      %v1262 = vpack.c.bf16 %v1206, %v1206
      %v1263 = vpack.c.bf16 %v1207, %v1207
      %v1264 = vpack.c.bf16 %v1208, %v1208
      %v1265 = vpack.c.bf16 %v1209, %v1209
      %v1266 = vpack.c.bf16 %v1210, %v1210
      %v1267 = vpack.c.bf16 %v1211, %v1211
      %v1268 = vpack.c.bf16 %v1212, %v1212
      %v1269 = vpack.c.bf16 %v1213, %v1213
      %v1270 = vpack.c.bf16 %v1214, %v1214
      %v1271 = vpack.c.bf16 %v1215, %v1215
      %v1272 = vpack.c.bf16 %v1216, %v1216
      %v1273 = vpack.c.bf16 %v1217, %v1217
      %v1274 = vpack.c.bf16 %v1218, %v1218
      %v1275 = vpack.c.bf16 %v1219, %v1219
      %v1276 = vpack.c.bf16 %v1220, %v1220
      %v1277 = vpack.c.bf16 %v1221, %v1221
      %v1278 = vpack.c.bf16 %v1222, %v1222
      %v1279 = vpack.c.bf16 %v1223, %v1223
      %v1280 = vpack.c.bf16 %v1224, %v1224
      %v1281 = vpack.c.bf16 %v760, %v760
      %v1282 = vpack.c.bf16 %v761, %v761
      %v1283 = vpack.c.bf16 %v762, %v762
      %v1284 = vpack.c.bf16 %v763, %v763
      %v1285 = vpack.c.bf16 %v764, %v764
      %v1286 = vpack.c.bf16 %v765, %v765
      %v1287 = vpack.c.bf16 %v766, %v766
      %v1288 = vpack.c.bf16 %v767, %v767
      %v1289 = vpack.c.bf16 %v768, %v768
      %v1290 = vpack.c.bf16 %v769, %v769
      %v1291 = vpack.c.bf16 %v770, %v770
      %v1292 = vpack.c.bf16 %v771, %v771
      %v1293 = vpack.c.bf16 %v772, %v772
      %v1294 = vpack.c.bf16 %v773, %v773
      %v1295 = vpack.c.bf16 %v774, %v774
      %v1296 = vpack.c.bf16 %v775, %v775
      %v1297 = vpack.c.bf16 %v776, %v776
      %v1298 = vpack.c.bf16 %v777, %v777
      %v1299 = vpack.c.bf16 %v778, %v778
      %v1300 = vpack.c.bf16 %v779, %v779
      %v1301 = vpack.c.bf16 %v780, %v780
      %v1302 = vpack.c.bf16 %v781, %v781
      %v1303 = vpack.c.bf16 %v782, %v782
      %v1304 = vpack.c.bf16 %v783, %v783
      %v1305 = vpack.c.bf16 %v784, %v784
      %v1306 = vpack.c.bf16 %v785, %v785
      %v1307 = vpack.c.bf16 %v786, %v786
      %v1308 = vpack.c.bf16 %v787, %v787
      %1310 = vrot.lane.b32.xlu0 %v760, 126
      %v1311 = vpop.permute.xlu0 %1310
      %1312 = vrot.lane.b32.xlu0 %v761, 126
      %v1313 = vpop.permute.xlu0 %1312
      %1314 = vrot.lane.b32.xlu0 %v762, 126
      %v1315 = vpop.permute.xlu0 %1314
      %1316 = vrot.lane.b32.xlu0 %v763, 126
      %v1317 = vpop.permute.xlu0 %1316
      %1318 = vrot.lane.b32.xlu0 %v764, 126
      %v1319 = vpop.permute.xlu0 %1318
      %1320 = vrot.lane.b32.xlu0 %v765, 126
      %v1321 = vpop.permute.xlu0 %1320
      %1322 = vrot.lane.b32.xlu0 %v766, 126
      %v1323 = vpop.permute.xlu0 %1322
      %1324 = vrot.lane.b32.xlu0 %v767, 126
      %v1325 = vpop.permute.xlu0 %1324
      %1326 = vrot.lane.b32.xlu0 %v768, 126
      %v1327 = vpop.permute.xlu0 %1326
      %1328 = vrot.lane.b32.xlu0 %v769, 126
      %v1329 = vpop.permute.xlu0 %1328
      %1330 = vrot.lane.b32.xlu0 %v770, 126
      %v1331 = vpop.permute.xlu0 %1330
      %1332 = vrot.lane.b32.xlu0 %v771, 126
      %v1333 = vpop.permute.xlu0 %1332
      %1334 = vrot.lane.b32.xlu0 %v772, 126
      %v1335 = vpop.permute.xlu0 %1334
      %1336 = vrot.lane.b32.xlu0 %v773, 126
      %v1337 = vpop.permute.xlu0 %1336
      %1338 = vrot.lane.b32.xlu0 %v774, 126
      %v1339 = vpop.permute.xlu0 %1338
      %1340 = vrot.lane.b32.xlu0 %v775, 126
      %v1341 = vpop.permute.xlu0 %1340
      %1342 = vrot.lane.b32.xlu0 %v776, 126
      %v1343 = vpop.permute.xlu0 %1342
      %1344 = vrot.lane.b32.xlu0 %v777, 126
      %v1345 = vpop.permute.xlu0 %1344
      %1346 = vrot.lane.b32.xlu0 %v778, 126
      %v1347 = vpop.permute.xlu0 %1346
      %1348 = vrot.lane.b32.xlu0 %v779, 126
      %v1349 = vpop.permute.xlu0 %1348
      %1350 = vrot.lane.b32.xlu0 %v780, 126
      %v1351 = vpop.permute.xlu0 %1350
      %1352 = vrot.lane.b32.xlu0 %v781, 126
      %v1353 = vpop.permute.xlu0 %1352
      %1354 = vrot.lane.b32.xlu0 %v782, 126
      %v1355 = vpop.permute.xlu0 %1354
      %1356 = vrot.lane.b32.xlu0 %v783, 126
      %v1357 = vpop.permute.xlu0 %1356
      %1358 = vrot.lane.b32.xlu0 %v784, 126
      %v1359 = vpop.permute.xlu0 %1358
      %1360 = vrot.lane.b32.xlu0 %v785, 126
      %v1361 = vpop.permute.xlu0 %1360
      %1362 = vrot.lane.b32.xlu0 %v786, 126
      %v1363 = vpop.permute.xlu0 %1362
      %1364 = vrot.lane.b32.xlu0 %v787, 126
      %v1365 = vpop.permute.xlu0 %1364
      %1366 = vrot.lane.b32.xlu0 %v788, 126
      %v1367 = vpop.permute.xlu0 %1366
      %vm1368 = vcmask 1031168
      %v1369 = vsel %vm1368, %v1311, %v1313
      %v1370 = vsel %vm1368, %v1313, %v1315
      %v1371 = vsel %vm1368, %v1315, %v1317
      %v1372 = vsel %vm1368, %v1317, %v1319
      %v1373 = vsel %vm1368, %v1319, %v1321
      %v1374 = vsel %vm1368, %v1321, %v1323
      %v1375 = vsel %vm1368, %v1323, %v1325
      %v1376 = vsel %vm1368, %v1325, %v1327
      %v1377 = vsel %vm1368, %v1327, %v1329
      %v1378 = vsel %vm1368, %v1329, %v1331
      %v1379 = vsel %vm1368, %v1331, %v1333
      %v1380 = vsel %vm1368, %v1333, %v1335
      %v1381 = vsel %vm1368, %v1335, %v1337
      %v1382 = vsel %vm1368, %v1337, %v1339
      %v1383 = vsel %vm1368, %v1339, %v1341
      %v1384 = vsel %vm1368, %v1341, %v1343
      %v1385 = vsel %vm1368, %v1343, %v1345
      %v1386 = vsel %vm1368, %v1345, %v1347
      %v1387 = vsel %vm1368, %v1347, %v1349
      %v1388 = vsel %vm1368, %v1349, %v1351
      %v1389 = vsel %vm1368, %v1351, %v1353
      %v1390 = vsel %vm1368, %v1353, %v1355
      %v1391 = vsel %vm1368, %v1355, %v1357
      %v1392 = vsel %vm1368, %v1357, %v1359
      %v1393 = vsel %vm1368, %v1359, %v1361
      %v1394 = vsel %vm1368, %v1361, %v1363
      %v1395 = vsel %vm1368, %v1363, %v1365
      %v1396 = vsel %vm1368, %v1365, %v1367
      %v1425 = vpack.c.bf16 %v1369, %v1369
      %v1426 = vpack.c.bf16 %v1370, %v1370
      %v1427 = vpack.c.bf16 %v1371, %v1371
      %v1428 = vpack.c.bf16 %v1372, %v1372
      %v1429 = vpack.c.bf16 %v1373, %v1373
      %v1430 = vpack.c.bf16 %v1374, %v1374
      %v1431 = vpack.c.bf16 %v1375, %v1375
      %v1432 = vpack.c.bf16 %v1376, %v1376
      %v1433 = vpack.c.bf16 %v1377, %v1377
      %v1434 = vpack.c.bf16 %v1378, %v1378
      %v1435 = vpack.c.bf16 %v1379, %v1379
      %v1436 = vpack.c.bf16 %v1380, %v1380
      %v1437 = vpack.c.bf16 %v1381, %v1381
      %v1438 = vpack.c.bf16 %v1382, %v1382
      %v1439 = vpack.c.bf16 %v1383, %v1383
      %v1440 = vpack.c.bf16 %v1384, %v1384
      %v1441 = vpack.c.bf16 %v1385, %v1385
      %v1442 = vpack.c.bf16 %v1386, %v1386
      %v1443 = vpack.c.bf16 %v1387, %v1387
      %v1444 = vpack.c.bf16 %v1388, %v1388
      %v1445 = vpack.c.bf16 %v1389, %v1389
      %v1446 = vpack.c.bf16 %v1390, %v1390
      %v1447 = vpack.c.bf16 %v1391, %v1391
      %v1448 = vpack.c.bf16 %v1392, %v1392
      %v1449 = vpack.c.bf16 %v1393, %v1393
      %v1450 = vpack.c.bf16 %v1394, %v1394
      %v1451 = vpack.c.bf16 %v1395, %v1395
      %v1452 = vpack.c.bf16 %v1396, %v1396
      %v1477 = vrot.slane %v949, 4
      %v1478 = vrot.slane %v950, 4
      %v1479 = vrot.slane %v951, 4
      %v1480 = vrot.slane %v952, 4
      %v1481 = vrot.slane %v953, 4
      %v1482 = vrot.slane %v954, 4
      %v1483 = vrot.slane %v955, 4
      %v1484 = vrot.slane %v956, 4
      %v1485 = vrot.slane %v957, 4
      %v1486 = vrot.slane %v958, 4
      %v1487 = vrot.slane %v959, 4
      %v1488 = vrot.slane %v960, 4
      %v1489 = vrot.slane %v961, 4
      %v1490 = vrot.slane %v962, 4
      %v1491 = vrot.slane %v963, 4
      %v1492 = vrot.slane %v964, 4
      %v1493 = vrot.slane %v965, 4
      %v1494 = vrot.slane %v966, 4
      %v1495 = vrot.slane %v967, 4
      %v1496 = vrot.slane %v968, 4
      %v1497 = vrot.slane %v969, 4
      %v1498 = vrot.slane %v970, 4
      %v1499 = vrot.slane %v971, 4
      %v1500 = vrot.slane %v972, 4
      %v1525 = vrot.slane %v924, 4
      %v1526 = vrot.slane %v925, 4
      %v1527 = vrot.slane %v926, 4
      %v1528 = vrot.slane %v927, 4
      %v1529 = vrot.slane %v928, 4
      %v1530 = vrot.slane %v929, 4
      %v1531 = vrot.slane %v930, 4
      %v1532 = vrot.slane %v931, 4
      %v1533 = vrot.slane %v932, 4
      %v1534 = vrot.slane %v933, 4
      %v1535 = vrot.slane %v934, 4
      %v1536 = vrot.slane %v935, 4
      %v1537 = vrot.slane %v936, 4
      %v1538 = vrot.slane %v937, 4
      %v1539 = vrot.slane %v938, 4
      %v1540 = vrot.slane %v939, 4
      %v1541 = vrot.slane %v940, 4
      %v1542 = vrot.slane %v941, 4
      %v1543 = vrot.slane %v942, 4
      %v1544 = vrot.slane %v943, 4
      %v1545 = vrot.slane %v944, 4
      %v1546 = vrot.slane %v945, 4
      %v1547 = vrot.slane %v946, 4
      %v1548 = vrot.slane %v947, 4
      %v1573 = vrot.slane %v1084, 4
      %v1574 = vrot.slane %v1085, 4
      %v1575 = vrot.slane %v1086, 4
      %v1576 = vrot.slane %v1087, 4
      %v1577 = vrot.slane %v1088, 4
      %v1578 = vrot.slane %v1089, 4
      %v1579 = vrot.slane %v1090, 4
      %v1580 = vrot.slane %v1091, 4
      %v1581 = vrot.slane %v1092, 4
      %v1582 = vrot.slane %v1093, 4
      %v1583 = vrot.slane %v1094, 4
      %v1584 = vrot.slane %v1095, 4
      %v1585 = vrot.slane %v1096, 4
      %v1586 = vrot.slane %v1097, 4
      %v1587 = vrot.slane %v1098, 4
      %v1588 = vrot.slane %v1099, 4
      %v1589 = vrot.slane %v1100, 4
      %v1590 = vrot.slane %v1101, 4
      %v1591 = vrot.slane %v1102, 4
      %v1592 = vrot.slane %v1103, 4
      %v1593 = vrot.slane %v1104, 4
      %v1594 = vrot.slane %v1105, 4
      %v1595 = vrot.slane %v1106, 4
      %v1596 = vrot.slane %v1107, 4
      %v1599 = vrot.slane %v973, 4
      %v1600 = vrot.slane %v974, 4
      %v1625 = vrot.slane %v1253, 4
      %v1626 = vrot.slane %v1254, 4
      %v1627 = vrot.slane %v1255, 4
      %v1628 = vrot.slane %v1256, 4
      %v1629 = vrot.slane %v1257, 4
      %v1630 = vrot.slane %v1258, 4
      %v1631 = vrot.slane %v1259, 4
      %v1632 = vrot.slane %v1260, 4
      %v1633 = vrot.slane %v1261, 4
      %v1634 = vrot.slane %v1262, 4
      %v1635 = vrot.slane %v1263, 4
      %v1636 = vrot.slane %v1264, 4
      %v1637 = vrot.slane %v1265, 4
      %v1638 = vrot.slane %v1266, 4
      %v1639 = vrot.slane %v1267, 4
      %v1640 = vrot.slane %v1268, 4
      %v1641 = vrot.slane %v1269, 4
      %v1642 = vrot.slane %v1270, 4
      %v1643 = vrot.slane %v1271, 4
      %v1644 = vrot.slane %v1272, 4
      %v1645 = vrot.slane %v1273, 4
      %v1646 = vrot.slane %v1274, 4
      %v1647 = vrot.slane %v1275, 4
      %v1648 = vrot.slane %v1276, 4
      %v1673 = vrot.slane %v1425, 4
      %v1674 = vrot.slane %v1426, 4
      %v1675 = vrot.slane %v1427, 4
      %v1676 = vrot.slane %v1428, 4
      %v1677 = vrot.slane %v1429, 4
      %v1678 = vrot.slane %v1430, 4
      %v1679 = vrot.slane %v1431, 4
      %v1680 = vrot.slane %v1432, 4
      %v1681 = vrot.slane %v1433, 4
      %v1682 = vrot.slane %v1434, 4
      %v1683 = vrot.slane %v1435, 4
      %v1684 = vrot.slane %v1436, 4
      %v1685 = vrot.slane %v1437, 4
      %v1686 = vrot.slane %v1438, 4
      %v1687 = vrot.slane %v1439, 4
      %v1688 = vrot.slane %v1440, 4
      %v1689 = vrot.slane %v1441, 4
      %v1690 = vrot.slane %v1442, 4
      %v1691 = vrot.slane %v1443, 4
      %v1692 = vrot.slane %v1444, 4
      %v1693 = vrot.slane %v1445, 4
      %v1694 = vrot.slane %v1446, 4
      %v1695 = vrot.slane %v1447, 4
      %v1696 = vrot.slane %v1448, 4
      %v1721 = vrot.slane %v1283, 4
      %v1722 = vrot.slane %v1284, 4
      %v1723 = vrot.slane %v1285, 4
      %v1724 = vrot.slane %v1286, 4
      %v1725 = vrot.slane %v1287, 4
      %v1726 = vrot.slane %v1288, 4
      %v1727 = vrot.slane %v1289, 4
      %v1728 = vrot.slane %v1290, 4
      %v1729 = vrot.slane %v1291, 4
      %v1730 = vrot.slane %v1292, 4
      %v1731 = vrot.slane %v1293, 4
      %v1732 = vrot.slane %v1294, 4
      %v1733 = vrot.slane %v1295, 4
      %v1734 = vrot.slane %v1296, 4
      %v1735 = vrot.slane %v1297, 4
      %v1736 = vrot.slane %v1298, 4
      %v1737 = vrot.slane %v1299, 4
      %v1738 = vrot.slane %v1300, 4
      %v1739 = vrot.slane %v1301, 4
      %v1740 = vrot.slane %v1302, 4
      %v1741 = vrot.slane %v1303, 4
      %v1742 = vrot.slane %v1304, 4
      %v1743 = vrot.slane %v1305, 4
      %v1744 = vrot.slane %v1306, 4
      %v1749 = vrot.slane %v1277, 4
      %v1750 = vrot.slane %v1278, 4
      %v1751 = vrot.slane %v1279, 4
      %v1752 = vrot.slane %v1280, 4
      %vm1753 = vcmask 1043456
      %v1756 = vsel %vm1753, %v923, %v1477
      %v1760 = vsel %vm1753, %v924, %v1478
      %v1764 = vsel %vm1753, %v925, %v1479
      %v1768 = vsel %vm1753, %v926, %v1480
      %v1772 = vsel %vm1753, %v927, %v1481
      %v1776 = vsel %vm1753, %v928, %v1482
      %v1780 = vsel %vm1753, %v929, %v1483
      %v1784 = vsel %vm1753, %v930, %v1484
      %v1788 = vsel %vm1753, %v931, %v1485
      %v1792 = vsel %vm1753, %v932, %v1486
      %v1796 = vsel %vm1753, %v933, %v1487
      %v1800 = vsel %vm1753, %v934, %v1488
      %v1804 = vsel %vm1753, %v935, %v1489
      %v1808 = vsel %vm1753, %v936, %v1490
      %v1812 = vsel %vm1753, %v937, %v1491
      %v1816 = vsel %vm1753, %v938, %v1492
      %v1820 = vsel %vm1753, %v939, %v1493
      %v1824 = vsel %vm1753, %v940, %v1494
      %v1828 = vsel %vm1753, %v941, %v1495
      %v1832 = vsel %vm1753, %v942, %v1496
      %v1836 = vsel %vm1753, %v943, %v1497
      %v1840 = vsel %vm1753, %v944, %v1498
      %v1844 = vsel %vm1753, %v945, %v1499
      %v1848 = vsel %vm1753, %v946, %v1500
      %v1852 = vsel %vm1753, %v1083, %v1525
      %v1856 = vsel %vm1753, %v1084, %v1526
      %v1860 = vsel %vm1753, %v1085, %v1527
      %v1864 = vsel %vm1753, %v1086, %v1528
      %v1868 = vsel %vm1753, %v1087, %v1529
      %v1872 = vsel %vm1753, %v1088, %v1530
      %v1876 = vsel %vm1753, %v1089, %v1531
      %v1880 = vsel %vm1753, %v1090, %v1532
      %v1884 = vsel %vm1753, %v1091, %v1533
      %v1888 = vsel %vm1753, %v1092, %v1534
      %v1892 = vsel %vm1753, %v1093, %v1535
      %v1896 = vsel %vm1753, %v1094, %v1536
      %v1900 = vsel %vm1753, %v1095, %v1537
      %v1904 = vsel %vm1753, %v1096, %v1538
      %v1908 = vsel %vm1753, %v1097, %v1539
      %v1912 = vsel %vm1753, %v1098, %v1540
      %v1916 = vsel %vm1753, %v1099, %v1541
      %v1920 = vsel %vm1753, %v1100, %v1542
      %v1924 = vsel %vm1753, %v1101, %v1543
      %v1928 = vsel %vm1753, %v1102, %v1544
      %v1932 = vsel %vm1753, %v1103, %v1545
      %v1936 = vsel %vm1753, %v1104, %v1546
      %v1940 = vsel %vm1753, %v1105, %v1547
      %v1944 = vsel %vm1753, %v1106, %v1548
      %v1948 = vsel %vm1753, %v950, %v1573
      %v1952 = vsel %vm1753, %v951, %v1574
      %v1956 = vsel %vm1753, %v952, %v1575
      %v1960 = vsel %vm1753, %v953, %v1576
      %v1964 = vsel %vm1753, %v954, %v1577
      %v1968 = vsel %vm1753, %v955, %v1578
      %v1972 = vsel %vm1753, %v956, %v1579
      %v1976 = vsel %vm1753, %v957, %v1580
      %v1980 = vsel %vm1753, %v958, %v1581
      %v1984 = vsel %vm1753, %v959, %v1582
      %v1988 = vsel %vm1753, %v960, %v1583
      %v1992 = vsel %vm1753, %v961, %v1584
      %v1996 = vsel %vm1753, %v962, %v1585
      %v2000 = vsel %vm1753, %v963, %v1586
      %v2004 = vsel %vm1753, %v964, %v1587
      %v2008 = vsel %vm1753, %v965, %v1588
      %v2012 = vsel %vm1753, %v966, %v1589
      %v2016 = vsel %vm1753, %v967, %v1590
      %v2020 = vsel %vm1753, %v968, %v1591
      %v2024 = vsel %vm1753, %v969, %v1592
      %v2028 = vsel %vm1753, %v970, %v1593
      %v2032 = vsel %vm1753, %v971, %v1594
      %v2036 = vsel %vm1753, %v972, %v1595
      %v2040 = vsel %vm1753, %v973, %v1596
      %v2044 = vsel %vm1753, %v947, %v1599
      %v2048 = vsel %vm1753, %v948, %v1600
      %v2051 = vsel %vm1753, %v1085, %v1625
      %v2054 = vsel %vm1753, %v1086, %v1626
      %v2057 = vsel %vm1753, %v1087, %v1627
      %v2060 = vsel %vm1753, %v1088, %v1628
      %v2063 = vsel %vm1753, %v1089, %v1629
      %v2066 = vsel %vm1753, %v1090, %v1630
      %v2069 = vsel %vm1753, %v1091, %v1631
      %v2072 = vsel %vm1753, %v1092, %v1632
      %v2075 = vsel %vm1753, %v1093, %v1633
      %v2078 = vsel %vm1753, %v1094, %v1634
      %v2081 = vsel %vm1753, %v1095, %v1635
      %v2084 = vsel %vm1753, %v1096, %v1636
      %v2087 = vsel %vm1753, %v1097, %v1637
      %v2090 = vsel %vm1753, %v1098, %v1638
      %v2093 = vsel %vm1753, %v1099, %v1639
      %v2096 = vsel %vm1753, %v1100, %v1640
      %v2099 = vsel %vm1753, %v1101, %v1641
      %v2102 = vsel %vm1753, %v1102, %v1642
      %v2105 = vsel %vm1753, %v1103, %v1643
      %v2108 = vsel %vm1753, %v1104, %v1644
      %v2111 = vsel %vm1753, %v1105, %v1645
      %v2114 = vsel %vm1753, %v1106, %v1646
      %v2118 = vsel %vm1753, %v1107, %v1647
      %v2122 = vsel %vm1753, %v1108, %v1648
      %v2126 = vsel %vm1753, %v1281, %v1673
      %v2130 = vsel %vm1753, %v1282, %v1674
      %v2134 = vsel %vm1753, %v1283, %v1675
      %v2138 = vsel %vm1753, %v1284, %v1676
      %v2142 = vsel %vm1753, %v1285, %v1677
      %v2146 = vsel %vm1753, %v1286, %v1678
      %v2150 = vsel %vm1753, %v1287, %v1679
      %v2154 = vsel %vm1753, %v1288, %v1680
      %v2158 = vsel %vm1753, %v1289, %v1681
      %v2162 = vsel %vm1753, %v1290, %v1682
      %v2166 = vsel %vm1753, %v1291, %v1683
      %v2170 = vsel %vm1753, %v1292, %v1684
      %v2174 = vsel %vm1753, %v1293, %v1685
      %v2178 = vsel %vm1753, %v1294, %v1686
      %v2182 = vsel %vm1753, %v1295, %v1687
      %v2186 = vsel %vm1753, %v1296, %v1688
      %v2190 = vsel %vm1753, %v1297, %v1689
      %v2194 = vsel %vm1753, %v1298, %v1690
      %v2198 = vsel %vm1753, %v1299, %v1691
      %v2202 = vsel %vm1753, %v1300, %v1692
      %v2206 = vsel %vm1753, %v1301, %v1693
      %v2210 = vsel %vm1753, %v1302, %v1694
      %v2214 = vsel %vm1753, %v1303, %v1695
      %v2218 = vsel %vm1753, %v1304, %v1696
      %v2222 = vsel %vm1753, %v1255, %v1721
      %v2226 = vsel %vm1753, %v1256, %v1722
      %v2230 = vsel %vm1753, %v1257, %v1723
      %v2234 = vsel %vm1753, %v1258, %v1724
      %v2238 = vsel %vm1753, %v1259, %v1725
      %v2242 = vsel %vm1753, %v1260, %v1726
      %v2246 = vsel %vm1753, %v1261, %v1727
      %v2250 = vsel %vm1753, %v1262, %v1728
      %v2254 = vsel %vm1753, %v1263, %v1729
      %v2258 = vsel %vm1753, %v1264, %v1730
      %v2262 = vsel %vm1753, %v1265, %v1731
      %v2266 = vsel %vm1753, %v1266, %v1732
      %v2270 = vsel %vm1753, %v1267, %v1733
      %v2274 = vsel %vm1753, %v1268, %v1734
      %v2278 = vsel %vm1753, %v1269, %v1735
      %v2282 = vsel %vm1753, %v1270, %v1736
      %v2286 = vsel %vm1753, %v1271, %v1737
      %v2290 = vsel %vm1753, %v1272, %v1738
      %v2294 = vsel %vm1753, %v1273, %v1739
      %v2298 = vsel %vm1753, %v1274, %v1740
      %v2302 = vsel %vm1753, %v1275, %v1741
      %v2306 = vsel %vm1753, %v1276, %v1742
      %v2310 = vsel %vm1753, %v1277, %v1743
      %v2314 = vsel %vm1753, %v1278, %v1744
      %v2317 = vsel %vm1753, %v1427, %v1629
      %v2320 = vsel %vm1753, %v1428, %v1630
      %v2323 = vsel %vm1753, %v1429, %v1631
      %v2326 = vsel %vm1753, %v1430, %v1632
      %v2329 = vsel %vm1753, %v1431, %v1633
      %v2332 = vsel %vm1753, %v1432, %v1634
      %v2335 = vsel %vm1753, %v1433, %v1635
      %v2338 = vsel %vm1753, %v1434, %v1636
      %v2341 = vsel %vm1753, %v1435, %v1637
      %v2344 = vsel %vm1753, %v1436, %v1638
      %v2347 = vsel %vm1753, %v1437, %v1639
      %v2350 = vsel %vm1753, %v1438, %v1640
      %v2353 = vsel %vm1753, %v1439, %v1641
      %v2356 = vsel %vm1753, %v1440, %v1642
      %v2359 = vsel %vm1753, %v1441, %v1643
      %v2362 = vsel %vm1753, %v1442, %v1644
      %v2365 = vsel %vm1753, %v1443, %v1645
      %v2368 = vsel %vm1753, %v1444, %v1646
      %v2371 = vsel %vm1753, %v1445, %v1647
      %v2374 = vsel %vm1753, %v1446, %v1648
      %v2378 = vsel %vm1753, %v1447, %v1749
      %v2382 = vsel %vm1753, %v1448, %v1750
      %v2386 = vsel %vm1753, %v1449, %v1751
      %v2390 = vsel %vm1753, %v1450, %v1752
      %v2396 = vrot.slane %v1449, 4
      %v2397 = vrot.slane %v1450, 4
      %v2398 = vrot.slane %v1451, 4
      %v2399 = vrot.slane %v1452, 4
      %v2402 = vsel %vm1753, %v1305, %v2396
      %v2406 = vsel %vm1753, %v1306, %v2397
      %v2410 = vsel %vm1753, %v1307, %v2398
      %v2414 = vsel %vm1753, %v1308, %v2399
      %v2416 = vld [vmem:[%s4] sm:$0xff]
      %v2417 = vld [vmem:[%s5] sm:$0xff]
      %2419 = vset.pattern.permute.xlu0 0
      %2420 = vperm.xlu0 %2419, %v2417
      %v2421 = vpop.permute.xlu0 %2420
      %v2424 = vunpack.c.l.b16 %v2416
      %v2425 = vunpack.c.h.b16 %v2416
      %v2426 = vpack.c.b16 %v2424, %v2424
      %v2427 = vpack.c.b16 %v2425, %v2425
      %vm2429 = vcmask 130048
      %v2431 = vsel %vm2429, %v2427, 0
      %2433 = vmatprep.subr.bf16.mxu0 %v2320
      %2434 = vmatpush1.bf16.msra.mxu0 %v2317
      %2435 = vmatprep.subr.bf16.mxu0 %v2226
      %2436 = vmatpush1.bf16.msra.mxu0 %v2222
      %2437 = vmatprep.subr.bf16.mxu0 %v2130
      %2438 = vmatpush1.bf16.msra.mxu0 %v2126
      %2439 = vmatprep.subr.bf16.mxu0 %v2054
      %2440 = vmatpush1.bf16.msra.mxu0 %v2051
      %2441 = vmatprep.subr.bf16.mxu0 %v1768
      %2442 = vmatpush1.bf16.msra.mxu0 %v1764
      %2443 = vmatprep.subr.bf16.mxu0 %v1952
      %2444 = vmatpush1.bf16.msra.mxu0 %v1948
      %2445 = vmatprep.subr.bf16.mxu0 %v1856
      %2446 = vmatpush1.bf16.msra.mxu0 %v1852
      %2447 = vmatprep.subr.bf16.mxu0 %v1760
      %2448 = vmatpush1.bf16.msra.mxu0 %v1756
      %2449 = vmatprep.subr.bf16.mxu0 0
      %2450 = vmatpush2.bf16.msra.mxu0 0
      %2451 = vmatprep.subr.bf16.mxu0 0
      %2452 = vmatpush2.bf16.msra.mxu0 0
      %2453 = vmatprep.subr.bf16.mxu0 0
      %2454 = vmatpush2.bf16.msra.mxu0 0
      %2455 = vmatprep.subr.bf16.mxu0 0
      %2456 = vmatpush2.bf16.msra.mxu0 0
      %2457 = vmatprep.subr.bf16.mxu0 0
      %2458 = vmatpush2.bf16.msra.mxu0 0
      %2459 = vmatprep.subr.bf16.mxu0 0
      %2460 = vmatpush2.bf16.msra.mxu0 0
      %2461 = vmatprep.subr.bf16.mxu0 0
      %2462 = vmatpush2.bf16.msra.mxu0 0
      %2463 = vmatprep.subr.bf16.mxu0 %v2146
      %2464 = vmatpush2.bf16.msra.mxu0 %v2142
      %2465 = vmatprep.mubr.bf16.mxu0 %v2431
      %2466 = vmatmul.mubr.bf16.gmra.mxu0 %v2426
      %v2467 = vpop.f32.mrf.mxu0
      %v2468 = vadd.f32 %v2421, %v2467
      %v2469 = vpop.f32.mrf.mxu0
      %v2470 = vadd.f32 %v2421, %v2469
      %v2471 = vpop.f32.mrf.mxu0
      %v2472 = vpop.f32.mrf.mxu0
      %2473 = vdwg.mxu0
      %2474 = vmatprep.subr.bf16.mxu0 %v2326
      %2475 = vmatpush1.bf16.msra.mxu0 %v2323
      %2476 = vmatprep.subr.bf16.mxu0 %v2234
      %2477 = vmatpush1.bf16.msra.mxu0 %v2230
      %2478 = vmatprep.subr.bf16.mxu0 %v2138
      %2479 = vmatpush1.bf16.msra.mxu0 %v2134
      %2480 = vmatprep.subr.bf16.mxu0 %v2060
      %2481 = vmatpush1.bf16.msra.mxu0 %v2057
      %2482 = vmatprep.subr.bf16.mxu0 %v1776
      %2483 = vmatpush1.bf16.msra.mxu0 %v1772
      %2484 = vmatprep.subr.bf16.mxu0 %v1960
      %2485 = vmatpush1.bf16.msra.mxu0 %v1956
      %2486 = vmatprep.subr.bf16.mxu0 %v1864
      %2487 = vmatpush1.bf16.msra.mxu0 %v1860
      %2488 = vmatprep.subr.bf16.mxu0 %v1768
      %2489 = vmatpush1.bf16.msra.mxu0 %v1764
      %2490 = vmatprep.subr.bf16.mxu0 0
      %2491 = vmatpush2.bf16.msra.mxu0 0
      %2492 = vmatprep.subr.bf16.mxu0 0
      %2493 = vmatpush2.bf16.msra.mxu0 0
      %2494 = vmatprep.subr.bf16.mxu0 0
      %2495 = vmatpush2.bf16.msra.mxu0 0
      %2496 = vmatprep.subr.bf16.mxu0 0
      %2497 = vmatpush2.bf16.msra.mxu0 0
      %2498 = vmatprep.subr.bf16.mxu0 0
      %2499 = vmatpush2.bf16.msra.mxu0 0
      %2500 = vmatprep.subr.bf16.mxu0 0
      %2501 = vmatpush2.bf16.msra.mxu0 0
      %2502 = vmatprep.subr.bf16.mxu0 0
      %2503 = vmatpush2.bf16.msra.mxu0 0
      %2504 = vmatprep.subr.bf16.mxu0 %v2154
      %2505 = vmatpush2.bf16.msra.mxu0 %v2150
      %2506 = vmatprep.mubr.bf16.mxu0 %v2431
      %2507 = vmatmul.mubr.bf16.gmra.mxu0 %v2426
      %v2508 = vpop.f32.mrf.mxu0
      %v2509 = vadd.f32 %v2421, %v2508
      %v2510 = vpop.f32.mrf.mxu0
      %v2511 = vadd.f32 %v2421, %v2510
      %v2512 = vpop.f32.mrf.mxu0
      %v2513 = vpop.f32.mrf.mxu0
      %2514 = vdwg.mxu0
      %2515 = vmatprep.subr.bf16.mxu0 %v2332
      %2516 = vmatpush1.bf16.msra.mxu0 %v2329
      %2517 = vmatprep.subr.bf16.mxu0 %v2242
      %2518 = vmatpush1.bf16.msra.mxu0 %v2238
      %2519 = vmatprep.subr.bf16.mxu0 %v2146
      %2520 = vmatpush1.bf16.msra.mxu0 %v2142
      %2521 = vmatprep.subr.bf16.mxu0 %v2066
      %2522 = vmatpush1.bf16.msra.mxu0 %v2063
      %2523 = vmatprep.subr.bf16.mxu0 %v1784
      %2524 = vmatpush1.bf16.msra.mxu0 %v1780
      %2525 = vmatprep.subr.bf16.mxu0 %v1968
      %2526 = vmatpush1.bf16.msra.mxu0 %v1964
      %2527 = vmatprep.subr.bf16.mxu0 %v1872
      %2528 = vmatpush1.bf16.msra.mxu0 %v1868
      %2529 = vmatprep.subr.bf16.mxu0 %v1776
      %2530 = vmatpush1.bf16.msra.mxu0 %v1772
      %2531 = vmatprep.subr.bf16.mxu0 0
      %2532 = vmatpush2.bf16.msra.mxu0 0
      %2533 = vmatprep.subr.bf16.mxu0 0
      %2534 = vmatpush2.bf16.msra.mxu0 0
      %2535 = vmatprep.subr.bf16.mxu0 0
      %2536 = vmatpush2.bf16.msra.mxu0 0
      %2537 = vmatprep.subr.bf16.mxu0 0
      %2538 = vmatpush2.bf16.msra.mxu0 0
      %2539 = vmatprep.subr.bf16.mxu0 0
      %2540 = vmatpush2.bf16.msra.mxu0 0
      %2541 = vmatprep.subr.bf16.mxu0 0
      %2542 = vmatpush2.bf16.msra.mxu0 0
      %2543 = vmatprep.subr.bf16.mxu0 0
      %2544 = vmatpush2.bf16.msra.mxu0 0
      %2545 = vmatprep.subr.bf16.mxu0 %v2162
      %2546 = vmatpush2.bf16.msra.mxu0 %v2158
      %2547 = vmatprep.mubr.bf16.mxu0 %v2431
      %2548 = vmatmul.mubr.bf16.gmra.mxu0 %v2426
      %v2549 = vpop.f32.mrf.mxu0
      %v2550 = vadd.f32 %v2421, %v2549
      %v2551 = vpop.f32.mrf.mxu0
      %v2552 = vadd.f32 %v2421, %v2551
      %v2553 = vpop.f32.mrf.mxu0
      %v2554 = vpop.f32.mrf.mxu0
      %2555 = vdwg.mxu0
      %2556 = vmatprep.subr.bf16.mxu0 %v2338
      %2557 = vmatpush1.bf16.msra.mxu0 %v2335
      %2558 = vmatprep.subr.bf16.mxu0 %v2250
      %2559 = vmatpush1.bf16.msra.mxu0 %v2246
      %2560 = vmatprep.subr.bf16.mxu0 %v2154
      %2561 = vmatpush1.bf16.msra.mxu0 %v2150
      %2562 = vmatprep.subr.bf16.mxu0 %v2072
      %2563 = vmatpush1.bf16.msra.mxu0 %v2069
      %2564 = vmatprep.subr.bf16.mxu0 %v1792
      %2565 = vmatpush1.bf16.msra.mxu0 %v1788
      %2566 = vmatprep.subr.bf16.mxu0 %v1976
      %2567 = vmatpush1.bf16.msra.mxu0 %v1972
      %2568 = vmatprep.subr.bf16.mxu0 %v1880
      %2569 = vmatpush1.bf16.msra.mxu0 %v1876
      %2570 = vmatprep.subr.bf16.mxu0 %v1784
      %2571 = vmatpush1.bf16.msra.mxu0 %v1780
      %2572 = vmatprep.subr.bf16.mxu0 0
      %2573 = vmatpush2.bf16.msra.mxu0 0
      %2574 = vmatprep.subr.bf16.mxu0 0
      %2575 = vmatpush2.bf16.msra.mxu0 0
      %2576 = vmatprep.subr.bf16.mxu0 0
      %2577 = vmatpush2.bf16.msra.mxu0 0
      %2578 = vmatprep.subr.bf16.mxu0 0
      %2579 = vmatpush2.bf16.msra.mxu0 0
      %2580 = vmatprep.subr.bf16.mxu0 0
      %2581 = vmatpush2.bf16.msra.mxu0 0
      %2582 = vmatprep.subr.bf16.mxu0 0
      %2583 = vmatpush2.bf16.msra.mxu0 0
      %2584 = vmatprep.subr.bf16.mxu0 0
      %2585 = vmatpush2.bf16.msra.mxu0 0
      %2586 = vmatprep.subr.bf16.mxu0 %v2170
      %2587 = vmatpush2.bf16.msra.mxu0 %v2166
      %2588 = vmatprep.mubr.bf16.mxu0 %v2431
      %2589 = vmatmul.mubr.bf16.gmra.mxu0 %v2426
      %v2590 = vpop.f32.mrf.mxu0
      %v2591 = vadd.f32 %v2421, %v2590
      %v2592 = vpop.f32.mrf.mxu0
      %v2593 = vadd.f32 %v2421, %v2592
      %v2594 = vpop.f32.mrf.mxu0
      %v2595 = vpop.f32.mrf.mxu0
      %2596 = vdwg.mxu0
      %2597 = vmatprep.subr.bf16.mxu0 %v2344
      %2598 = vmatpush1.bf16.msra.mxu0 %v2341
      %2599 = vmatprep.subr.bf16.mxu0 %v2258
      %2600 = vmatpush1.bf16.msra.mxu0 %v2254
      %2601 = vmatprep.subr.bf16.mxu0 %v2162
      %2602 = vmatpush1.bf16.msra.mxu0 %v2158
      %2603 = vmatprep.subr.bf16.mxu0 %v2078
      %2604 = vmatpush1.bf16.msra.mxu0 %v2075
      %2605 = vmatprep.subr.bf16.mxu0 %v1800
      %2606 = vmatpush1.bf16.msra.mxu0 %v1796
      %2607 = vmatprep.subr.bf16.mxu0 %v1984
      %2608 = vmatpush1.bf16.msra.mxu0 %v1980
      %2609 = vmatprep.subr.bf16.mxu0 %v1888
      %2610 = vmatpush1.bf16.msra.mxu0 %v1884
      %2611 = vmatprep.subr.bf16.mxu0 %v1792
      %2612 = vmatpush1.bf16.msra.mxu0 %v1788
      %2613 = vmatprep.subr.bf16.mxu0 0
      %2614 = vmatpush2.bf16.msra.mxu0 0
      %2615 = vmatprep.subr.bf16.mxu0 0
      %2616 = vmatpush2.bf16.msra.mxu0 0
      %2617 = vmatprep.subr.bf16.mxu0 0
      %2618 = vmatpush2.bf16.msra.mxu0 0
      %2619 = vmatprep.subr.bf16.mxu0 0
      %2620 = vmatpush2.bf16.msra.mxu0 0
      %2621 = vmatprep.subr.bf16.mxu0 0
      %2622 = vmatpush2.bf16.msra.mxu0 0
      %2623 = vmatprep.subr.bf16.mxu0 0
      %2624 = vmatpush2.bf16.msra.mxu0 0
      %2625 = vmatprep.subr.bf16.mxu0 0
      %2626 = vmatpush2.bf16.msra.mxu0 0
      %2627 = vmatprep.subr.bf16.mxu0 %v2178
      %2628 = vmatpush2.bf16.msra.mxu0 %v2174
      %2629 = vmatprep.mubr.bf16.mxu0 %v2431
      %2630 = vmatmul.mubr.bf16.gmra.mxu0 %v2426
      %v2631 = vpop.f32.mrf.mxu0
      %v2632 = vadd.f32 %v2421, %v2631
      %v2633 = vpop.f32.mrf.mxu0
      %v2634 = vadd.f32 %v2421, %v2633
      %v2635 = vpop.f32.mrf.mxu0
      %v2636 = vpop.f32.mrf.mxu0
      %2637 = vdwg.mxu0
      %2638 = vmatprep.subr.bf16.mxu0 %v2350
      %2639 = vmatpush1.bf16.msra.mxu0 %v2347
      %2640 = vmatprep.subr.bf16.mxu0 %v2266
      %2641 = vmatpush1.bf16.msra.mxu0 %v2262
      %2642 = vmatprep.subr.bf16.mxu0 %v2170
      %2643 = vmatpush1.bf16.msra.mxu0 %v2166
      %2644 = vmatprep.subr.bf16.mxu0 %v2084
      %2645 = vmatpush1.bf16.msra.mxu0 %v2081
      %2646 = vmatprep.subr.bf16.mxu0 %v1808
      %2647 = vmatpush1.bf16.msra.mxu0 %v1804
      %2648 = vmatprep.subr.bf16.mxu0 %v1992
      %2649 = vmatpush1.bf16.msra.mxu0 %v1988
      %2650 = vmatprep.subr.bf16.mxu0 %v1896
      %2651 = vmatpush1.bf16.msra.mxu0 %v1892
      %2652 = vmatprep.subr.bf16.mxu0 %v1800
      %2653 = vmatpush1.bf16.msra.mxu0 %v1796
      %2654 = vmatprep.subr.bf16.mxu0 0
      %2655 = vmatpush2.bf16.msra.mxu0 0
      %2656 = vmatprep.subr.bf16.mxu0 0
      %2657 = vmatpush2.bf16.msra.mxu0 0
      %2658 = vmatprep.subr.bf16.mxu0 0
      %2659 = vmatpush2.bf16.msra.mxu0 0
      %2660 = vmatprep.subr.bf16.mxu0 0
      %2661 = vmatpush2.bf16.msra.mxu0 0
      %2662 = vmatprep.subr.bf16.mxu0 0
      %2663 = vmatpush2.bf16.msra.mxu0 0
      %2664 = vmatprep.subr.bf16.mxu0 0
      %2665 = vmatpush2.bf16.msra.mxu0 0
      %2666 = vmatprep.subr.bf16.mxu0 0
      %2667 = vmatpush2.bf16.msra.mxu0 0
      %2668 = vmatprep.subr.bf16.mxu0 %v2186
      %2669 = vmatpush2.bf16.msra.mxu0 %v2182
      %2670 = vmatprep.mubr.bf16.mxu0 %v2431
      %2671 = vmatmul.mubr.bf16.gmra.mxu0 %v2426
      %v2672 = vpop.f32.mrf.mxu0
      %v2673 = vadd.f32 %v2421, %v2672
      %v2674 = vpop.f32.mrf.mxu0
      %v2675 = vadd.f32 %v2421, %v2674
      %v2676 = vpop.f32.mrf.mxu0
      %v2677 = vpop.f32.mrf.mxu0
      %2678 = vdwg.mxu0
      %2679 = vmatprep.subr.bf16.mxu0 %v2356
      %2680 = vmatpush1.bf16.msra.mxu0 %v2353
      %2681 = vmatprep.subr.bf16.mxu0 %v2274
      %2682 = vmatpush1.bf16.msra.mxu0 %v2270
      %2683 = vmatprep.subr.bf16.mxu0 %v2178
      %2684 = vmatpush1.bf16.msra.mxu0 %v2174
      %2685 = vmatprep.subr.bf16.mxu0 %v2090
      %2686 = vmatpush1.bf16.msra.mxu0 %v2087
      %2687 = vmatprep.subr.bf16.mxu0 %v1816
      %2688 = vmatpush1.bf16.msra.mxu0 %v1812
      %2689 = vmatprep.subr.bf16.mxu0 %v2000
      %2690 = vmatpush1.bf16.msra.mxu0 %v1996
      %2691 = vmatprep.subr.bf16.mxu0 %v1904
      %2692 = vmatpush1.bf16.msra.mxu0 %v1900
      %2693 = vmatprep.subr.bf16.mxu0 %v1808
      %2694 = vmatpush1.bf16.msra.mxu0 %v1804
      %2695 = vmatprep.subr.bf16.mxu0 0
      %2696 = vmatpush2.bf16.msra.mxu0 0
      %2697 = vmatprep.subr.bf16.mxu0 0
      %2698 = vmatpush2.bf16.msra.mxu0 0
      %2699 = vmatprep.subr.bf16.mxu0 0
      %2700 = vmatpush2.bf16.msra.mxu0 0
      %2701 = vmatprep.subr.bf16.mxu0 0
      %2702 = vmatpush2.bf16.msra.mxu0 0
      %2703 = vmatprep.subr.bf16.mxu0 0
      %2704 = vmatpush2.bf16.msra.mxu0 0
      %2705 = vmatprep.subr.bf16.mxu0 0
      %2706 = vmatpush2.bf16.msra.mxu0 0
      %2707 = vmatprep.subr.bf16.mxu0 0
      %2708 = vmatpush2.bf16.msra.mxu0 0
      %2709 = vmatprep.subr.bf16.mxu0 %v2194
      %2710 = vmatpush2.bf16.msra.mxu0 %v2190
      %2711 = vmatprep.mubr.bf16.mxu0 %v2431
      %2712 = vmatmul.mubr.bf16.gmra.mxu0 %v2426
      %v2713 = vpop.f32.mrf.mxu0
      %v2714 = vadd.f32 %v2421, %v2713
      %v2715 = vpop.f32.mrf.mxu0
      %v2716 = vadd.f32 %v2421, %v2715
      %v2717 = vpop.f32.mrf.mxu0
      %v2718 = vpop.f32.mrf.mxu0
      %2719 = vdwg.mxu0
      %2720 = vmatprep.subr.bf16.mxu0 %v2362
      %2721 = vmatpush1.bf16.msra.mxu0 %v2359
      %2722 = vmatprep.subr.bf16.mxu0 %v2282
      %2723 = vmatpush1.bf16.msra.mxu0 %v2278
      %2724 = vmatprep.subr.bf16.mxu0 %v2186
      %2725 = vmatpush1.bf16.msra.mxu0 %v2182
      %2726 = vmatprep.subr.bf16.mxu0 %v2096
      %2727 = vmatpush1.bf16.msra.mxu0 %v2093
      %2728 = vmatprep.subr.bf16.mxu0 %v1824
      %2729 = vmatpush1.bf16.msra.mxu0 %v1820
      %2730 = vmatprep.subr.bf16.mxu0 %v2008
      %2731 = vmatpush1.bf16.msra.mxu0 %v2004
      %2732 = vmatprep.subr.bf16.mxu0 %v1912
      %2733 = vmatpush1.bf16.msra.mxu0 %v1908
      %2734 = vmatprep.subr.bf16.mxu0 %v1816
      %2735 = vmatpush1.bf16.msra.mxu0 %v1812
      %2736 = vmatprep.subr.bf16.mxu0 0
      %2737 = vmatpush2.bf16.msra.mxu0 0
      %2738 = vmatprep.subr.bf16.mxu0 0
      %2739 = vmatpush2.bf16.msra.mxu0 0
      %2740 = vmatprep.subr.bf16.mxu0 0
      %2741 = vmatpush2.bf16.msra.mxu0 0
      %2742 = vmatprep.subr.bf16.mxu0 0
      %2743 = vmatpush2.bf16.msra.mxu0 0
      %2744 = vmatprep.subr.bf16.mxu0 0
      %2745 = vmatpush2.bf16.msra.mxu0 0
      %2746 = vmatprep.subr.bf16.mxu0 0
      %2747 = vmatpush2.bf16.msra.mxu0 0
      %2748 = vmatprep.subr.bf16.mxu0 0
      %2749 = vmatpush2.bf16.msra.mxu0 0
      %2750 = vmatprep.subr.bf16.mxu0 %v2202
      %2751 = vmatpush2.bf16.msra.mxu0 %v2198
      %2752 = vmatprep.mubr.bf16.mxu0 %v2431
      %2753 = vmatmul.mubr.bf16.gmra.mxu0 %v2426
      %v2754 = vpop.f32.mrf.mxu0
      %v2755 = vadd.f32 %v2421, %v2754
      %v2756 = vpop.f32.mrf.mxu0
      %v2757 = vadd.f32 %v2421, %v2756
      %v2758 = vpop.f32.mrf.mxu0
      %v2759 = vpop.f32.mrf.mxu0
      %2760 = vdwg.mxu0
      %2761 = vmatprep.subr.bf16.mxu0 %v2368
      %2762 = vmatpush1.bf16.msra.mxu0 %v2365
      %2763 = vmatprep.subr.bf16.mxu0 %v2290
      %2764 = vmatpush1.bf16.msra.mxu0 %v2286
      %2765 = vmatprep.subr.bf16.mxu0 %v2194
      %2766 = vmatpush1.bf16.msra.mxu0 %v2190
      %2767 = vmatprep.subr.bf16.mxu0 %v2102
      %2768 = vmatpush1.bf16.msra.mxu0 %v2099
      %2769 = vmatprep.subr.bf16.mxu0 %v1832
      %2770 = vmatpush1.bf16.msra.mxu0 %v1828
      %2771 = vmatprep.subr.bf16.mxu0 %v2016
      %2772 = vmatpush1.bf16.msra.mxu0 %v2012
      %2773 = vmatprep.subr.bf16.mxu0 %v1920
      %2774 = vmatpush1.bf16.msra.mxu0 %v1916
      %2775 = vmatprep.subr.bf16.mxu0 %v1824
      %2776 = vmatpush1.bf16.msra.mxu0 %v1820
      %2777 = vmatprep.subr.bf16.mxu0 0
      %2778 = vmatpush2.bf16.msra.mxu0 0
      %2779 = vmatprep.subr.bf16.mxu0 0
      %2780 = vmatpush2.bf16.msra.mxu0 0
      %2781 = vmatprep.subr.bf16.mxu0 0
      %2782 = vmatpush2.bf16.msra.mxu0 0
      %2783 = vmatprep.subr.bf16.mxu0 0
      %2784 = vmatpush2.bf16.msra.mxu0 0
      %2785 = vmatprep.subr.bf16.mxu0 0
      %2786 = vmatpush2.bf16.msra.mxu0 0
      %2787 = vmatprep.subr.bf16.mxu0 0
      %2788 = vmatpush2.bf16.msra.mxu0 0
      %2789 = vmatprep.subr.bf16.mxu0 0
      %2790 = vmatpush2.bf16.msra.mxu0 0
      %2791 = vmatprep.subr.bf16.mxu0 %v2210
      %2792 = vmatpush2.bf16.msra.mxu0 %v2206
      %2793 = vmatprep.mubr.bf16.mxu0 %v2431
      %2794 = vmatmul.mubr.bf16.gmra.mxu0 %v2426
      %v2795 = vpop.f32.mrf.mxu0
      %v2796 = vadd.f32 %v2421, %v2795
      %v2797 = vpop.f32.mrf.mxu0
      %v2798 = vadd.f32 %v2421, %v2797
      %v2799 = vpop.f32.mrf.mxu0
      %v2800 = vpop.f32.mrf.mxu0
      %2801 = vdwg.mxu0
      %2802 = vmatprep.subr.bf16.mxu0 %v2374
      %2803 = vmatpush1.bf16.msra.mxu0 %v2371
      %2804 = vmatprep.subr.bf16.mxu0 %v2298
      %2805 = vmatpush1.bf16.msra.mxu0 %v2294
      %2806 = vmatprep.subr.bf16.mxu0 %v2202
      %2807 = vmatpush1.bf16.msra.mxu0 %v2198
      %2808 = vmatprep.subr.bf16.mxu0 %v2108
      %2809 = vmatpush1.bf16.msra.mxu0 %v2105
      %2810 = vmatprep.subr.bf16.mxu0 %v1840
      %2811 = vmatpush1.bf16.msra.mxu0 %v1836
      %2812 = vmatprep.subr.bf16.mxu0 %v2024
      %2813 = vmatpush1.bf16.msra.mxu0 %v2020
      %2814 = vmatprep.subr.bf16.mxu0 %v1928
      %2815 = vmatpush1.bf16.msra.mxu0 %v1924
      %2816 = vmatprep.subr.bf16.mxu0 %v1832
      %2817 = vmatpush1.bf16.msra.mxu0 %v1828
      %2818 = vmatprep.subr.bf16.mxu0 0
      %2819 = vmatpush2.bf16.msra.mxu0 0
      %2820 = vmatprep.subr.bf16.mxu0 0
      %2821 = vmatpush2.bf16.msra.mxu0 0
      %2822 = vmatprep.subr.bf16.mxu0 0
      %2823 = vmatpush2.bf16.msra.mxu0 0
      %2824 = vmatprep.subr.bf16.mxu0 0
      %2825 = vmatpush2.bf16.msra.mxu0 0
      %2826 = vmatprep.subr.bf16.mxu0 0
      %2827 = vmatpush2.bf16.msra.mxu0 0
      %2828 = vmatprep.subr.bf16.mxu0 0
      %2829 = vmatpush2.bf16.msra.mxu0 0
      %2830 = vmatprep.subr.bf16.mxu0 0
      %2831 = vmatpush2.bf16.msra.mxu0 0
      %2832 = vmatprep.subr.bf16.mxu0 %v2218
      %2833 = vmatpush2.bf16.msra.mxu0 %v2214
      %2834 = vmatprep.mubr.bf16.mxu0 %v2431
      %2835 = vmatmul.mubr.bf16.gmra.mxu0 %v2426
      %v2836 = vpop.f32.mrf.mxu0
      %v2837 = vadd.f32 %v2421, %v2836
      %v2838 = vpop.f32.mrf.mxu0
      %v2839 = vadd.f32 %v2421, %v2838
      %v2840 = vpop.f32.mrf.mxu0
      %v2841 = vpop.f32.mrf.mxu0
      %2842 = vdwg.mxu0
      %2843 = vmatprep.subr.bf16.mxu0 %v2382
      %2844 = vmatpush1.bf16.msra.mxu0 %v2378
      %2845 = vmatprep.subr.bf16.mxu0 %v2306
      %2846 = vmatpush1.bf16.msra.mxu0 %v2302
      %2847 = vmatprep.subr.bf16.mxu0 %v2210
      %2848 = vmatpush1.bf16.msra.mxu0 %v2206
      %2849 = vmatprep.subr.bf16.mxu0 %v2114
      %2850 = vmatpush1.bf16.msra.mxu0 %v2111
      %2851 = vmatprep.subr.bf16.mxu0 %v1848
      %2852 = vmatpush1.bf16.msra.mxu0 %v1844
      %2853 = vmatprep.subr.bf16.mxu0 %v2032
      %2854 = vmatpush1.bf16.msra.mxu0 %v2028
      %2855 = vmatprep.subr.bf16.mxu0 %v1936
      %2856 = vmatpush1.bf16.msra.mxu0 %v1932
      %2857 = vmatprep.subr.bf16.mxu0 %v1840
      %2858 = vmatpush1.bf16.msra.mxu0 %v1836
      %2859 = vmatprep.subr.bf16.mxu0 0
      %2860 = vmatpush2.bf16.msra.mxu0 0
      %2861 = vmatprep.subr.bf16.mxu0 0
      %2862 = vmatpush2.bf16.msra.mxu0 0
      %2863 = vmatprep.subr.bf16.mxu0 0
      %2864 = vmatpush2.bf16.msra.mxu0 0
      %2865 = vmatprep.subr.bf16.mxu0 0
      %2866 = vmatpush2.bf16.msra.mxu0 0
      %2867 = vmatprep.subr.bf16.mxu0 0
      %2868 = vmatpush2.bf16.msra.mxu0 0
      %2869 = vmatprep.subr.bf16.mxu0 0
      %2870 = vmatpush2.bf16.msra.mxu0 0
      %2871 = vmatprep.subr.bf16.mxu0 0
      %2872 = vmatpush2.bf16.msra.mxu0 0
      %2873 = vmatprep.subr.bf16.mxu0 %v2406
      %2874 = vmatpush2.bf16.msra.mxu0 %v2402
      %2875 = vmatprep.mubr.bf16.mxu0 %v2431
      %2876 = vmatmul.mubr.bf16.gmra.mxu0 %v2426
      %v2877 = vpop.f32.mrf.mxu0
      %v2878 = vadd.f32 %v2421, %v2877
      %v2879 = vpop.f32.mrf.mxu0
      %v2880 = vadd.f32 %v2421, %v2879
      %v2881 = vpop.f32.mrf.mxu0
      %v2882 = vpop.f32.mrf.mxu0
      %2883 = vdwg.mxu0
      %2884 = vmatprep.subr.bf16.mxu0 %v2390
      %2885 = vmatpush1.bf16.msra.mxu0 %v2386
      %2886 = vmatprep.subr.bf16.mxu0 %v2314
      %2887 = vmatpush1.bf16.msra.mxu0 %v2310
      %2888 = vmatprep.subr.bf16.mxu0 %v2218
      %2889 = vmatpush1.bf16.msra.mxu0 %v2214
      %2890 = vmatprep.subr.bf16.mxu0 %v2122
      %2891 = vmatpush1.bf16.msra.mxu0 %v2118
      %2892 = vmatprep.subr.bf16.mxu0 %v2048
      %2893 = vmatpush1.bf16.msra.mxu0 %v2044
      %2894 = vmatprep.subr.bf16.mxu0 %v2040
      %2895 = vmatpush1.bf16.msra.mxu0 %v2036
      %2896 = vmatprep.subr.bf16.mxu0 %v1944
      %2897 = vmatpush1.bf16.msra.mxu0 %v1940
      %2898 = vmatprep.subr.bf16.mxu0 %v1848
      %2899 = vmatpush1.bf16.msra.mxu0 %v1844
      %2900 = vmatprep.subr.bf16.mxu0 0
      %2901 = vmatpush2.bf16.msra.mxu0 0
      %2902 = vmatprep.subr.bf16.mxu0 0
      %2903 = vmatpush2.bf16.msra.mxu0 0
      %2904 = vmatprep.subr.bf16.mxu0 0
      %2905 = vmatpush2.bf16.msra.mxu0 0
      %2906 = vmatprep.subr.bf16.mxu0 0
      %2907 = vmatpush2.bf16.msra.mxu0 0
      %2908 = vmatprep.subr.bf16.mxu0 0
      %2909 = vmatpush2.bf16.msra.mxu0 0
      %2910 = vmatprep.subr.bf16.mxu0 0
      %2911 = vmatpush2.bf16.msra.mxu0 0
      %2912 = vmatprep.subr.bf16.mxu0 0
      %2913 = vmatpush2.bf16.msra.mxu0 0
      %2914 = vmatprep.subr.bf16.mxu0 %v2414
      %2915 = vmatpush2.bf16.msra.mxu0 %v2410
      %2916 = vmatprep.mubr.bf16.mxu0 %v2431
      %2917 = vmatmul.mubr.bf16.gmra.mxu0 %v2426
      %v2918 = vpop.f32.mrf.mxu0
      %v2919 = vadd.f32 %v2421, %v2918
      %v2920 = vpop.f32.mrf.mxu0
      %v2921 = vadd.f32 %v2421, %v2920
      %v2922 = vpop.f32.mrf.mxu0
      %v2923 = vpop.f32.mrf.mxu0
      %2924 = vdwg.mxu0
      %2925 = vst [vmem:[%s253] sm:$0xff] 0.0
      %2926 = vst [vmem:[%s253 + $0x8] sm:$0xff] 0.0
      %2927 = vst [vmem:[%s253 + $0x10] sm:$0xff] 0.0
      %2928 = vst [vmem:[%s253 + $0x18] sm:$0xff] 0.0
      %2929 = vst [vmem:[%s253 + $0x20] sm:$0xff] 0.0
      %2930 = vst [vmem:[%s253 + $0x28] sm:$0xff] %v2468
      %2931 = vst [vmem:[%s253 + $0x30] sm:$0xff] %v2470
      %2932 = vst [vmem:[%s253 + $0x38] sm:$0xff] %v2509
      %2933 = vst [vmem:[%s253 + $0x40] sm:$0xff] %v2511
      %2934 = vst [vmem:[%s253 + $0x48] sm:$0xff] %v2550
      %2935 = vst [vmem:[%s253 + $0x50] sm:$0xff] %v2552
      %2936 = vst [vmem:[%s253 + $0x58] sm:$0xff] %v2591
      %2937 = vst [vmem:[%s253 + $0x60] sm:$0xff] %v2593
      %2938 = vst [vmem:[%s253 + $0x68] sm:$0xff] %v2632
      %2939 = vst [vmem:[%s253 + $0x70] sm:$0xff] %v2634
      %2940 = vst [vmem:[%s253 + $0x78] sm:$0xff] %v2673
      %2941 = vst [vmem:[%s253 + $0x80] sm:$0xff] %v2675
      %2942 = vst [vmem:[%s253 + $0x88] sm:$0xff] %v2714
      %2943 = vst [vmem:[%s253 + $0x90] sm:$0xff] %v2716
      %2944 = vst [vmem:[%s253 + $0x98] sm:$0xff] %v2755
      %2945 = vst [vmem:[%s253 + $0xa0] sm:$0xff] %v2757
      %2946 = vst [vmem:[%s253 + $0xa8] sm:$0xff] %v2796
      %2947 = vst [vmem:[%s253 + $0xb0] sm:$0xff] %v2798
      %2948 = vst [vmem:[%s253 + $0xb8] sm:$0xff] %v2837
      %2949 = vst [vmem:[%s253 + $0xc0] sm:$0xff] %v2839
      %2950 = vst [vmem:[%s253 + $0xc8] sm:$0xff] %v2878
      %2951 = vst [vmem:[%s253 + $0xd0] sm:$0xff] %v2880
      %2952 = vst [vmem:[%s253 + $0xd8] sm:$0xff] %v2919
      %2953 = vst [vmem:[%s253 + $0xe0] sm:$0xff] %v2921
      %2954 = vst [vmem:[%s253 + $0xe8] sm:$0xff] 0.0
      %2955 = vst [vmem:[%s253 + $0xf0] sm:$0xff] 0.0
      %2956 = vst [vmem:[%s253 + $0xf8] sm:$0xff] 0.0
      %2957 = vst [vmem:[%s253 + $0x100] sm:$0xff] 0.0
      %2958 = vst [vmem:[%s253 + $0x108] sm:$0xff] 0.0
      %p2959 = scmp.lt.s32.totalorder %s17, 1
      %s2960 = scalar_select %p2959, %s17, 1
      %s2961 = smul.addr %s2960, 136
      %s2962 = sadd.s32 68, %s2961
      %s2963 = smul.addr %s2962, 8
      %s2964 = scalar_lea.vmem %s6, %s2963
      // Predicated region
      $region45: #{compressed_d2_block.4} parent=43 // pred_check
        %p2965 = pneg %p166
      $region46: #{compressed_d2_block.4} parent=43 // pred_check_branch
        %2967 = sbr.rel (%p2965) target = $region48
      $region47: #{compressed_d2_block.4} parent=43 // pred_region
        _
      $region48: #{compressed_d2_block.4} parent=43 // pred_fallthru
        _
    $region44: #{compressed_d2_block.4} parent=5 // pred_fallthru
      _
    %p2968 = scmp.le.s32.totalorder 2, %s12
    // Predicated region
    $region49: #{compressed_d2_block.4} parent=5 // pred_check
      %p2969 = pneg %p2968
    $region50: #{compressed_d2_block.4} parent=5 // pred_check_branch
      %2971 = sbr.rel (%p2969) target = $region52
    $region51: #{compressed_d2_block.4} parent=5 // pred_region
      %s2972 = ssub.s32 %s12, 2
      // Predicated region
      $region53: #{compressed_d2_block.4} parent=51 // pred_check
        %p2973 = pneg %p172
      $region54: #{compressed_d2_block.4} parent=51 // pred_check_branch
        %2975 = sbr.rel (%p2973) target = $region56
      $region55: #{compressed_d2_block.4} parent=51 // pred_region
        %p2976 = scmp.lt.s32.totalorder %s18, 1
        %s2977 = scalar_select %p2976, %s18, 1
        %s2978 = smul.addr %s2977, 136
        %s2979 = sadd.s32 68, %s2978
        %s2980 = smul.addr %s2979, 8
        %s2981 = scalar_lea.vmem %s6, %s2980
      $region56: #{compressed_d2_block.4} parent=51 // pred_fallthru
        _
    $region52: #{compressed_d2_block.4} parent=5 // pred_fallthru
      _
  $region6: #{compressed_d2_block.4} parent=0 // loop_footer
    %s16 = sadd.s32 1, %s12
  $region7: #{compressed_d2_block.4} parent=0 // loop_footer_branch
    %11 = sbr.rel target = $region3
  $region8: #{compressed_d2_block.4} parent=0 // loop_exit
    _

// kernel: compressed_d2_block.5
$region0: #{compressed_d2_block.5}
  #allocation0 [shape = 'u32[]', space=smem, size = 0x4, offset = 0x4, fixed_abs, tag = 'smem constant byte address 0x4 - core index']
  #allocation1 [shape = 'u32[144,128]{1,0:T(1,128)}', space=vmem, size = 0x12000, scoped, tag = 'internal scratch']
  %s0 = inlined_call_operand.vmem [shape: f32[2,32,4352], index: 0, kind: input, shape index: {}, may-alias: {0,6}]
  %s1 = inlined_call_operand.vmem [shape: f32[1,4352], index: 1, kind: input, shape index: {}]
  %s2 = inlined_call_operand.vmem [shape: f32[24,1], index: 2, kind: input, shape index: {}]
  %s3 = inlined_call_operand.vmem [shape: f32[24,1], index: 3, kind: input, shape index: {}]
  %s4 = inlined_call_operand.vmem [shape: bf16[8,216], index: 4, kind: input, shape index: {}]
  %s5 = inlined_call_operand.vmem [shape: f32[8,1], index: 5, kind: input, shape index: {}]
  %s6 = inlined_call_operand.vmem [shape: f32[2,32,4352], index: 6, kind: output, shape index: {}, may-alias: {0,6}]
  %s7 = sld [smem:[#allocation0]]
  $region57: #{compressed_d2_block.5} parent=0
    _
  %s9 = ssub.s32 1, %s7
  %s10 = scalar_select 0, %s9, %s7
  loop: start=0, step=1, limit=4
  $region2: #{compressed_d2_block.5} parent=0 // loop_pre_header
    _
  $region3: #{compressed_d2_block.5} parent=0 // loop_header
    %s12 = sphi 0, %s16
    %p13 = scmp.ge.s32.totalorder %s12, 4
    %s22 = sphi 0, %s24
    %s25 = sphi 0, %s22
    %s26 = sphi 0, %s25
    %s42 = sphi 0, %s26
    %s46 = sphi 0, %s46
    %s48 = sphi 0, %s46
    %s49 = sphi 0, %s48
    %s63 = sphi 0, %s49
    %s67 = sphi 0, %s67
    %s69 = sphi 0, %s67
    %s70 = sphi 0, %s69
    %s84 = sphi 0, %s70
    %s88 = sphi 0, %s88
    %s90 = sphi 0, %s88
    %s91 = sphi 0, %s90
    %s105 = sphi 0, %s91
    %s109 = sphi 0, %s109
    %s111 = sphi 0, %s109
    %s112 = sphi 0, %s111
    %s126 = sphi 0, %s112
    %s130 = sphi 0, %s130
    %s132 = sphi 0, %s130
    %s133 = sphi 0, %s132
    %s147 = sphi 0, %s133
    %s153 = sphi 0, %s155
    %s156 = sphi 0, %s153
    %s157 = sphi 0, %s156
    %s173 = sphi 0, %s157
  $region4: #{compressed_d2_block.5} parent=0 // loop_header_branch
    %15 = sbr.rel (%p13) target = $region8
  $region5: #{compressed_d2_block.5} parent=0 // loop_body
    %s17 = ssub.s32 %s12, 1
    %s18 = ssub.s32 %s12, 2
    %s19 = sadd.s32 %s12, 1
    %s20 = ssub.s32 %s12, %s19
    %p21 = scmp.eq.s32.totalorder %s20, 0
    %s23 = sadd.s32 %s22, 1
    %s24 = scalar_select %p21, %s22, %s23
    %p27 = pneg %p21
    %p28 = scmp.eq.s32.totalorder %s12, 1
    %p29 = por %p27, %p28
    %p30 = scmp.ne.s32.totalorder %s22, %s25
    %p31 = scmp.eq.s32.totalorder %s12, 0
    %p32 = por %p30, %p31
    %p33 = scmp.ne.s32.totalorder %s22, %s25
    %p34 = scmp.eq.s32.totalorder %s17, 1
    %p35 = por %p33, %p34
    %p36 = scmp.ne.s32.totalorder %s25, %s26
    %p37 = scmp.eq.s32.totalorder %s17, 0
    %p38 = por %p36, %p37
    %p39 = scmp.ne.s32.totalorder %s25, %s26
    %p40 = scmp.eq.s32.totalorder %s18, 1
    %p41 = por %p39, %p40
    %p43 = scmp.ne.s32.totalorder %s26, %s42
    %p44 = scmp.eq.s32.totalorder %s18, 0
    %p45 = por %p43, %p44
    %s47 = sadd.s32 %s46, 1
    %p50 = scmp.eq.s32.totalorder %s12, 1
    %p51 = scmp.ne.s32.totalorder %s46, %s48
    %p52 = scmp.eq.s32.totalorder %s12, 0
    %p53 = por %p51, %p52
    %p54 = scmp.ne.s32.totalorder %s46, %s48
    %p55 = scmp.eq.s32.totalorder %s17, 1
    %p56 = por %p54, %p55
    %p57 = scmp.ne.s32.totalorder %s48, %s49
    %p58 = scmp.eq.s32.totalorder %s17, 0
    %p59 = por %p57, %p58
    %p60 = scmp.ne.s32.totalorder %s48, %s49
    %p61 = scmp.eq.s32.totalorder %s18, 1
    %p62 = por %p60, %p61
    %p64 = scmp.ne.s32.totalorder %s49, %s63
    %p65 = scmp.eq.s32.totalorder %s18, 0
    %p66 = por %p64, %p65
    %s68 = sadd.s32 %s67, 1
    %p71 = scmp.eq.s32.totalorder %s12, 1
    %p72 = scmp.ne.s32.totalorder %s67, %s69
    %p73 = scmp.eq.s32.totalorder %s12, 0
    %p74 = por %p72, %p73
    %p75 = scmp.ne.s32.totalorder %s67, %s69
    %p76 = scmp.eq.s32.totalorder %s17, 1
    %p77 = por %p75, %p76
    %p78 = scmp.ne.s32.totalorder %s69, %s70
    %p79 = scmp.eq.s32.totalorder %s17, 0
    %p80 = por %p78, %p79
    %p81 = scmp.ne.s32.totalorder %s69, %s70
    %p82 = scmp.eq.s32.totalorder %s18, 1
    %p83 = por %p81, %p82
    %p85 = scmp.ne.s32.totalorder %s70, %s84
    %p86 = scmp.eq.s32.totalorder %s18, 0
    %p87 = por %p85, %p86
    %s89 = sadd.s32 %s88, 1
    %p92 = scmp.eq.s32.totalorder %s12, 1
    %p93 = scmp.ne.s32.totalorder %s88, %s90
    %p94 = scmp.eq.s32.totalorder %s12, 0
    %p95 = por %p93, %p94
    %p96 = scmp.ne.s32.totalorder %s88, %s90
    %p97 = scmp.eq.s32.totalorder %s17, 1
    %p98 = por %p96, %p97
    %p99 = scmp.ne.s32.totalorder %s90, %s91
    %p100 = scmp.eq.s32.totalorder %s17, 0
    %p101 = por %p99, %p100
    %p102 = scmp.ne.s32.totalorder %s90, %s91
    %p103 = scmp.eq.s32.totalorder %s18, 1
    %p104 = por %p102, %p103
    %p106 = scmp.ne.s32.totalorder %s91, %s105
    %p107 = scmp.eq.s32.totalorder %s18, 0
    %p108 = por %p106, %p107
    %s110 = sadd.s32 %s109, 1
    %p113 = scmp.eq.s32.totalorder %s12, 1
    %p114 = scmp.ne.s32.totalorder %s109, %s111
    %p115 = scmp.eq.s32.totalorder %s12, 0
    %p116 = por %p114, %p115
    %p117 = scmp.ne.s32.totalorder %s109, %s111
    %p118 = scmp.eq.s32.totalorder %s17, 1
    %p119 = por %p117, %p118
    %p120 = scmp.ne.s32.totalorder %s111, %s112
    %p121 = scmp.eq.s32.totalorder %s17, 0
    %p122 = por %p120, %p121
    %p123 = scmp.ne.s32.totalorder %s111, %s112
    %p124 = scmp.eq.s32.totalorder %s18, 1
    %p125 = por %p123, %p124
    %p127 = scmp.ne.s32.totalorder %s112, %s126
    %p128 = scmp.eq.s32.totalorder %s18, 0
    %p129 = por %p127, %p128
    %s131 = sadd.s32 %s130, 1
    %p134 = scmp.eq.s32.totalorder %s12, 1
    %p135 = scmp.ne.s32.totalorder %s130, %s132
    %p136 = scmp.eq.s32.totalorder %s12, 0
    %p137 = por %p135, %p136
    %p138 = scmp.ne.s32.totalorder %s130, %s132
    %p139 = scmp.eq.s32.totalorder %s17, 1
    %p140 = por %p138, %p139
    %p141 = scmp.ne.s32.totalorder %s132, %s133
    %p142 = scmp.eq.s32.totalorder %s17, 0
    %p143 = por %p141, %p142
    %p144 = scmp.ne.s32.totalorder %s132, %s133
    %p145 = scmp.eq.s32.totalorder %s18, 1
    %p146 = por %p144, %p145
    %p148 = scmp.ne.s32.totalorder %s133, %s147
    %p149 = scmp.eq.s32.totalorder %s18, 0
    %p150 = por %p148, %p149
    %s151 = ssub.s32 %s12, %s19
    %p152 = scmp.eq.s32.totalorder %s151, 0
    %s154 = sadd.s32 %s153, 1
    %s155 = scalar_select %p152, %s153, %s154
    %p158 = pneg %p152
    %p159 = scmp.eq.s32.totalorder %s12, 1
    %p160 = por %p158, %p159
    %p161 = scmp.ne.s32.totalorder %s153, %s156
    %p162 = scmp.eq.s32.totalorder %s12, 0
    %p163 = por %p161, %p162
    %p164 = scmp.ne.s32.totalorder %s153, %s156
    %p165 = scmp.eq.s32.totalorder %s17, 1
    %p166 = por %p164, %p165
    %p167 = scmp.ne.s32.totalorder %s156, %s157
    %p168 = scmp.eq.s32.totalorder %s17, 0
    %p169 = por %p167, %p168
    %p170 = scmp.ne.s32.totalorder %s156, %s157
    %p171 = scmp.eq.s32.totalorder %s18, 1
    %p172 = por %p170, %p171
    %p174 = scmp.ne.s32.totalorder %s157, %s173
    %p175 = scmp.eq.s32.totalorder %s18, 0
    %p176 = por %p174, %p175
    %p177 = scmp.le.s32.totalorder 1, %s12
    %p178 = scmp.lt.s32.totalorder %s12, 3
    %p179 = pnand %p177, %p178
    %p180 = pneg %p179
    // Predicated region
    $region9: #{compressed_d2_block.5} parent=5 // pred_check
      _
    $region10: #{compressed_d2_block.5} parent=5 // pred_check_branch
      %182 = sbr.rel (%p179) target = $region12
    $region11: #{compressed_d2_block.5} parent=5 // pred_region
      %s183 = ssub.s32 %s12, 1
      // Predicated region
      $region13: #{compressed_d2_block.5} parent=11 // pred_check
        %p184 = pneg %p59
      $region14: #{compressed_d2_block.5} parent=11 // pred_check_branch
        %186 = sbr.rel (%p184) target = $region16
      $region15: #{compressed_d2_block.5} parent=11 // pred_region
        _
      $region16: #{compressed_d2_block.5} parent=11 // pred_fallthru
        _
      // Predicated region
      $region17: #{compressed_d2_block.5} parent=11 // pred_check
        %p187 = pneg %p80
      $region18: #{compressed_d2_block.5} parent=11 // pred_check_branch
        %189 = sbr.rel (%p187) target = $region20
      $region19: #{compressed_d2_block.5} parent=11 // pred_region
        _
      $region20: #{compressed_d2_block.5} parent=11 // pred_fallthru
        _
      // Predicated region
      $region21: #{compressed_d2_block.5} parent=11 // pred_check
        %p190 = pneg %p101
      $region22: #{compressed_d2_block.5} parent=11 // pred_check_branch
        %192 = sbr.rel (%p190) target = $region24
      $region23: #{compressed_d2_block.5} parent=11 // pred_region
        _
      $region24: #{compressed_d2_block.5} parent=11 // pred_fallthru
        _
      // Predicated region
      $region25: #{compressed_d2_block.5} parent=11 // pred_check
        %p193 = pneg %p122
      $region26: #{compressed_d2_block.5} parent=11 // pred_check_branch
        %195 = sbr.rel (%p193) target = $region28
      $region27: #{compressed_d2_block.5} parent=11 // pred_region
        _
      $region28: #{compressed_d2_block.5} parent=11 // pred_fallthru
        _
      // Predicated region
      $region29: #{compressed_d2_block.5} parent=11 // pred_check
        %p196 = pneg %p143
      $region30: #{compressed_d2_block.5} parent=11 // pred_check_branch
        %198 = sbr.rel (%p196) target = $region32
      $region31: #{compressed_d2_block.5} parent=11 // pred_region
        _
      $region32: #{compressed_d2_block.5} parent=11 // pred_fallthru
        _
    $region12: #{compressed_d2_block.5} parent=5 // pred_fallthru
      _
    %p199 = scmp.lt.s32.totalorder %s12, 2
    // Predicated region
    $region33: #{compressed_d2_block.5} parent=5 // pred_check
      %p200 = pneg %p199
    $region34: #{compressed_d2_block.5} parent=5 // pred_check_branch
      %202 = sbr.rel (%p200) target = $region36
    $region35: #{compressed_d2_block.5} parent=5 // pred_region
      // Predicated region
      $region37: #{compressed_d2_block.5} parent=35 // pred_check
        %p203 = pneg %p32
      $region38: #{compressed_d2_block.5} parent=35 // pred_check_branch
        %205 = sbr.rel (%p203) target = $region40
      $region39: #{compressed_d2_block.5} parent=35 // pred_region
        %p206 = scmp.lt.s32.totalorder %s12, 1
        %s207 = scalar_select %p206, %s12, 1
        %s208 = smul.addr %s207, 136
        %s209 = smul.addr %s208, 8
        %s210 = scalar_lea.vmem %s0, %s209
      $region40: #{compressed_d2_block.5} parent=35 // pred_fallthru
        _
    $region36: #{compressed_d2_block.5} parent=5 // pred_fallthru
      _
    %p211 = scmp.le.s32.totalorder 1, %s12
    %p212 = scmp.lt.s32.totalorder %s12, 3
    %p213 = pnand %p211, %p212
    %p214 = pneg %p213
    // Predicated region
    $region41: #{compressed_d2_block.5} parent=5 // pred_check
      _
    $region42: #{compressed_d2_block.5} parent=5 // pred_check_branch
      %216 = sbr.rel (%p213) target = $region44
    $region43: #{compressed_d2_block.5} parent=5 // pred_region
      %s217 = ssub.s32 %s12, 1
      %p218 = scmp.lt.s32.totalorder %s17, 1
      %s219 = scalar_select %p218, %s17, 1
      %s220 = smul.addr %s219, 136
      %s221 = smul.addr %s220, 8
      %s222 = scalar_lea.vmem %s0, %s221
      %p223 = pneg %p38
      %p224 = pneg %p35
      %p225 = pneg %p59
      %p226 = pneg %p56
      %p227 = pneg %p80
      %p228 = pneg %p77
      %p229 = pneg %p101
      %p230 = pneg %p98
      %p231 = pneg %p122
      %p232 = pneg %p119
      %p233 = pneg %p143
      %p234 = pneg %p140
      %p235 = pneg %p169
      %p236 = pneg %p166
      %p237 = scmp.lt.s32.totalorder %s17, 1
      %s238 = scalar_select %p237, %s17, 1
      %s239 = smul.addr %s238, 136
      %s240 = sadd.s32 102, %s239
      %s241 = smul.addr %s240, 8
      %s242 = scalar_lea.vmem %s6, %s241
      %p243 = scmp.lt.s32.totalorder %s17, 1
      %s244 = scalar_select %p243, %s17, 1
      %s245 = smul.addr %s244, 136
      %s246 = smul.addr %s245, 8
      %s247 = scalar_lea.vmem %s0, %s246
      %p248 = scmp.lt.s32.totalorder %s17, 1
      %s249 = scalar_select %p248, %s17, 1
      %s250 = smul.addr %s249, 136
      %s251 = sadd.s32 102, %s250
      %s252 = smul.addr %s251, 8
      %s253 = scalar_lea.vmem %s6, %s252
      %v255 = vld [vmem:[%s247 + $0x18] sm:$0xff]
      %v256 = vld [vmem:[%s247 + $0x20] sm:$0xff]
      %v257 = vld [vmem:[%s247 + $0x28] sm:$0xff]
      %v258 = vld [vmem:[%s247 + $0x30] sm:$0xff]
      %v259 = vld [vmem:[%s247 + $0x38] sm:$0xff]
      %v260 = vld [vmem:[%s247 + $0x40] sm:$0xff]
      %v261 = vld [vmem:[%s247 + $0x48] sm:$0xff]
      %v262 = vld [vmem:[%s247 + $0x50] sm:$0xff]
      %v263 = vld [vmem:[%s247 + $0x58] sm:$0xff]
      %v264 = vld [vmem:[%s247 + $0x60] sm:$0xff]
      %v265 = vld [vmem:[%s247 + $0x68] sm:$0xff]
      %v266 = vld [vmem:[%s247 + $0x70] sm:$0xff]
      %v267 = vld [vmem:[%s247 + $0x78] sm:$0xff]
      %v268 = vld [vmem:[%s247 + $0x80] sm:$0xff]
      %v269 = vld [vmem:[%s247 + $0x88] sm:$0xff]
      %v270 = vld [vmem:[%s247 + $0x90] sm:$0xff]
      %v271 = vld [vmem:[%s247 + $0x98] sm:$0xff]
      %v272 = vld [vmem:[%s247 + $0xa0] sm:$0xff]
      %v273 = vld [vmem:[%s247 + $0xa8] sm:$0xff]
      %v274 = vld [vmem:[%s247 + $0xb0] sm:$0xff]
      %v275 = vld [vmem:[%s247 + $0xb8] sm:$0xff]
      %v276 = vld [vmem:[%s247 + $0xc0] sm:$0xff]
      %v277 = vld [vmem:[%s247 + $0xc8] sm:$0xff]
      %v278 = vld [vmem:[%s247 + $0xd0] sm:$0xff]
      %v279 = vld [vmem:[%s247 + $0xd8] sm:$0xff]
      %v280 = vld [vmem:[%s247 + $0xe0] sm:$0xff]
      %v281 = vld [vmem:[%s247 + $0xe8] sm:$0xff]
      %v282 = vld [vmem:[%s247 + $0xf0] sm:$0xff]
      %v283 = vld [vmem:[%s247 + $0x120] sm:$0xff]
      %v284 = vld [vmem:[%s247 + $0x128] sm:$0xff]
      %v285 = vld [vmem:[%s247 + $0x130] sm:$0xff]
      %v286 = vld [vmem:[%s247 + $0x138] sm:$0xff]
      %v287 = vld [vmem:[%s247 + $0x140] sm:$0xff]
      %v288 = vld [vmem:[%s247 + $0x148] sm:$0xff]
      %v289 = vld [vmem:[%s247 + $0x150] sm:$0xff]
      %v290 = vld [vmem:[%s247 + $0x158] sm:$0xff]
      %v291 = vld [vmem:[%s247 + $0x160] sm:$0xff]
      %v292 = vld [vmem:[%s247 + $0x168] sm:$0xff]
      %v293 = vld [vmem:[%s247 + $0x170] sm:$0xff]
      %v294 = vld [vmem:[%s247 + $0x178] sm:$0xff]
      %v295 = vld [vmem:[%s247 + $0x180] sm:$0xff]
      %v296 = vld [vmem:[%s247 + $0x188] sm:$0xff]
      %v297 = vld [vmem:[%s247 + $0x190] sm:$0xff]
      %v298 = vld [vmem:[%s247 + $0x198] sm:$0xff]
      %v299 = vld [vmem:[%s247 + $0x1a0] sm:$0xff]
      %v300 = vld [vmem:[%s247 + $0x1a8] sm:$0xff]
      %v301 = vld [vmem:[%s247 + $0x1b0] sm:$0xff]
      %v302 = vld [vmem:[%s247 + $0x1b8] sm:$0xff]
      %v303 = vld [vmem:[%s247 + $0x1c0] sm:$0xff]
      %v304 = vld [vmem:[%s247 + $0x1c8] sm:$0xff]
      %v305 = vld [vmem:[%s247 + $0x1d0] sm:$0xff]
      %v306 = vld [vmem:[%s247 + $0x1d8] sm:$0xff]
      %v307 = vld [vmem:[%s247 + $0x1e0] sm:$0xff]
      %v308 = vld [vmem:[%s247 + $0x1e8] sm:$0xff]
      %v309 = vld [vmem:[%s247 + $0x1f0] sm:$0xff]
      %v310 = vld [vmem:[%s247 + $0x1f8] sm:$0xff]
      %v311 = vld [vmem:[%s247 + $0x200] sm:$0xff]
      %v312 = vld [vmem:[%s247 + $0x208] sm:$0xff]
      %v313 = vld [vmem:[%s247 + $0x220] sm:$0xff]
      %v314 = vld [vmem:[%s247 + $0x228] sm:$0xff]
      %v315 = vld [vmem:[%s247 + $0x230] sm:$0xff]
      %v316 = vld [vmem:[%s247 + $0x238] sm:$0xff]
      %v317 = vld [vmem:[%s247 + $0x240] sm:$0xff]
      %v318 = vld [vmem:[%s247 + $0x248] sm:$0xff]
      %v319 = vld [vmem:[%s247 + $0x250] sm:$0xff]
      %v320 = vld [vmem:[%s247 + $0x258] sm:$0xff]
      %v321 = vld [vmem:[%s247 + $0x260] sm:$0xff]
      %v322 = vld [vmem:[%s247 + $0x268] sm:$0xff]
      %v323 = vld [vmem:[%s247 + $0x270] sm:$0xff]
      %v324 = vld [vmem:[%s247 + $0x278] sm:$0xff]
      %v325 = vld [vmem:[%s247 + $0x280] sm:$0xff]
      %v326 = vld [vmem:[%s247 + $0x288] sm:$0xff]
      %v327 = vld [vmem:[%s247 + $0x290] sm:$0xff]
      %v328 = vld [vmem:[%s247 + $0x298] sm:$0xff]
      %v329 = vld [vmem:[%s247 + $0x2a0] sm:$0xff]
      %v330 = vld [vmem:[%s247 + $0x2a8] sm:$0xff]
      %v331 = vld [vmem:[%s247 + $0x2b0] sm:$0xff]
      %v332 = vld [vmem:[%s247 + $0x2b8] sm:$0xff]
      %v333 = vld [vmem:[%s247 + $0x2c0] sm:$0xff]
      %v334 = vld [vmem:[%s247 + $0x2c8] sm:$0xff]
      %v335 = vld [vmem:[%s247 + $0x2d0] sm:$0xff]
      %v336 = vld [vmem:[%s247 + $0x2d8] sm:$0xff]
      %v337 = vld [vmem:[%s247 + $0x2e0] sm:$0xff]
      %v338 = vld [vmem:[%s247 + $0x2e8] sm:$0xff]
      %v339 = vld [vmem:[%s247 + $0x2f0] sm:$0xff]
      %v340 = vld [vmem:[%s247 + $0x2f8] sm:$0xff]
      %v341 = vld [vmem:[%s247 + $0x300] sm:$0xff]
      %v342 = vld [vmem:[%s247 + $0x308] sm:$0xff]
      %v343 = vld [vmem:[%s247 + $0x310] sm:$0xff]
      %v344 = vld [vmem:[%s247 + $0x318] sm:$0xff]
      %v345 = vld [vmem:[%s247 + $0x320] sm:$0xff]
      %v346 = vld [vmem:[%s247 + $0x328] sm:$0xff]
      %v347 = vld [vmem:[%s2] sm:$0xff]
      %v348 = vld [vmem:[%s2 + $0x8] sm:$0xff]
      %v349 = vld [vmem:[%s2 + $0x10] sm:$0xff]
      %351 = vset.pattern.permute.xlu0 0
      %352 = vperm.xlu0 %351, %v347
      %v353 = vpop.permute.xlu0 %352
      %356 = vset.pattern.permute.xlu0 0
      %357 = vperm.xlu0 %356, %v348
      %v358 = vpop.permute.xlu0 %357
      %361 = vset.pattern.permute.xlu0 0
      %362 = vperm.xlu0 %361, %v349
      %v363 = vpop.permute.xlu0 %362
      %v365 = vmul.f32 %v255, %v353
      %v366 = vmul.f32 %v256, %v353
      %v367 = vmul.f32 %v257, %v353
      %v368 = vmul.f32 %v258, %v353
      %v369 = vmul.f32 %v259, %v353
      %v370 = vmul.f32 %v260, %v353
      %v371 = vmul.f32 %v261, %v353
      %v372 = vmul.f32 %v262, %v353
      %v373 = vmul.f32 %v263, %v353
      %v374 = vmul.f32 %v264, %v353
      %v375 = vmul.f32 %v265, %v353
      %v376 = vmul.f32 %v266, %v353
      %v377 = vmul.f32 %v267, %v353
      %v378 = vmul.f32 %v268, %v353
      %v379 = vmul.f32 %v269, %v353
      %v380 = vmul.f32 %v270, %v353
      %v381 = vmul.f32 %v271, %v353
      %v382 = vmul.f32 %v272, %v353
      %v383 = vmul.f32 %v273, %v353
      %v384 = vmul.f32 %v274, %v353
      %v385 = vmul.f32 %v275, %v353
      %v386 = vmul.f32 %v276, %v353
      %v387 = vmul.f32 %v277, %v353
      %v388 = vmul.f32 %v278, %v353
      %v389 = vmul.f32 %v279, %v353
      %v390 = vmul.f32 %v280, %v353
      %v391 = vmul.f32 %v281, %v353
      %v392 = vmul.f32 %v282, %v353
      %v393 = vmul.f32 %v283, %v358
      %v394 = vmul.f32 %v284, %v358
      %v395 = vmul.f32 %v285, %v358
      %v396 = vmul.f32 %v286, %v358
      %v397 = vmul.f32 %v287, %v358
      %v398 = vmul.f32 %v288, %v358
      %v399 = vmul.f32 %v289, %v358
      %v400 = vmul.f32 %v290, %v358
      %v401 = vmul.f32 %v291, %v358
      %v402 = vmul.f32 %v292, %v358
      %v403 = vmul.f32 %v293, %v358
      %v404 = vmul.f32 %v294, %v358
      %v405 = vmul.f32 %v295, %v358
      %v406 = vmul.f32 %v296, %v358
      %v407 = vmul.f32 %v297, %v358
      %v408 = vmul.f32 %v298, %v358
      %v409 = vmul.f32 %v299, %v358
      %v410 = vmul.f32 %v300, %v358
      %v411 = vmul.f32 %v301, %v358
      %v412 = vmul.f32 %v302, %v358
      %v413 = vmul.f32 %v303, %v358
      %v414 = vmul.f32 %v304, %v358
      %v415 = vmul.f32 %v305, %v358
      %v416 = vmul.f32 %v306, %v358
      %v417 = vmul.f32 %v307, %v358
      %v418 = vmul.f32 %v308, %v358
      %v419 = vmul.f32 %v309, %v358
      %v420 = vmul.f32 %v310, %v358
      %v421 = vmul.f32 %v311, %v358
      %v422 = vmul.f32 %v312, %v358
      %v423 = vmul.f32 %v313, %v363
      %v424 = vmul.f32 %v314, %v363
      %v425 = vmul.f32 %v315, %v363
      %v426 = vmul.f32 %v316, %v363
      %v427 = vmul.f32 %v317, %v363
      %v428 = vmul.f32 %v318, %v363
      %v429 = vmul.f32 %v319, %v363
      %v430 = vmul.f32 %v320, %v363
      %v431 = vmul.f32 %v321, %v363
      %v432 = vmul.f32 %v322, %v363
      %v433 = vmul.f32 %v323, %v363
      %v434 = vmul.f32 %v324, %v363
      %v435 = vmul.f32 %v325, %v363
      %v436 = vmul.f32 %v326, %v363
      %v437 = vmul.f32 %v327, %v363
      %v438 = vmul.f32 %v328, %v363
      %v439 = vmul.f32 %v329, %v363
      %v440 = vmul.f32 %v330, %v363
      %v441 = vmul.f32 %v331, %v363
      %v442 = vmul.f32 %v332, %v363
      %v443 = vmul.f32 %v333, %v363
      %v444 = vmul.f32 %v334, %v363
      %v445 = vmul.f32 %v335, %v363
      %v446 = vmul.f32 %v336, %v363
      %v447 = vmul.f32 %v337, %v363
      %v448 = vmul.f32 %v338, %v363
      %v449 = vmul.f32 %v339, %v363
      %v450 = vmul.f32 %v340, %v363
      %v451 = vmul.f32 %v341, %v363
      %v452 = vmul.f32 %v342, %v363
      %v453 = vmul.f32 %v343, %v363
      %v454 = vmul.f32 %v344, %v363
      %v455 = vmul.f32 %v345, %v363
      %v456 = vmul.f32 %v346, %v363
      %v457 = vld [vmem:[%s3] sm:$0xff]
      %v458 = vld [vmem:[%s3 + $0x8] sm:$0xff]
      %v459 = vld [vmem:[%s3 + $0x10] sm:$0xff]
      %461 = vset.pattern.permute.xlu0 0
      %462 = vperm.xlu0 %461, %v457
      %v463 = vpop.permute.xlu0 %462
      %466 = vset.pattern.permute.xlu0 0
      %467 = vperm.xlu0 %466, %v458
      %v468 = vpop.permute.xlu0 %467
      %471 = vset.pattern.permute.xlu0 0
      %472 = vperm.xlu0 %471, %v459
      %v473 = vpop.permute.xlu0 %472
      %v475 = vadd.f32 %v365, %v463
      %v476 = vadd.f32 %v366, %v463
      %v477 = vadd.f32 %v367, %v463
      %v478 = vadd.f32 %v368, %v463
      %v479 = vadd.f32 %v369, %v463
      %v480 = vadd.f32 %v370, %v463
      %v481 = vadd.f32 %v371, %v463
      %v482 = vadd.f32 %v372, %v463
      %v483 = vadd.f32 %v373, %v463
      %v484 = vadd.f32 %v374, %v463
      %v485 = vadd.f32 %v375, %v463
      %v486 = vadd.f32 %v376, %v463
      %v487 = vadd.f32 %v377, %v463
      %v488 = vadd.f32 %v378, %v463
      %v489 = vadd.f32 %v379, %v463
      %v490 = vadd.f32 %v380, %v463
      %v491 = vadd.f32 %v381, %v463
      %v492 = vadd.f32 %v382, %v463
      %v493 = vadd.f32 %v383, %v463
      %v494 = vadd.f32 %v384, %v463
      %v495 = vadd.f32 %v385, %v463
      %v496 = vadd.f32 %v386, %v463
      %v497 = vadd.f32 %v387, %v463
      %v498 = vadd.f32 %v388, %v463
      %v499 = vadd.f32 %v389, %v463
      %v500 = vadd.f32 %v390, %v463
      %v501 = vadd.f32 %v391, %v463
      %v502 = vadd.f32 %v392, %v463
      %v503 = vadd.f32 %v393, %v468
      %v504 = vadd.f32 %v394, %v468
      %v505 = vadd.f32 %v395, %v468
      %v506 = vadd.f32 %v396, %v468
      %v507 = vadd.f32 %v397, %v468
      %v508 = vadd.f32 %v398, %v468
      %v509 = vadd.f32 %v399, %v468
      %v510 = vadd.f32 %v400, %v468
      %v511 = vadd.f32 %v401, %v468
      %v512 = vadd.f32 %v402, %v468
      %v513 = vadd.f32 %v403, %v468
      %v514 = vadd.f32 %v404, %v468
      %v515 = vadd.f32 %v405, %v468
      %v516 = vadd.f32 %v406, %v468
      %v517 = vadd.f32 %v407, %v468
      %v518 = vadd.f32 %v408, %v468
      %v519 = vadd.f32 %v409, %v468
      %v520 = vadd.f32 %v410, %v468
      %v521 = vadd.f32 %v411, %v468
      %v522 = vadd.f32 %v412, %v468
      %v523 = vadd.f32 %v413, %v468
      %v524 = vadd.f32 %v414, %v468
      %v525 = vadd.f32 %v415, %v468
      %v526 = vadd.f32 %v416, %v468
      %v527 = vadd.f32 %v417, %v468
      %v528 = vadd.f32 %v418, %v468
      %v529 = vadd.f32 %v419, %v468
      %v530 = vadd.f32 %v420, %v468
      %v531 = vadd.f32 %v421, %v468
      %v532 = vadd.f32 %v422, %v468
      %v533 = vadd.f32 %v423, %v473
      %v534 = vadd.f32 %v424, %v473
      %v535 = vadd.f32 %v425, %v473
      %v536 = vadd.f32 %v426, %v473
      %v537 = vadd.f32 %v427, %v473
      %v538 = vadd.f32 %v428, %v473
      %v539 = vadd.f32 %v429, %v473
      %v540 = vadd.f32 %v430, %v473
      %v541 = vadd.f32 %v431, %v473
      %v542 = vadd.f32 %v432, %v473
      %v543 = vadd.f32 %v433, %v473
      %v544 = vadd.f32 %v434, %v473
      %v545 = vadd.f32 %v435, %v473
      %v546 = vadd.f32 %v436, %v473
      %v547 = vadd.f32 %v437, %v473
      %v548 = vadd.f32 %v438, %v473
      %v549 = vadd.f32 %v439, %v473
      %v550 = vadd.f32 %v440, %v473
      %v551 = vadd.f32 %v441, %v473
      %v552 = vadd.f32 %v442, %v473
      %v553 = vadd.f32 %v443, %v473
      %v554 = vadd.f32 %v444, %v473
      %v555 = vadd.f32 %v445, %v473
      %v556 = vadd.f32 %v446, %v473
      %v557 = vadd.f32 %v447, %v473
      %v558 = vadd.f32 %v448, %v473
      %v559 = vadd.f32 %v449, %v473
      %v560 = vadd.f32 %v450, %v473
      %v561 = vadd.f32 %v451, %v473
      %v562 = vadd.f32 %v452, %v473
      %v563 = vadd.f32 %v453, %v473
      %v564 = vadd.f32 %v454, %v473
      %v565 = vadd.f32 %v455, %v473
      %v566 = vadd.f32 %v456, %v473
      %v567 = vmul.f32 %v475, 0.0
      %v568 = vmul.f32 %v476, 0.0
      %v569 = vmul.f32 %v477, 0.0
      %v570 = vmul.f32 %v478, 0.0
      %v571 = vmul.f32 %v479, 0.0
      %v572 = vmul.f32 %v480, 0.0
      %v573 = vmul.f32 %v481, 0.0
      %v574 = vmul.f32 %v482, 0.0
      %v575 = vmul.f32 %v483, 0.0
      %v576 = vmul.f32 %v484, 0.0
      %v577 = vmul.f32 %v485, 0.0
      %v578 = vmul.f32 %v486, 0.0
      %v579 = vmul.f32 %v487, 0.0
      %v580 = vmul.f32 %v488, 0.0
      %v581 = vmul.f32 %v489, 0.0
      %v582 = vmul.f32 %v490, 0.0
      %v583 = vmul.f32 %v491, 0.0
      %v584 = vmul.f32 %v492, 0.0
      %v585 = vmul.f32 %v493, 0.0
      %v586 = vmul.f32 %v494, 0.0
      %v587 = vmul.f32 %v495, 0.0
      %v588 = vmul.f32 %v496, 0.0
      %v589 = vmul.f32 %v497, 0.0
      %v590 = vmul.f32 %v498, 0.0
      %v591 = vmul.f32 %v499, 0.0
      %v592 = vmul.f32 %v500, 0.0
      %v593 = vmul.f32 %v501, 0.0
      %v594 = vmul.f32 %v502, 0.0
      %v595 = vmul.f32 %v503, 0.0
      %v596 = vmul.f32 %v504, 0.0
      %v597 = vmul.f32 %v505, 0.0
      %v598 = vmul.f32 %v506, 0.0
      %v599 = vmul.f32 %v507, 0.0
      %v600 = vmul.f32 %v508, 0.0
      %v601 = vmul.f32 %v509, 0.0
      %v602 = vmul.f32 %v510, 0.0
      %v603 = vmul.f32 %v511, 0.0
      %v604 = vmul.f32 %v512, 0.0
      %v605 = vmul.f32 %v513, 0.0
      %v606 = vmul.f32 %v514, 0.0
      %v607 = vmul.f32 %v515, 0.0
      %v608 = vmul.f32 %v516, 0.0
      %v609 = vmul.f32 %v517, 0.0
      %v610 = vmul.f32 %v518, 0.0
      %v611 = vmul.f32 %v519, 0.0
      %v612 = vmul.f32 %v520, 0.0
      %v613 = vmul.f32 %v521, 0.0
      %v614 = vmul.f32 %v522, 0.0
      %v615 = vmul.f32 %v523, 0.0
      %v616 = vmul.f32 %v524, 0.0
      %v617 = vmul.f32 %v525, 0.0
      %v618 = vmul.f32 %v526, 0.0
      %v619 = vmul.f32 %v527, 0.0
      %v620 = vmul.f32 %v528, 0.0
      %v621 = vmul.f32 %v529, 0.0
      %v622 = vmul.f32 %v530, 0.0
      %v623 = vmul.f32 %v531, 0.0
      %v624 = vmul.f32 %v532, 0.0
      %v625 = vmul.f32 %v533, 0.0
      %v626 = vmul.f32 %v534, 0.0
      %v627 = vmul.f32 %v535, 0.0
      %v628 = vmul.f32 %v536, 0.0
      %v629 = vmul.f32 %v537, 0.0
      %v630 = vmul.f32 %v538, 0.0
      %v631 = vmul.f32 %v539, 0.0
      %v632 = vmul.f32 %v540, 0.0
      %v633 = vmul.f32 %v541, 0.0
      %v634 = vmul.f32 %v542, 0.0
      %v635 = vmul.f32 %v543, 0.0
      %v636 = vmul.f32 %v544, 0.0
      %v637 = vmul.f32 %v545, 0.0
      %v638 = vmul.f32 %v546, 0.0
      %v639 = vmul.f32 %v547, 0.0
      %v640 = vmul.f32 %v548, 0.0
      %v641 = vmul.f32 %v549, 0.0
      %v642 = vmul.f32 %v550, 0.0
      %v643 = vmul.f32 %v551, 0.0
      %v644 = vmul.f32 %v552, 0.0
      %v645 = vmul.f32 %v553, 0.0
      %v646 = vmul.f32 %v554, 0.0
      %v647 = vmul.f32 %v555, 0.0
      %v648 = vmul.f32 %v556, 0.0
      %v649 = vmul.f32 %v557, 0.0
      %v650 = vmul.f32 %v558, 0.0
      %v651 = vmul.f32 %v559, 0.0
      %v652 = vmul.f32 %v560, 0.0
      %v653 = vmul.f32 %v561, 0.0
      %v654 = vmul.f32 %v562, 0.0
      %v655 = vmul.f32 %v563, 0.0
      %v656 = vmul.f32 %v564, 0.0
      %v657 = vmul.f32 %v565, 0.0
      %v658 = vmul.f32 %v566, 0.0
      %v659 = vmax.f32 %v475, %v567
      %v660 = vmax.f32 %v476, %v568
      %v661 = vmax.f32 %v477, %v569
      %v662 = vmax.f32 %v478, %v570
      %v663 = vmax.f32 %v479, %v571
      %v664 = vmax.f32 %v480, %v572
      %v665 = vmax.f32 %v481, %v573
      %v666 = vmax.f32 %v482, %v574
      %v667 = vmax.f32 %v483, %v575
      %v668 = vmax.f32 %v484, %v576
      %v669 = vmax.f32 %v485, %v577
      %v670 = vmax.f32 %v486, %v578
      %v671 = vmax.f32 %v487, %v579
      %v672 = vmax.f32 %v488, %v580
      %v673 = vmax.f32 %v489, %v581
      %v674 = vmax.f32 %v490, %v582
      %v675 = vmax.f32 %v491, %v583
      %v676 = vmax.f32 %v492, %v584
      %v677 = vmax.f32 %v493, %v585
      %v678 = vmax.f32 %v494, %v586
      %v679 = vmax.f32 %v495, %v587
      %v680 = vmax.f32 %v496, %v588
      %v681 = vmax.f32 %v497, %v589
      %v682 = vmax.f32 %v498, %v590
      %v683 = vmax.f32 %v499, %v591
      %v684 = vmax.f32 %v500, %v592
      %v685 = vmax.f32 %v501, %v593
      %v686 = vmax.f32 %v502, %v594
      %v687 = vmax.f32 %v503, %v595
      %v688 = vmax.f32 %v504, %v596
      %v689 = vmax.f32 %v505, %v597
      %v690 = vmax.f32 %v506, %v598
      %v691 = vmax.f32 %v507, %v599
      %v692 = vmax.f32 %v508, %v600
      %v693 = vmax.f32 %v509, %v601
      %v694 = vmax.f32 %v510, %v602
      %v695 = vmax.f32 %v511, %v603
      %v696 = vmax.f32 %v512, %v604
      %v697 = vmax.f32 %v513, %v605
      %v698 = vmax.f32 %v514, %v606
      %v699 = vmax.f32 %v515, %v607
      %v700 = vmax.f32 %v516, %v608
      %v701 = vmax.f32 %v517, %v609
      %v702 = vmax.f32 %v518, %v610
      %v703 = vmax.f32 %v519, %v611
      %v704 = vmax.f32 %v520, %v612
      %v705 = vmax.f32 %v521, %v613
      %v706 = vmax.f32 %v522, %v614
      %v707 = vmax.f32 %v523, %v615
      %v708 = vmax.f32 %v524, %v616
      %v709 = vmax.f32 %v525, %v617
      %v710 = vmax.f32 %v526, %v618
      %v711 = vmax.f32 %v527, %v619
      %v712 = vmax.f32 %v528, %v620
      %v713 = vmax.f32 %v529, %v621
      %v714 = vmax.f32 %v530, %v622
      %v715 = vmax.f32 %v531, %v623
      %v716 = vmax.f32 %v532, %v624
      %v717 = vmax.f32 %v533, %v625
      %v718 = vmax.f32 %v534, %v626
      %v719 = vmax.f32 %v535, %v627
      %v720 = vmax.f32 %v536, %v628
      %v721 = vmax.f32 %v537, %v629
      %v722 = vmax.f32 %v538, %v630
      %v723 = vmax.f32 %v539, %v631
      %v724 = vmax.f32 %v540, %v632
      %v725 = vmax.f32 %v541, %v633
      %v726 = vmax.f32 %v542, %v634
      %v727 = vmax.f32 %v543, %v635
      %v728 = vmax.f32 %v544, %v636
      %v729 = vmax.f32 %v545, %v637
      %v730 = vmax.f32 %v546, %v638
      %v731 = vmax.f32 %v547, %v639
      %v732 = vmax.f32 %v548, %v640
      %v733 = vmax.f32 %v549, %v641
      %v734 = vmax.f32 %v550, %v642
      %v735 = vmax.f32 %v551, %v643
      %v736 = vmax.f32 %v552, %v644
      %v737 = vmax.f32 %v553, %v645
      %v738 = vmax.f32 %v554, %v646
      %v739 = vmax.f32 %v555, %v647
      %v740 = vmax.f32 %v556, %v648
      %v741 = vmax.f32 %v557, %v649
      %v742 = vmax.f32 %v558, %v650
      %v743 = vmax.f32 %v559, %v651
      %v744 = vmax.f32 %v560, %v652
      %v745 = vmax.f32 %v561, %v653
      %v746 = vmax.f32 %v562, %v654
      %v747 = vmax.f32 %v563, %v655
      %v748 = vmax.f32 %v564, %v656
      %v749 = vmax.f32 %v565, %v657
      %v750 = vmax.f32 %v566, %v658
      %v751 = vld [vmem:[%s1] sm:$0xff]
      %v752 = vld [vmem:[%s1 + $0x8] sm:$0xff]
      %v753 = vld [vmem:[%s1 + $0x10] sm:$0xff]
      %v754 = vld [vmem:[%s1 + $0x18] sm:$0xff]
      %v755 = vld [vmem:[%s1 + $0x20] sm:$0x3]
      %vm756 = vcmp.gt.f32.partialorder %v751, 0.5
      %vm757 = vcmp.gt.f32.partialorder %v752, 0.5
      %vm758 = vcmp.gt.f32.partialorder %v753, 0.5
      %vm759 = vcmp.gt.f32.partialorder %v754, 0.5
      %vm760 = vcmp.gt.f32.partialorder %v755, 0.5
      %v761 = vsel %vm756, 1, 0
      %v762 = vsel %vm757, 1, 0
      %v763 = vsel %vm758, 1, 0
      %v764 = vsel %vm759, 1, 0
      %v765 = vsel %vm760, 1, 0
      %v766 = vlaneseq
      %v767 = vshrl.u32 %v766, 7
      %v768 = vsub.s32 0, %v767
      %v769 = vrot.slane %v761, %v768
      %v770 = vlaneseq
      %v771 = vshrl.u32 %v770, 7
      %v772 = vsub.s32 1, %v771
      %v773 = vrot.slane %v761, %v772
      %v774 = vlaneseq
      %v775 = vshrl.u32 %v774, 7
      %v776 = vsub.s32 2, %v775
      %v777 = vrot.slane %v761, %v776
      %v778 = vlaneseq
      %v779 = vshrl.u32 %v778, 7
      %v780 = vsub.s32 3, %v779
      %v781 = vrot.slane %v761, %v780
      %v782 = vlaneseq
      %v783 = vshrl.u32 %v782, 7
      %v784 = vsub.s32 4, %v783
      %v785 = vrot.slane %v761, %v784
      %v786 = vlaneseq
      %v787 = vshrl.u32 %v786, 7
      %v788 = vsub.s32 5, %v787
      %v789 = vrot.slane %v761, %v788
      %v790 = vlaneseq
      %v791 = vshrl.u32 %v790, 7
      %v792 = vsub.s32 6, %v791
      %v793 = vrot.slane %v761, %v792
      %v794 = vlaneseq
      %v795 = vshrl.u32 %v794, 7
      %v796 = vsub.s32 7, %v795
      %v797 = vrot.slane %v761, %v796
      %v798 = vlaneseq
      %v799 = vshrl.u32 %v798, 7
      %v800 = vsub.s32 0, %v799
      %v801 = vrot.slane %v762, %v800
      %v802 = vlaneseq
      %v803 = vshrl.u32 %v802, 7
      %v804 = vsub.s32 1, %v803
      %v805 = vrot.slane %v762, %v804
      %v806 = vlaneseq
      %v807 = vshrl.u32 %v806, 7
      %v808 = vsub.s32 2, %v807
      %v809 = vrot.slane %v762, %v808
      %v810 = vlaneseq
      %v811 = vshrl.u32 %v810, 7
      %v812 = vsub.s32 3, %v811
      %v813 = vrot.slane %v762, %v812
      %v814 = vlaneseq
      %v815 = vshrl.u32 %v814, 7
      %v816 = vsub.s32 4, %v815
      %v817 = vrot.slane %v762, %v816
      %v818 = vlaneseq
      %v819 = vshrl.u32 %v818, 7
      %v820 = vsub.s32 5, %v819
      %v821 = vrot.slane %v762, %v820
      %v822 = vlaneseq
      %v823 = vshrl.u32 %v822, 7
      %v824 = vsub.s32 6, %v823
      %v825 = vrot.slane %v762, %v824
      %v826 = vlaneseq
      %v827 = vshrl.u32 %v826, 7
      %v828 = vsub.s32 7, %v827
      %v829 = vrot.slane %v762, %v828
      %v830 = vlaneseq
      %v831 = vshrl.u32 %v830, 7
      %v832 = vsub.s32 0, %v831
      %v833 = vrot.slane %v763, %v832
      %v834 = vlaneseq
      %v835 = vshrl.u32 %v834, 7
      %v836 = vsub.s32 1, %v835
      %v837 = vrot.slane %v763, %v836
      %v838 = vlaneseq
      %v839 = vshrl.u32 %v838, 7
      %v840 = vsub.s32 2, %v839
      %v841 = vrot.slane %v763, %v840
      %v842 = vlaneseq
      %v843 = vshrl.u32 %v842, 7
      %v844 = vsub.s32 3, %v843
      %v845 = vrot.slane %v763, %v844
      %v846 = vlaneseq
      %v847 = vshrl.u32 %v846, 7
      %v848 = vsub.s32 4, %v847
      %v849 = vrot.slane %v763, %v848
      %v850 = vlaneseq
      %v851 = vshrl.u32 %v850, 7
      %v852 = vsub.s32 5, %v851
      %v853 = vrot.slane %v763, %v852
      %v854 = vlaneseq
      %v855 = vshrl.u32 %v854, 7
      %v856 = vsub.s32 6, %v855
      %v857 = vrot.slane %v763, %v856
      %v858 = vlaneseq
      %v859 = vshrl.u32 %v858, 7
      %v860 = vsub.s32 7, %v859
      %v861 = vrot.slane %v763, %v860
      %v862 = vlaneseq
      %v863 = vshrl.u32 %v862, 7
      %v864 = vsub.s32 0, %v863
      %v865 = vrot.slane %v764, %v864
      %v866 = vlaneseq
      %v867 = vshrl.u32 %v866, 7
      %v868 = vsub.s32 1, %v867
      %v869 = vrot.slane %v764, %v868
      %v870 = vlaneseq
      %v871 = vshrl.u32 %v870, 7
      %v872 = vsub.s32 2, %v871
      %v873 = vrot.slane %v764, %v872
      %v874 = vlaneseq
      %v875 = vshrl.u32 %v874, 7
      %v876 = vsub.s32 3, %v875
      %v877 = vrot.slane %v764, %v876
      %v878 = vlaneseq
      %v879 = vshrl.u32 %v878, 7
      %v880 = vsub.s32 4, %v879
      %v881 = vrot.slane %v764, %v880
      %v882 = vlaneseq
      %v883 = vshrl.u32 %v882, 7
      %v884 = vsub.s32 5, %v883
      %v885 = vrot.slane %v764, %v884
      %v886 = vlaneseq
      %v887 = vshrl.u32 %v886, 7
      %v888 = vsub.s32 6, %v887
      %v889 = vrot.slane %v764, %v888
      %v890 = vlaneseq
      %v891 = vshrl.u32 %v890, 7
      %v892 = vsub.s32 7, %v891
      %v893 = vrot.slane %v764, %v892
      %v894 = vlaneseq
      %v895 = vshrl.u32 %v894, 7
      %v896 = vsub.s32 0, %v895
      %v897 = vrot.slane %v765, %v896
      %v898 = vlaneseq
      %v899 = vshrl.u32 %v898, 7
      %v900 = vsub.s32 1, %v899
      %v901 = vrot.slane %v765, %v900
      %vm902 = vcmp.eq.s32.totalorder %v769, 1
      %vm903 = vcmp.eq.s32.totalorder %v773, 1
      %vm904 = vcmp.eq.s32.totalorder %v777, 1
      %vm905 = vcmp.eq.s32.totalorder %v781, 1
      %vm906 = vcmp.eq.s32.totalorder %v785, 1
      %vm907 = vcmp.eq.s32.totalorder %v789, 1
      %vm908 = vcmp.eq.s32.totalorder %v793, 1
      %vm909 = vcmp.eq.s32.totalorder %v797, 1
      %vm910 = vcmp.eq.s32.totalorder %v801, 1
      %vm911 = vcmp.eq.s32.totalorder %v805, 1
      %vm912 = vcmp.eq.s32.totalorder %v809, 1
      %vm913 = vcmp.eq.s32.totalorder %v813, 1
      %vm914 = vcmp.eq.s32.totalorder %v817, 1
      %vm915 = vcmp.eq.s32.totalorder %v821, 1
      %vm916 = vcmp.eq.s32.totalorder %v825, 1
      %vm917 = vcmp.eq.s32.totalorder %v829, 1
      %vm918 = vcmp.eq.s32.totalorder %v833, 1
      %vm919 = vcmp.eq.s32.totalorder %v837, 1
      %vm920 = vcmp.eq.s32.totalorder %v841, 1
      %vm921 = vcmp.eq.s32.totalorder %v845, 1
      %vm922 = vcmp.eq.s32.totalorder %v849, 1
      %vm923 = vcmp.eq.s32.totalorder %v853, 1
      %vm924 = vcmp.eq.s32.totalorder %v857, 1
      %vm925 = vcmp.eq.s32.totalorder %v861, 1
      %vm926 = vcmp.eq.s32.totalorder %v865, 1
      %vm927 = vcmp.eq.s32.totalorder %v869, 1
      %vm928 = vcmp.eq.s32.totalorder %v873, 1
      %vm929 = vcmp.eq.s32.totalorder %v877, 1
      %vm930 = vcmp.eq.s32.totalorder %v881, 1
      %vm931 = vcmp.eq.s32.totalorder %v885, 1
      %vm932 = vcmp.eq.s32.totalorder %v889, 1
      %vm933 = vcmp.eq.s32.totalorder %v893, 1
      %vm934 = vcmp.eq.s32.totalorder %v897, 1
      %vm935 = vcmp.eq.s32.totalorder %v901, 1
      %v936 = vsel %vm905, %v659, 0.0
      %v937 = vsel %vm906, %v660, 0.0
      %v938 = vsel %vm907, %v661, 0.0
      %v939 = vsel %vm908, %v662, 0.0
      %v940 = vsel %vm909, %v663, 0.0
      %v941 = vsel %vm910, %v664, 0.0
      %v942 = vsel %vm911, %v665, 0.0
      %v943 = vsel %vm912, %v666, 0.0
      %v944 = vsel %vm913, %v667, 0.0
      %v945 = vsel %vm914, %v668, 0.0
      %v946 = vsel %vm915, %v669, 0.0
      %v947 = vsel %vm916, %v670, 0.0
      %v948 = vsel %vm917, %v671, 0.0
      %v949 = vsel %vm918, %v672, 0.0
      %v950 = vsel %vm919, %v673, 0.0
      %v951 = vsel %vm920, %v674, 0.0
      %v952 = vsel %vm921, %v675, 0.0
      %v953 = vsel %vm922, %v676, 0.0
      %v954 = vsel %vm923, %v677, 0.0
      %v955 = vsel %vm924, %v678, 0.0
      %v956 = vsel %vm925, %v679, 0.0
      %v957 = vsel %vm926, %v680, 0.0
      %v958 = vsel %vm927, %v681, 0.0
      %v959 = vsel %vm928, %v682, 0.0
      %v960 = vsel %vm929, %v683, 0.0
      %v961 = vsel %vm930, %v684, 0.0
      %v962 = vsel %vm931, %v685, 0.0
      %v963 = vsel %vm932, %v686, 0.0
      %v964 = vsel %vm904, %v687, 0.0
      %v965 = vsel %vm905, %v688, 0.0
      %v966 = vsel %vm906, %v689, 0.0
      %v967 = vsel %vm907, %v690, 0.0
      %v968 = vsel %vm908, %v691, 0.0
      %v969 = vsel %vm909, %v692, 0.0
      %v970 = vsel %vm910, %v693, 0.0
      %v971 = vsel %vm911, %v694, 0.0
      %v972 = vsel %vm912, %v695, 0.0
      %v973 = vsel %vm913, %v696, 0.0
      %v974 = vsel %vm914, %v697, 0.0
      %v975 = vsel %vm915, %v698, 0.0
      %v976 = vsel %vm916, %v699, 0.0
      %v977 = vsel %vm917, %v700, 0.0
      %v978 = vsel %vm918, %v701, 0.0
      %v979 = vsel %vm919, %v702, 0.0
      %v980 = vsel %vm920, %v703, 0.0
      %v981 = vsel %vm921, %v704, 0.0
      %v982 = vsel %vm922, %v705, 0.0
      %v983 = vsel %vm923, %v706, 0.0
      %v984 = vsel %vm924, %v707, 0.0
      %v985 = vsel %vm925, %v708, 0.0
      %v986 = vsel %vm926, %v709, 0.0
      %v987 = vsel %vm927, %v710, 0.0
      %v988 = vsel %vm928, %v711, 0.0
      %v989 = vsel %vm929, %v712, 0.0
      %v990 = vsel %vm930, %v713, 0.0
      %v991 = vsel %vm931, %v714, 0.0
      %v992 = vsel %vm932, %v715, 0.0
      %v993 = vsel %vm933, %v716, 0.0
      %v994 = vsel %vm902, %v717, 0.0
      %v995 = vsel %vm903, %v718, 0.0
      %v996 = vsel %vm904, %v719, 0.0
      %v997 = vsel %vm905, %v720, 0.0
      %v998 = vsel %vm906, %v721, 0.0
      %v999 = vsel %vm907, %v722, 0.0
      %v1000 = vsel %vm908, %v723, 0.0
      %v1001 = vsel %vm909, %v724, 0.0
      %v1002 = vsel %vm910, %v725, 0.0
      %v1003 = vsel %vm911, %v726, 0.0
      %v1004 = vsel %vm912, %v727, 0.0
      %v1005 = vsel %vm913, %v728, 0.0
      %v1006 = vsel %vm914, %v729, 0.0
      %v1007 = vsel %vm915, %v730, 0.0
      %v1008 = vsel %vm916, %v731, 0.0
      %v1009 = vsel %vm917, %v732, 0.0
      %v1010 = vsel %vm918, %v733, 0.0
      %v1011 = vsel %vm919, %v734, 0.0
      %v1012 = vsel %vm920, %v735, 0.0
      %v1013 = vsel %vm921, %v736, 0.0
      %v1014 = vsel %vm922, %v737, 0.0
      %v1015 = vsel %vm923, %v738, 0.0
      %v1016 = vsel %vm924, %v739, 0.0
      %v1017 = vsel %vm925, %v740, 0.0
      %v1018 = vsel %vm926, %v741, 0.0
      %v1019 = vsel %vm927, %v742, 0.0
      %v1020 = vsel %vm928, %v743, 0.0
      %v1021 = vsel %vm929, %v744, 0.0
      %v1022 = vsel %vm930, %v745, 0.0
      %v1023 = vsel %vm931, %v746, 0.0
      %v1024 = vsel %vm932, %v747, 0.0
      %v1025 = vsel %vm933, %v748, 0.0
      %v1026 = vsel %vm934, %v749, 0.0
      %v1027 = vsel %vm935, %v750, 0.0
      %1055 = vrot.lane.b32.xlu0 %v936, 1
      %v1056 = vpop.permute.xlu0 %1055
      %1057 = vrot.lane.b32.xlu0 %v937, 1
      %v1058 = vpop.permute.xlu0 %1057
      %1059 = vrot.lane.b32.xlu0 %v938, 1
      %v1060 = vpop.permute.xlu0 %1059
      %1061 = vrot.lane.b32.xlu0 %v939, 1
      %v1062 = vpop.permute.xlu0 %1061
      %1063 = vrot.lane.b32.xlu0 %v940, 1
      %v1064 = vpop.permute.xlu0 %1063
      %1065 = vrot.lane.b32.xlu0 %v941, 1
      %v1066 = vpop.permute.xlu0 %1065
      %1067 = vrot.lane.b32.xlu0 %v942, 1
      %v1068 = vpop.permute.xlu0 %1067
      %1069 = vrot.lane.b32.xlu0 %v943, 1
      %v1070 = vpop.permute.xlu0 %1069
      %1071 = vrot.lane.b32.xlu0 %v944, 1
      %v1072 = vpop.permute.xlu0 %1071
      %1073 = vrot.lane.b32.xlu0 %v945, 1
      %v1074 = vpop.permute.xlu0 %1073
      %1075 = vrot.lane.b32.xlu0 %v946, 1
      %v1076 = vpop.permute.xlu0 %1075
      %1077 = vrot.lane.b32.xlu0 %v947, 1
      %v1078 = vpop.permute.xlu0 %1077
      %1079 = vrot.lane.b32.xlu0 %v948, 1
      %v1080 = vpop.permute.xlu0 %1079
      %1081 = vrot.lane.b32.xlu0 %v949, 1
      %v1082 = vpop.permute.xlu0 %1081
      %1083 = vrot.lane.b32.xlu0 %v950, 1
      %v1084 = vpop.permute.xlu0 %1083
      %1085 = vrot.lane.b32.xlu0 %v951, 1
      %v1086 = vpop.permute.xlu0 %1085
      %1087 = vrot.lane.b32.xlu0 %v952, 1
      %v1088 = vpop.permute.xlu0 %1087
      %1089 = vrot.lane.b32.xlu0 %v953, 1
      %v1090 = vpop.permute.xlu0 %1089
      %1091 = vrot.lane.b32.xlu0 %v954, 1
      %v1092 = vpop.permute.xlu0 %1091
      %1093 = vrot.lane.b32.xlu0 %v955, 1
      %v1094 = vpop.permute.xlu0 %1093
      %1095 = vrot.lane.b32.xlu0 %v956, 1
      %v1096 = vpop.permute.xlu0 %1095
      %1097 = vrot.lane.b32.xlu0 %v957, 1
      %v1098 = vpop.permute.xlu0 %1097
      %1099 = vrot.lane.b32.xlu0 %v958, 1
      %v1100 = vpop.permute.xlu0 %1099
      %1101 = vrot.lane.b32.xlu0 %v959, 1
      %v1102 = vpop.permute.xlu0 %1101
      %1103 = vrot.lane.b32.xlu0 %v960, 1
      %v1104 = vpop.permute.xlu0 %1103
      %1105 = vrot.lane.b32.xlu0 %v961, 1
      %v1106 = vpop.permute.xlu0 %1105
      %1107 = vrot.lane.b32.xlu0 %v962, 1
      %v1108 = vpop.permute.xlu0 %1107
      %vm1109 = vcmask 7168
      %v1110 = vsel %vm1109, %v1056, %v1058
      %v1111 = vsel %vm1109, %v1058, %v1060
      %v1112 = vsel %vm1109, %v1060, %v1062
      %v1113 = vsel %vm1109, %v1062, %v1064
      %v1114 = vsel %vm1109, %v1064, %v1066
      %v1115 = vsel %vm1109, %v1066, %v1068
      %v1116 = vsel %vm1109, %v1068, %v1070
      %v1117 = vsel %vm1109, %v1070, %v1072
      %v1118 = vsel %vm1109, %v1072, %v1074
      %v1119 = vsel %vm1109, %v1074, %v1076
      %v1120 = vsel %vm1109, %v1076, %v1078
      %v1121 = vsel %vm1109, %v1078, %v1080
      %v1122 = vsel %vm1109, %v1080, %v1082
      %v1123 = vsel %vm1109, %v1082, %v1084
      %v1124 = vsel %vm1109, %v1084, %v1086
      %v1125 = vsel %vm1109, %v1086, %v1088
      %v1126 = vsel %vm1109, %v1088, %v1090
      %v1127 = vsel %vm1109, %v1090, %v1092
      %v1128 = vsel %vm1109, %v1092, %v1094
      %v1129 = vsel %vm1109, %v1094, %v1096
      %v1130 = vsel %vm1109, %v1096, %v1098
      %v1131 = vsel %vm1109, %v1098, %v1100
      %v1132 = vsel %vm1109, %v1100, %v1102
      %v1133 = vsel %vm1109, %v1102, %v1104
      %v1134 = vsel %vm1109, %v1104, %v1106
      %v1135 = vsel %vm1109, %v1106, %v1108
      %v1162 = vpack.c.bf16 %v1110, %v1110
      %v1163 = vpack.c.bf16 %v1111, %v1111
      %v1164 = vpack.c.bf16 %v1112, %v1112
      %v1165 = vpack.c.bf16 %v1113, %v1113
      %v1166 = vpack.c.bf16 %v1114, %v1114
      %v1167 = vpack.c.bf16 %v1115, %v1115
      %v1168 = vpack.c.bf16 %v1116, %v1116
      %v1169 = vpack.c.bf16 %v1117, %v1117
      %v1170 = vpack.c.bf16 %v1118, %v1118
      %v1171 = vpack.c.bf16 %v1119, %v1119
      %v1172 = vpack.c.bf16 %v1120, %v1120
      %v1173 = vpack.c.bf16 %v1121, %v1121
      %v1174 = vpack.c.bf16 %v1122, %v1122
      %v1175 = vpack.c.bf16 %v1123, %v1123
      %v1176 = vpack.c.bf16 %v1124, %v1124
      %v1177 = vpack.c.bf16 %v1125, %v1125
      %v1178 = vpack.c.bf16 %v1126, %v1126
      %v1179 = vpack.c.bf16 %v1127, %v1127
      %v1180 = vpack.c.bf16 %v1128, %v1128
      %v1181 = vpack.c.bf16 %v1129, %v1129
      %v1182 = vpack.c.bf16 %v1130, %v1130
      %v1183 = vpack.c.bf16 %v1131, %v1131
      %v1184 = vpack.c.bf16 %v1132, %v1132
      %v1185 = vpack.c.bf16 %v1133, %v1133
      %v1186 = vpack.c.bf16 %v1134, %v1134
      %v1187 = vpack.c.bf16 %v1135, %v1135
      %v1188 = vpack.c.bf16 %v937, %v937
      %v1189 = vpack.c.bf16 %v938, %v938
      %v1190 = vpack.c.bf16 %v939, %v939
      %v1191 = vpack.c.bf16 %v940, %v940
      %v1192 = vpack.c.bf16 %v941, %v941
      %v1193 = vpack.c.bf16 %v942, %v942
      %v1194 = vpack.c.bf16 %v943, %v943
      %v1195 = vpack.c.bf16 %v944, %v944
      %v1196 = vpack.c.bf16 %v945, %v945
      %v1197 = vpack.c.bf16 %v946, %v946
      %v1198 = vpack.c.bf16 %v947, %v947
      %v1199 = vpack.c.bf16 %v948, %v948
      %v1200 = vpack.c.bf16 %v949, %v949
      %v1201 = vpack.c.bf16 %v950, %v950
      %v1202 = vpack.c.bf16 %v951, %v951
      %v1203 = vpack.c.bf16 %v952, %v952
      %v1204 = vpack.c.bf16 %v953, %v953
      %v1205 = vpack.c.bf16 %v954, %v954
      %v1206 = vpack.c.bf16 %v955, %v955
      %v1207 = vpack.c.bf16 %v956, %v956
      %v1208 = vpack.c.bf16 %v957, %v957
      %v1209 = vpack.c.bf16 %v958, %v958
      %v1210 = vpack.c.bf16 %v959, %v959
      %v1211 = vpack.c.bf16 %v960, %v960
      %v1212 = vpack.c.bf16 %v961, %v961
      %v1213 = vpack.c.bf16 %v962, %v962
      %1215 = vrot.lane.b32.xlu0 %v937, 127
      %v1216 = vpop.permute.xlu0 %1215
      %1217 = vrot.lane.b32.xlu0 %v938, 127
      %v1218 = vpop.permute.xlu0 %1217
      %1219 = vrot.lane.b32.xlu0 %v939, 127
      %v1220 = vpop.permute.xlu0 %1219
      %1221 = vrot.lane.b32.xlu0 %v940, 127
      %v1222 = vpop.permute.xlu0 %1221
      %1223 = vrot.lane.b32.xlu0 %v941, 127
      %v1224 = vpop.permute.xlu0 %1223
      %1225 = vrot.lane.b32.xlu0 %v942, 127
      %v1226 = vpop.permute.xlu0 %1225
      %1227 = vrot.lane.b32.xlu0 %v943, 127
      %v1228 = vpop.permute.xlu0 %1227
      %1229 = vrot.lane.b32.xlu0 %v944, 127
      %v1230 = vpop.permute.xlu0 %1229
      %1231 = vrot.lane.b32.xlu0 %v945, 127
      %v1232 = vpop.permute.xlu0 %1231
      %1233 = vrot.lane.b32.xlu0 %v946, 127
      %v1234 = vpop.permute.xlu0 %1233
      %1235 = vrot.lane.b32.xlu0 %v947, 127
      %v1236 = vpop.permute.xlu0 %1235
      %1237 = vrot.lane.b32.xlu0 %v948, 127
      %v1238 = vpop.permute.xlu0 %1237
      %1239 = vrot.lane.b32.xlu0 %v949, 127
      %v1240 = vpop.permute.xlu0 %1239
      %1241 = vrot.lane.b32.xlu0 %v950, 127
      %v1242 = vpop.permute.xlu0 %1241
      %1243 = vrot.lane.b32.xlu0 %v951, 127
      %v1244 = vpop.permute.xlu0 %1243
      %1245 = vrot.lane.b32.xlu0 %v952, 127
      %v1246 = vpop.permute.xlu0 %1245
      %1247 = vrot.lane.b32.xlu0 %v953, 127
      %v1248 = vpop.permute.xlu0 %1247
      %1249 = vrot.lane.b32.xlu0 %v954, 127
      %v1250 = vpop.permute.xlu0 %1249
      %1251 = vrot.lane.b32.xlu0 %v955, 127
      %v1252 = vpop.permute.xlu0 %1251
      %1253 = vrot.lane.b32.xlu0 %v956, 127
      %v1254 = vpop.permute.xlu0 %1253
      %1255 = vrot.lane.b32.xlu0 %v957, 127
      %v1256 = vpop.permute.xlu0 %1255
      %1257 = vrot.lane.b32.xlu0 %v958, 127
      %v1258 = vpop.permute.xlu0 %1257
      %1259 = vrot.lane.b32.xlu0 %v959, 127
      %v1260 = vpop.permute.xlu0 %1259
      %1261 = vrot.lane.b32.xlu0 %v960, 127
      %v1262 = vpop.permute.xlu0 %1261
      %1263 = vrot.lane.b32.xlu0 %v961, 127
      %v1264 = vpop.permute.xlu0 %1263
      %1265 = vrot.lane.b32.xlu0 %v962, 127
      %v1266 = vpop.permute.xlu0 %1265
      %1267 = vrot.lane.b32.xlu0 %v963, 127
      %v1268 = vpop.permute.xlu0 %1267
      %vm1269 = vcmask 1039360
      %v1270 = vsel %vm1269, %v1216, %v1218
      %v1271 = vsel %vm1269, %v1218, %v1220
      %v1272 = vsel %vm1269, %v1220, %v1222
      %v1273 = vsel %vm1269, %v1222, %v1224
      %v1274 = vsel %vm1269, %v1224, %v1226
      %v1275 = vsel %vm1269, %v1226, %v1228
      %v1276 = vsel %vm1269, %v1228, %v1230
      %v1277 = vsel %vm1269, %v1230, %v1232
      %v1278 = vsel %vm1269, %v1232, %v1234
      %v1279 = vsel %vm1269, %v1234, %v1236
      %v1280 = vsel %vm1269, %v1236, %v1238
      %v1281 = vsel %vm1269, %v1238, %v1240
      %v1282 = vsel %vm1269, %v1240, %v1242
      %v1283 = vsel %vm1269, %v1242, %v1244
      %v1284 = vsel %vm1269, %v1244, %v1246
      %v1285 = vsel %vm1269, %v1246, %v1248
      %v1286 = vsel %vm1269, %v1248, %v1250
      %v1287 = vsel %vm1269, %v1250, %v1252
      %v1288 = vsel %vm1269, %v1252, %v1254
      %v1289 = vsel %vm1269, %v1254, %v1256
      %v1290 = vsel %vm1269, %v1256, %v1258
      %v1291 = vsel %vm1269, %v1258, %v1260
      %v1292 = vsel %vm1269, %v1260, %v1262
      %v1293 = vsel %vm1269, %v1262, %v1264
      %v1294 = vsel %vm1269, %v1264, %v1266
      %v1295 = vsel %vm1269, %v1266, %v1268
      %v1322 = vpack.c.bf16 %v1270, %v1270
      %v1323 = vpack.c.bf16 %v1271, %v1271
      %v1324 = vpack.c.bf16 %v1272, %v1272
      %v1325 = vpack.c.bf16 %v1273, %v1273
      %v1326 = vpack.c.bf16 %v1274, %v1274
      %v1327 = vpack.c.bf16 %v1275, %v1275
      %v1328 = vpack.c.bf16 %v1276, %v1276
      %v1329 = vpack.c.bf16 %v1277, %v1277
      %v1330 = vpack.c.bf16 %v1278, %v1278
      %v1331 = vpack.c.bf16 %v1279, %v1279
      %v1332 = vpack.c.bf16 %v1280, %v1280
      %v1333 = vpack.c.bf16 %v1281, %v1281
      %v1334 = vpack.c.bf16 %v1282, %v1282
      %v1335 = vpack.c.bf16 %v1283, %v1283
      %v1336 = vpack.c.bf16 %v1284, %v1284
      %v1337 = vpack.c.bf16 %v1285, %v1285
      %v1338 = vpack.c.bf16 %v1286, %v1286
      %v1339 = vpack.c.bf16 %v1287, %v1287
      %v1340 = vpack.c.bf16 %v1288, %v1288
      %v1341 = vpack.c.bf16 %v1289, %v1289
      %v1342 = vpack.c.bf16 %v1290, %v1290
      %v1343 = vpack.c.bf16 %v1291, %v1291
      %v1344 = vpack.c.bf16 %v1292, %v1292
      %v1345 = vpack.c.bf16 %v1293, %v1293
      %v1346 = vpack.c.bf16 %v1294, %v1294
      %v1347 = vpack.c.bf16 %v1295, %v1295
      %1377 = vrot.lane.b32.xlu0 %v964, 2
      %v1378 = vpop.permute.xlu0 %1377
      %1379 = vrot.lane.b32.xlu0 %v965, 2
      %v1380 = vpop.permute.xlu0 %1379
      %1381 = vrot.lane.b32.xlu0 %v966, 2
      %v1382 = vpop.permute.xlu0 %1381
      %1383 = vrot.lane.b32.xlu0 %v967, 2
      %v1384 = vpop.permute.xlu0 %1383
      %1385 = vrot.lane.b32.xlu0 %v968, 2
      %v1386 = vpop.permute.xlu0 %1385
      %1387 = vrot.lane.b32.xlu0 %v969, 2
      %v1388 = vpop.permute.xlu0 %1387
      %1389 = vrot.lane.b32.xlu0 %v970, 2
      %v1390 = vpop.permute.xlu0 %1389
      %1391 = vrot.lane.b32.xlu0 %v971, 2
      %v1392 = vpop.permute.xlu0 %1391
      %1393 = vrot.lane.b32.xlu0 %v972, 2
      %v1394 = vpop.permute.xlu0 %1393
      %1395 = vrot.lane.b32.xlu0 %v973, 2
      %v1396 = vpop.permute.xlu0 %1395
      %1397 = vrot.lane.b32.xlu0 %v974, 2
      %v1398 = vpop.permute.xlu0 %1397
      %1399 = vrot.lane.b32.xlu0 %v975, 2
      %v1400 = vpop.permute.xlu0 %1399
      %1401 = vrot.lane.b32.xlu0 %v976, 2
      %v1402 = vpop.permute.xlu0 %1401
      %1403 = vrot.lane.b32.xlu0 %v977, 2
      %v1404 = vpop.permute.xlu0 %1403
      %1405 = vrot.lane.b32.xlu0 %v978, 2
      %v1406 = vpop.permute.xlu0 %1405
      %1407 = vrot.lane.b32.xlu0 %v979, 2
      %v1408 = vpop.permute.xlu0 %1407
      %1409 = vrot.lane.b32.xlu0 %v980, 2
      %v1410 = vpop.permute.xlu0 %1409
      %1411 = vrot.lane.b32.xlu0 %v981, 2
      %v1412 = vpop.permute.xlu0 %1411
      %1413 = vrot.lane.b32.xlu0 %v982, 2
      %v1414 = vpop.permute.xlu0 %1413
      %1415 = vrot.lane.b32.xlu0 %v983, 2
      %v1416 = vpop.permute.xlu0 %1415
      %1417 = vrot.lane.b32.xlu0 %v984, 2
      %v1418 = vpop.permute.xlu0 %1417
      %1419 = vrot.lane.b32.xlu0 %v985, 2
      %v1420 = vpop.permute.xlu0 %1419
      %1421 = vrot.lane.b32.xlu0 %v986, 2
      %v1422 = vpop.permute.xlu0 %1421
      %1423 = vrot.lane.b32.xlu0 %v987, 2
      %v1424 = vpop.permute.xlu0 %1423
      %1425 = vrot.lane.b32.xlu0 %v988, 2
      %v1426 = vpop.permute.xlu0 %1425
      %1427 = vrot.lane.b32.xlu0 %v989, 2
      %v1428 = vpop.permute.xlu0 %1427
      %1429 = vrot.lane.b32.xlu0 %v990, 2
      %v1430 = vpop.permute.xlu0 %1429
      %1431 = vrot.lane.b32.xlu0 %v991, 2
      %v1432 = vpop.permute.xlu0 %1431
      %1433 = vrot.lane.b32.xlu0 %v992, 2
      %v1434 = vpop.permute.xlu0 %1433
      %vm1435 = vcmask 15360
      %v1436 = vsel %vm1435, %v1378, %v1380
      %v1437 = vsel %vm1435, %v1380, %v1382
      %v1438 = vsel %vm1435, %v1382, %v1384
      %v1439 = vsel %vm1435, %v1384, %v1386
      %v1440 = vsel %vm1435, %v1386, %v1388
      %v1441 = vsel %vm1435, %v1388, %v1390
      %v1442 = vsel %vm1435, %v1390, %v1392
      %v1443 = vsel %vm1435, %v1392, %v1394
      %v1444 = vsel %vm1435, %v1394, %v1396
      %v1445 = vsel %vm1435, %v1396, %v1398
      %v1446 = vsel %vm1435, %v1398, %v1400
      %v1447 = vsel %vm1435, %v1400, %v1402
      %v1448 = vsel %vm1435, %v1402, %v1404
      %v1449 = vsel %vm1435, %v1404, %v1406
      %v1450 = vsel %vm1435, %v1406, %v1408
      %v1451 = vsel %vm1435, %v1408, %v1410
      %v1452 = vsel %vm1435, %v1410, %v1412
      %v1453 = vsel %vm1435, %v1412, %v1414
      %v1454 = vsel %vm1435, %v1414, %v1416
      %v1455 = vsel %vm1435, %v1416, %v1418
      %v1456 = vsel %vm1435, %v1418, %v1420
      %v1457 = vsel %vm1435, %v1420, %v1422
      %v1458 = vsel %vm1435, %v1422, %v1424
      %v1459 = vsel %vm1435, %v1424, %v1426
      %v1460 = vsel %vm1435, %v1426, %v1428
      %v1461 = vsel %vm1435, %v1428, %v1430
      %v1462 = vsel %vm1435, %v1430, %v1432
      %v1463 = vsel %vm1435, %v1432, %v1434
      %v1492 = vpack.c.bf16 %v1436, %v1436
      %v1493 = vpack.c.bf16 %v1437, %v1437
      %v1494 = vpack.c.bf16 %v1438, %v1438
      %v1495 = vpack.c.bf16 %v1439, %v1439
      %v1496 = vpack.c.bf16 %v1440, %v1440
      %v1497 = vpack.c.bf16 %v1441, %v1441
      %v1498 = vpack.c.bf16 %v1442, %v1442
      %v1499 = vpack.c.bf16 %v1443, %v1443
      %v1500 = vpack.c.bf16 %v1444, %v1444
      %v1501 = vpack.c.bf16 %v1445, %v1445
      %v1502 = vpack.c.bf16 %v1446, %v1446
      %v1503 = vpack.c.bf16 %v1447, %v1447
      %v1504 = vpack.c.bf16 %v1448, %v1448
      %v1505 = vpack.c.bf16 %v1449, %v1449
      %v1506 = vpack.c.bf16 %v1450, %v1450
      %v1507 = vpack.c.bf16 %v1451, %v1451
      %v1508 = vpack.c.bf16 %v1452, %v1452
      %v1509 = vpack.c.bf16 %v1453, %v1453
      %v1510 = vpack.c.bf16 %v1454, %v1454
      %v1511 = vpack.c.bf16 %v1455, %v1455
      %v1512 = vpack.c.bf16 %v1456, %v1456
      %v1513 = vpack.c.bf16 %v1457, %v1457
      %v1514 = vpack.c.bf16 %v1458, %v1458
      %v1515 = vpack.c.bf16 %v1459, %v1459
      %v1516 = vpack.c.bf16 %v1460, %v1460
      %v1517 = vpack.c.bf16 %v1461, %v1461
      %v1518 = vpack.c.bf16 %v1462, %v1462
      %v1519 = vpack.c.bf16 %v1463, %v1463
      %v1520 = vpack.c.bf16 %v965, %v965
      %v1521 = vpack.c.bf16 %v966, %v966
      %v1522 = vpack.c.bf16 %v967, %v967
      %v1523 = vpack.c.bf16 %v968, %v968
      %v1524 = vpack.c.bf16 %v969, %v969
      %v1525 = vpack.c.bf16 %v970, %v970
      %v1526 = vpack.c.bf16 %v971, %v971
      %v1527 = vpack.c.bf16 %v972, %v972
      %v1528 = vpack.c.bf16 %v973, %v973
      %v1529 = vpack.c.bf16 %v974, %v974
      %v1530 = vpack.c.bf16 %v975, %v975
      %v1531 = vpack.c.bf16 %v976, %v976
      %v1532 = vpack.c.bf16 %v977, %v977
      %v1533 = vpack.c.bf16 %v978, %v978
      %v1534 = vpack.c.bf16 %v979, %v979
      %v1535 = vpack.c.bf16 %v980, %v980
      %v1536 = vpack.c.bf16 %v981, %v981
      %v1537 = vpack.c.bf16 %v982, %v982
      %v1538 = vpack.c.bf16 %v983, %v983
      %v1539 = vpack.c.bf16 %v984, %v984
      %v1540 = vpack.c.bf16 %v985, %v985
      %v1541 = vpack.c.bf16 %v986, %v986
      %v1542 = vpack.c.bf16 %v987, %v987
      %v1543 = vpack.c.bf16 %v988, %v988
      %v1544 = vpack.c.bf16 %v989, %v989
      %v1545 = vpack.c.bf16 %v990, %v990
      %v1546 = vpack.c.bf16 %v991, %v991
      %v1547 = vpack.c.bf16 %v992, %v992
      %1549 = vrot.lane.b32.xlu0 %v965, 126
      %v1550 = vpop.permute.xlu0 %1549
      %1551 = vrot.lane.b32.xlu0 %v966, 126
      %v1552 = vpop.permute.xlu0 %1551
      %1553 = vrot.lane.b32.xlu0 %v967, 126
      %v1554 = vpop.permute.xlu0 %1553
      %1555 = vrot.lane.b32.xlu0 %v968, 126
      %v1556 = vpop.permute.xlu0 %1555
      %1557 = vrot.lane.b32.xlu0 %v969, 126
      %v1558 = vpop.permute.xlu0 %1557
      %1559 = vrot.lane.b32.xlu0 %v970, 126
      %v1560 = vpop.permute.xlu0 %1559
      %1561 = vrot.lane.b32.xlu0 %v971, 126
      %v1562 = vpop.permute.xlu0 %1561
      %1563 = vrot.lane.b32.xlu0 %v972, 126
      %v1564 = vpop.permute.xlu0 %1563
      %1565 = vrot.lane.b32.xlu0 %v973, 126
      %v1566 = vpop.permute.xlu0 %1565
      %1567 = vrot.lane.b32.xlu0 %v974, 126
      %v1568 = vpop.permute.xlu0 %1567
      %1569 = vrot.lane.b32.xlu0 %v975, 126
      %v1570 = vpop.permute.xlu0 %1569
      %1571 = vrot.lane.b32.xlu0 %v976, 126
      %v1572 = vpop.permute.xlu0 %1571
      %1573 = vrot.lane.b32.xlu0 %v977, 126
      %v1574 = vpop.permute.xlu0 %1573
      %1575 = vrot.lane.b32.xlu0 %v978, 126
      %v1576 = vpop.permute.xlu0 %1575
      %1577 = vrot.lane.b32.xlu0 %v979, 126
      %v1578 = vpop.permute.xlu0 %1577
      %1579 = vrot.lane.b32.xlu0 %v980, 126
      %v1580 = vpop.permute.xlu0 %1579
      %1581 = vrot.lane.b32.xlu0 %v981, 126
      %v1582 = vpop.permute.xlu0 %1581
      %1583 = vrot.lane.b32.xlu0 %v982, 126
      %v1584 = vpop.permute.xlu0 %1583
      %1585 = vrot.lane.b32.xlu0 %v983, 126
      %v1586 = vpop.permute.xlu0 %1585
      %1587 = vrot.lane.b32.xlu0 %v984, 126
      %v1588 = vpop.permute.xlu0 %1587
      %1589 = vrot.lane.b32.xlu0 %v985, 126
      %v1590 = vpop.permute.xlu0 %1589
      %1591 = vrot.lane.b32.xlu0 %v986, 126
      %v1592 = vpop.permute.xlu0 %1591
      %1593 = vrot.lane.b32.xlu0 %v987, 126
      %v1594 = vpop.permute.xlu0 %1593
      %1595 = vrot.lane.b32.xlu0 %v988, 126
      %v1596 = vpop.permute.xlu0 %1595
      %1597 = vrot.lane.b32.xlu0 %v989, 126
      %v1598 = vpop.permute.xlu0 %1597
      %1599 = vrot.lane.b32.xlu0 %v990, 126
      %v1600 = vpop.permute.xlu0 %1599
      %1601 = vrot.lane.b32.xlu0 %v991, 126
      %v1602 = vpop.permute.xlu0 %1601
      %1603 = vrot.lane.b32.xlu0 %v992, 126
      %v1604 = vpop.permute.xlu0 %1603
      %1605 = vrot.lane.b32.xlu0 %v993, 126
      %v1606 = vpop.permute.xlu0 %1605
      %vm1607 = vcmask 1031168
      %v1608 = vsel %vm1607, %v1550, %v1552
      %v1609 = vsel %vm1607, %v1552, %v1554
      %v1610 = vsel %vm1607, %v1554, %v1556
      %v1611 = vsel %vm1607, %v1556, %v1558
      %v1612 = vsel %vm1607, %v1558, %v1560
      %v1613 = vsel %vm1607, %v1560, %v1562
      %v1614 = vsel %vm1607, %v1562, %v1564
      %v1615 = vsel %vm1607, %v1564, %v1566
      %v1616 = vsel %vm1607, %v1566, %v1568
      %v1617 = vsel %vm1607, %v1568, %v1570
      %v1618 = vsel %vm1607, %v1570, %v1572
      %v1619 = vsel %vm1607, %v1572, %v1574
      %v1620 = vsel %vm1607, %v1574, %v1576
      %v1621 = vsel %vm1607, %v1576, %v1578
      %v1622 = vsel %vm1607, %v1578, %v1580
      %v1623 = vsel %vm1607, %v1580, %v1582
      %v1624 = vsel %vm1607, %v1582, %v1584
      %v1625 = vsel %vm1607, %v1584, %v1586
      %v1626 = vsel %vm1607, %v1586, %v1588
      %v1627 = vsel %vm1607, %v1588, %v1590
      %v1628 = vsel %vm1607, %v1590, %v1592
      %v1629 = vsel %vm1607, %v1592, %v1594
      %v1630 = vsel %vm1607, %v1594, %v1596
      %v1631 = vsel %vm1607, %v1596, %v1598
      %v1632 = vsel %vm1607, %v1598, %v1600
      %v1633 = vsel %vm1607, %v1600, %v1602
      %v1634 = vsel %vm1607, %v1602, %v1604
      %v1635 = vsel %vm1607, %v1604, %v1606
      %v1664 = vpack.c.bf16 %v1608, %v1608
      %v1665 = vpack.c.bf16 %v1609, %v1609
      %v1666 = vpack.c.bf16 %v1610, %v1610
      %v1667 = vpack.c.bf16 %v1611, %v1611
      %v1668 = vpack.c.bf16 %v1612, %v1612
      %v1669 = vpack.c.bf16 %v1613, %v1613
      %v1670 = vpack.c.bf16 %v1614, %v1614
      %v1671 = vpack.c.bf16 %v1615, %v1615
      %v1672 = vpack.c.bf16 %v1616, %v1616
      %v1673 = vpack.c.bf16 %v1617, %v1617
      %v1674 = vpack.c.bf16 %v1618, %v1618
      %v1675 = vpack.c.bf16 %v1619, %v1619
      %v1676 = vpack.c.bf16 %v1620, %v1620
      %v1677 = vpack.c.bf16 %v1621, %v1621
      %v1678 = vpack.c.bf16 %v1622, %v1622
      %v1679 = vpack.c.bf16 %v1623, %v1623
      %v1680 = vpack.c.bf16 %v1624, %v1624
      %v1681 = vpack.c.bf16 %v1625, %v1625
      %v1682 = vpack.c.bf16 %v1626, %v1626
      %v1683 = vpack.c.bf16 %v1627, %v1627
      %v1684 = vpack.c.bf16 %v1628, %v1628
      %v1685 = vpack.c.bf16 %v1629, %v1629
      %v1686 = vpack.c.bf16 %v1630, %v1630
      %v1687 = vpack.c.bf16 %v1631, %v1631
      %v1688 = vpack.c.bf16 %v1632, %v1632
      %v1689 = vpack.c.bf16 %v1633, %v1633
      %v1690 = vpack.c.bf16 %v1634, %v1634
      %v1691 = vpack.c.bf16 %v1635, %v1635
      %1725 = vrot.lane.b32.xlu0 %v994, 4
      %v1726 = vpop.permute.xlu0 %1725
      %1727 = vrot.lane.b32.xlu0 %v995, 4
      %v1728 = vpop.permute.xlu0 %1727
      %1729 = vrot.lane.b32.xlu0 %v996, 4
      %v1730 = vpop.permute.xlu0 %1729
      %1731 = vrot.lane.b32.xlu0 %v997, 4
      %v1732 = vpop.permute.xlu0 %1731
      %1733 = vrot.lane.b32.xlu0 %v998, 4
      %v1734 = vpop.permute.xlu0 %1733
      %1735 = vrot.lane.b32.xlu0 %v999, 4
      %v1736 = vpop.permute.xlu0 %1735
      %1737 = vrot.lane.b32.xlu0 %v1000, 4
      %v1738 = vpop.permute.xlu0 %1737
      %1739 = vrot.lane.b32.xlu0 %v1001, 4
      %v1740 = vpop.permute.xlu0 %1739
      %1741 = vrot.lane.b32.xlu0 %v1002, 4
      %v1742 = vpop.permute.xlu0 %1741
      %1743 = vrot.lane.b32.xlu0 %v1003, 4
      %v1744 = vpop.permute.xlu0 %1743
      %1745 = vrot.lane.b32.xlu0 %v1004, 4
      %v1746 = vpop.permute.xlu0 %1745
      %1747 = vrot.lane.b32.xlu0 %v1005, 4
      %v1748 = vpop.permute.xlu0 %1747
      %1749 = vrot.lane.b32.xlu0 %v1006, 4
      %v1750 = vpop.permute.xlu0 %1749
      %1751 = vrot.lane.b32.xlu0 %v1007, 4
      %v1752 = vpop.permute.xlu0 %1751
      %1753 = vrot.lane.b32.xlu0 %v1008, 4
      %v1754 = vpop.permute.xlu0 %1753
      %1755 = vrot.lane.b32.xlu0 %v1009, 4
      %v1756 = vpop.permute.xlu0 %1755
      %1757 = vrot.lane.b32.xlu0 %v1010, 4
      %v1758 = vpop.permute.xlu0 %1757
      %1759 = vrot.lane.b32.xlu0 %v1011, 4
      %v1760 = vpop.permute.xlu0 %1759
      %1761 = vrot.lane.b32.xlu0 %v1012, 4
      %v1762 = vpop.permute.xlu0 %1761
      %1763 = vrot.lane.b32.xlu0 %v1013, 4
      %v1764 = vpop.permute.xlu0 %1763
      %1765 = vrot.lane.b32.xlu0 %v1014, 4
      %v1766 = vpop.permute.xlu0 %1765
      %1767 = vrot.lane.b32.xlu0 %v1015, 4
      %v1768 = vpop.permute.xlu0 %1767
      %1769 = vrot.lane.b32.xlu0 %v1016, 4
      %v1770 = vpop.permute.xlu0 %1769
      %1771 = vrot.lane.b32.xlu0 %v1017, 4
      %v1772 = vpop.permute.xlu0 %1771
      %1773 = vrot.lane.b32.xlu0 %v1018, 4
      %v1774 = vpop.permute.xlu0 %1773
      %1775 = vrot.lane.b32.xlu0 %v1019, 4
      %v1776 = vpop.permute.xlu0 %1775
      %1777 = vrot.lane.b32.xlu0 %v1020, 4
      %v1778 = vpop.permute.xlu0 %1777
      %1779 = vrot.lane.b32.xlu0 %v1021, 4
      %v1780 = vpop.permute.xlu0 %1779
      %1781 = vrot.lane.b32.xlu0 %v1022, 4
      %v1782 = vpop.permute.xlu0 %1781
      %1783 = vrot.lane.b32.xlu0 %v1023, 4
      %v1784 = vpop.permute.xlu0 %1783
      %1785 = vrot.lane.b32.xlu0 %v1024, 4
      %v1786 = vpop.permute.xlu0 %1785
      %1787 = vrot.lane.b32.xlu0 %v1025, 4
      %v1788 = vpop.permute.xlu0 %1787
      %1789 = vrot.lane.b32.xlu0 %v1026, 4
      %v1790 = vpop.permute.xlu0 %1789
      %vm1791 = vcmask 31744
      %v1792 = vsel %vm1791, %v1726, %v1728
      %v1793 = vsel %vm1791, %v1728, %v1730
      %v1794 = vsel %vm1791, %v1730, %v1732
      %v1795 = vsel %vm1791, %v1732, %v1734
      %v1796 = vsel %vm1791, %v1734, %v1736
      %v1797 = vsel %vm1791, %v1736, %v1738
      %v1798 = vsel %vm1791, %v1738, %v1740
      %v1799 = vsel %vm1791, %v1740, %v1742
      %v1800 = vsel %vm1791, %v1742, %v1744
      %v1801 = vsel %vm1791, %v1744, %v1746
      %v1802 = vsel %vm1791, %v1746, %v1748
      %v1803 = vsel %vm1791, %v1748, %v1750
      %v1804 = vsel %vm1791, %v1750, %v1752
      %v1805 = vsel %vm1791, %v1752, %v1754
      %v1806 = vsel %vm1791, %v1754, %v1756
      %v1807 = vsel %vm1791, %v1756, %v1758
      %v1808 = vsel %vm1791, %v1758, %v1760
      %v1809 = vsel %vm1791, %v1760, %v1762
      %v1810 = vsel %vm1791, %v1762, %v1764
      %v1811 = vsel %vm1791, %v1764, %v1766
      %v1812 = vsel %vm1791, %v1766, %v1768
      %v1813 = vsel %vm1791, %v1768, %v1770
      %v1814 = vsel %vm1791, %v1770, %v1772
      %v1815 = vsel %vm1791, %v1772, %v1774
      %v1816 = vsel %vm1791, %v1774, %v1776
      %v1817 = vsel %vm1791, %v1776, %v1778
      %v1818 = vsel %vm1791, %v1778, %v1780
      %v1819 = vsel %vm1791, %v1780, %v1782
      %v1820 = vsel %vm1791, %v1782, %v1784
      %v1821 = vsel %vm1791, %v1784, %v1786
      %v1822 = vsel %vm1791, %v1786, %v1788
      %v1823 = vsel %vm1791, %v1788, %v1790
      %v1856 = vpack.c.bf16 %v1792, %v1792
      %v1857 = vpack.c.bf16 %v1793, %v1793
      %v1858 = vpack.c.bf16 %v1794, %v1794
      %v1859 = vpack.c.bf16 %v1795, %v1795
      %v1860 = vpack.c.bf16 %v1796, %v1796
      %v1861 = vpack.c.bf16 %v1797, %v1797
      %v1862 = vpack.c.bf16 %v1798, %v1798
      %v1863 = vpack.c.bf16 %v1799, %v1799
      %v1864 = vpack.c.bf16 %v1800, %v1800
      %v1865 = vpack.c.bf16 %v1801, %v1801
      %v1866 = vpack.c.bf16 %v1802, %v1802
      %v1867 = vpack.c.bf16 %v1803, %v1803
      %v1868 = vpack.c.bf16 %v1804, %v1804
      %v1869 = vpack.c.bf16 %v1805, %v1805
      %v1870 = vpack.c.bf16 %v1806, %v1806
      %v1871 = vpack.c.bf16 %v1807, %v1807
      %v1872 = vpack.c.bf16 %v1808, %v1808
      %v1873 = vpack.c.bf16 %v1809, %v1809
      %v1874 = vpack.c.bf16 %v1810, %v1810
      %v1875 = vpack.c.bf16 %v1811, %v1811
      %v1876 = vpack.c.bf16 %v1812, %v1812
      %v1877 = vpack.c.bf16 %v1813, %v1813
      %v1878 = vpack.c.bf16 %v1814, %v1814
      %v1879 = vpack.c.bf16 %v1815, %v1815
      %v1880 = vpack.c.bf16 %v1816, %v1816
      %v1881 = vpack.c.bf16 %v1817, %v1817
      %v1882 = vpack.c.bf16 %v1818, %v1818
      %v1883 = vpack.c.bf16 %v1819, %v1819
      %v1884 = vpack.c.bf16 %v1820, %v1820
      %v1885 = vpack.c.bf16 %v1821, %v1821
      %v1886 = vpack.c.bf16 %v1822, %v1822
      %v1887 = vpack.c.bf16 %v1823, %v1823
      %v1888 = vpack.c.bf16 %v995, %v995
      %v1889 = vpack.c.bf16 %v996, %v996
      %v1890 = vpack.c.bf16 %v997, %v997
      %v1891 = vpack.c.bf16 %v998, %v998
      %v1892 = vpack.c.bf16 %v999, %v999
      %v1893 = vpack.c.bf16 %v1000, %v1000
      %v1894 = vpack.c.bf16 %v1001, %v1001
      %v1895 = vpack.c.bf16 %v1002, %v1002
      %v1896 = vpack.c.bf16 %v1003, %v1003
      %v1897 = vpack.c.bf16 %v1004, %v1004
      %v1898 = vpack.c.bf16 %v1005, %v1005
      %v1899 = vpack.c.bf16 %v1006, %v1006
      %v1900 = vpack.c.bf16 %v1007, %v1007
      %v1901 = vpack.c.bf16 %v1008, %v1008
      %v1902 = vpack.c.bf16 %v1009, %v1009
      %v1903 = vpack.c.bf16 %v1010, %v1010
      %v1904 = vpack.c.bf16 %v1011, %v1011
      %v1905 = vpack.c.bf16 %v1012, %v1012
      %v1906 = vpack.c.bf16 %v1013, %v1013
      %v1907 = vpack.c.bf16 %v1014, %v1014
      %v1908 = vpack.c.bf16 %v1015, %v1015
      %v1909 = vpack.c.bf16 %v1016, %v1016
      %v1910 = vpack.c.bf16 %v1017, %v1017
      %v1911 = vpack.c.bf16 %v1018, %v1018
      %v1912 = vpack.c.bf16 %v1019, %v1019
      %v1913 = vpack.c.bf16 %v1020, %v1020
      %v1914 = vpack.c.bf16 %v1021, %v1021
      %v1915 = vpack.c.bf16 %v1022, %v1022
      %v1916 = vpack.c.bf16 %v1023, %v1023
      %v1917 = vpack.c.bf16 %v1024, %v1024
      %v1918 = vpack.c.bf16 %v1025, %v1025
      %v1919 = vpack.c.bf16 %v1026, %v1026
      %1921 = vrot.lane.b32.xlu0 %v995, 124
      %v1922 = vpop.permute.xlu0 %1921
      %1923 = vrot.lane.b32.xlu0 %v996, 124
      %v1924 = vpop.permute.xlu0 %1923
      %1925 = vrot.lane.b32.xlu0 %v997, 124
      %v1926 = vpop.permute.xlu0 %1925
      %1927 = vrot.lane.b32.xlu0 %v998, 124
      %v1928 = vpop.permute.xlu0 %1927
      %1929 = vrot.lane.b32.xlu0 %v999, 124
      %v1930 = vpop.permute.xlu0 %1929
      %1931 = vrot.lane.b32.xlu0 %v1000, 124
      %v1932 = vpop.permute.xlu0 %1931
      %1933 = vrot.lane.b32.xlu0 %v1001, 124
      %v1934 = vpop.permute.xlu0 %1933
      %1935 = vrot.lane.b32.xlu0 %v1002, 124
      %v1936 = vpop.permute.xlu0 %1935
      %1937 = vrot.lane.b32.xlu0 %v1003, 124
      %v1938 = vpop.permute.xlu0 %1937
      %1939 = vrot.lane.b32.xlu0 %v1004, 124
      %v1940 = vpop.permute.xlu0 %1939
      %1941 = vrot.lane.b32.xlu0 %v1005, 124
      %v1942 = vpop.permute.xlu0 %1941
      %1943 = vrot.lane.b32.xlu0 %v1006, 124
      %v1944 = vpop.permute.xlu0 %1943
      %1945 = vrot.lane.b32.xlu0 %v1007, 124
      %v1946 = vpop.permute.xlu0 %1945
      %1947 = vrot.lane.b32.xlu0 %v1008, 124
      %v1948 = vpop.permute.xlu0 %1947
      %1949 = vrot.lane.b32.xlu0 %v1009, 124
      %v1950 = vpop.permute.xlu0 %1949
      %1951 = vrot.lane.b32.xlu0 %v1010, 124
      %v1952 = vpop.permute.xlu0 %1951
      %1953 = vrot.lane.b32.xlu0 %v1011, 124
      %v1954 = vpop.permute.xlu0 %1953
      %1955 = vrot.lane.b32.xlu0 %v1012, 124
      %v1956 = vpop.permute.xlu0 %1955
      %1957 = vrot.lane.b32.xlu0 %v1013, 124
      %v1958 = vpop.permute.xlu0 %1957
      %1959 = vrot.lane.b32.xlu0 %v1014, 124
      %v1960 = vpop.permute.xlu0 %1959
      %1961 = vrot.lane.b32.xlu0 %v1015, 124
      %v1962 = vpop.permute.xlu0 %1961
      %1963 = vrot.lane.b32.xlu0 %v1016, 124
      %v1964 = vpop.permute.xlu0 %1963
      %1965 = vrot.lane.b32.xlu0 %v1017, 124
      %v1966 = vpop.permute.xlu0 %1965
      %1967 = vrot.lane.b32.xlu0 %v1018, 124
      %v1968 = vpop.permute.xlu0 %1967
      %1969 = vrot.lane.b32.xlu0 %v1019, 124
      %v1970 = vpop.permute.xlu0 %1969
      %1971 = vrot.lane.b32.xlu0 %v1020, 124
      %v1972 = vpop.permute.xlu0 %1971
      %1973 = vrot.lane.b32.xlu0 %v1021, 124
      %v1974 = vpop.permute.xlu0 %1973
      %1975 = vrot.lane.b32.xlu0 %v1022, 124
      %v1976 = vpop.permute.xlu0 %1975
      %1977 = vrot.lane.b32.xlu0 %v1023, 124
      %v1978 = vpop.permute.xlu0 %1977
      %1979 = vrot.lane.b32.xlu0 %v1024, 124
      %v1980 = vpop.permute.xlu0 %1979
      %1981 = vrot.lane.b32.xlu0 %v1025, 124
      %v1982 = vpop.permute.xlu0 %1981
      %1983 = vrot.lane.b32.xlu0 %v1026, 124
      %v1984 = vpop.permute.xlu0 %1983
      %1985 = vrot.lane.b32.xlu0 %v1027, 124
      %v1986 = vpop.permute.xlu0 %1985
      %vm1987 = vcmask 1014784
      %v1988 = vsel %vm1987, %v1922, %v1924
      %v1989 = vsel %vm1987, %v1924, %v1926
      %v1990 = vsel %vm1987, %v1926, %v1928
      %v1991 = vsel %vm1987, %v1928, %v1930
      %v1992 = vsel %vm1987, %v1930, %v1932
      %v1993 = vsel %vm1987, %v1932, %v1934
      %v1994 = vsel %vm1987, %v1934, %v1936
      %v1995 = vsel %vm1987, %v1936, %v1938
      %v1996 = vsel %vm1987, %v1938, %v1940
      %v1997 = vsel %vm1987, %v1940, %v1942
      %v1998 = vsel %vm1987, %v1942, %v1944
      %v1999 = vsel %vm1987, %v1944, %v1946
      %v2000 = vsel %vm1987, %v1946, %v1948
      %v2001 = vsel %vm1987, %v1948, %v1950
      %v2002 = vsel %vm1987, %v1950, %v1952
      %v2003 = vsel %vm1987, %v1952, %v1954
      %v2004 = vsel %vm1987, %v1954, %v1956
      %v2005 = vsel %vm1987, %v1956, %v1958
      %v2006 = vsel %vm1987, %v1958, %v1960
      %v2007 = vsel %vm1987, %v1960, %v1962
      %v2008 = vsel %vm1987, %v1962, %v1964
      %v2009 = vsel %vm1987, %v1964, %v1966
      %v2010 = vsel %vm1987, %v1966, %v1968
      %v2011 = vsel %vm1987, %v1968, %v1970
      %v2012 = vsel %vm1987, %v1970, %v1972
      %v2013 = vsel %vm1987, %v1972, %v1974
      %v2014 = vsel %vm1987, %v1974, %v1976
      %v2015 = vsel %vm1987, %v1976, %v1978
      %v2016 = vsel %vm1987, %v1978, %v1980
      %v2017 = vsel %vm1987, %v1980, %v1982
      %v2018 = vsel %vm1987, %v1982, %v1984
      %v2019 = vsel %vm1987, %v1984, %v1986
      %v2052 = vpack.c.bf16 %v1988, %v1988
      %v2053 = vpack.c.bf16 %v1989, %v1989
      %v2054 = vpack.c.bf16 %v1990, %v1990
      %v2055 = vpack.c.bf16 %v1991, %v1991
      %v2056 = vpack.c.bf16 %v1992, %v1992
      %v2057 = vpack.c.bf16 %v1993, %v1993
      %v2058 = vpack.c.bf16 %v1994, %v1994
      %v2059 = vpack.c.bf16 %v1995, %v1995
      %v2060 = vpack.c.bf16 %v1996, %v1996
      %v2061 = vpack.c.bf16 %v1997, %v1997
      %v2062 = vpack.c.bf16 %v1998, %v1998
      %v2063 = vpack.c.bf16 %v1999, %v1999
      %v2064 = vpack.c.bf16 %v2000, %v2000
      %v2065 = vpack.c.bf16 %v2001, %v2001
      %v2066 = vpack.c.bf16 %v2002, %v2002
      %v2067 = vpack.c.bf16 %v2003, %v2003
      %v2068 = vpack.c.bf16 %v2004, %v2004
      %v2069 = vpack.c.bf16 %v2005, %v2005
      %v2070 = vpack.c.bf16 %v2006, %v2006
      %v2071 = vpack.c.bf16 %v2007, %v2007
      %v2072 = vpack.c.bf16 %v2008, %v2008
      %v2073 = vpack.c.bf16 %v2009, %v2009
      %v2074 = vpack.c.bf16 %v2010, %v2010
      %v2075 = vpack.c.bf16 %v2011, %v2011
      %v2076 = vpack.c.bf16 %v2012, %v2012
      %v2077 = vpack.c.bf16 %v2013, %v2013
      %v2078 = vpack.c.bf16 %v2014, %v2014
      %v2079 = vpack.c.bf16 %v2015, %v2015
      %v2080 = vpack.c.bf16 %v2016, %v2016
      %v2081 = vpack.c.bf16 %v2017, %v2017
      %v2082 = vpack.c.bf16 %v2018, %v2018
      %v2083 = vpack.c.bf16 %v2019, %v2019
      %v2108 = vrot.slane %v1188, 4
      %v2109 = vrot.slane %v1189, 4
      %v2110 = vrot.slane %v1190, 4
      %v2111 = vrot.slane %v1191, 4
      %v2112 = vrot.slane %v1192, 4
      %v2113 = vrot.slane %v1193, 4
      %v2114 = vrot.slane %v1194, 4
      %v2115 = vrot.slane %v1195, 4
      %v2116 = vrot.slane %v1196, 4
      %v2117 = vrot.slane %v1197, 4
      %v2118 = vrot.slane %v1198, 4
      %v2119 = vrot.slane %v1199, 4
      %v2120 = vrot.slane %v1200, 4
      %v2121 = vrot.slane %v1201, 4
      %v2122 = vrot.slane %v1202, 4
      %v2123 = vrot.slane %v1203, 4
      %v2124 = vrot.slane %v1204, 4
      %v2125 = vrot.slane %v1205, 4
      %v2126 = vrot.slane %v1206, 4
      %v2127 = vrot.slane %v1207, 4
      %v2128 = vrot.slane %v1208, 4
      %v2129 = vrot.slane %v1209, 4
      %v2130 = vrot.slane %v1210, 4
      %v2131 = vrot.slane %v1211, 4
      %v2156 = vrot.slane %v1163, 4
      %v2157 = vrot.slane %v1164, 4
      %v2158 = vrot.slane %v1165, 4
      %v2159 = vrot.slane %v1166, 4
      %v2160 = vrot.slane %v1167, 4
      %v2161 = vrot.slane %v1168, 4
      %v2162 = vrot.slane %v1169, 4
      %v2163 = vrot.slane %v1170, 4
      %v2164 = vrot.slane %v1171, 4
      %v2165 = vrot.slane %v1172, 4
      %v2166 = vrot.slane %v1173, 4
      %v2167 = vrot.slane %v1174, 4
      %v2168 = vrot.slane %v1175, 4
      %v2169 = vrot.slane %v1176, 4
      %v2170 = vrot.slane %v1177, 4
      %v2171 = vrot.slane %v1178, 4
      %v2172 = vrot.slane %v1179, 4
      %v2173 = vrot.slane %v1180, 4
      %v2174 = vrot.slane %v1181, 4
      %v2175 = vrot.slane %v1182, 4
      %v2176 = vrot.slane %v1183, 4
      %v2177 = vrot.slane %v1184, 4
      %v2178 = vrot.slane %v1185, 4
      %v2179 = vrot.slane %v1186, 4
      %v2204 = vrot.slane %v1323, 4
      %v2205 = vrot.slane %v1324, 4
      %v2206 = vrot.slane %v1325, 4
      %v2207 = vrot.slane %v1326, 4
      %v2208 = vrot.slane %v1327, 4
      %v2209 = vrot.slane %v1328, 4
      %v2210 = vrot.slane %v1329, 4
      %v2211 = vrot.slane %v1330, 4
      %v2212 = vrot.slane %v1331, 4
      %v2213 = vrot.slane %v1332, 4
      %v2214 = vrot.slane %v1333, 4
      %v2215 = vrot.slane %v1334, 4
      %v2216 = vrot.slane %v1335, 4
      %v2217 = vrot.slane %v1336, 4
      %v2218 = vrot.slane %v1337, 4
      %v2219 = vrot.slane %v1338, 4
      %v2220 = vrot.slane %v1339, 4
      %v2221 = vrot.slane %v1340, 4
      %v2222 = vrot.slane %v1341, 4
      %v2223 = vrot.slane %v1342, 4
      %v2224 = vrot.slane %v1343, 4
      %v2225 = vrot.slane %v1344, 4
      %v2226 = vrot.slane %v1345, 4
      %v2227 = vrot.slane %v1346, 4
      %v2230 = vrot.slane %v1212, 4
      %v2231 = vrot.slane %v1213, 4
      %v2256 = vrot.slane %v1492, 4
      %v2257 = vrot.slane %v1493, 4
      %v2258 = vrot.slane %v1494, 4
      %v2259 = vrot.slane %v1495, 4
      %v2260 = vrot.slane %v1496, 4
      %v2261 = vrot.slane %v1497, 4
      %v2262 = vrot.slane %v1498, 4
      %v2263 = vrot.slane %v1499, 4
      %v2264 = vrot.slane %v1500, 4
      %v2265 = vrot.slane %v1501, 4
      %v2266 = vrot.slane %v1502, 4
      %v2267 = vrot.slane %v1503, 4
      %v2268 = vrot.slane %v1504, 4
      %v2269 = vrot.slane %v1505, 4
      %v2270 = vrot.slane %v1506, 4
      %v2271 = vrot.slane %v1507, 4
      %v2272 = vrot.slane %v1508, 4
      %v2273 = vrot.slane %v1509, 4
      %v2274 = vrot.slane %v1510, 4
      %v2275 = vrot.slane %v1511, 4
      %v2276 = vrot.slane %v1512, 4
      %v2277 = vrot.slane %v1513, 4
      %v2278 = vrot.slane %v1514, 4
      %v2279 = vrot.slane %v1515, 4
      %v2304 = vrot.slane %v1664, 4
      %v2305 = vrot.slane %v1665, 4
      %v2306 = vrot.slane %v1666, 4
      %v2307 = vrot.slane %v1667, 4
      %v2308 = vrot.slane %v1668, 4
      %v2309 = vrot.slane %v1669, 4
      %v2310 = vrot.slane %v1670, 4
      %v2311 = vrot.slane %v1671, 4
      %v2312 = vrot.slane %v1672, 4
      %v2313 = vrot.slane %v1673, 4
      %v2314 = vrot.slane %v1674, 4
      %v2315 = vrot.slane %v1675, 4
      %v2316 = vrot.slane %v1676, 4
      %v2317 = vrot.slane %v1677, 4
      %v2318 = vrot.slane %v1678, 4
      %v2319 = vrot.slane %v1679, 4
      %v2320 = vrot.slane %v1680, 4
      %v2321 = vrot.slane %v1681, 4
      %v2322 = vrot.slane %v1682, 4
      %v2323 = vrot.slane %v1683, 4
      %v2324 = vrot.slane %v1684, 4
      %v2325 = vrot.slane %v1685, 4
      %v2326 = vrot.slane %v1686, 4
      %v2327 = vrot.slane %v1687, 4
      %v2352 = vrot.slane %v1522, 4
      %v2353 = vrot.slane %v1523, 4
      %v2354 = vrot.slane %v1524, 4
      %v2355 = vrot.slane %v1525, 4
      %v2356 = vrot.slane %v1526, 4
      %v2357 = vrot.slane %v1527, 4
      %v2358 = vrot.slane %v1528, 4
      %v2359 = vrot.slane %v1529, 4
      %v2360 = vrot.slane %v1530, 4
      %v2361 = vrot.slane %v1531, 4
      %v2362 = vrot.slane %v1532, 4
      %v2363 = vrot.slane %v1533, 4
      %v2364 = vrot.slane %v1534, 4
      %v2365 = vrot.slane %v1535, 4
      %v2366 = vrot.slane %v1536, 4
      %v2367 = vrot.slane %v1537, 4
      %v2368 = vrot.slane %v1538, 4
      %v2369 = vrot.slane %v1539, 4
      %v2370 = vrot.slane %v1540, 4
      %v2371 = vrot.slane %v1541, 4
      %v2372 = vrot.slane %v1542, 4
      %v2373 = vrot.slane %v1543, 4
      %v2374 = vrot.slane %v1544, 4
      %v2375 = vrot.slane %v1545, 4
      %v2380 = vrot.slane %v1516, 4
      %v2381 = vrot.slane %v1517, 4
      %v2382 = vrot.slane %v1518, 4
      %v2383 = vrot.slane %v1519, 4
      %vm2384 = vcmask 1043456
      %v2387 = vsel %vm2384, %v1162, %v2108
      %v2391 = vsel %vm2384, %v1163, %v2109
      %v2395 = vsel %vm2384, %v1164, %v2110
      %v2399 = vsel %vm2384, %v1165, %v2111
      %v2403 = vsel %vm2384, %v1166, %v2112
      %v2407 = vsel %vm2384, %v1167, %v2113
      %v2411 = vsel %vm2384, %v1168, %v2114
      %v2415 = vsel %vm2384, %v1169, %v2115
      %v2419 = vsel %vm2384, %v1170, %v2116
      %v2423 = vsel %vm2384, %v1171, %v2117
      %v2427 = vsel %vm2384, %v1172, %v2118
      %v2431 = vsel %vm2384, %v1173, %v2119
      %v2435 = vsel %vm2384, %v1174, %v2120
      %v2439 = vsel %vm2384, %v1175, %v2121
      %v2443 = vsel %vm2384, %v1176, %v2122
      %v2447 = vsel %vm2384, %v1177, %v2123
      %v2451 = vsel %vm2384, %v1178, %v2124
      %v2455 = vsel %vm2384, %v1179, %v2125
      %v2459 = vsel %vm2384, %v1180, %v2126
      %v2463 = vsel %vm2384, %v1181, %v2127
      %v2467 = vsel %vm2384, %v1182, %v2128
      %v2471 = vsel %vm2384, %v1183, %v2129
      %v2475 = vsel %vm2384, %v1184, %v2130
      %v2479 = vsel %vm2384, %v1185, %v2131
      %v2483 = vsel %vm2384, %v1322, %v2156
      %v2487 = vsel %vm2384, %v1323, %v2157
      %v2491 = vsel %vm2384, %v1324, %v2158
      %v2495 = vsel %vm2384, %v1325, %v2159
      %v2499 = vsel %vm2384, %v1326, %v2160
      %v2503 = vsel %vm2384, %v1327, %v2161
      %v2507 = vsel %vm2384, %v1328, %v2162
      %v2511 = vsel %vm2384, %v1329, %v2163
      %v2515 = vsel %vm2384, %v1330, %v2164
      %v2519 = vsel %vm2384, %v1331, %v2165
      %v2523 = vsel %vm2384, %v1332, %v2166
      %v2527 = vsel %vm2384, %v1333, %v2167
      %v2531 = vsel %vm2384, %v1334, %v2168
      %v2535 = vsel %vm2384, %v1335, %v2169
      %v2539 = vsel %vm2384, %v1336, %v2170
      %v2543 = vsel %vm2384, %v1337, %v2171
      %v2547 = vsel %vm2384, %v1338, %v2172
      %v2551 = vsel %vm2384, %v1339, %v2173
      %v2555 = vsel %vm2384, %v1340, %v2174
      %v2559 = vsel %vm2384, %v1341, %v2175
      %v2563 = vsel %vm2384, %v1342, %v2176
      %v2567 = vsel %vm2384, %v1343, %v2177
      %v2571 = vsel %vm2384, %v1344, %v2178
      %v2575 = vsel %vm2384, %v1345, %v2179
      %v2579 = vsel %vm2384, %v1189, %v2204
      %v2583 = vsel %vm2384, %v1190, %v2205
      %v2587 = vsel %vm2384, %v1191, %v2206
      %v2591 = vsel %vm2384, %v1192, %v2207
      %v2595 = vsel %vm2384, %v1193, %v2208
      %v2599 = vsel %vm2384, %v1194, %v2209
      %v2603 = vsel %vm2384, %v1195, %v2210
      %v2607 = vsel %vm2384, %v1196, %v2211
      %v2611 = vsel %vm2384, %v1197, %v2212
      %v2615 = vsel %vm2384, %v1198, %v2213
      %v2619 = vsel %vm2384, %v1199, %v2214
      %v2623 = vsel %vm2384, %v1200, %v2215
      %v2627 = vsel %vm2384, %v1201, %v2216
      %v2631 = vsel %vm2384, %v1202, %v2217
      %v2635 = vsel %vm2384, %v1203, %v2218
      %v2639 = vsel %vm2384, %v1204, %v2219
      %v2643 = vsel %vm2384, %v1205, %v2220
      %v2647 = vsel %vm2384, %v1206, %v2221
      %v2651 = vsel %vm2384, %v1207, %v2222
      %v2655 = vsel %vm2384, %v1208, %v2223
      %v2659 = vsel %vm2384, %v1209, %v2224
      %v2663 = vsel %vm2384, %v1210, %v2225
      %v2667 = vsel %vm2384, %v1211, %v2226
      %v2671 = vsel %vm2384, %v1212, %v2227
      %v2675 = vsel %vm2384, %v1186, %v2230
      %v2679 = vsel %vm2384, %v1187, %v2231
      %v2682 = vsel %vm2384, %v1324, %v2256
      %v2685 = vsel %vm2384, %v1325, %v2257
      %v2688 = vsel %vm2384, %v1326, %v2258
      %v2691 = vsel %vm2384, %v1327, %v2259
      %v2694 = vsel %vm2384, %v1328, %v2260
      %v2697 = vsel %vm2384, %v1329, %v2261
      %v2700 = vsel %vm2384, %v1330, %v2262
      %v2703 = vsel %vm2384, %v1331, %v2263
      %v2706 = vsel %vm2384, %v1332, %v2264
      %v2709 = vsel %vm2384, %v1333, %v2265
      %v2712 = vsel %vm2384, %v1334, %v2266
      %v2715 = vsel %vm2384, %v1335, %v2267
      %v2718 = vsel %vm2384, %v1336, %v2268
      %v2721 = vsel %vm2384, %v1337, %v2269
      %v2724 = vsel %vm2384, %v1338, %v2270
      %v2727 = vsel %vm2384, %v1339, %v2271
      %v2730 = vsel %vm2384, %v1340, %v2272
      %v2733 = vsel %vm2384, %v1341, %v2273
      %v2736 = vsel %vm2384, %v1342, %v2274
      %v2739 = vsel %vm2384, %v1343, %v2275
      %v2742 = vsel %vm2384, %v1344, %v2276
      %v2745 = vsel %vm2384, %v1345, %v2277
      %v2749 = vsel %vm2384, %v1346, %v2278
      %v2753 = vsel %vm2384, %v1347, %v2279
      %v2757 = vsel %vm2384, %v1520, %v2304
      %v2761 = vsel %vm2384, %v1521, %v2305
      %v2765 = vsel %vm2384, %v1522, %v2306
      %v2769 = vsel %vm2384, %v1523, %v2307
      %v2773 = vsel %vm2384, %v1524, %v2308
      %v2777 = vsel %vm2384, %v1525, %v2309
      %v2781 = vsel %vm2384, %v1526, %v2310
      %v2785 = vsel %vm2384, %v1527, %v2311
      %v2789 = vsel %vm2384, %v1528, %v2312
      %v2793 = vsel %vm2384, %v1529, %v2313
      %v2797 = vsel %vm2384, %v1530, %v2314
      %v2801 = vsel %vm2384, %v1531, %v2315
      %v2805 = vsel %vm2384, %v1532, %v2316
      %v2809 = vsel %vm2384, %v1533, %v2317
      %v2813 = vsel %vm2384, %v1534, %v2318
      %v2817 = vsel %vm2384, %v1535, %v2319
      %v2821 = vsel %vm2384, %v1536, %v2320
      %v2825 = vsel %vm2384, %v1537, %v2321
      %v2829 = vsel %vm2384, %v1538, %v2322
      %v2833 = vsel %vm2384, %v1539, %v2323
      %v2837 = vsel %vm2384, %v1540, %v2324
      %v2841 = vsel %vm2384, %v1541, %v2325
      %v2845 = vsel %vm2384, %v1542, %v2326
      %v2849 = vsel %vm2384, %v1543, %v2327
      %v2853 = vsel %vm2384, %v1494, %v2352
      %v2857 = vsel %vm2384, %v1495, %v2353
      %v2861 = vsel %vm2384, %v1496, %v2354
      %v2865 = vsel %vm2384, %v1497, %v2355
      %v2869 = vsel %vm2384, %v1498, %v2356
      %v2873 = vsel %vm2384, %v1499, %v2357
      %v2877 = vsel %vm2384, %v1500, %v2358
      %v2881 = vsel %vm2384, %v1501, %v2359
      %v2885 = vsel %vm2384, %v1502, %v2360
      %v2889 = vsel %vm2384, %v1503, %v2361
      %v2893 = vsel %vm2384, %v1504, %v2362
      %v2897 = vsel %vm2384, %v1505, %v2363
      %v2901 = vsel %vm2384, %v1506, %v2364
      %v2905 = vsel %vm2384, %v1507, %v2365
      %v2909 = vsel %vm2384, %v1508, %v2366
      %v2913 = vsel %vm2384, %v1509, %v2367
      %v2917 = vsel %vm2384, %v1510, %v2368
      %v2921 = vsel %vm2384, %v1511, %v2369
      %v2925 = vsel %vm2384, %v1512, %v2370
      %v2929 = vsel %vm2384, %v1513, %v2371
      %v2933 = vsel %vm2384, %v1514, %v2372
      %v2937 = vsel %vm2384, %v1515, %v2373
      %v2941 = vsel %vm2384, %v1516, %v2374
      %v2945 = vsel %vm2384, %v1517, %v2375
      %v2948 = vsel %vm2384, %v1666, %v2260
      %v2951 = vsel %vm2384, %v1667, %v2261
      %v2954 = vsel %vm2384, %v1668, %v2262
      %v2957 = vsel %vm2384, %v1669, %v2263
      %v2960 = vsel %vm2384, %v1670, %v2264
      %v2963 = vsel %vm2384, %v1671, %v2265
      %v2966 = vsel %vm2384, %v1672, %v2266
      %v2969 = vsel %vm2384, %v1673, %v2267
      %v2972 = vsel %vm2384, %v1674, %v2268
      %v2975 = vsel %vm2384, %v1675, %v2269
      %v2978 = vsel %vm2384, %v1676, %v2270
      %v2981 = vsel %vm2384, %v1677, %v2271
      %v2984 = vsel %vm2384, %v1678, %v2272
      %v2987 = vsel %vm2384, %v1679, %v2273
      %v2990 = vsel %vm2384, %v1680, %v2274
      %v2993 = vsel %vm2384, %v1681, %v2275
      %v2996 = vsel %vm2384, %v1682, %v2276
      %v2999 = vsel %vm2384, %v1683, %v2277
      %v3002 = vsel %vm2384, %v1684, %v2278
      %v3005 = vsel %vm2384, %v1685, %v2279
      %v3009 = vsel %vm2384, %v1686, %v2380
      %v3013 = vsel %vm2384, %v1687, %v2381
      %v3017 = vsel %vm2384, %v1688, %v2382
      %v3021 = vsel %vm2384, %v1689, %v2383
      %v3027 = vrot.slane %v1688, 4
      %v3028 = vrot.slane %v1689, 4
      %v3029 = vrot.slane %v1690, 4
      %v3030 = vrot.slane %v1691, 4
      %v3055 = vrot.slane %v1888, 4
      %v3056 = vrot.slane %v1889, 4
      %v3057 = vrot.slane %v1890, 4
      %v3058 = vrot.slane %v1891, 4
      %v3059 = vrot.slane %v1892, 4
      %v3060 = vrot.slane %v1893, 4
      %v3061 = vrot.slane %v1894, 4
      %v3062 = vrot.slane %v1895, 4
      %v3063 = vrot.slane %v1896, 4
      %v3064 = vrot.slane %v1897, 4
      %v3065 = vrot.slane %v1898, 4
      %v3066 = vrot.slane %v1899, 4
      %v3067 = vrot.slane %v1900, 4
      %v3068 = vrot.slane %v1901, 4
      %v3069 = vrot.slane %v1902, 4
      %v3070 = vrot.slane %v1903, 4
      %v3071 = vrot.slane %v1904, 4
      %v3072 = vrot.slane %v1905, 4
      %v3073 = vrot.slane %v1906, 4
      %v3074 = vrot.slane %v1907, 4
      %v3075 = vrot.slane %v1908, 4
      %v3076 = vrot.slane %v1909, 4
      %v3077 = vrot.slane %v1910, 4
      %v3078 = vrot.slane %v1911, 4
      %v3103 = vrot.slane %v1860, 4
      %v3104 = vrot.slane %v1861, 4
      %v3105 = vrot.slane %v1862, 4
      %v3106 = vrot.slane %v1863, 4
      %v3107 = vrot.slane %v1864, 4
      %v3108 = vrot.slane %v1865, 4
      %v3109 = vrot.slane %v1866, 4
      %v3110 = vrot.slane %v1867, 4
      %v3111 = vrot.slane %v1868, 4
      %v3112 = vrot.slane %v1869, 4
      %v3113 = vrot.slane %v1870, 4
      %v3114 = vrot.slane %v1871, 4
      %v3115 = vrot.slane %v1872, 4
      %v3116 = vrot.slane %v1873, 4
      %v3117 = vrot.slane %v1874, 4
      %v3118 = vrot.slane %v1875, 4
      %v3119 = vrot.slane %v1876, 4
      %v3120 = vrot.slane %v1877, 4
      %v3121 = vrot.slane %v1878, 4
      %v3122 = vrot.slane %v1879, 4
      %v3123 = vrot.slane %v1880, 4
      %v3124 = vrot.slane %v1881, 4
      %v3125 = vrot.slane %v1882, 4
      %v3126 = vrot.slane %v1883, 4
      %v3151 = vrot.slane %v2056, 4
      %v3152 = vrot.slane %v2057, 4
      %v3153 = vrot.slane %v2058, 4
      %v3154 = vrot.slane %v2059, 4
      %v3155 = vrot.slane %v2060, 4
      %v3156 = vrot.slane %v2061, 4
      %v3157 = vrot.slane %v2062, 4
      %v3158 = vrot.slane %v2063, 4
      %v3159 = vrot.slane %v2064, 4
      %v3160 = vrot.slane %v2065, 4
      %v3161 = vrot.slane %v2066, 4
      %v3162 = vrot.slane %v2067, 4
      %v3163 = vrot.slane %v2068, 4
      %v3164 = vrot.slane %v2069, 4
      %v3165 = vrot.slane %v2070, 4
      %v3166 = vrot.slane %v2071, 4
      %v3167 = vrot.slane %v2072, 4
      %v3168 = vrot.slane %v2073, 4
      %v3169 = vrot.slane %v2074, 4
      %v3170 = vrot.slane %v2075, 4
      %v3171 = vrot.slane %v2076, 4
      %v3172 = vrot.slane %v2077, 4
      %v3173 = vrot.slane %v2078, 4
      %v3174 = vrot.slane %v2079, 4
      %v3183 = vrot.slane %v1912, 4
      %v3184 = vrot.slane %v1913, 4
      %v3185 = vrot.slane %v1914, 4
      %v3186 = vrot.slane %v1915, 4
      %v3187 = vrot.slane %v1916, 4
      %v3188 = vrot.slane %v1917, 4
      %v3189 = vrot.slane %v1918, 4
      %v3190 = vrot.slane %v1919, 4
      %v3193 = vsel %vm2384, %v1544, %v3027
      %v3197 = vsel %vm2384, %v1545, %v3028
      %v3201 = vsel %vm2384, %v1546, %v3029
      %v3205 = vsel %vm2384, %v1547, %v3030
      %v3209 = vsel %vm2384, %v1856, %v3055
      %v3213 = vsel %vm2384, %v1857, %v3056
      %v3217 = vsel %vm2384, %v1858, %v3057
      %v3221 = vsel %vm2384, %v1859, %v3058
      %v3225 = vsel %vm2384, %v1860, %v3059
      %v3229 = vsel %vm2384, %v1861, %v3060
      %v3233 = vsel %vm2384, %v1862, %v3061
      %v3237 = vsel %vm2384, %v1863, %v3062
      %v3241 = vsel %vm2384, %v1864, %v3063
      %v3245 = vsel %vm2384, %v1865, %v3064
      %v3249 = vsel %vm2384, %v1866, %v3065
      %v3253 = vsel %vm2384, %v1867, %v3066
      %v3257 = vsel %vm2384, %v1868, %v3067
      %v3261 = vsel %vm2384, %v1869, %v3068
      %v3265 = vsel %vm2384, %v1870, %v3069
      %v3269 = vsel %vm2384, %v1871, %v3070
      %v3273 = vsel %vm2384, %v1872, %v3071
      %v3277 = vsel %vm2384, %v1873, %v3072
      %v3281 = vsel %vm2384, %v1874, %v3073
      %v3285 = vsel %vm2384, %v1875, %v3074
      %v3289 = vsel %vm2384, %v1876, %v3075
      %v3293 = vsel %vm2384, %v1877, %v3076
      %v3297 = vsel %vm2384, %v1878, %v3077
      %v3301 = vsel %vm2384, %v1879, %v3078
      %v3305 = vsel %vm2384, %v2052, %v3103
      %v3309 = vsel %vm2384, %v2053, %v3104
      %v3313 = vsel %vm2384, %v2054, %v3105
      %v3317 = vsel %vm2384, %v2055, %v3106
      %v3321 = vsel %vm2384, %v2056, %v3107
      %v3325 = vsel %vm2384, %v2057, %v3108
      %v3329 = vsel %vm2384, %v2058, %v3109
      %v3333 = vsel %vm2384, %v2059, %v3110
      %v3337 = vsel %vm2384, %v2060, %v3111
      %v3341 = vsel %vm2384, %v2061, %v3112
      %v3345 = vsel %vm2384, %v2062, %v3113
      %v3349 = vsel %vm2384, %v2063, %v3114
      %v3353 = vsel %vm2384, %v2064, %v3115
      %v3357 = vsel %vm2384, %v2065, %v3116
      %v3361 = vsel %vm2384, %v2066, %v3117
      %v3365 = vsel %vm2384, %v2067, %v3118
      %v3369 = vsel %vm2384, %v2068, %v3119
      %v3373 = vsel %vm2384, %v2069, %v3120
      %v3377 = vsel %vm2384, %v2070, %v3121
      %v3381 = vsel %vm2384, %v2071, %v3122
      %v3385 = vsel %vm2384, %v2072, %v3123
      %v3389 = vsel %vm2384, %v2073, %v3124
      %v3393 = vsel %vm2384, %v2074, %v3125
      %v3397 = vsel %vm2384, %v2075, %v3126
      %v3401 = vsel %vm2384, %v1892, %v3151
      %v3405 = vsel %vm2384, %v1893, %v3152
      %v3409 = vsel %vm2384, %v1894, %v3153
      %v3413 = vsel %vm2384, %v1895, %v3154
      %v3417 = vsel %vm2384, %v1896, %v3155
      %v3421 = vsel %vm2384, %v1897, %v3156
      %v3425 = vsel %vm2384, %v1898, %v3157
      %v3429 = vsel %vm2384, %v1899, %v3158
      %v3433 = vsel %vm2384, %v1900, %v3159
      %v3437 = vsel %vm2384, %v1901, %v3160
      %v3441 = vsel %vm2384, %v1902, %v3161
      %v3445 = vsel %vm2384, %v1903, %v3162
      %v3449 = vsel %vm2384, %v1904, %v3163
      %v3453 = vsel %vm2384, %v1905, %v3164
      %v3457 = vsel %vm2384, %v1906, %v3165
      %v3461 = vsel %vm2384, %v1907, %v3166
      %v3465 = vsel %vm2384, %v1908, %v3167
      %v3469 = vsel %vm2384, %v1909, %v3168
      %v3473 = vsel %vm2384, %v1910, %v3169
      %v3477 = vsel %vm2384, %v1911, %v3170
      %v3481 = vsel %vm2384, %v1912, %v3171
      %v3485 = vsel %vm2384, %v1913, %v3172
      %v3489 = vsel %vm2384, %v1914, %v3173
      %v3493 = vsel %vm2384, %v1915, %v3174
      %v3497 = vsel %vm2384, %v1880, %v3183
      %v3501 = vsel %vm2384, %v1881, %v3184
      %v3505 = vsel %vm2384, %v1882, %v3185
      %v3509 = vsel %vm2384, %v1883, %v3186
      %v3513 = vsel %vm2384, %v1884, %v3187
      %v3517 = vsel %vm2384, %v1885, %v3188
      %v3521 = vsel %vm2384, %v1886, %v3189
      %v3525 = vsel %vm2384, %v1887, %v3190
      %v3527 = vld [vmem:[%s4] sm:$0xff]
      %v3528 = vld [vmem:[%s5] sm:$0xff]
      %3530 = vset.pattern.permute.xlu0 0
      %3531 = vperm.xlu0 %3530, %v3528
      %v3532 = vpop.permute.xlu0 %3531
      %v3535 = vunpack.c.l.b16 %v3527
      %v3536 = vunpack.c.h.b16 %v3527
      %v3537 = vpack.c.b16 %v3535, %v3535
      %v3538 = vpack.c.b16 %v3536, %v3536
      %vm3540 = vcmask 719872
      %v3542 = vsel %vm3540, %v3538, 0
      %v3544 = vsel %vm2384, %v2060, 0
      %v3546 = vsel %vm2384, %v2061, 0
      %v3548 = vsel %vm2384, %v2062, 0
      %v3550 = vsel %vm2384, %v2063, 0
      %v3552 = vsel %vm2384, %v2064, 0
      %v3554 = vsel %vm2384, %v2065, 0
      %v3556 = vsel %vm2384, %v2066, 0
      %v3558 = vsel %vm2384, %v2067, 0
      %v3560 = vsel %vm2384, %v2068, 0
      %v3562 = vsel %vm2384, %v2069, 0
      %v3564 = vsel %vm2384, %v2070, 0
      %v3566 = vsel %vm2384, %v2071, 0
      %v3568 = vsel %vm2384, %v2072, 0
      %v3570 = vsel %vm2384, %v2073, 0
      %v3572 = vsel %vm2384, %v2074, 0
      %v3574 = vsel %vm2384, %v2075, 0
      %v3577 = vsel %vm2384, %v2076, 0
      %v3580 = vsel %vm2384, %v2077, 0
      %v3583 = vsel %vm2384, %v2078, 0
      %v3586 = vsel %vm2384, %v2079, 0
      %v3589 = vsel %vm2384, %v2080, 0
      %v3592 = vsel %vm2384, %v2081, 0
      %v3595 = vsel %vm2384, %v2082, 0
      %v3598 = vsel %vm2384, %v2083, 0
      %3600 = vmatprep.subr.bf16.mxu0 %v2951
      %3601 = vmatpush1.bf16.msra.mxu0 %v2948
      %3602 = vmatprep.subr.bf16.mxu0 %v2857
      %3603 = vmatpush1.bf16.msra.mxu0 %v2853
      %3604 = vmatprep.subr.bf16.mxu0 %v2761
      %3605 = vmatpush1.bf16.msra.mxu0 %v2757
      %3606 = vmatprep.subr.bf16.mxu0 %v2685
      %3607 = vmatpush1.bf16.msra.mxu0 %v2682
      %3608 = vmatprep.subr.bf16.mxu0 %v2399
      %3609 = vmatpush1.bf16.msra.mxu0 %v2395
      %3610 = vmatprep.subr.bf16.mxu0 %v2583
      %3611 = vmatpush1.bf16.msra.mxu0 %v2579
      %3612 = vmatprep.subr.bf16.mxu0 %v2487
      %3613 = vmatpush1.bf16.msra.mxu0 %v2483
      %3614 = vmatprep.subr.bf16.mxu0 %v2391
      %3615 = vmatpush1.bf16.msra.mxu0 %v2387
      %3616 = vmatprep.subr.bf16.mxu0 0
      %3617 = vmatpush2.bf16.msra.mxu0 0
      %3618 = vmatprep.subr.bf16.mxu0 0
      %3619 = vmatpush2.bf16.msra.mxu0 0
      %3620 = vmatprep.subr.bf16.mxu0 %v3546
      %3621 = vmatpush2.bf16.msra.mxu0 %v3544
      %3622 = vmatprep.subr.bf16.mxu0 %v3245
      %3623 = vmatpush2.bf16.msra.mxu0 %v3241
      %3624 = vmatprep.subr.bf16.mxu0 %v3405
      %3625 = vmatpush2.bf16.msra.mxu0 %v3401
      %3626 = vmatprep.subr.bf16.mxu0 %v3309
      %3627 = vmatpush2.bf16.msra.mxu0 %v3305
      %3628 = vmatprep.subr.bf16.mxu0 %v3213
      %3629 = vmatpush2.bf16.msra.mxu0 %v3209
      %3630 = vmatprep.subr.bf16.mxu0 %v2777
      %3631 = vmatpush2.bf16.msra.mxu0 %v2773
      %3632 = vmatprep.mubr.bf16.mxu0 %v3542
      %3633 = vmatmul.mubr.bf16.gmra.mxu0 %v3537
      %v3634 = vpop.f32.mrf.mxu0
      %v3635 = vadd.f32 %v3532, %v3634
      %v3636 = vpop.f32.mrf.mxu0
      %v3637 = vadd.f32 %v3532, %v3636
      %v3638 = vpop.f32.mrf.mxu0
      %v3639 = vpop.f32.mrf.mxu0
      %3640 = vdwg.mxu0
      %3641 = vmatprep.subr.bf16.mxu0 %v2957
      %3642 = vmatpush1.bf16.msra.mxu0 %v2954
      %3643 = vmatprep.subr.bf16.mxu0 %v2865
      %3644 = vmatpush1.bf16.msra.mxu0 %v2861
      %3645 = vmatprep.subr.bf16.mxu0 %v2769
      %3646 = vmatpush1.bf16.msra.mxu0 %v2765
      %3647 = vmatprep.subr.bf16.mxu0 %v2691
      %3648 = vmatpush1.bf16.msra.mxu0 %v2688
      %3649 = vmatprep.subr.bf16.mxu0 %v2407
      %3650 = vmatpush1.bf16.msra.mxu0 %v2403
      %3651 = vmatprep.subr.bf16.mxu0 %v2591
      %3652 = vmatpush1.bf16.msra.mxu0 %v2587
      %3653 = vmatprep.subr.bf16.mxu0 %v2495
      %3654 = vmatpush1.bf16.msra.mxu0 %v2491
      %3655 = vmatprep.subr.bf16.mxu0 %v2399
      %3656 = vmatpush1.bf16.msra.mxu0 %v2395
      %3657 = vmatprep.subr.bf16.mxu0 0
      %3658 = vmatpush2.bf16.msra.mxu0 0
      %3659 = vmatprep.subr.bf16.mxu0 0
      %3660 = vmatpush2.bf16.msra.mxu0 0
      %3661 = vmatprep.subr.bf16.mxu0 %v3550
      %3662 = vmatpush2.bf16.msra.mxu0 %v3548
      %3663 = vmatprep.subr.bf16.mxu0 %v3253
      %3664 = vmatpush2.bf16.msra.mxu0 %v3249
      %3665 = vmatprep.subr.bf16.mxu0 %v3413
      %3666 = vmatpush2.bf16.msra.mxu0 %v3409
      %3667 = vmatprep.subr.bf16.mxu0 %v3317
      %3668 = vmatpush2.bf16.msra.mxu0 %v3313
      %3669 = vmatprep.subr.bf16.mxu0 %v3221
      %3670 = vmatpush2.bf16.msra.mxu0 %v3217
      %3671 = vmatprep.subr.bf16.mxu0 %v2785
      %3672 = vmatpush2.bf16.msra.mxu0 %v2781
      %3673 = vmatprep.mubr.bf16.mxu0 %v3542
      %3674 = vmatmul.mubr.bf16.gmra.mxu0 %v3537
      %v3675 = vpop.f32.mrf.mxu0
      %v3676 = vadd.f32 %v3532, %v3675
      %v3677 = vpop.f32.mrf.mxu0
      %v3678 = vadd.f32 %v3532, %v3677
      %v3679 = vpop.f32.mrf.mxu0
      %v3680 = vpop.f32.mrf.mxu0
      %3681 = vdwg.mxu0
      %3682 = vmatprep.subr.bf16.mxu0 %v2963
      %3683 = vmatpush1.bf16.msra.mxu0 %v2960
      %3684 = vmatprep.subr.bf16.mxu0 %v2873
      %3685 = vmatpush1.bf16.msra.mxu0 %v2869
      %3686 = vmatprep.subr.bf16.mxu0 %v2777
      %3687 = vmatpush1.bf16.msra.mxu0 %v2773
      %3688 = vmatprep.subr.bf16.mxu0 %v2697
      %3689 = vmatpush1.bf16.msra.mxu0 %v2694
      %3690 = vmatprep.subr.bf16.mxu0 %v2415
      %3691 = vmatpush1.bf16.msra.mxu0 %v2411
      %3692 = vmatprep.subr.bf16.mxu0 %v2599
      %3693 = vmatpush1.bf16.msra.mxu0 %v2595
      %3694 = vmatprep.subr.bf16.mxu0 %v2503
      %3695 = vmatpush1.bf16.msra.mxu0 %v2499
      %3696 = vmatprep.subr.bf16.mxu0 %v2407
      %3697 = vmatpush1.bf16.msra.mxu0 %v2403
      %3698 = vmatprep.subr.bf16.mxu0 0
      %3699 = vmatpush2.bf16.msra.mxu0 0
      %3700 = vmatprep.subr.bf16.mxu0 0
      %3701 = vmatpush2.bf16.msra.mxu0 0
      %3702 = vmatprep.subr.bf16.mxu0 %v3554
      %3703 = vmatpush2.bf16.msra.mxu0 %v3552
      %3704 = vmatprep.subr.bf16.mxu0 %v3261
      %3705 = vmatpush2.bf16.msra.mxu0 %v3257
      %3706 = vmatprep.subr.bf16.mxu0 %v3421
      %3707 = vmatpush2.bf16.msra.mxu0 %v3417
      %3708 = vmatprep.subr.bf16.mxu0 %v3325
      %3709 = vmatpush2.bf16.msra.mxu0 %v3321
      %3710 = vmatprep.subr.bf16.mxu0 %v3229
      %3711 = vmatpush2.bf16.msra.mxu0 %v3225
      %3712 = vmatprep.subr.bf16.mxu0 %v2793
      %3713 = vmatpush2.bf16.msra.mxu0 %v2789
      %3714 = vmatprep.mubr.bf16.mxu0 %v3542
      %3715 = vmatmul.mubr.bf16.gmra.mxu0 %v3537
      %v3716 = vpop.f32.mrf.mxu0
      %v3717 = vadd.f32 %v3532, %v3716
      %v3718 = vpop.f32.mrf.mxu0
      %v3719 = vadd.f32 %v3532, %v3718
      %v3720 = vpop.f32.mrf.mxu0
      %v3721 = vpop.f32.mrf.mxu0
      %3722 = vdwg.mxu0
      %3723 = vmatprep.subr.bf16.mxu0 %v2969
      %3724 = vmatpush1.bf16.msra.mxu0 %v2966
      %3725 = vmatprep.subr.bf16.mxu0 %v2881
      %3726 = vmatpush1.bf16.msra.mxu0 %v2877
      %3727 = vmatprep.subr.bf16.mxu0 %v2785
      %3728 = vmatpush1.bf16.msra.mxu0 %v2781
      %3729 = vmatprep.subr.bf16.mxu0 %v2703
      %3730 = vmatpush1.bf16.msra.mxu0 %v2700
      %3731 = vmatprep.subr.bf16.mxu0 %v2423
      %3732 = vmatpush1.bf16.msra.mxu0 %v2419
      %3733 = vmatprep.subr.bf16.mxu0 %v2607
      %3734 = vmatpush1.bf16.msra.mxu0 %v2603
      %3735 = vmatprep.subr.bf16.mxu0 %v2511
      %3736 = vmatpush1.bf16.msra.mxu0 %v2507
      %3737 = vmatprep.subr.bf16.mxu0 %v2415
      %3738 = vmatpush1.bf16.msra.mxu0 %v2411
      %3739 = vmatprep.subr.bf16.mxu0 0
      %3740 = vmatpush2.bf16.msra.mxu0 0
      %3741 = vmatprep.subr.bf16.mxu0 0
      %3742 = vmatpush2.bf16.msra.mxu0 0
      %3743 = vmatprep.subr.bf16.mxu0 %v3558
      %3744 = vmatpush2.bf16.msra.mxu0 %v3556
      %3745 = vmatprep.subr.bf16.mxu0 %v3269
      %3746 = vmatpush2.bf16.msra.mxu0 %v3265
      %3747 = vmatprep.subr.bf16.mxu0 %v3429
      %3748 = vmatpush2.bf16.msra.mxu0 %v3425
      %3749 = vmatprep.subr.bf16.mxu0 %v3333
      %3750 = vmatpush2.bf16.msra.mxu0 %v3329
      %3751 = vmatprep.subr.bf16.mxu0 %v3237
      %3752 = vmatpush2.bf16.msra.mxu0 %v3233
      %3753 = vmatprep.subr.bf16.mxu0 %v2801
      %3754 = vmatpush2.bf16.msra.mxu0 %v2797
      %3755 = vmatprep.mubr.bf16.mxu0 %v3542
      %3756 = vmatmul.mubr.bf16.gmra.mxu0 %v3537
      %v3757 = vpop.f32.mrf.mxu0
      %v3758 = vadd.f32 %v3532, %v3757
      %v3759 = vpop.f32.mrf.mxu0
      %v3760 = vadd.f32 %v3532, %v3759
      %v3761 = vpop.f32.mrf.mxu0
      %v3762 = vpop.f32.mrf.mxu0
      %3763 = vdwg.mxu0
      %3764 = vmatprep.subr.bf16.mxu0 %v2975
      %3765 = vmatpush1.bf16.msra.mxu0 %v2972
      %3766 = vmatprep.subr.bf16.mxu0 %v2889
      %3767 = vmatpush1.bf16.msra.mxu0 %v2885
      %3768 = vmatprep.subr.bf16.mxu0 %v2793
      %3769 = vmatpush1.bf16.msra.mxu0 %v2789
      %3770 = vmatprep.subr.bf16.mxu0 %v2709
      %3771 = vmatpush1.bf16.msra.mxu0 %v2706
      %3772 = vmatprep.subr.bf16.mxu0 %v2431
      %3773 = vmatpush1.bf16.msra.mxu0 %v2427
      %3774 = vmatprep.subr.bf16.mxu0 %v2615
      %3775 = vmatpush1.bf16.msra.mxu0 %v2611
      %3776 = vmatprep.subr.bf16.mxu0 %v2519
      %3777 = vmatpush1.bf16.msra.mxu0 %v2515
      %3778 = vmatprep.subr.bf16.mxu0 %v2423
      %3779 = vmatpush1.bf16.msra.mxu0 %v2419
      %3780 = vmatprep.subr.bf16.mxu0 0
      %3781 = vmatpush2.bf16.msra.mxu0 0
      %3782 = vmatprep.subr.bf16.mxu0 0
      %3783 = vmatpush2.bf16.msra.mxu0 0
      %3784 = vmatprep.subr.bf16.mxu0 %v3562
      %3785 = vmatpush2.bf16.msra.mxu0 %v3560
      %3786 = vmatprep.subr.bf16.mxu0 %v3277
      %3787 = vmatpush2.bf16.msra.mxu0 %v3273
      %3788 = vmatprep.subr.bf16.mxu0 %v3437
      %3789 = vmatpush2.bf16.msra.mxu0 %v3433
      %3790 = vmatprep.subr.bf16.mxu0 %v3341
      %3791 = vmatpush2.bf16.msra.mxu0 %v3337
      %3792 = vmatprep.subr.bf16.mxu0 %v3245
      %3793 = vmatpush2.bf16.msra.mxu0 %v3241
      %3794 = vmatprep.subr.bf16.mxu0 %v2809
      %3795 = vmatpush2.bf16.msra.mxu0 %v2805
      %3796 = vmatprep.mubr.bf16.mxu0 %v3542
      %3797 = vmatmul.mubr.bf16.gmra.mxu0 %v3537
      %v3798 = vpop.f32.mrf.mxu0
      %v3799 = vadd.f32 %v3532, %v3798
      %v3800 = vpop.f32.mrf.mxu0
      %v3801 = vadd.f32 %v3532, %v3800
      %v3802 = vpop.f32.mrf.mxu0
      %v3803 = vpop.f32.mrf.mxu0
      %3804 = vdwg.mxu0
      %3805 = vmatprep.subr.bf16.mxu0 %v2981
      %3806 = vmatpush1.bf16.msra.mxu0 %v2978
      %3807 = vmatprep.subr.bf16.mxu0 %v2897
      %3808 = vmatpush1.bf16.msra.mxu0 %v2893
      %3809 = vmatprep.subr.bf16.mxu0 %v2801
      %3810 = vmatpush1.bf16.msra.mxu0 %v2797
      %3811 = vmatprep.subr.bf16.mxu0 %v2715
      %3812 = vmatpush1.bf16.msra.mxu0 %v2712
      %3813 = vmatprep.subr.bf16.mxu0 %v2439
      %3814 = vmatpush1.bf16.msra.mxu0 %v2435
      %3815 = vmatprep.subr.bf16.mxu0 %v2623
      %3816 = vmatpush1.bf16.msra.mxu0 %v2619
      %3817 = vmatprep.subr.bf16.mxu0 %v2527
      %3818 = vmatpush1.bf16.msra.mxu0 %v2523
      %3819 = vmatprep.subr.bf16.mxu0 %v2431
      %3820 = vmatpush1.bf16.msra.mxu0 %v2427
      %3821 = vmatprep.subr.bf16.mxu0 0
      %3822 = vmatpush2.bf16.msra.mxu0 0
      %3823 = vmatprep.subr.bf16.mxu0 0
      %3824 = vmatpush2.bf16.msra.mxu0 0
      %3825 = vmatprep.subr.bf16.mxu0 %v3566
      %3826 = vmatpush2.bf16.msra.mxu0 %v3564
      %3827 = vmatprep.subr.bf16.mxu0 %v3285
      %3828 = vmatpush2.bf16.msra.mxu0 %v3281
      %3829 = vmatprep.subr.bf16.mxu0 %v3445
      %3830 = vmatpush2.bf16.msra.mxu0 %v3441
      %3831 = vmatprep.subr.bf16.mxu0 %v3349
      %3832 = vmatpush2.bf16.msra.mxu0 %v3345
      %3833 = vmatprep.subr.bf16.mxu0 %v3253
      %3834 = vmatpush2.bf16.msra.mxu0 %v3249
      %3835 = vmatprep.subr.bf16.mxu0 %v2817
      %3836 = vmatpush2.bf16.msra.mxu0 %v2813
      %3837 = vmatprep.mubr.bf16.mxu0 %v3542
      %3838 = vmatmul.mubr.bf16.gmra.mxu0 %v3537
      %v3839 = vpop.f32.mrf.mxu0
      %v3840 = vadd.f32 %v3532, %v3839
      %v3841 = vpop.f32.mrf.mxu0
      %v3842 = vadd.f32 %v3532, %v3841
      %v3843 = vpop.f32.mrf.mxu0
      %v3844 = vpop.f32.mrf.mxu0
      %3845 = vdwg.mxu0
      %3846 = vmatprep.subr.bf16.mxu0 %v2987
      %3847 = vmatpush1.bf16.msra.mxu0 %v2984
      %3848 = vmatprep.subr.bf16.mxu0 %v2905
      %3849 = vmatpush1.bf16.msra.mxu0 %v2901
      %3850 = vmatprep.subr.bf16.mxu0 %v2809
      %3851 = vmatpush1.bf16.msra.mxu0 %v2805
      %3852 = vmatprep.subr.bf16.mxu0 %v2721
      %3853 = vmatpush1.bf16.msra.mxu0 %v2718
      %3854 = vmatprep.subr.bf16.mxu0 %v2447
      %3855 = vmatpush1.bf16.msra.mxu0 %v2443
      %3856 = vmatprep.subr.bf16.mxu0 %v2631
      %3857 = vmatpush1.bf16.msra.mxu0 %v2627
      %3858 = vmatprep.subr.bf16.mxu0 %v2535
      %3859 = vmatpush1.bf16.msra.mxu0 %v2531
      %3860 = vmatprep.subr.bf16.mxu0 %v2439
      %3861 = vmatpush1.bf16.msra.mxu0 %v2435
      %3862 = vmatprep.subr.bf16.mxu0 0
      %3863 = vmatpush2.bf16.msra.mxu0 0
      %3864 = vmatprep.subr.bf16.mxu0 0
      %3865 = vmatpush2.bf16.msra.mxu0 0
      %3866 = vmatprep.subr.bf16.mxu0 %v3570
      %3867 = vmatpush2.bf16.msra.mxu0 %v3568
      %3868 = vmatprep.subr.bf16.mxu0 %v3293
      %3869 = vmatpush2.bf16.msra.mxu0 %v3289
      %3870 = vmatprep.subr.bf16.mxu0 %v3453
      %3871 = vmatpush2.bf16.msra.mxu0 %v3449
      %3872 = vmatprep.subr.bf16.mxu0 %v3357
      %3873 = vmatpush2.bf16.msra.mxu0 %v3353
      %3874 = vmatprep.subr.bf16.mxu0 %v3261
      %3875 = vmatpush2.bf16.msra.mxu0 %v3257
      %3876 = vmatprep.subr.bf16.mxu0 %v2825
      %3877 = vmatpush2.bf16.msra.mxu0 %v2821
      %3878 = vmatprep.mubr.bf16.mxu0 %v3542
      %3879 = vmatmul.mubr.bf16.gmra.mxu0 %v3537
      %v3880 = vpop.f32.mrf.mxu0
      %v3881 = vadd.f32 %v3532, %v3880
      %v3882 = vpop.f32.mrf.mxu0
      %v3883 = vadd.f32 %v3532, %v3882
      %v3884 = vpop.f32.mrf.mxu0
      %v3885 = vpop.f32.mrf.mxu0
      %3886 = vdwg.mxu0
      %3887 = vmatprep.subr.bf16.mxu0 %v2993
      %3888 = vmatpush1.bf16.msra.mxu0 %v2990
      %3889 = vmatprep.subr.bf16.mxu0 %v2913
      %3890 = vmatpush1.bf16.msra.mxu0 %v2909
      %3891 = vmatprep.subr.bf16.mxu0 %v2817
      %3892 = vmatpush1.bf16.msra.mxu0 %v2813
      %3893 = vmatprep.subr.bf16.mxu0 %v2727
      %3894 = vmatpush1.bf16.msra.mxu0 %v2724
      %3895 = vmatprep.subr.bf16.mxu0 %v2455
      %3896 = vmatpush1.bf16.msra.mxu0 %v2451
      %3897 = vmatprep.subr.bf16.mxu0 %v2639
      %3898 = vmatpush1.bf16.msra.mxu0 %v2635
      %3899 = vmatprep.subr.bf16.mxu0 %v2543
      %3900 = vmatpush1.bf16.msra.mxu0 %v2539
      %3901 = vmatprep.subr.bf16.mxu0 %v2447
      %3902 = vmatpush1.bf16.msra.mxu0 %v2443
      %3903 = vmatprep.subr.bf16.mxu0 0
      %3904 = vmatpush2.bf16.msra.mxu0 0
      %3905 = vmatprep.subr.bf16.mxu0 0
      %3906 = vmatpush2.bf16.msra.mxu0 0
      %3907 = vmatprep.subr.bf16.mxu0 %v3574
      %3908 = vmatpush2.bf16.msra.mxu0 %v3572
      %3909 = vmatprep.subr.bf16.mxu0 %v3301
      %3910 = vmatpush2.bf16.msra.mxu0 %v3297
      %3911 = vmatprep.subr.bf16.mxu0 %v3461
      %3912 = vmatpush2.bf16.msra.mxu0 %v3457
      %3913 = vmatprep.subr.bf16.mxu0 %v3365
      %3914 = vmatpush2.bf16.msra.mxu0 %v3361
      %3915 = vmatprep.subr.bf16.mxu0 %v3269
      %3916 = vmatpush2.bf16.msra.mxu0 %v3265
      %3917 = vmatprep.subr.bf16.mxu0 %v2833
      %3918 = vmatpush2.bf16.msra.mxu0 %v2829
      %3919 = vmatprep.mubr.bf16.mxu0 %v3542
      %3920 = vmatmul.mubr.bf16.gmra.mxu0 %v3537
      %v3921 = vpop.f32.mrf.mxu0
      %v3922 = vadd.f32 %v3532, %v3921
      %v3923 = vpop.f32.mrf.mxu0
      %v3924 = vadd.f32 %v3532, %v3923
      %v3925 = vpop.f32.mrf.mxu0
      %v3926 = vpop.f32.mrf.mxu0
      %3927 = vdwg.mxu0
      %3928 = vmatprep.subr.bf16.mxu0 %v2999
      %3929 = vmatpush1.bf16.msra.mxu0 %v2996
      %3930 = vmatprep.subr.bf16.mxu0 %v2921
      %3931 = vmatpush1.bf16.msra.mxu0 %v2917
      %3932 = vmatprep.subr.bf16.mxu0 %v2825
      %3933 = vmatpush1.bf16.msra.mxu0 %v2821
      %3934 = vmatprep.subr.bf16.mxu0 %v2733
      %3935 = vmatpush1.bf16.msra.mxu0 %v2730
      %3936 = vmatprep.subr.bf16.mxu0 %v2463
      %3937 = vmatpush1.bf16.msra.mxu0 %v2459
      %3938 = vmatprep.subr.bf16.mxu0 %v2647
      %3939 = vmatpush1.bf16.msra.mxu0 %v2643
      %3940 = vmatprep.subr.bf16.mxu0 %v2551
      %3941 = vmatpush1.bf16.msra.mxu0 %v2547
      %3942 = vmatprep.subr.bf16.mxu0 %v2455
      %3943 = vmatpush1.bf16.msra.mxu0 %v2451
      %3944 = vmatprep.subr.bf16.mxu0 0
      %3945 = vmatpush2.bf16.msra.mxu0 0
      %3946 = vmatprep.subr.bf16.mxu0 0
      %3947 = vmatpush2.bf16.msra.mxu0 0
      %3948 = vmatprep.subr.bf16.mxu0 %v3580
      %3949 = vmatpush2.bf16.msra.mxu0 %v3577
      %3950 = vmatprep.subr.bf16.mxu0 %v3501
      %3951 = vmatpush2.bf16.msra.mxu0 %v3497
      %3952 = vmatprep.subr.bf16.mxu0 %v3469
      %3953 = vmatpush2.bf16.msra.mxu0 %v3465
      %3954 = vmatprep.subr.bf16.mxu0 %v3373
      %3955 = vmatpush2.bf16.msra.mxu0 %v3369
      %3956 = vmatprep.subr.bf16.mxu0 %v3277
      %3957 = vmatpush2.bf16.msra.mxu0 %v3273
      %3958 = vmatprep.subr.bf16.mxu0 %v2841
      %3959 = vmatpush2.bf16.msra.mxu0 %v2837
      %3960 = vmatprep.mubr.bf16.mxu0 %v3542
      %3961 = vmatmul.mubr.bf16.gmra.mxu0 %v3537
      %v3962 = vpop.f32.mrf.mxu0
      %v3963 = vadd.f32 %v3532, %v3962
      %v3964 = vpop.f32.mrf.mxu0
      %v3965 = vadd.f32 %v3532, %v3964
      %v3966 = vpop.f32.mrf.mxu0
      %v3967 = vpop.f32.mrf.mxu0
      %3968 = vdwg.mxu0
      %3969 = vmatprep.subr.bf16.mxu0 %v3005
      %3970 = vmatpush1.bf16.msra.mxu0 %v3002
      %3971 = vmatprep.subr.bf16.mxu0 %v2929
      %3972 = vmatpush1.bf16.msra.mxu0 %v2925
      %3973 = vmatprep.subr.bf16.mxu0 %v2833
      %3974 = vmatpush1.bf16.msra.mxu0 %v2829
      %3975 = vmatprep.subr.bf16.mxu0 %v2739
      %3976 = vmatpush1.bf16.msra.mxu0 %v2736
      %3977 = vmatprep.subr.bf16.mxu0 %v2471
      %3978 = vmatpush1.bf16.msra.mxu0 %v2467
      %3979 = vmatprep.subr.bf16.mxu0 %v2655
      %3980 = vmatpush1.bf16.msra.mxu0 %v2651
      %3981 = vmatprep.subr.bf16.mxu0 %v2559
      %3982 = vmatpush1.bf16.msra.mxu0 %v2555
      %3983 = vmatprep.subr.bf16.mxu0 %v2463
      %3984 = vmatpush1.bf16.msra.mxu0 %v2459
      %3985 = vmatprep.subr.bf16.mxu0 0
      %3986 = vmatpush2.bf16.msra.mxu0 0
      %3987 = vmatprep.subr.bf16.mxu0 0
      %3988 = vmatpush2.bf16.msra.mxu0 0
      %3989 = vmatprep.subr.bf16.mxu0 %v3586
      %3990 = vmatpush2.bf16.msra.mxu0 %v3583
      %3991 = vmatprep.subr.bf16.mxu0 %v3509
      %3992 = vmatpush2.bf16.msra.mxu0 %v3505
      %3993 = vmatprep.subr.bf16.mxu0 %v3477
      %3994 = vmatpush2.bf16.msra.mxu0 %v3473
      %3995 = vmatprep.subr.bf16.mxu0 %v3381
      %3996 = vmatpush2.bf16.msra.mxu0 %v3377
      %3997 = vmatprep.subr.bf16.mxu0 %v3285
      %3998 = vmatpush2.bf16.msra.mxu0 %v3281
      %3999 = vmatprep.subr.bf16.mxu0 %v2849
      %4000 = vmatpush2.bf16.msra.mxu0 %v2845
      %4001 = vmatprep.mubr.bf16.mxu0 %v3542
      %4002 = vmatmul.mubr.bf16.gmra.mxu0 %v3537
      %v4003 = vpop.f32.mrf.mxu0
      %v4004 = vadd.f32 %v3532, %v4003
      %v4005 = vpop.f32.mrf.mxu0
      %v4006 = vadd.f32 %v3532, %v4005
      %v4007 = vpop.f32.mrf.mxu0
      %v4008 = vpop.f32.mrf.mxu0
      %4009 = vdwg.mxu0
      %4010 = vmatprep.subr.bf16.mxu0 %v3013
      %4011 = vmatpush1.bf16.msra.mxu0 %v3009
      %4012 = vmatprep.subr.bf16.mxu0 %v2937
      %4013 = vmatpush1.bf16.msra.mxu0 %v2933
      %4014 = vmatprep.subr.bf16.mxu0 %v2841
      %4015 = vmatpush1.bf16.msra.mxu0 %v2837
      %4016 = vmatprep.subr.bf16.mxu0 %v2745
      %4017 = vmatpush1.bf16.msra.mxu0 %v2742
      %4018 = vmatprep.subr.bf16.mxu0 %v2479
      %4019 = vmatpush1.bf16.msra.mxu0 %v2475
      %4020 = vmatprep.subr.bf16.mxu0 %v2663
      %4021 = vmatpush1.bf16.msra.mxu0 %v2659
      %4022 = vmatprep.subr.bf16.mxu0 %v2567
      %4023 = vmatpush1.bf16.msra.mxu0 %v2563
      %4024 = vmatprep.subr.bf16.mxu0 %v2471
      %4025 = vmatpush1.bf16.msra.mxu0 %v2467
      %4026 = vmatprep.subr.bf16.mxu0 0
      %4027 = vmatpush2.bf16.msra.mxu0 0
      %4028 = vmatprep.subr.bf16.mxu0 0
      %4029 = vmatpush2.bf16.msra.mxu0 0
      %4030 = vmatprep.subr.bf16.mxu0 %v3592
      %4031 = vmatpush2.bf16.msra.mxu0 %v3589
      %4032 = vmatprep.subr.bf16.mxu0 %v3517
      %4033 = vmatpush2.bf16.msra.mxu0 %v3513
      %4034 = vmatprep.subr.bf16.mxu0 %v3485
      %4035 = vmatpush2.bf16.msra.mxu0 %v3481
      %4036 = vmatprep.subr.bf16.mxu0 %v3389
      %4037 = vmatpush2.bf16.msra.mxu0 %v3385
      %4038 = vmatprep.subr.bf16.mxu0 %v3293
      %4039 = vmatpush2.bf16.msra.mxu0 %v3289
      %4040 = vmatprep.subr.bf16.mxu0 %v3197
      %4041 = vmatpush2.bf16.msra.mxu0 %v3193
      %4042 = vmatprep.mubr.bf16.mxu0 %v3542
      %4043 = vmatmul.mubr.bf16.gmra.mxu0 %v3537
      %v4044 = vpop.f32.mrf.mxu0
      %v4045 = vadd.f32 %v3532, %v4044
      %v4046 = vpop.f32.mrf.mxu0
      %v4047 = vadd.f32 %v3532, %v4046
      %v4048 = vpop.f32.mrf.mxu0
      %v4049 = vpop.f32.mrf.mxu0
      %4050 = vdwg.mxu0
      %4051 = vmatprep.subr.bf16.mxu0 %v3021
      %4052 = vmatpush1.bf16.msra.mxu0 %v3017
      %4053 = vmatprep.subr.bf16.mxu0 %v2945
      %4054 = vmatpush1.bf16.msra.mxu0 %v2941
      %4055 = vmatprep.subr.bf16.mxu0 %v2849
      %4056 = vmatpush1.bf16.msra.mxu0 %v2845
      %4057 = vmatprep.subr.bf16.mxu0 %v2753
      %4058 = vmatpush1.bf16.msra.mxu0 %v2749
      %4059 = vmatprep.subr.bf16.mxu0 %v2679
      %4060 = vmatpush1.bf16.msra.mxu0 %v2675
      %4061 = vmatprep.subr.bf16.mxu0 %v2671
      %4062 = vmatpush1.bf16.msra.mxu0 %v2667
      %4063 = vmatprep.subr.bf16.mxu0 %v2575
      %4064 = vmatpush1.bf16.msra.mxu0 %v2571
      %4065 = vmatprep.subr.bf16.mxu0 %v2479
      %4066 = vmatpush1.bf16.msra.mxu0 %v2475
      %4067 = vmatprep.subr.bf16.mxu0 0
      %4068 = vmatpush2.bf16.msra.mxu0 0
      %4069 = vmatprep.subr.bf16.mxu0 0
      %4070 = vmatpush2.bf16.msra.mxu0 0
      %4071 = vmatprep.subr.bf16.mxu0 %v3598
      %4072 = vmatpush2.bf16.msra.mxu0 %v3595
      %4073 = vmatprep.subr.bf16.mxu0 %v3525
      %4074 = vmatpush2.bf16.msra.mxu0 %v3521
      %4075 = vmatprep.subr.bf16.mxu0 %v3493
      %4076 = vmatpush2.bf16.msra.mxu0 %v3489
      %4077 = vmatprep.subr.bf16.mxu0 %v3397
      %4078 = vmatpush2.bf16.msra.mxu0 %v3393
      %4079 = vmatprep.subr.bf16.mxu0 %v3301
      %4080 = vmatpush2.bf16.msra.mxu0 %v3297
      %4081 = vmatprep.subr.bf16.mxu0 %v3205
      %4082 = vmatpush2.bf16.msra.mxu0 %v3201
      %4083 = vmatprep.mubr.bf16.mxu0 %v3542
      %4084 = vmatmul.mubr.bf16.gmra.mxu0 %v3537
      %v4085 = vpop.f32.mrf.mxu0
      %v4086 = vadd.f32 %v3532, %v4085
      %v4087 = vpop.f32.mrf.mxu0
      %v4088 = vadd.f32 %v3532, %v4087
      %v4089 = vpop.f32.mrf.mxu0
      %v4090 = vpop.f32.mrf.mxu0
      %4091 = vdwg.mxu0
      %4092 = vst [vmem:[%s253] sm:$0xff] 0.0
      %4093 = vst [vmem:[%s253 + $0x8] sm:$0xff] 0.0
      %4094 = vst [vmem:[%s253 + $0x10] sm:$0xff] 0.0
      %4095 = vst [vmem:[%s253 + $0x18] sm:$0xff] 0.0
      %4096 = vst [vmem:[%s253 + $0x20] sm:$0xff] 0.0
      %4097 = vst [vmem:[%s253 + $0x28] sm:$0xff] %v3635
      %4098 = vst [vmem:[%s253 + $0x30] sm:$0xff] %v3637
      %4099 = vst [vmem:[%s253 + $0x38] sm:$0xff] %v3676
      %4100 = vst [vmem:[%s253 + $0x40] sm:$0xff] %v3678
      %4101 = vst [vmem:[%s253 + $0x48] sm:$0xff] %v3717
      %4102 = vst [vmem:[%s253 + $0x50] sm:$0xff] %v3719
      %4103 = vst [vmem:[%s253 + $0x58] sm:$0xff] %v3758
      %4104 = vst [vmem:[%s253 + $0x60] sm:$0xff] %v3760
      %4105 = vst [vmem:[%s253 + $0x68] sm:$0xff] %v3799
      %4106 = vst [vmem:[%s253 + $0x70] sm:$0xff] %v3801
      %4107 = vst [vmem:[%s253 + $0x78] sm:$0xff] %v3840
      %4108 = vst [vmem:[%s253 + $0x80] sm:$0xff] %v3842
      %4109 = vst [vmem:[%s253 + $0x88] sm:$0xff] %v3881
      %4110 = vst [vmem:[%s253 + $0x90] sm:$0xff] %v3883
      %4111 = vst [vmem:[%s253 + $0x98] sm:$0xff] %v3922
      %4112 = vst [vmem:[%s253 + $0xa0] sm:$0xff] %v3924
      %4113 = vst [vmem:[%s253 + $0xa8] sm:$0xff] %v3963
      %4114 = vst [vmem:[%s253 + $0xb0] sm:$0xff] %v3965
      %4115 = vst [vmem:[%s253 + $0xb8] sm:$0xff] %v4004
      %4116 = vst [vmem:[%s253 + $0xc0] sm:$0xff] %v4006
      %4117 = vst [vmem:[%s253 + $0xc8] sm:$0xff] %v4045
      %4118 = vst [vmem:[%s253 + $0xd0] sm:$0xff] %v4047
      %4119 = vst [vmem:[%s253 + $0xd8] sm:$0xff] %v4086
      %4120 = vst [vmem:[%s253 + $0xe0] sm:$0xff] %v4088
      %4121 = vst [vmem:[%s253 + $0xe8] sm:$0xff] 0.0
      %4122 = vst [vmem:[%s253 + $0xf0] sm:$0xff] 0.0
      %4123 = vst [vmem:[%s253 + $0xf8] sm:$0xff] 0.0
      %4124 = vst [vmem:[%s253 + $0x100] sm:$0xff] 0.0
      %4125 = vst [vmem:[%s253 + $0x108] sm:$0xff] 0.0
      %p4126 = scmp.lt.s32.totalorder %s17, 1
      %s4127 = scalar_select %p4126, %s17, 1
      %s4128 = smul.addr %s4127, 136
      %s4129 = sadd.s32 102, %s4128
      %s4130 = smul.addr %s4129, 8
      %s4131 = scalar_lea.vmem %s6, %s4130
      // Predicated region
      $region45: #{compressed_d2_block.5} parent=43 // pred_check
        %p4132 = pneg %p166
      $region46: #{compressed_d2_block.5} parent=43 // pred_check_branch
        %4134 = sbr.rel (%p4132) target = $region48
      $region47: #{compressed_d2_block.5} parent=43 // pred_region
        _
      $region48: #{compressed_d2_block.5} parent=43 // pred_fallthru
        _
    $region44: #{compressed_d2_block.5} parent=5 // pred_fallthru
      _
    %p4135 = scmp.le.s32.totalorder 2, %s12
    // Predicated region
    $region49: #{compressed_d2_block.5} parent=5 // pred_check
      %p4136 = pneg %p4135
    $region50: #{compressed_d2_block.5} parent=5 // pred_check_branch
      %4138 = sbr.rel (%p4136) target = $region52
    $region51: #{compressed_d2_block.5} parent=5 // pred_region
      %s4139 = ssub.s32 %s12, 2
      // Predicated region
      $region53: #{compressed_d2_block.5} parent=51 // pred_check
        %p4140 = pneg %p172
      $region54: #{compressed_d2_block.5} parent=51 // pred_check_branch
        %4142 = sbr.rel (%p4140) target = $region56
      $region55: #{compressed_d2_block.5} parent=51 // pred_region
        %p4143 = scmp.lt.s32.totalorder %s18, 1
        %s4144 = scalar_select %p4143, %s18, 1
        %s4145 = smul.addr %s4144, 136
        %s4146 = sadd.s32 102, %s4145
        %s4147 = smul.addr %s4146, 8
        %s4148 = scalar_lea.vmem %s6, %s4147
      $region56: #{compressed_d2_block.5} parent=51 // pred_fallthru
        _
    $region52: #{compressed_d2_block.5} parent=5 // pred_fallthru
      _
  $region6: #{compressed_d2_block.5} parent=0 // loop_footer
    %s16 = sadd.s32 1, %s12
  $region7: #{compressed_d2_block.5} parent=0 // loop_footer_branch
    %11 = sbr.rel target = $region3
  $region8: #{compressed_d2_block.5} parent=0 // loop_exit
    _

</llo_original>
